<compile_context>
chip_gen: v6e
topology: v6e:2x2x1
jax: 0.10.0
libtpu: 0.0.40
codegen_flags: <defaults>
</compile_context>

<pallas_src>
import jax
import jax.numpy as jnp
from jax.experimental import pallas as pl
from jax.experimental.pallas import tpu as pltpu

NDF = 64
N_DISC = 10
N_CONT = 2
C_IN = NDF * 8                    # 512
C_MID = 128
KSP = 4                           # kernel size == spatial size (4x4x4)
K = C_IN * KSP * KSP * KSP        # 32768
N_HEAD = N_DISC + 2 * N_CONT      # 14 real head columns
HEAD_PAD = 128                    # padded to a lane-dense 128-wide output
BN_EPS = 1e-5
LRELU_SLOPE = 0.2


def q_kernel(x_ref, w_ref, gamma_ref, beta_ref, hw_ref, hb_ref,
             out_ref, acc_ref):
    k = pl.program_id(0)

    @pl.when(k == 0)
    def _():
        acc_ref[...] = jnp.zeros_like(acc_ref)

    # Conv3d(512->128, k=4, valid) == (N, K) @ (128, K)^T, accumulated over K
    # tiles.  Both operands are bf16; accumulation is f32.  Contracting dim 1
    # of the weight avoids any HBM-side transpose.
    acc_ref[...] += jax.lax.dot_general(
        x_ref[...], w_ref[...],
        dimension_numbers=(((1,), (1,)), ((), ())),
        preferred_element_type=jnp.float32)

    @pl.when(k == pl.num_programs(0) - 1)
    def _():
        h = acc_ref[...]                                   # (N, 128) f32
        # BatchNorm3d(128), training-mode batch stats (spatial is 1x1x1),
        # folded into a single scale/shift.
        mean = jnp.mean(h, axis=0, keepdims=True)
        var = jnp.mean((h - mean) ** 2, axis=0, keepdims=True)
        scale = gamma_ref[...] * jax.lax.rsqrt(var + BN_EPS)
        shift = beta_ref[...] - mean * scale
        h = h * scale + shift
        # LeakyReLU(0.2)
        h = jnp.where(h >= 0, h, LRELU_SLOPE * h)
        # All three heads fused into one lane-dense padded matmul.
        out_ref[...] = (jnp.dot(h, hw_ref[...],
                                preferred_element_type=jnp.float32)
                        + hb_ref[...])


def prepare_params(params):
    """One-time, outside-the-hot-path weight preparation."""
    # Conv weight kept as (C_out, K) -- NO transpose -- and cast to bf16.
    conv_w = params["conv_w"].reshape(C_MID, K).astype(jnp.bfloat16)
    # Fused (and zero-padded) head: [disc | mu | log-var] -> (128, 128).
    wq = jnp.concatenate([params["fc_disc_w"], params["fc_mu_w"],
                          params["fc_var_w"]], axis=0)          # (14, 128)
    bq = jnp.concatenate([params["fc_disc_b"], params["fc_mu_b"],
                          params["fc_var_b"]], axis=0)          # (14,)
    head_w = jnp.zeros((C_MID, HEAD_PAD), jnp.float32).at[:, :N_HEAD].set(wq.T)
    head_b = jnp.zeros((1, HEAD_PAD), jnp.float32).at[0, :N_HEAD].set(bq)
    return {
        "conv_w": conv_w,                                   # (128, K) bf16
        "bn_gamma": params["bn_gamma"].reshape(1, C_MID),
        "bn_beta": params["bn_beta"].reshape(1, C_MID),
        "head_w": head_w,                                   # (128, 128)
        "head_b": head_b,                                   # (1, 128)
    }


def q_forward(x, prep, *, tk=16384):
    """x: (N, 512, 4, 4, 4) float32 (NCDHW). prep: prepare_params(params).

    Returns (disc, cont_mu, cont_var)."""
    n = x.shape[0]
    assert x.shape[1:] == (C_IN, KSP, KSP, KSP)
    assert K % tk == 0

    x2 = x.reshape(n, K).astype(jnp.bfloat16)

    const = lambda k: (0, 0)
    cost = pl.CostEstimate(
        flops=2 * n * K * C_MID + 2 * n * C_MID * HEAD_PAD,
        transcendentals=0,
        bytes_accessed=(n * K + C_MID * K) * 2                 # bf16 streams
        + (C_MID * HEAD_PAD + HEAD_PAD + 2 * C_MID + n * HEAD_PAD) * 4,
    )

    heads = pl.pallas_call(
        q_kernel,
        out_shape=jax.ShapeDtypeStruct((n, HEAD_PAD), jnp.float32),
        grid_spec=pltpu.PrefetchScalarGridSpec(
            num_scalar_prefetch=0,
            grid=(K // tk,),
            in_specs=[
                pl.BlockSpec((n, tk), lambda k: (0, k)),        # x tiles (bf16)
                pl.BlockSpec((C_MID, tk), lambda k: (0, k)),    # weight tiles (bf16)
                pl.BlockSpec((1, C_MID), const),                # bn gamma
                pl.BlockSpec((1, C_MID), const),                # bn beta
                pl.BlockSpec((C_MID, HEAD_PAD), const),         # fused head W
                pl.BlockSpec((1, HEAD_PAD), const),             # fused head b
            ],
            out_specs=pl.BlockSpec((n, HEAD_PAD), const),
            scratch_shapes=[pltpu.VMEM((n, C_MID), jnp.float32)],
        ),
        compiler_params=pltpu.CompilerParams(
            dimension_semantics=("arbitrary",),   # K reduction: must stay arbitrary
            vmem_limit_bytes=32 * 1024 * 1024),
        cost_estimate=cost,
    )(x2, prep["conv_w"], prep["bn_gamma"], prep["bn_beta"],
      prep["head_w"], prep["head_b"])

    disc = heads[:, :N_DISC]
    mu = heads[:, N_DISC:N_DISC + N_CONT]
    cont_var = jnp.exp(heads[:, N_DISC + N_CONT:N_DISC + 2 * N_CONT])
    return disc, mu, cont_var


def q_reference(x, params):
    """Pure-JAX f32 reference of the PyTorch forward."""
    n = x.shape[0]
    h = jnp.dot(x.reshape(n, K), params["conv_w"].reshape(C_MID, K).T,
                preferred_element_type=jnp.float32,
                precision=jax.lax.Precision.HIGHEST)
    mean = h.mean(0, keepdims=True)
    var = ((h - mean) ** 2).mean(0, keepdims=True)
    h = (h - mean) / jnp.sqrt(var + BN_EPS)
    h = h * params["bn_gamma"] + params["bn_beta"]
    h = jnp.where(h >= 0, h, LRELU_SLOPE * h)
    disc = h @ params["fc_disc_w"].T + params["fc_disc_b"]
    mu = h @ params["fc_mu_w"].T + params["fc_mu_b"]
    var_c = jnp.exp(h @ params["fc_var_w"].T + params["fc_var_b"])
    return disc, mu, var_c


def init_params(key):
    ks = jax.random.split(key, 8)
    return {
        "conv_w": 0.02 * jax.random.normal(ks[0], (C_MID, C_IN, KSP, KSP, KSP), jnp.float32),
        "bn_gamma": 1.0 + 0.01 * jax.random.normal(ks[1], (C_MID,), jnp.float32),
        "bn_beta": 0.01 * jax.random.normal(ks[2], (C_MID,), jnp.float32),
        "fc_disc_w": 0.05 * jax.random.normal(ks[3], (N_DISC, C_MID), jnp.float32),
        "fc_disc_b": 0.01 * jax.random.normal(ks[4], (N_DISC,), jnp.float32),
        "fc_mu_w": 0.05 * jax.random.normal(ks[5], (N_CONT, C_MID), jnp.float32),
        "fc_mu_b": 0.01 * jax.random.normal(ks[6], (N_CONT,), jnp.float32),
        "fc_var_w": 0.05 * jax.random.normal(ks[7], (N_CONT, C_MID), jnp.float32),
        "fc_var_b": jnp.zeros((N_CONT,), jnp.float32),
    }


if __name__ == "__main__":
    key = jax.random.PRNGKey(0)
    kx, kp = jax.random.split(key)
    batch = 8  # (N, 512, 4, 4, 4): the Share backbone's output at 64^3 input
    x = jax.random.normal(kx, (batch, C_IN, KSP, KSP, KSP), jnp.float32)
    params = init_params(kp)

    # One-time weight prep (bf16 cast, fused/padded heads) outside the hot path.
    prep = prepare_params(params)

    disc, mu, var = jax.block_until_ready(q_forward(x, prep))

    disc_r, mu_r, var_r = q_reference(x, params)
    assert disc.shape == (batch, N_DISC)
    assert mu.shape == (batch, N_CONT) and var.shape == (batch, N_CONT)
    for got, ref in ((disc, disc_r), (mu, mu_r), (var, var_r)):
        assert jnp.allclose(got, ref, rtol=2e-2, atol=2e-2), (
            float(jnp.max(jnp.abs(got - ref))))

    print("KERNEL_OK")
</pallas_src>

<mosaic_0001>
module attributes {stable_mosaic.version = 11 : i64} {
  func.func @q_kernel(%arg0: i32, %arg1: memref<8x16384xbf16, #tpu.memory_space<vmem>>, %arg2: memref<128x16384xbf16, #tpu.memory_space<vmem>>, %arg3: memref<1x128xf32, #tpu.memory_space<vmem>>, %arg4: memref<1x128xf32, #tpu.memory_space<vmem>>, %arg5: memref<128x128xf32, #tpu.memory_space<vmem>>, %arg6: memref<1x128xf32, #tpu.memory_space<vmem>>, %arg7: memref<8x128xf32, #tpu.memory_space<vmem>>, %arg8: memref<8x128xf32, #tpu.memory_space<vmem>>) attributes {dimension_semantics = [#tpu.dimension_semantics<arbitrary>], iteration_bounds = array<i64: 2>, scalar_prefetch = 0 : i64, scratch_operands = 1 : i64, tpu.core_type = #tpu.core_type<tc>, window_params = [{transform_indices = @transform_0, window_bounds = array<i64: 8, 16384>}, {transform_indices = @transform_1, window_bounds = array<i64: 128, 16384>}, {pipeline_mode = #tpu.pipeline_mode<synchronous>, transform_indices = @transform_2, window_bounds = array<i64: 1, 128>}, {pipeline_mode = #tpu.pipeline_mode<synchronous>, transform_indices = @transform_3, window_bounds = array<i64: 1, 128>}, {pipeline_mode = #tpu.pipeline_mode<synchronous>, transform_indices = @transform_4, window_bounds = array<i64: 128, 128>}, {pipeline_mode = #tpu.pipeline_mode<synchronous>, transform_indices = @transform_5, window_bounds = array<i64: 1, 128>}, {pipeline_mode = #tpu.pipeline_mode<synchronous>, transform_indices = @transform_6, window_bounds = array<i64: 8, 128>}]} {
    %c0_i32 = arith.constant 0 : i32
    %0 = arith.cmpi eq, %arg0, %c0_i32 : i32
    %1 = arith.extui %0 : i1 to i32
    %c0_i32_0 = arith.constant 0 : i32
    %2 = arith.cmpi ne, %1, %c0_i32_0 : i32
    scf.if %2 {
      %cst_9 = arith.constant 0.000000e+00 : f32
      %12 = vector.broadcast %cst_9 : f32 to vector<8x128xf32>
      %c0_10 = arith.constant 0 : index
      %c0_11 = arith.constant 0 : index
      %13 = vector.load %arg8[%c0_10, %c0_11] : memref<8x128xf32, #tpu.memory_space<vmem>>, vector<8x128xf32>
      tpu.vector_store %arg8[%c0_10, %c0_11], %12 {strides = array<i32>} : memref<8x128xf32, #tpu.memory_space<vmem>>, vector<8x128xf32>,
    } else {
    }
    %c0 = arith.constant 0 : index
    %c0_1 = arith.constant 0 : index
    %3 = vector.load %arg8[%c0, %c0_1] : memref<8x128xf32, #tpu.memory_space<vmem>>, vector<8x128xf32>
    %c0_2 = arith.constant 0 : index
    %c0_3 = arith.constant 0 : index
    %4 = vector.load %arg1[%c0_2, %c0_3] : memref<8x16384xbf16, #tpu.memory_space<vmem>>, vector<8x16384xbf16>
    %c0_4 = arith.constant 0 : index
    %c0_5 = arith.constant 0 : index
    %5 = vector.load %arg2[%c0_4, %c0_5] : memref<128x16384xbf16, #tpu.memory_space<vmem>>, vector<128x16384xbf16>
    %cst = arith.constant dense<0.000000e+00> : vector<8x128xf32>
    %6 = tpu.matmul %4, %5, %cst {dimension_numbers = #tpu.dot_dimension_numbers<[1], [1], [0], [0], [0, 0, 1, 0], [], []>} : vector<8x16384xbf16>, vector<128x16384xbf16>, vector<8x128xf32> -> vector<8x128xf32>
    %7 = arith.addf %3, %6 : vector<8x128xf32>
    %c0_6 = arith.constant 0 : index
    %c0_7 = arith.constant 0 : index
    %8 = vector.load %arg8[%c0_6, %c0_7] : memref<8x128xf32, #tpu.memory_space<vmem>>, vector<8x128xf32>
    tpu.vector_store %arg8[%c0_6, %c0_7], %7 {strides = array<i32>} : memref<8x128xf32, #tpu.memory_space<vmem>>, vector<8x128xf32>,
    %c1_i32 = arith.constant 1 : i32
    %9 = arith.cmpi eq, %arg0, %c1_i32 : i32
    %10 = arith.extui %9 : i1 to i32
    %c0_i32_8 = arith.constant 0 : i32
    %11 = arith.cmpi ne, %10, %c0_i32_8 : i32
    scf.if %11 {
      %c0_9 = arith.constant 0 : index
      %c0_10 = arith.constant 0 : index
      %12 = vector.load %arg8[%c0_9, %c0_10] : memref<8x128xf32, #tpu.memory_space<vmem>>, vector<8x128xf32>
      %cst_11 = arith.constant dense<0.000000e+00> : vector<128xf32>
      %13 = vector.multi_reduction <add>, %12, %cst_11 [0] : vector<8x128xf32> to vector<128xf32>
      %14 = vector.shape_cast %13 : vector<128xf32> to vector<1x128xf32>
      %cst_12 = arith.constant 8.000000e+00 : f32
      %15 = vector.broadcast %cst_12 : f32 to vector<1x128xf32>
      %16 = arith.divf %14, %15 : vector<1x128xf32>
      %17 = vector.broadcast %16 : vector<1x128xf32> to vector<8x128xf32>
      %18 = arith.subf %12, %17 : vector<8x128xf32>
      %19 = arith.mulf %18, %18 : vector<8x128xf32>
      %cst_13 = arith.constant dense<0.000000e+00> : vector<128xf32>
      %20 = vector.multi_reduction <add>, %19, %cst_13 [0] : vector<8x128xf32> to vector<128xf32>
      %21 = vector.shape_cast %20 : vector<128xf32> to vector<1x128xf32>
      %cst_14 = arith.constant 8.000000e+00 : f32
      %22 = vector.broadcast %cst_14 : f32 to vector<1x128xf32>
      %23 = arith.divf %21, %22 : vector<1x128xf32>
      %c0_15 = arith.constant 0 : index
      %c0_16 = arith.constant 0 : index
      %24 = vector.load %arg3[%c0_15, %c0_16] : memref<1x128xf32, #tpu.memory_space<vmem>>, vector<1x128xf32>
      %cst_17 = arith.constant 9.99999974E-6 : f32
      %25 = vector.broadcast %cst_17 : f32 to vector<1x128xf32>
      %26 = arith.addf %23, %25 : vector<1x128xf32>
      %27 = math.rsqrt %26 : vector<1x128xf32>
      %28 = arith.mulf %24, %27 : vector<1x128xf32>
      %c0_18 = arith.constant 0 : index
      %c0_19 = arith.constant 0 : index
      %29 = vector.load %arg4[%c0_18, %c0_19] : memref<1x128xf32, #tpu.memory_space<vmem>>, vector<1x128xf32>
      %30 = arith.mulf %16, %28 : vector<1x128xf32>
      %31 = arith.subf %29, %30 : vector<1x128xf32>
      %32 = vector.broadcast %28 : vector<1x128xf32> to vector<8x128xf32>
      %33 = arith.mulf %12, %32 : vector<8x128xf32>
      %34 = vector.broadcast %31 : vector<1x128xf32> to vector<8x128xf32>
      %35 = arith.addf %33, %34 : vector<8x128xf32>
      %cst_20 = arith.constant 0.000000e+00 : f32
      %36 = vector.broadcast %cst_20 : f32 to vector<8x128xf32>
      %37 = arith.cmpf oge, %35, %36 : vector<8x128xf32>
      %cst_21 = arith.constant 2.000000e-01 : f32
      %38 = vector.broadcast %cst_21 : f32 to vector<8x128xf32>
      %39 = arith.mulf %38, %35 : vector<8x128xf32>
      %40 = arith.select %37, %35, %39 : vector<8x128xi1>, vector<8x128xf32>
      %c0_22 = arith.constant 0 : index
      %c0_23 = arith.constant 0 : index
      %41 = vector.load %arg5[%c0_22, %c0_23] : memref<128x128xf32, #tpu.memory_space<vmem>>, vector<128x128xf32>
      %cst_24 = arith.constant dense<0.000000e+00> : vector<8x128xf32>
      %42 = tpu.matmul %40, %41, %cst_24 {dimension_numbers = #tpu.dot_dimension_numbers<[1], [0], [0], [1], [0, 0, 1, 1], [], []>} : vector<8x128xf32>, vector<128x128xf32>, vector<8x128xf32> -> vector<8x128xf32>
      %c0_25 = arith.constant 0 : index
      %c0_26 = arith.constant 0 : index
      %43 = vector.load %arg6[%c0_25, %c0_26] : memref<1x128xf32, #tpu.memory_space<vmem>>, vector<1x128xf32>
      %44 = vector.broadcast %43 : vector<1x128xf32> to vector<8x128xf32>
      %45 = arith.addf %42, %44 : vector<8x128xf32>
      %c0_27 = arith.constant 0 : index
      %c0_28 = arith.constant 0 : index
      %46 = vector.load %arg7[%c0_27, %c0_28] : memref<8x128xf32, #tpu.memory_space<vmem>>, vector<8x128xf32>
      tpu.vector_store %arg7[%c0_27, %c0_28], %45 {strides = array<i32>} : memref<8x128xf32, #tpu.memory_space<vmem>>, vector<8x128xf32>,
    } else {
    }
    return
  }
  func.func @transform_0(%arg0: i32) -> (i32, i32) {
    %c0_i32 = arith.constant 0 : i32
    %c0_i32_0 = arith.constant 0 : i32
    return %c0_i32, %arg0 : i32, i32
  }
  func.func @transform_1(%arg0: i32) -> (i32, i32) {
    %c0_i32 = arith.constant 0 : i32
    %c0_i32_0 = arith.constant 0 : i32
    return %c0_i32, %arg0 : i32, i32
  }
  func.func @transform_2(%arg0: i32) -> (i32, i32) {
    %c0_i32 = arith.constant 0 : i32
    %c0_i32_0 = arith.constant 0 : i32
    %c0_i32_1 = arith.constant 0 : i32
    return %c0_i32, %c0_i32_0 : i32, i32
  }
  func.func @transform_3(%arg0: i32) -> (i32, i32) {
    %c0_i32 = arith.constant 0 : i32
    %c0_i32_0 = arith.constant 0 : i32
    %c0_i32_1 = arith.constant 0 : i32
    return %c0_i32, %c0_i32_0 : i32, i32
  }
  func.func @transform_4(%arg0: i32) -> (i32, i32) {
    %c0_i32 = arith.constant 0 : i32
    %c0_i32_0 = arith.constant 0 : i32
    %c0_i32_1 = arith.constant 0 : i32
    return %c0_i32, %c0_i32_0 : i32, i32
  }
  func.func @transform_5(%arg0: i32) -> (i32, i32) {
    %c0_i32 = arith.constant 0 : i32
    %c0_i32_0 = arith.constant 0 : i32
    %c0_i32_1 = arith.constant 0 : i32
    return %c0_i32, %c0_i32_0 : i32, i32
  }
  func.func @transform_6(%arg0: i32) -> (i32, i32) {
    %c0_i32 = arith.constant 0 : i32
    %c0_i32_0 = arith.constant 0 : i32
    %c0_i32_1 = arith.constant 0 : i32
    return %c0_i32, %c0_i32_0 : i32, i32
  }
}

</mosaic_0001>

<llo_original>
// kernel: tpu_custom_call.1
$region0: #{tpu_custom_call.1}
  #allocation0 [shape = 'u32[]', space=smem, size = 0x4, offset = 0x4, fixed_abs, tag = 'smem constant byte address 0x4 - core index']
  #allocation1 [shape = 'u32[144,128]{1,0:T(1,128)}', space=vmem, size = 0x12000, scoped, tag = 'internal scratch']
  #allocation2 [shape = 'f32[8,128]{1,0:T(8,128)}', space=vmem, size = 0x1000, scoped, tag = 'scratch operand']
  %s0 = inlined_call_operand.hbm [shape: bf16[8,32768], index: 0, kind: input, shape index: {}]
  %s1 = inlined_call_operand.hbm [shape: bf16[128,32768], index: 1, kind: input, shape index: {}]
  %s2 = inlined_call_operand.hbm [shape: f32[1,128], index: 2, kind: input, shape index: {}]
  %s3 = inlined_call_operand.hbm [shape: f32[1,128], index: 3, kind: input, shape index: {}]
  %s4 = inlined_call_operand.hbm [shape: f32[128,128], index: 4, kind: input, shape index: {}]
  %s5 = inlined_call_operand.hbm [shape: f32[1,128], index: 5, kind: input, shape index: {}]
  %s6 = inlined_call_operand.hbm [shape: f32[8,128], index: 6, kind: output, shape index: {}]
  %s7 = sld [smem:[#allocation0]]
  $region89: #{tpu_custom_call.1} parent=0
    _
  %s9 = ssub.s32 1, %s7
  %s10 = scalar_select 0, %s9, %s7
  $region1: #{tpu_custom_call.1} parent=0
    #allocation3 [shape = 'u8[524288]{0}', space=vmem, size = 0x80000, scoped, tag = 'input window, operand 0']
    #allocation4 [shape = 's32[2]{0}', space=sflag, size = 0x8, scoped, tag = 'scoped memory for tpu_custom_call.1']
    #allocation5 [shape = 's32[2]{0}', space=sflag, size = 0x8, scoped, tag = 'scoped memory for tpu_custom_call.1']
    #allocation6 [shape = 'u8[8388608]{0}', space=vmem, size = 0x800000, scoped, tag = 'input window, operand 1']
    #allocation7 [shape = 's32[2]{0}', space=sflag, size = 0x8, scoped, tag = 'scoped memory for tpu_custom_call.1']
    #allocation8 [shape = 'u8[512]{0}', space=vmem, size = 0x400, scoped, tag = 'input window, operand 2, single buffered']
    #allocation9 [shape = 'u8[512]{0}', space=vmem, size = 0x400, scoped, tag = 'input window, operand 3, single buffered']
    #allocation10 [shape = 's32[1]{0}', space=sflag, size = 0x4, scoped, tag = 'scoped memory for tpu_custom_call.1']
    #allocation11 [shape = 'u8[65536]{0}', space=vmem, size = 0x10000, scoped, tag = 'input window, operand 4, single buffered']
    #allocation12 [shape = 'u8[512]{0}', space=vmem, size = 0x400, scoped, tag = 'input window, operand 5, single buffered']
    #allocation13 [shape = 's32[1]{0}', space=sflag, size = 0x4, scoped, tag = 'scoped memory for tpu_custom_call.1']
    #allocation14 [shape = 'u8[4096]{0}', space=vmem, size = 0x1000, scoped, tag = 'output window, operand 0, single buffered']
    %11 = vsyncpa [#allocation4], 0
    %s12 = scalar_lea.sflag [#allocation4], 1
    %13 = vsyncpa %s12, 0
    %14 = vsyncpa [#allocation7], 0
    %s15 = scalar_lea.sflag [#allocation7], 1
    %16 = vsyncpa %s15, 0
    %17 = vsyncpa [#allocation10], 0
    %18 = vsyncpa [#allocation13], 0
    %19 = vsyncpa [#allocation5], 0
    loop: start=0, step=1, limit=4
    $region2: #{tpu_custom_call.1} parent=1 // loop_pre_header
      _
    $region3: #{tpu_custom_call.1} parent=1 // loop_header
      %s21 = sphi 0, %s25
      %p22 = scmp.ge.s32.totalorder %s21, 4
      %s31 = sphi 0, %s33
      %s34 = sphi 0, %s31
      %s35 = sphi 0, %s34
      %s51 = sphi 0, %s35
      %s57 = sphi 0, %s59
      %s60 = sphi 0, %s57
      %s61 = sphi 0, %s60
      %s77 = sphi 0, %s61
      %s81 = sphi 0, %s81
      %s83 = sphi 0, %s81
      %s84 = sphi 0, %s83
      %s98 = sphi 0, %s84
      %s102 = sphi 0, %s102
      %s104 = sphi 0, %s102
      %s105 = sphi 0, %s104
      %s119 = sphi 0, %s105
      %s123 = sphi 0, %s123
      %s125 = sphi 0, %s123
      %s126 = sphi 0, %s125
      %s140 = sphi 0, %s126
      %s144 = sphi 0, %s144
      %s146 = sphi 0, %s144
      %s147 = sphi 0, %s146
      %s161 = sphi 0, %s147
      %s165 = sphi 0, %s165
      %s167 = sphi 0, %s165
      %s168 = sphi 0, %s167
      %s182 = sphi 0, %s168
    $region4: #{tpu_custom_call.1} parent=1 // loop_header_branch
      %24 = sbr.rel (%p22) target = $region8
    $region5: #{tpu_custom_call.1} parent=1 // loop_body
      %s26 = ssub.s32 %s21, 1
      %s27 = ssub.s32 %s21, 2
      %s28 = sadd.s32 %s21, 1
      %s29 = ssub.s32 %s21, %s28
      %p30 = scmp.eq.s32.totalorder %s29, 0
      %s32 = sadd.s32 %s31, 1
      %s33 = scalar_select %p30, %s31, %s32
      %p36 = pneg %p30
      %p37 = scmp.eq.s32.totalorder %s21, 1
      %p38 = por %p36, %p37
      %p39 = scmp.ne.s32.totalorder %s31, %s34
      %p40 = scmp.eq.s32.totalorder %s21, 0
      %p41 = por %p39, %p40
      %p42 = scmp.ne.s32.totalorder %s31, %s34
      %p43 = scmp.eq.s32.totalorder %s26, 1
      %p44 = por %p42, %p43
      %p45 = scmp.ne.s32.totalorder %s34, %s35
      %p46 = scmp.eq.s32.totalorder %s26, 0
      %p47 = por %p45, %p46
      %p48 = scmp.ne.s32.totalorder %s34, %s35
      %p49 = scmp.eq.s32.totalorder %s27, 1
      %p50 = por %p48, %p49
      %p52 = scmp.ne.s32.totalorder %s35, %s51
      %p53 = scmp.eq.s32.totalorder %s27, 0
      %p54 = por %p52, %p53
      %s55 = ssub.s32 %s21, %s28
      %p56 = scmp.eq.s32.totalorder %s55, 0
      %s58 = sadd.s32 %s57, 1
      %s59 = scalar_select %p56, %s57, %s58
      %p62 = pneg %p56
      %p63 = scmp.eq.s32.totalorder %s21, 1
      %p64 = por %p62, %p63
      %p65 = scmp.ne.s32.totalorder %s57, %s60
      %p66 = scmp.eq.s32.totalorder %s21, 0
      %p67 = por %p65, %p66
      %p68 = scmp.ne.s32.totalorder %s57, %s60
      %p69 = scmp.eq.s32.totalorder %s26, 1
      %p70 = por %p68, %p69
      %p71 = scmp.ne.s32.totalorder %s60, %s61
      %p72 = scmp.eq.s32.totalorder %s26, 0
      %p73 = por %p71, %p72
      %p74 = scmp.ne.s32.totalorder %s60, %s61
      %p75 = scmp.eq.s32.totalorder %s27, 1
      %p76 = por %p74, %p75
      %p78 = scmp.ne.s32.totalorder %s61, %s77
      %p79 = scmp.eq.s32.totalorder %s27, 0
      %p80 = por %p78, %p79
      %s82 = sadd.s32 %s81, 1
      %p85 = scmp.eq.s32.totalorder %s21, 1
      %p86 = scmp.ne.s32.totalorder %s81, %s83
      %p87 = scmp.eq.s32.totalorder %s21, 0
      %p88 = por %p86, %p87
      %p89 = scmp.ne.s32.totalorder %s81, %s83
      %p90 = scmp.eq.s32.totalorder %s26, 1
      %p91 = por %p89, %p90
      %p92 = scmp.ne.s32.totalorder %s83, %s84
      %p93 = scmp.eq.s32.totalorder %s26, 0
      %p94 = por %p92, %p93
      %p95 = scmp.ne.s32.totalorder %s83, %s84
      %p96 = scmp.eq.s32.totalorder %s27, 1
      %p97 = por %p95, %p96
      %p99 = scmp.ne.s32.totalorder %s84, %s98
      %p100 = scmp.eq.s32.totalorder %s27, 0
      %p101 = por %p99, %p100
      %s103 = sadd.s32 %s102, 1
      %p106 = scmp.eq.s32.totalorder %s21, 1
      %p107 = scmp.ne.s32.totalorder %s102, %s104
      %p108 = scmp.eq.s32.totalorder %s21, 0
      %p109 = por %p107, %p108
      %p110 = scmp.ne.s32.totalorder %s102, %s104
      %p111 = scmp.eq.s32.totalorder %s26, 1
      %p112 = por %p110, %p111
      %p113 = scmp.ne.s32.totalorder %s104, %s105
      %p114 = scmp.eq.s32.totalorder %s26, 0
      %p115 = por %p113, %p114
      %p116 = scmp.ne.s32.totalorder %s104, %s105
      %p117 = scmp.eq.s32.totalorder %s27, 1
      %p118 = por %p116, %p117
      %p120 = scmp.ne.s32.totalorder %s105, %s119
      %p121 = scmp.eq.s32.totalorder %s27, 0
      %p122 = por %p120, %p121
      %s124 = sadd.s32 %s123, 1
      %p127 = scmp.eq.s32.totalorder %s21, 1
      %p128 = scmp.ne.s32.totalorder %s123, %s125
      %p129 = scmp.eq.s32.totalorder %s21, 0
      %p130 = por %p128, %p129
      %p131 = scmp.ne.s32.totalorder %s123, %s125
      %p132 = scmp.eq.s32.totalorder %s26, 1
      %p133 = por %p131, %p132
      %p134 = scmp.ne.s32.totalorder %s125, %s126
      %p135 = scmp.eq.s32.totalorder %s26, 0
      %p136 = por %p134, %p135
      %p137 = scmp.ne.s32.totalorder %s125, %s126
      %p138 = scmp.eq.s32.totalorder %s27, 1
      %p139 = por %p137, %p138
      %p141 = scmp.ne.s32.totalorder %s126, %s140
      %p142 = scmp.eq.s32.totalorder %s27, 0
      %p143 = por %p141, %p142
      %s145 = sadd.s32 %s144, 1
      %p148 = scmp.eq.s32.totalorder %s21, 1
      %p149 = scmp.ne.s32.totalorder %s144, %s146
      %p150 = scmp.eq.s32.totalorder %s21, 0
      %p151 = por %p149, %p150
      %p152 = scmp.ne.s32.totalorder %s144, %s146
      %p153 = scmp.eq.s32.totalorder %s26, 1
      %p154 = por %p152, %p153
      %p155 = scmp.ne.s32.totalorder %s146, %s147
      %p156 = scmp.eq.s32.totalorder %s26, 0
      %p157 = por %p155, %p156
      %p158 = scmp.ne.s32.totalorder %s146, %s147
      %p159 = scmp.eq.s32.totalorder %s27, 1
      %p160 = por %p158, %p159
      %p162 = scmp.ne.s32.totalorder %s147, %s161
      %p163 = scmp.eq.s32.totalorder %s27, 0
      %p164 = por %p162, %p163
      %s166 = sadd.s32 %s165, 1
      %p169 = scmp.eq.s32.totalorder %s21, 1
      %p170 = scmp.ne.s32.totalorder %s165, %s167
      %p171 = scmp.eq.s32.totalorder %s21, 0
      %p172 = por %p170, %p171
      %p173 = scmp.ne.s32.totalorder %s165, %s167
      %p174 = scmp.eq.s32.totalorder %s26, 1
      %p175 = por %p173, %p174
      %p176 = scmp.ne.s32.totalorder %s167, %s168
      %p177 = scmp.eq.s32.totalorder %s26, 0
      %p178 = por %p176, %p177
      %p179 = scmp.ne.s32.totalorder %s167, %s168
      %p180 = scmp.eq.s32.totalorder %s27, 1
      %p181 = por %p179, %p180
      %p183 = scmp.ne.s32.totalorder %s168, %s182
      %p184 = scmp.eq.s32.totalorder %s27, 0
      %p185 = por %p183, %p184
      %p186 = scmp.le.s32.totalorder 1, %s21
      %p187 = scmp.lt.s32.totalorder %s21, 3
      %p188 = pnand %p186, %p187
      %p189 = pneg %p188
      // Predicated region
      $region9: #{tpu_custom_call.1} parent=5 // pred_check
        _
      $region10: #{tpu_custom_call.1} parent=5 // pred_check_branch
        %191 = sbr.rel (%p188) target = $region12
      $region11: #{tpu_custom_call.1} parent=5 // pred_region
        %s192 = ssub.s32 %s21, 1
        // Predicated region
        $region13: #{tpu_custom_call.1} parent=11 // pred_check
          %p193 = pneg %p94
        $region14: #{tpu_custom_call.1} parent=11 // pred_check_branch
          %195 = sbr.rel (%p193) target = $region16
        $region15: #{tpu_custom_call.1} parent=11 // pred_region
          %s197 = ssub.s32 16, 16
          %198 = vsyncadd [#allocation7], %s197
          %s200 = sshll.u32 [#allocation8], 4
          %s201 = int_to_ptr.vmem [resolvable:$true] %s200
          %203 = dma.hbm_to_vmem [thread:$0]  %s2, 16, %s201, [#allocation7]
        $region16: #{tpu_custom_call.1} parent=11 // pred_fallthru
          _
        // Predicated region
        $region17: #{tpu_custom_call.1} parent=11 // pred_check
          %p204 = pneg %p115
        $region18: #{tpu_custom_call.1} parent=11 // pred_check_branch
          %206 = sbr.rel (%p204) target = $region20
        $region19: #{tpu_custom_call.1} parent=11 // pred_region
          %s208 = ssub.s32 16, 16
          %209 = vsyncadd [#allocation10], %s208
          %s211 = sshll.u32 [#allocation9], 4
          %s212 = int_to_ptr.vmem [resolvable:$true] %s211
          %214 = dma.hbm_to_vmem [thread:$0]  %s3, 16, %s212, [#allocation10]
        $region20: #{tpu_custom_call.1} parent=11 // pred_fallthru
          _
        // Predicated region
        $region21: #{tpu_custom_call.1} parent=11 // pred_check
          %p215 = pneg %p136
        $region22: #{tpu_custom_call.1} parent=11 // pred_check_branch
          %217 = sbr.rel (%p215) target = $region24
        $region23: #{tpu_custom_call.1} parent=11 // pred_region
          %s219 = ssub.s32 2048, 2048
          %220 = vsyncadd [#allocation10], %s219
          %s221 = sshll.u32 [#allocation11], 4
          %s222 = int_to_ptr.vmem [resolvable:$true] %s221
          %227 = dma.hbm_to_vmem [thread:$0]  %s4, 2048, %s222, [#allocation10], 128, 128, 8
        $region24: #{tpu_custom_call.1} parent=11 // pred_fallthru
          _
        // Predicated region
        $region25: #{tpu_custom_call.1} parent=11 // pred_check
          %p228 = pneg %p157
        $region26: #{tpu_custom_call.1} parent=11 // pred_check_branch
          %230 = sbr.rel (%p228) target = $region28
        $region27: #{tpu_custom_call.1} parent=11 // pred_region
          %s232 = ssub.s32 16, 16
          %233 = vsyncadd [#allocation13], %s232
          %s235 = sshll.u32 [#allocation12], 4
          %s236 = int_to_ptr.vmem [resolvable:$true] %s235
          %238 = dma.hbm_to_vmem [thread:$0]  %s5, 16, %s236, [#allocation13]
        $region28: #{tpu_custom_call.1} parent=11 // pred_fallthru
          _
      $region12: #{tpu_custom_call.1} parent=5 // pred_fallthru
        _
      %p239 = scmp.lt.s32.totalorder %s21, 2
      // Predicated region
      $region29: #{tpu_custom_call.1} parent=5 // pred_check
        %p240 = pneg %p239
      $region30: #{tpu_custom_call.1} parent=5 // pred_check_branch
        %242 = sbr.rel (%p240) target = $region32
      $region31: #{tpu_custom_call.1} parent=5 // pred_region
        // Predicated region
        $region33: #{tpu_custom_call.1} parent=31 // pred_check
          %p243 = pneg %p41
        $region34: #{tpu_custom_call.1} parent=31 // pred_check_branch
          %245 = sbr.rel (%p243) target = $region36
        $region35: #{tpu_custom_call.1} parent=31 // pred_region
          %s246 = sand.u32 %s31, 1
          %s247 = scalar_lea.sflag [#allocation4], %s246
          %s248 = sand.u32 %s31, 1
          %s249 = smul.addr %s248, 512
          %s250 = scalar_lea.vmem [#allocation3], %s249
          %s251 = smul.u32 128, %s21
          %s253 = ssub.s32 8192, 8192
          %254 = vsyncadd %s247, %s253
          %s255 = smul.addr %s251, 64
          %s256 = scalar_lea.hbm %s0, %s255
          %s258 = sshll.u32 %s250, 4
          %s259 = int_to_ptr.vmem [resolvable:$true] %s258
          %261 = dma.hbm_to_vmem [thread:$0]  %s256, 8192, %s259, %s247
        $region36: #{tpu_custom_call.1} parent=31 // pred_fallthru
          _
        // Predicated region
        $region37: #{tpu_custom_call.1} parent=31 // pred_check
          %p262 = pneg %p67
        $region38: #{tpu_custom_call.1} parent=31 // pred_check_branch
          %264 = sbr.rel (%p262) target = $region40
        $region39: #{tpu_custom_call.1} parent=31 // pred_region
          %s265 = sand.u32 %s21, 1
          %s266 = scalar_lea.sflag [#allocation7], %s265
          %s267 = sand.u32 %s57, 1
          %s268 = smul.addr %s267, 8192
          %s269 = scalar_lea.vmem [#allocation6], %s268
          %s270 = smul.u32 128, %s21
          %s272 = ssub.s32 131072, 131072
          %273 = vsyncadd %s266, %s272
          %s274 = smul.addr %s270, 64
          %s275 = scalar_lea.hbm %s1, %s274
          %s276 = sshll.u32 %s269, 4
          %s277 = int_to_ptr.vmem [resolvable:$true] %s276
          %282 = dma.hbm_to_vmem [thread:$0]  %s275, 131072, %s277, %s266, 16384, 8192, 512
        $region40: #{tpu_custom_call.1} parent=31 // pred_fallthru
          _
      $region32: #{tpu_custom_call.1} parent=5 // pred_fallthru
        _
      %p283 = scmp.le.s32.totalorder 1, %s21
      %p284 = scmp.lt.s32.totalorder %s21, 3
      %p285 = pnand %p283, %p284
      %p286 = pneg %p285
      // Predicated region
      $region41: #{tpu_custom_call.1} parent=5 // pred_check
        _
      $region42: #{tpu_custom_call.1} parent=5 // pred_check_branch
        %288 = sbr.rel (%p285) target = $region44
      $region43: #{tpu_custom_call.1} parent=5 // pred_region
        %s289 = ssub.s32 %s21, 1
        %s290 = sand.u32 %s34, 1
        %s291 = scalar_lea.sflag [#allocation4], %s290
        %s292 = sand.u32 %s34, 1
        %s293 = smul.addr %s292, 512
        %s294 = scalar_lea.vmem [#allocation3], %s293
        // Predicated region
        $region45: #{tpu_custom_call.1} parent=43 // pred_check
          %p295 = pneg %p47
        $region46: #{tpu_custom_call.1} parent=43 // pred_check_branch
          %297 = sbr.rel (%p295) target = $region48
        $region47: #{tpu_custom_call.1} parent=43 // pred_region
          %298 = dma.done %s291, 8192
        $region48: #{tpu_custom_call.1} parent=43 // pred_fallthru
          _
        %s299 = sand.u32 %s26, 1
        %s300 = scalar_lea.sflag [#allocation7], %s299
        %s301 = sand.u32 %s60, 1
        %s302 = smul.addr %s301, 8192
        %s303 = scalar_lea.vmem [#allocation6], %s302
        // Predicated region
        $region49: #{tpu_custom_call.1} parent=43 // pred_check
          %p304 = pneg %p73
        $region50: #{tpu_custom_call.1} parent=43 // pred_check_branch
          %306 = sbr.rel (%p304) target = $region52
        $region51: #{tpu_custom_call.1} parent=43 // pred_region
          %307 = dma.done %s300, 131072
        $region52: #{tpu_custom_call.1} parent=43 // pred_fallthru
          _
        // Predicated region
        $region53: #{tpu_custom_call.1} parent=43 // pred_check
          %p308 = pneg %p94
        $region54: #{tpu_custom_call.1} parent=43 // pred_check_branch
          %310 = sbr.rel (%p308) target = $region56
        $region55: #{tpu_custom_call.1} parent=43 // pred_region
          %311 = dma.done [#allocation7], 16
        $region56: #{tpu_custom_call.1} parent=43 // pred_fallthru
          _
        // Predicated region
        $region57: #{tpu_custom_call.1} parent=43 // pred_check
          %p312 = pneg %p115
        $region58: #{tpu_custom_call.1} parent=43 // pred_check_branch
          %314 = sbr.rel (%p312) target = $region60
        $region59: #{tpu_custom_call.1} parent=43 // pred_region
          %315 = dma.done [#allocation10], 16
        $region60: #{tpu_custom_call.1} parent=43 // pred_fallthru
          _
        // Predicated region
        $region61: #{tpu_custom_call.1} parent=43 // pred_check
          %p316 = pneg %p136
        $region62: #{tpu_custom_call.1} parent=43 // pred_check_branch
          %318 = sbr.rel (%p316) target = $region64
        $region63: #{tpu_custom_call.1} parent=43 // pred_region
          %319 = dma.done [#allocation10], 2048
        $region64: #{tpu_custom_call.1} parent=43 // pred_fallthru
          _
        // Predicated region
        $region65: #{tpu_custom_call.1} parent=43 // pred_check
          %p320 = pneg %p157
        $region66: #{tpu_custom_call.1} parent=43 // pred_check_branch
          %322 = sbr.rel (%p320) target = $region68
        $region67: #{tpu_custom_call.1} parent=43 // pred_region
          %323 = dma.done [#allocation13], 16
        $region68: #{tpu_custom_call.1} parent=43 // pred_fallthru
          _
        %s324 = sand.u32 %s34, 1
        %s325 = scalar_lea.sflag [#allocation4], %s324
        %s326 = sand.u32 %s34, 1
        %s327 = smul.addr %s326, 512
        %s328 = scalar_lea.vmem [#allocation3], %s327
        %p329 = pneg %p47
        %p330 = pneg %p44
        %s331 = sand.u32 %s26, 1
        %s332 = scalar_lea.sflag [#allocation7], %s331
        %s333 = sand.u32 %s60, 1
        %s334 = smul.addr %s333, 8192
        %s335 = scalar_lea.vmem [#allocation6], %s334
        %p336 = pneg %p73
        %p337 = pneg %p70
        %p338 = pneg %p94
        %p339 = pneg %p91
        %p340 = pneg %p115
        %p341 = pneg %p112
        %p342 = pneg %p136
        %p343 = pneg %p133
        %p344 = pneg %p157
        %p345 = pneg %p154
        %p346 = pneg %p178
        %p347 = pneg %p175
        %s348 = smul.u32 128, %s26
        %s349 = smul.u32 128, %s26
        %p351 = scmp.eq.s32.totalorder %s26, 0
        // Predicated region
        $region69: #{tpu_custom_call.1} parent=43 // pred_check
          %p352 = pneg %p351
        $region70: #{tpu_custom_call.1} parent=43 // pred_check_branch
          %354 = sbr.rel (%p352) target = $region72
        $region71: #{tpu_custom_call.1} parent=43 // pred_region
          %355 = vst [vmem:[#allocation2] sm:$0xff] 0.0
        $region72: #{tpu_custom_call.1} parent=43 // pred_fallthru
          _
        %v356 = vld [vmem:[#allocation2] sm:$0xff]
        %v357 = vld [vmem:[%s294] sm:$0xff]
        %v358 = vld [vmem:[%s294 + $0x8] sm:$0xff]
        %v359 = vld [vmem:[%s294 + $0x10] sm:$0xff]
        %v360 = vld [vmem:[%s294 + $0x18] sm:$0xff]
        %v361 = vld [vmem:[%s294 + $0x20] sm:$0xff]
        %v362 = vld [vmem:[%s294 + $0x28] sm:$0xff]
        %v363 = vld [vmem:[%s294 + $0x30] sm:$0xff]
        %v364 = vld [vmem:[%s294 + $0x38] sm:$0xff]
        %v365 = vld [vmem:[%s294 + $0x40] sm:$0xff]
        %v366 = vld [vmem:[%s294 + $0x48] sm:$0xff]
        %v367 = vld [vmem:[%s294 + $0x50] sm:$0xff]
        %v368 = vld [vmem:[%s294 + $0x58] sm:$0xff]
        %v369 = vld [vmem:[%s294 + $0x60] sm:$0xff]
        %v370 = vld [vmem:[%s294 + $0x68] sm:$0xff]
        %v371 = vld [vmem:[%s294 + $0x70] sm:$0xff]
        %v372 = vld [vmem:[%s294 + $0x78] sm:$0xff]
        %v373 = vld [vmem:[%s294 + $0x80] sm:$0xff]
        %v374 = vld [vmem:[%s294 + $0x88] sm:$0xff]
        %v375 = vld [vmem:[%s294 + $0x90] sm:$0xff]
        %v376 = vld [vmem:[%s294 + $0x98] sm:$0xff]
        %v377 = vld [vmem:[%s294 + $0xa0] sm:$0xff]
        %v378 = vld [vmem:[%s294 + $0xa8] sm:$0xff]
        %v379 = vld [vmem:[%s294 + $0xb0] sm:$0xff]
        %v380 = vld [vmem:[%s294 + $0xb8] sm:$0xff]
        %v381 = vld [vmem:[%s294 + $0xc0] sm:$0xff]
        %v382 = vld [vmem:[%s294 + $0xc8] sm:$0xff]
        %v383 = vld [vmem:[%s294 + $0xd0] sm:$0xff]
        %v384 = vld [vmem:[%s294 + $0xd8] sm:$0xff]
        %v385 = vld [vmem:[%s294 + $0xe0] sm:$0xff]
        %v386 = vld [vmem:[%s294 + $0xe8] sm:$0xff]
        %v387 = vld [vmem:[%s294 + $0xf0] sm:$0xff]
        %v388 = vld [vmem:[%s294 + $0xf8] sm:$0xff]
        %v389 = vld [vmem:[%s294 + $0x100] sm:$0xff]
        %v390 = vld [vmem:[%s294 + $0x108] sm:$0xff]
        %v391 = vld [vmem:[%s294 + $0x110] sm:$0xff]
        %v392 = vld [vmem:[%s294 + $0x118] sm:$0xff]
        %v393 = vld [vmem:[%s294 + $0x120] sm:$0xff]
        %v394 = vld [vmem:[%s294 + $0x128] sm:$0xff]
        %v395 = vld [vmem:[%s294 + $0x130] sm:$0xff]
        %v396 = vld [vmem:[%s294 + $0x138] sm:$0xff]
        %v397 = vld [vmem:[%s294 + $0x140] sm:$0xff]
        %v398 = vld [vmem:[%s294 + $0x148] sm:$0xff]
        %v399 = vld [vmem:[%s294 + $0x150] sm:$0xff]
        %v400 = vld [vmem:[%s294 + $0x158] sm:$0xff]
        %v401 = vld [vmem:[%s294 + $0x160] sm:$0xff]
        %v402 = vld [vmem:[%s294 + $0x168] sm:$0xff]
        %v403 = vld [vmem:[%s294 + $0x170] sm:$0xff]
        %v404 = vld [vmem:[%s294 + $0x178] sm:$0xff]
        %v405 = vld [vmem:[%s294 + $0x180] sm:$0xff]
        %v406 = vld [vmem:[%s294 + $0x188] sm:$0xff]
        %v407 = vld [vmem:[%s294 + $0x190] sm:$0xff]
        %v408 = vld [vmem:[%s294 + $0x198] sm:$0xff]
        %v409 = vld [vmem:[%s294 + $0x1a0] sm:$0xff]
        %v410 = vld [vmem:[%s294 + $0x1a8] sm:$0xff]
        %v411 = vld [vmem:[%s294 + $0x1b0] sm:$0xff]
        %v412 = vld [vmem:[%s294 + $0x1b8] sm:$0xff]
        %v413 = vld [vmem:[%s294 + $0x1c0] sm:$0xff]
        %v414 = vld [vmem:[%s294 + $0x1c8] sm:$0xff]
        %v415 = vld [vmem:[%s294 + $0x1d0] sm:$0xff]
        %v416 = vld [vmem:[%s294 + $0x1d8] sm:$0xff]
        %v417 = vld [vmem:[%s294 + $0x1e0] sm:$0xff]
        %v418 = vld [vmem:[%s294 + $0x1e8] sm:$0xff]
        %v419 = vld [vmem:[%s294 + $0x1f0] sm:$0xff]
        %v420 = vld [vmem:[%s294 + $0x1f8] sm:$0xff]
        %v421 = vld [vmem:[%s303] sm:$0xff]
        %v422 = vld [vmem:[%s303 + $0x8] sm:$0xff]
        %v423 = vld [vmem:[%s303 + $0x10] sm:$0xff]
        %v424 = vld [vmem:[%s303 + $0x18] sm:$0xff]
        %v425 = vld [vmem:[%s303 + $0x20] sm:$0xff]
        %v426 = vld [vmem:[%s303 + $0x28] sm:$0xff]
        %v427 = vld [vmem:[%s303 + $0x30] sm:$0xff]
        %v428 = vld [vmem:[%s303 + $0x38] sm:$0xff]
        %v429 = vld [vmem:[%s303 + $0x40] sm:$0xff]
        %v430 = vld [vmem:[%s303 + $0x48] sm:$0xff]
        %v431 = vld [vmem:[%s303 + $0x50] sm:$0xff]
        %v432 = vld [vmem:[%s303 + $0x58] sm:$0xff]
        %v433 = vld [vmem:[%s303 + $0x60] sm:$0xff]
        %v434 = vld [vmem:[%s303 + $0x68] sm:$0xff]
        %v435 = vld [vmem:[%s303 + $0x70] sm:$0xff]
        %v436 = vld [vmem:[%s303 + $0x78] sm:$0xff]
        %v437 = vld [vmem:[%s303 + $0x80] sm:$0xff]
        %v438 = vld [vmem:[%s303 + $0x88] sm:$0xff]
        %v439 = vld [vmem:[%s303 + $0x90] sm:$0xff]
        %v440 = vld [vmem:[%s303 + $0x98] sm:$0xff]
        %v441 = vld [vmem:[%s303 + $0xa0] sm:$0xff]
        %v442 = vld [vmem:[%s303 + $0xa8] sm:$0xff]
        %v443 = vld [vmem:[%s303 + $0xb0] sm:$0xff]
        %v444 = vld [vmem:[%s303 + $0xb8] sm:$0xff]
        %v445 = vld [vmem:[%s303 + $0xc0] sm:$0xff]
        %v446 = vld [vmem:[%s303 + $0xc8] sm:$0xff]
        %v447 = vld [vmem:[%s303 + $0xd0] sm:$0xff]
        %v448 = vld [vmem:[%s303 + $0xd8] sm:$0xff]
        %v449 = vld [vmem:[%s303 + $0xe0] sm:$0xff]
        %v450 = vld [vmem:[%s303 + $0xe8] sm:$0xff]
        %v451 = vld [vmem:[%s303 + $0xf0] sm:$0xff]
        %v452 = vld [vmem:[%s303 + $0xf8] sm:$0xff]
        %v453 = vld [vmem:[%s303 + $0x100] sm:$0xff]
        %v454 = vld [vmem:[%s303 + $0x108] sm:$0xff]
        %v455 = vld [vmem:[%s303 + $0x110] sm:$0xff]
        %v456 = vld [vmem:[%s303 + $0x118] sm:$0xff]
        %v457 = vld [vmem:[%s303 + $0x120] sm:$0xff]
        %v458 = vld [vmem:[%s303 + $0x128] sm:$0xff]
        %v459 = vld [vmem:[%s303 + $0x130] sm:$0xff]
        %v460 = vld [vmem:[%s303 + $0x138] sm:$0xff]
        %v461 = vld [vmem:[%s303 + $0x140] sm:$0xff]
        %v462 = vld [vmem:[%s303 + $0x148] sm:$0xff]
        %v463 = vld [vmem:[%s303 + $0x150] sm:$0xff]
        %v464 = vld [vmem:[%s303 + $0x158] sm:$0xff]
        %v465 = vld [vmem:[%s303 + $0x160] sm:$0xff]
        %v466 = vld [vmem:[%s303 + $0x168] sm:$0xff]
        %v467 = vld [vmem:[%s303 + $0x170] sm:$0xff]
        %v468 = vld [vmem:[%s303 + $0x178] sm:$0xff]
        %v469 = vld [vmem:[%s303 + $0x180] sm:$0xff]
        %v470 = vld [vmem:[%s303 + $0x188] sm:$0xff]
        %v471 = vld [vmem:[%s303 + $0x190] sm:$0xff]
        %v472 = vld [vmem:[%s303 + $0x198] sm:$0xff]
        %v473 = vld [vmem:[%s303 + $0x1a0] sm:$0xff]
        %v474 = vld [vmem:[%s303 + $0x1a8] sm:$0xff]
        %v475 = vld [vmem:[%s303 + $0x1b0] sm:$0xff]
        %v476 = vld [vmem:[%s303 + $0x1b8] sm:$0xff]
        %v477 = vld [vmem:[%s303 + $0x1c0] sm:$0xff]
        %v478 = vld [vmem:[%s303 + $0x1c8] sm:$0xff]
        %v479 = vld [vmem:[%s303 + $0x1d0] sm:$0xff]
        %v480 = vld [vmem:[%s303 + $0x1d8] sm:$0xff]
        %v481 = vld [vmem:[%s303 + $0x1e0] sm:$0xff]
        %v482 = vld [vmem:[%s303 + $0x1e8] sm:$0xff]
        %v483 = vld [vmem:[%s303 + $0x1f0] sm:$0xff]
        %v484 = vld [vmem:[%s303 + $0x1f8] sm:$0xff]
        %v485 = vld [vmem:[%s303 + $0x200] sm:$0xff]
        %v486 = vld [vmem:[%s303 + $0x208] sm:$0xff]
        %v487 = vld [vmem:[%s303 + $0x210] sm:$0xff]
        %v488 = vld [vmem:[%s303 + $0x218] sm:$0xff]
        %v489 = vld [vmem:[%s303 + $0x220] sm:$0xff]
        %v490 = vld [vmem:[%s303 + $0x228] sm:$0xff]
        %v491 = vld [vmem:[%s303 + $0x230] sm:$0xff]
        %v492 = vld [vmem:[%s303 + $0x238] sm:$0xff]
        %v493 = vld [vmem:[%s303 + $0x240] sm:$0xff]
        %v494 = vld [vmem:[%s303 + $0x248] sm:$0xff]
        %v495 = vld [vmem:[%s303 + $0x250] sm:$0xff]
        %v496 = vld [vmem:[%s303 + $0x258] sm:$0xff]
        %v497 = vld [vmem:[%s303 + $0x260] sm:$0xff]
        %v498 = vld [vmem:[%s303 + $0x268] sm:$0xff]
        %v499 = vld [vmem:[%s303 + $0x270] sm:$0xff]
        %v500 = vld [vmem:[%s303 + $0x278] sm:$0xff]
        %v501 = vld [vmem:[%s303 + $0x280] sm:$0xff]
        %v502 = vld [vmem:[%s303 + $0x288] sm:$0xff]
        %v503 = vld [vmem:[%s303 + $0x290] sm:$0xff]
        %v504 = vld [vmem:[%s303 + $0x298] sm:$0xff]
        %v505 = vld [vmem:[%s303 + $0x2a0] sm:$0xff]
        %v506 = vld [vmem:[%s303 + $0x2a8] sm:$0xff]
        %v507 = vld [vmem:[%s303 + $0x2b0] sm:$0xff]
        %v508 = vld [vmem:[%s303 + $0x2b8] sm:$0xff]
        %v509 = vld [vmem:[%s303 + $0x2c0] sm:$0xff]
        %v510 = vld [vmem:[%s303 + $0x2c8] sm:$0xff]
        %v511 = vld [vmem:[%s303 + $0x2d0] sm:$0xff]
        %v512 = vld [vmem:[%s303 + $0x2d8] sm:$0xff]
        %v513 = vld [vmem:[%s303 + $0x2e0] sm:$0xff]
        %v514 = vld [vmem:[%s303 + $0x2e8] sm:$0xff]
        %v515 = vld [vmem:[%s303 + $0x2f0] sm:$0xff]
        %v516 = vld [vmem:[%s303 + $0x2f8] sm:$0xff]
        %v517 = vld [vmem:[%s303 + $0x300] sm:$0xff]
        %v518 = vld [vmem:[%s303 + $0x308] sm:$0xff]
        %v519 = vld [vmem:[%s303 + $0x310] sm:$0xff]
        %v520 = vld [vmem:[%s303 + $0x318] sm:$0xff]
        %v521 = vld [vmem:[%s303 + $0x320] sm:$0xff]
        %v522 = vld [vmem:[%s303 + $0x328] sm:$0xff]
        %v523 = vld [vmem:[%s303 + $0x330] sm:$0xff]
        %v524 = vld [vmem:[%s303 + $0x338] sm:$0xff]
        %v525 = vld [vmem:[%s303 + $0x340] sm:$0xff]
        %v526 = vld [vmem:[%s303 + $0x348] sm:$0xff]
        %v527 = vld [vmem:[%s303 + $0x350] sm:$0xff]
        %v528 = vld [vmem:[%s303 + $0x358] sm:$0xff]
        %v529 = vld [vmem:[%s303 + $0x360] sm:$0xff]
        %v530 = vld [vmem:[%s303 + $0x368] sm:$0xff]
        %v531 = vld [vmem:[%s303 + $0x370] sm:$0xff]
        %v532 = vld [vmem:[%s303 + $0x378] sm:$0xff]
        %v533 = vld [vmem:[%s303 + $0x380] sm:$0xff]
        %v534 = vld [vmem:[%s303 + $0x388] sm:$0xff]
        %v535 = vld [vmem:[%s303 + $0x390] sm:$0xff]
        %v536 = vld [vmem:[%s303 + $0x398] sm:$0xff]
        %v537 = vld [vmem:[%s303 + $0x3a0] sm:$0xff]
        %v538 = vld [vmem:[%s303 + $0x3a8] sm:$0xff]
        %v539 = vld [vmem:[%s303 + $0x3b0] sm:$0xff]
        %v540 = vld [vmem:[%s303 + $0x3b8] sm:$0xff]
        %v541 = vld [vmem:[%s303 + $0x3c0] sm:$0xff]
        %v542 = vld [vmem:[%s303 + $0x3c8] sm:$0xff]
        %v543 = vld [vmem:[%s303 + $0x3d0] sm:$0xff]
        %v544 = vld [vmem:[%s303 + $0x3d8] sm:$0xff]
        %v545 = vld [vmem:[%s303 + $0x3e0] sm:$0xff]
        %v546 = vld [vmem:[%s303 + $0x3e8] sm:$0xff]
        %v547 = vld [vmem:[%s303 + $0x3f0] sm:$0xff]
        %v548 = vld [vmem:[%s303 + $0x3f8] sm:$0xff]
        %v549 = vld [vmem:[%s303 + $0x400] sm:$0xff]
        %v550 = vld [vmem:[%s303 + $0x408] sm:$0xff]
        %v551 = vld [vmem:[%s303 + $0x410] sm:$0xff]
        %v552 = vld [vmem:[%s303 + $0x418] sm:$0xff]
        %v553 = vld [vmem:[%s303 + $0x420] sm:$0xff]
        %v554 = vld [vmem:[%s303 + $0x428] sm:$0xff]
        %v555 = vld [vmem:[%s303 + $0x430] sm:$0xff]
        %v556 = vld [vmem:[%s303 + $0x438] sm:$0xff]
        %v557 = vld [vmem:[%s303 + $0x440] sm:$0xff]
        %v558 = vld [vmem:[%s303 + $0x448] sm:$0xff]
        %v559 = vld [vmem:[%s303 + $0x450] sm:$0xff]
        %v560 = vld [vmem:[%s303 + $0x458] sm:$0xff]
        %v561 = vld [vmem:[%s303 + $0x460] sm:$0xff]
        %v562 = vld [vmem:[%s303 + $0x468] sm:$0xff]
        %v563 = vld [vmem:[%s303 + $0x470] sm:$0xff]
        %v564 = vld [vmem:[%s303 + $0x478] sm:$0xff]
        %v565 = vld [vmem:[%s303 + $0x480] sm:$0xff]
        %v566 = vld [vmem:[%s303 + $0x488] sm:$0xff]
        %v567 = vld [vmem:[%s303 + $0x490] sm:$0xff]
        %v568 = vld [vmem:[%s303 + $0x498] sm:$0xff]
        %v569 = vld [vmem:[%s303 + $0x4a0] sm:$0xff]
        %v570 = vld [vmem:[%s303 + $0x4a8] sm:$0xff]
        %v571 = vld [vmem:[%s303 + $0x4b0] sm:$0xff]
        %v572 = vld [vmem:[%s303 + $0x4b8] sm:$0xff]
        %v573 = vld [vmem:[%s303 + $0x4c0] sm:$0xff]
        %v574 = vld [vmem:[%s303 + $0x4c8] sm:$0xff]
        %v575 = vld [vmem:[%s303 + $0x4d0] sm:$0xff]
        %v576 = vld [vmem:[%s303 + $0x4d8] sm:$0xff]
        %v577 = vld [vmem:[%s303 + $0x4e0] sm:$0xff]
        %v578 = vld [vmem:[%s303 + $0x4e8] sm:$0xff]
        %v579 = vld [vmem:[%s303 + $0x4f0] sm:$0xff]
        %v580 = vld [vmem:[%s303 + $0x4f8] sm:$0xff]
        %v581 = vld [vmem:[%s303 + $0x500] sm:$0xff]
        %v582 = vld [vmem:[%s303 + $0x508] sm:$0xff]
        %v583 = vld [vmem:[%s303 + $0x510] sm:$0xff]
        %v584 = vld [vmem:[%s303 + $0x518] sm:$0xff]
        %v585 = vld [vmem:[%s303 + $0x520] sm:$0xff]
        %v586 = vld [vmem:[%s303 + $0x528] sm:$0xff]
        %v587 = vld [vmem:[%s303 + $0x530] sm:$0xff]
        %v588 = vld [vmem:[%s303 + $0x538] sm:$0xff]
        %v589 = vld [vmem:[%s303 + $0x540] sm:$0xff]
        %v590 = vld [vmem:[%s303 + $0x548] sm:$0xff]
        %v591 = vld [vmem:[%s303 + $0x550] sm:$0xff]
        %v592 = vld [vmem:[%s303 + $0x558] sm:$0xff]
        %v593 = vld [vmem:[%s303 + $0x560] sm:$0xff]
        %v594 = vld [vmem:[%s303 + $0x568] sm:$0xff]
        %v595 = vld [vmem:[%s303 + $0x570] sm:$0xff]
        %v596 = vld [vmem:[%s303 + $0x578] sm:$0xff]
        %v597 = vld [vmem:[%s303 + $0x580] sm:$0xff]
        %v598 = vld [vmem:[%s303 + $0x588] sm:$0xff]
        %v599 = vld [vmem:[%s303 + $0x590] sm:$0xff]
        %v600 = vld [vmem:[%s303 + $0x598] sm:$0xff]
        %v601 = vld [vmem:[%s303 + $0x5a0] sm:$0xff]
        %v602 = vld [vmem:[%s303 + $0x5a8] sm:$0xff]
        %v603 = vld [vmem:[%s303 + $0x5b0] sm:$0xff]
        %v604 = vld [vmem:[%s303 + $0x5b8] sm:$0xff]
        %v605 = vld [vmem:[%s303 + $0x5c0] sm:$0xff]
        %v606 = vld [vmem:[%s303 + $0x5c8] sm:$0xff]
        %v607 = vld [vmem:[%s303 + $0x5d0] sm:$0xff]
        %v608 = vld [vmem:[%s303 + $0x5d8] sm:$0xff]
        %v609 = vld [vmem:[%s303 + $0x5e0] sm:$0xff]
        %v610 = vld [vmem:[%s303 + $0x5e8] sm:$0xff]
        %v611 = vld [vmem:[%s303 + $0x5f0] sm:$0xff]
        %v612 = vld [vmem:[%s303 + $0x5f8] sm:$0xff]
        %v613 = vld [vmem:[%s303 + $0x600] sm:$0xff]
        %v614 = vld [vmem:[%s303 + $0x608] sm:$0xff]
        %v615 = vld [vmem:[%s303 + $0x610] sm:$0xff]
        %v616 = vld [vmem:[%s303 + $0x618] sm:$0xff]
        %v617 = vld [vmem:[%s303 + $0x620] sm:$0xff]
        %v618 = vld [vmem:[%s303 + $0x628] sm:$0xff]
        %v619 = vld [vmem:[%s303 + $0x630] sm:$0xff]
        %v620 = vld [vmem:[%s303 + $0x638] sm:$0xff]
        %v621 = vld [vmem:[%s303 + $0x640] sm:$0xff]
        %v622 = vld [vmem:[%s303 + $0x648] sm:$0xff]
        %v623 = vld [vmem:[%s303 + $0x650] sm:$0xff]
        %v624 = vld [vmem:[%s303 + $0x658] sm:$0xff]
        %v625 = vld [vmem:[%s303 + $0x660] sm:$0xff]
        %v626 = vld [vmem:[%s303 + $0x668] sm:$0xff]
        %v627 = vld [vmem:[%s303 + $0x670] sm:$0xff]
        %v628 = vld [vmem:[%s303 + $0x678] sm:$0xff]
        %v629 = vld [vmem:[%s303 + $0x680] sm:$0xff]
        %v630 = vld [vmem:[%s303 + $0x688] sm:$0xff]
        %v631 = vld [vmem:[%s303 + $0x690] sm:$0xff]
        %v632 = vld [vmem:[%s303 + $0x698] sm:$0xff]
        %v633 = vld [vmem:[%s303 + $0x6a0] sm:$0xff]
        %v634 = vld [vmem:[%s303 + $0x6a8] sm:$0xff]
        %v635 = vld [vmem:[%s303 + $0x6b0] sm:$0xff]
        %v636 = vld [vmem:[%s303 + $0x6b8] sm:$0xff]
        %v637 = vld [vmem:[%s303 + $0x6c0] sm:$0xff]
        %v638 = vld [vmem:[%s303 + $0x6c8] sm:$0xff]
        %v639 = vld [vmem:[%s303 + $0x6d0] sm:$0xff]
        %v640 = vld [vmem:[%s303 + $0x6d8] sm:$0xff]
        %v641 = vld [vmem:[%s303 + $0x6e0] sm:$0xff]
        %v642 = vld [vmem:[%s303 + $0x6e8] sm:$0xff]
        %v643 = vld [vmem:[%s303 + $0x6f0] sm:$0xff]
        %v644 = vld [vmem:[%s303 + $0x6f8] sm:$0xff]
        %v645 = vld [vmem:[%s303 + $0x700] sm:$0xff]
        %v646 = vld [vmem:[%s303 + $0x708] sm:$0xff]
        %v647 = vld [vmem:[%s303 + $0x710] sm:$0xff]
        %v648 = vld [vmem:[%s303 + $0x718] sm:$0xff]
        %v649 = vld [vmem:[%s303 + $0x720] sm:$0xff]
        %v650 = vld [vmem:[%s303 + $0x728] sm:$0xff]
        %v651 = vld [vmem:[%s303 + $0x730] sm:$0xff]
        %v652 = vld [vmem:[%s303 + $0x738] sm:$0xff]
        %v653 = vld [vmem:[%s303 + $0x740] sm:$0xff]
        %v654 = vld [vmem:[%s303 + $0x748] sm:$0xff]
        %v655 = vld [vmem:[%s303 + $0x750] sm:$0xff]
        %v656 = vld [vmem:[%s303 + $0x758] sm:$0xff]
        %v657 = vld [vmem:[%s303 + $0x760] sm:$0xff]
        %v658 = vld [vmem:[%s303 + $0x768] sm:$0xff]
        %v659 = vld [vmem:[%s303 + $0x770] sm:$0xff]
        %v660 = vld [vmem:[%s303 + $0x778] sm:$0xff]
        %v661 = vld [vmem:[%s303 + $0x780] sm:$0xff]
        %v662 = vld [vmem:[%s303 + $0x788] sm:$0xff]
        %v663 = vld [vmem:[%s303 + $0x790] sm:$0xff]
        %v664 = vld [vmem:[%s303 + $0x798] sm:$0xff]
        %v665 = vld [vmem:[%s303 + $0x7a0] sm:$0xff]
        %v666 = vld [vmem:[%s303 + $0x7a8] sm:$0xff]
        %v667 = vld [vmem:[%s303 + $0x7b0] sm:$0xff]
        %v668 = vld [vmem:[%s303 + $0x7b8] sm:$0xff]
        %v669 = vld [vmem:[%s303 + $0x7c0] sm:$0xff]
        %v670 = vld [vmem:[%s303 + $0x7c8] sm:$0xff]
        %v671 = vld [vmem:[%s303 + $0x7d0] sm:$0xff]
        %v672 = vld [vmem:[%s303 + $0x7d8] sm:$0xff]
        %v673 = vld [vmem:[%s303 + $0x7e0] sm:$0xff]
        %v674 = vld [vmem:[%s303 + $0x7e8] sm:$0xff]
        %v675 = vld [vmem:[%s303 + $0x7f0] sm:$0xff]
        %v676 = vld [vmem:[%s303 + $0x7f8] sm:$0xff]
        %v677 = vld [vmem:[%s303 + $0x800] sm:$0xff]
        %v678 = vld [vmem:[%s303 + $0x808] sm:$0xff]
        %v679 = vld [vmem:[%s303 + $0x810] sm:$0xff]
        %v680 = vld [vmem:[%s303 + $0x818] sm:$0xff]
        %v681 = vld [vmem:[%s303 + $0x820] sm:$0xff]
        %v682 = vld [vmem:[%s303 + $0x828] sm:$0xff]
        %v683 = vld [vmem:[%s303 + $0x830] sm:$0xff]
        %v684 = vld [vmem:[%s303 + $0x838] sm:$0xff]
        %v685 = vld [vmem:[%s303 + $0x840] sm:$0xff]
        %v686 = vld [vmem:[%s303 + $0x848] sm:$0xff]
        %v687 = vld [vmem:[%s303 + $0x850] sm:$0xff]
        %v688 = vld [vmem:[%s303 + $0x858] sm:$0xff]
        %v689 = vld [vmem:[%s303 + $0x860] sm:$0xff]
        %v690 = vld [vmem:[%s303 + $0x868] sm:$0xff]
        %v691 = vld [vmem:[%s303 + $0x870] sm:$0xff]
        %v692 = vld [vmem:[%s303 + $0x878] sm:$0xff]
        %v693 = vld [vmem:[%s303 + $0x880] sm:$0xff]
        %v694 = vld [vmem:[%s303 + $0x888] sm:$0xff]
        %v695 = vld [vmem:[%s303 + $0x890] sm:$0xff]
        %v696 = vld [vmem:[%s303 + $0x898] sm:$0xff]
        %v697 = vld [vmem:[%s303 + $0x8a0] sm:$0xff]
        %v698 = vld [vmem:[%s303 + $0x8a8] sm:$0xff]
        %v699 = vld [vmem:[%s303 + $0x8b0] sm:$0xff]
        %v700 = vld [vmem:[%s303 + $0x8b8] sm:$0xff]
        %v701 = vld [vmem:[%s303 + $0x8c0] sm:$0xff]
        %v702 = vld [vmem:[%s303 + $0x8c8] sm:$0xff]
        %v703 = vld [vmem:[%s303 + $0x8d0] sm:$0xff]
        %v704 = vld [vmem:[%s303 + $0x8d8] sm:$0xff]
        %v705 = vld [vmem:[%s303 + $0x8e0] sm:$0xff]
        %v706 = vld [vmem:[%s303 + $0x8e8] sm:$0xff]
        %v707 = vld [vmem:[%s303 + $0x8f0] sm:$0xff]
        %v708 = vld [vmem:[%s303 + $0x8f8] sm:$0xff]
        %v709 = vld [vmem:[%s303 + $0x900] sm:$0xff]
        %v710 = vld [vmem:[%s303 + $0x908] sm:$0xff]
        %v711 = vld [vmem:[%s303 + $0x910] sm:$0xff]
        %v712 = vld [vmem:[%s303 + $0x918] sm:$0xff]
        %v713 = vld [vmem:[%s303 + $0x920] sm:$0xff]
        %v714 = vld [vmem:[%s303 + $0x928] sm:$0xff]
        %v715 = vld [vmem:[%s303 + $0x930] sm:$0xff]
        %v716 = vld [vmem:[%s303 + $0x938] sm:$0xff]
        %v717 = vld [vmem:[%s303 + $0x940] sm:$0xff]
        %v718 = vld [vmem:[%s303 + $0x948] sm:$0xff]
        %v719 = vld [vmem:[%s303 + $0x950] sm:$0xff]
        %v720 = vld [vmem:[%s303 + $0x958] sm:$0xff]
        %v721 = vld [vmem:[%s303 + $0x960] sm:$0xff]
        %v722 = vld [vmem:[%s303 + $0x968] sm:$0xff]
        %v723 = vld [vmem:[%s303 + $0x970] sm:$0xff]
        %v724 = vld [vmem:[%s303 + $0x978] sm:$0xff]
        %v725 = vld [vmem:[%s303 + $0x980] sm:$0xff]
        %v726 = vld [vmem:[%s303 + $0x988] sm:$0xff]
        %v727 = vld [vmem:[%s303 + $0x990] sm:$0xff]
        %v728 = vld [vmem:[%s303 + $0x998] sm:$0xff]
        %v729 = vld [vmem:[%s303 + $0x9a0] sm:$0xff]
        %v730 = vld [vmem:[%s303 + $0x9a8] sm:$0xff]
        %v731 = vld [vmem:[%s303 + $0x9b0] sm:$0xff]
        %v732 = vld [vmem:[%s303 + $0x9b8] sm:$0xff]
        %v733 = vld [vmem:[%s303 + $0x9c0] sm:$0xff]
        %v734 = vld [vmem:[%s303 + $0x9c8] sm:$0xff]
        %v735 = vld [vmem:[%s303 + $0x9d0] sm:$0xff]
        %v736 = vld [vmem:[%s303 + $0x9d8] sm:$0xff]
        %v737 = vld [vmem:[%s303 + $0x9e0] sm:$0xff]
        %v738 = vld [vmem:[%s303 + $0x9e8] sm:$0xff]
        %v739 = vld [vmem:[%s303 + $0x9f0] sm:$0xff]
        %v740 = vld [vmem:[%s303 + $0x9f8] sm:$0xff]
        %v741 = vld [vmem:[%s303 + $0xa00] sm:$0xff]
        %v742 = vld [vmem:[%s303 + $0xa08] sm:$0xff]
        %v743 = vld [vmem:[%s303 + $0xa10] sm:$0xff]
        %v744 = vld [vmem:[%s303 + $0xa18] sm:$0xff]
        %v745 = vld [vmem:[%s303 + $0xa20] sm:$0xff]
        %v746 = vld [vmem:[%s303 + $0xa28] sm:$0xff]
        %v747 = vld [vmem:[%s303 + $0xa30] sm:$0xff]
        %v748 = vld [vmem:[%s303 + $0xa38] sm:$0xff]
        %v749 = vld [vmem:[%s303 + $0xa40] sm:$0xff]
        %v750 = vld [vmem:[%s303 + $0xa48] sm:$0xff]
        %v751 = vld [vmem:[%s303 + $0xa50] sm:$0xff]
        %v752 = vld [vmem:[%s303 + $0xa58] sm:$0xff]
        %v753 = vld [vmem:[%s303 + $0xa60] sm:$0xff]
        %v754 = vld [vmem:[%s303 + $0xa68] sm:$0xff]
        %v755 = vld [vmem:[%s303 + $0xa70] sm:$0xff]
        %v756 = vld [vmem:[%s303 + $0xa78] sm:$0xff]
        %v757 = vld [vmem:[%s303 + $0xa80] sm:$0xff]
        %v758 = vld [vmem:[%s303 + $0xa88] sm:$0xff]
        %v759 = vld [vmem:[%s303 + $0xa90] sm:$0xff]
        %v760 = vld [vmem:[%s303 + $0xa98] sm:$0xff]
        %v761 = vld [vmem:[%s303 + $0xaa0] sm:$0xff]
        %v762 = vld [vmem:[%s303 + $0xaa8] sm:$0xff]
        %v763 = vld [vmem:[%s303 + $0xab0] sm:$0xff]
        %v764 = vld [vmem:[%s303 + $0xab8] sm:$0xff]
        %v765 = vld [vmem:[%s303 + $0xac0] sm:$0xff]
        %v766 = vld [vmem:[%s303 + $0xac8] sm:$0xff]
        %v767 = vld [vmem:[%s303 + $0xad0] sm:$0xff]
        %v768 = vld [vmem:[%s303 + $0xad8] sm:$0xff]
        %v769 = vld [vmem:[%s303 + $0xae0] sm:$0xff]
        %v770 = vld [vmem:[%s303 + $0xae8] sm:$0xff]
        %v771 = vld [vmem:[%s303 + $0xaf0] sm:$0xff]
        %v772 = vld [vmem:[%s303 + $0xaf8] sm:$0xff]
        %v773 = vld [vmem:[%s303 + $0xb00] sm:$0xff]
        %v774 = vld [vmem:[%s303 + $0xb08] sm:$0xff]
        %v775 = vld [vmem:[%s303 + $0xb10] sm:$0xff]
        %v776 = vld [vmem:[%s303 + $0xb18] sm:$0xff]
        %v777 = vld [vmem:[%s303 + $0xb20] sm:$0xff]
        %v778 = vld [vmem:[%s303 + $0xb28] sm:$0xff]
        %v779 = vld [vmem:[%s303 + $0xb30] sm:$0xff]
        %v780 = vld [vmem:[%s303 + $0xb38] sm:$0xff]
        %v781 = vld [vmem:[%s303 + $0xb40] sm:$0xff]
        %v782 = vld [vmem:[%s303 + $0xb48] sm:$0xff]
        %v783 = vld [vmem:[%s303 + $0xb50] sm:$0xff]
        %v784 = vld [vmem:[%s303 + $0xb58] sm:$0xff]
        %v785 = vld [vmem:[%s303 + $0xb60] sm:$0xff]
        %v786 = vld [vmem:[%s303 + $0xb68] sm:$0xff]
        %v787 = vld [vmem:[%s303 + $0xb70] sm:$0xff]
        %v788 = vld [vmem:[%s303 + $0xb78] sm:$0xff]
        %v789 = vld [vmem:[%s303 + $0xb80] sm:$0xff]
        %v790 = vld [vmem:[%s303 + $0xb88] sm:$0xff]
        %v791 = vld [vmem:[%s303 + $0xb90] sm:$0xff]
        %v792 = vld [vmem:[%s303 + $0xb98] sm:$0xff]
        %v793 = vld [vmem:[%s303 + $0xba0] sm:$0xff]
        %v794 = vld [vmem:[%s303 + $0xba8] sm:$0xff]
        %v795 = vld [vmem:[%s303 + $0xbb0] sm:$0xff]
        %v796 = vld [vmem:[%s303 + $0xbb8] sm:$0xff]
        %v797 = vld [vmem:[%s303 + $0xbc0] sm:$0xff]
        %v798 = vld [vmem:[%s303 + $0xbc8] sm:$0xff]
        %v799 = vld [vmem:[%s303 + $0xbd0] sm:$0xff]
        %v800 = vld [vmem:[%s303 + $0xbd8] sm:$0xff]
        %v801 = vld [vmem:[%s303 + $0xbe0] sm:$0xff]
        %v802 = vld [vmem:[%s303 + $0xbe8] sm:$0xff]
        %v803 = vld [vmem:[%s303 + $0xbf0] sm:$0xff]
        %v804 = vld [vmem:[%s303 + $0xbf8] sm:$0xff]
        %v805 = vld [vmem:[%s303 + $0xc00] sm:$0xff]
        %v806 = vld [vmem:[%s303 + $0xc08] sm:$0xff]
        %v807 = vld [vmem:[%s303 + $0xc10] sm:$0xff]
        %v808 = vld [vmem:[%s303 + $0xc18] sm:$0xff]
        %v809 = vld [vmem:[%s303 + $0xc20] sm:$0xff]
        %v810 = vld [vmem:[%s303 + $0xc28] sm:$0xff]
        %v811 = vld [vmem:[%s303 + $0xc30] sm:$0xff]
        %v812 = vld [vmem:[%s303 + $0xc38] sm:$0xff]
        %v813 = vld [vmem:[%s303 + $0xc40] sm:$0xff]
        %v814 = vld [vmem:[%s303 + $0xc48] sm:$0xff]
        %v815 = vld [vmem:[%s303 + $0xc50] sm:$0xff]
        %v816 = vld [vmem:[%s303 + $0xc58] sm:$0xff]
        %v817 = vld [vmem:[%s303 + $0xc60] sm:$0xff]
        %v818 = vld [vmem:[%s303 + $0xc68] sm:$0xff]
        %v819 = vld [vmem:[%s303 + $0xc70] sm:$0xff]
        %v820 = vld [vmem:[%s303 + $0xc78] sm:$0xff]
        %v821 = vld [vmem:[%s303 + $0xc80] sm:$0xff]
        %v822 = vld [vmem:[%s303 + $0xc88] sm:$0xff]
        %v823 = vld [vmem:[%s303 + $0xc90] sm:$0xff]
        %v824 = vld [vmem:[%s303 + $0xc98] sm:$0xff]
        %v825 = vld [vmem:[%s303 + $0xca0] sm:$0xff]
        %v826 = vld [vmem:[%s303 + $0xca8] sm:$0xff]
        %v827 = vld [vmem:[%s303 + $0xcb0] sm:$0xff]
        %v828 = vld [vmem:[%s303 + $0xcb8] sm:$0xff]
        %v829 = vld [vmem:[%s303 + $0xcc0] sm:$0xff]
        %v830 = vld [vmem:[%s303 + $0xcc8] sm:$0xff]
        %v831 = vld [vmem:[%s303 + $0xcd0] sm:$0xff]
        %v832 = vld [vmem:[%s303 + $0xcd8] sm:$0xff]
        %v833 = vld [vmem:[%s303 + $0xce0] sm:$0xff]
        %v834 = vld [vmem:[%s303 + $0xce8] sm:$0xff]
        %v835 = vld [vmem:[%s303 + $0xcf0] sm:$0xff]
        %v836 = vld [vmem:[%s303 + $0xcf8] sm:$0xff]
        %v837 = vld [vmem:[%s303 + $0xd00] sm:$0xff]
        %v838 = vld [vmem:[%s303 + $0xd08] sm:$0xff]
        %v839 = vld [vmem:[%s303 + $0xd10] sm:$0xff]
        %v840 = vld [vmem:[%s303 + $0xd18] sm:$0xff]
        %v841 = vld [vmem:[%s303 + $0xd20] sm:$0xff]
        %v842 = vld [vmem:[%s303 + $0xd28] sm:$0xff]
        %v843 = vld [vmem:[%s303 + $0xd30] sm:$0xff]
        %v844 = vld [vmem:[%s303 + $0xd38] sm:$0xff]
        %v845 = vld [vmem:[%s303 + $0xd40] sm:$0xff]
        %v846 = vld [vmem:[%s303 + $0xd48] sm:$0xff]
        %v847 = vld [vmem:[%s303 + $0xd50] sm:$0xff]
        %v848 = vld [vmem:[%s303 + $0xd58] sm:$0xff]
        %v849 = vld [vmem:[%s303 + $0xd60] sm:$0xff]
        %v850 = vld [vmem:[%s303 + $0xd68] sm:$0xff]
        %v851 = vld [vmem:[%s303 + $0xd70] sm:$0xff]
        %v852 = vld [vmem:[%s303 + $0xd78] sm:$0xff]
        %v853 = vld [vmem:[%s303 + $0xd80] sm:$0xff]
        %v854 = vld [vmem:[%s303 + $0xd88] sm:$0xff]
        %v855 = vld [vmem:[%s303 + $0xd90] sm:$0xff]
        %v856 = vld [vmem:[%s303 + $0xd98] sm:$0xff]
        %v857 = vld [vmem:[%s303 + $0xda0] sm:$0xff]
        %v858 = vld [vmem:[%s303 + $0xda8] sm:$0xff]
        %v859 = vld [vmem:[%s303 + $0xdb0] sm:$0xff]
        %v860 = vld [vmem:[%s303 + $0xdb8] sm:$0xff]
        %v861 = vld [vmem:[%s303 + $0xdc0] sm:$0xff]
        %v862 = vld [vmem:[%s303 + $0xdc8] sm:$0xff]
        %v863 = vld [vmem:[%s303 + $0xdd0] sm:$0xff]
        %v864 = vld [vmem:[%s303 + $0xdd8] sm:$0xff]
        %v865 = vld [vmem:[%s303 + $0xde0] sm:$0xff]
        %v866 = vld [vmem:[%s303 + $0xde8] sm:$0xff]
        %v867 = vld [vmem:[%s303 + $0xdf0] sm:$0xff]
        %v868 = vld [vmem:[%s303 + $0xdf8] sm:$0xff]
        %v869 = vld [vmem:[%s303 + $0xe00] sm:$0xff]
        %v870 = vld [vmem:[%s303 + $0xe08] sm:$0xff]
        %v871 = vld [vmem:[%s303 + $0xe10] sm:$0xff]
        %v872 = vld [vmem:[%s303 + $0xe18] sm:$0xff]
        %v873 = vld [vmem:[%s303 + $0xe20] sm:$0xff]
        %v874 = vld [vmem:[%s303 + $0xe28] sm:$0xff]
        %v875 = vld [vmem:[%s303 + $0xe30] sm:$0xff]
        %v876 = vld [vmem:[%s303 + $0xe38] sm:$0xff]
        %v877 = vld [vmem:[%s303 + $0xe40] sm:$0xff]
        %v878 = vld [vmem:[%s303 + $0xe48] sm:$0xff]
        %v879 = vld [vmem:[%s303 + $0xe50] sm:$0xff]
        %v880 = vld [vmem:[%s303 + $0xe58] sm:$0xff]
        %v881 = vld [vmem:[%s303 + $0xe60] sm:$0xff]
        %v882 = vld [vmem:[%s303 + $0xe68] sm:$0xff]
        %v883 = vld [vmem:[%s303 + $0xe70] sm:$0xff]
        %v884 = vld [vmem:[%s303 + $0xe78] sm:$0xff]
        %v885 = vld [vmem:[%s303 + $0xe80] sm:$0xff]
        %v886 = vld [vmem:[%s303 + $0xe88] sm:$0xff]
        %v887 = vld [vmem:[%s303 + $0xe90] sm:$0xff]
        %v888 = vld [vmem:[%s303 + $0xe98] sm:$0xff]
        %v889 = vld [vmem:[%s303 + $0xea0] sm:$0xff]
        %v890 = vld [vmem:[%s303 + $0xea8] sm:$0xff]
        %v891 = vld [vmem:[%s303 + $0xeb0] sm:$0xff]
        %v892 = vld [vmem:[%s303 + $0xeb8] sm:$0xff]
        %v893 = vld [vmem:[%s303 + $0xec0] sm:$0xff]
        %v894 = vld [vmem:[%s303 + $0xec8] sm:$0xff]
        %v895 = vld [vmem:[%s303 + $0xed0] sm:$0xff]
        %v896 = vld [vmem:[%s303 + $0xed8] sm:$0xff]
        %v897 = vld [vmem:[%s303 + $0xee0] sm:$0xff]
        %v898 = vld [vmem:[%s303 + $0xee8] sm:$0xff]
        %v899 = vld [vmem:[%s303 + $0xef0] sm:$0xff]
        %v900 = vld [vmem:[%s303 + $0xef8] sm:$0xff]
        %v901 = vld [vmem:[%s303 + $0xf00] sm:$0xff]
        %v902 = vld [vmem:[%s303 + $0xf08] sm:$0xff]
        %v903 = vld [vmem:[%s303 + $0xf10] sm:$0xff]
        %v904 = vld [vmem:[%s303 + $0xf18] sm:$0xff]
        %v905 = vld [vmem:[%s303 + $0xf20] sm:$0xff]
        %v906 = vld [vmem:[%s303 + $0xf28] sm:$0xff]
        %v907 = vld [vmem:[%s303 + $0xf30] sm:$0xff]
        %v908 = vld [vmem:[%s303 + $0xf38] sm:$0xff]
        %v909 = vld [vmem:[%s303 + $0xf40] sm:$0xff]
        %v910 = vld [vmem:[%s303 + $0xf48] sm:$0xff]
        %v911 = vld [vmem:[%s303 + $0xf50] sm:$0xff]
        %v912 = vld [vmem:[%s303 + $0xf58] sm:$0xff]
        %v913 = vld [vmem:[%s303 + $0xf60] sm:$0xff]
        %v914 = vld [vmem:[%s303 + $0xf68] sm:$0xff]
        %v915 = vld [vmem:[%s303 + $0xf70] sm:$0xff]
        %v916 = vld [vmem:[%s303 + $0xf78] sm:$0xff]
        %v917 = vld [vmem:[%s303 + $0xf80] sm:$0xff]
        %v918 = vld [vmem:[%s303 + $0xf88] sm:$0xff]
        %v919 = vld [vmem:[%s303 + $0xf90] sm:$0xff]
        %v920 = vld [vmem:[%s303 + $0xf98] sm:$0xff]
        %v921 = vld [vmem:[%s303 + $0xfa0] sm:$0xff]
        %v922 = vld [vmem:[%s303 + $0xfa8] sm:$0xff]
        %v923 = vld [vmem:[%s303 + $0xfb0] sm:$0xff]
        %v924 = vld [vmem:[%s303 + $0xfb8] sm:$0xff]
        %v925 = vld [vmem:[%s303 + $0xfc0] sm:$0xff]
        %v926 = vld [vmem:[%s303 + $0xfc8] sm:$0xff]
        %v927 = vld [vmem:[%s303 + $0xfd0] sm:$0xff]
        %v928 = vld [vmem:[%s303 + $0xfd8] sm:$0xff]
        %v929 = vld [vmem:[%s303 + $0xfe0] sm:$0xff]
        %v930 = vld [vmem:[%s303 + $0xfe8] sm:$0xff]
        %v931 = vld [vmem:[%s303 + $0xff0] sm:$0xff]
        %v932 = vld [vmem:[%s303 + $0xff8] sm:$0xff]
        %v933 = vld [vmem:[%s303 + $0x1000] sm:$0xff]
        %v934 = vld [vmem:[%s303 + $0x1008] sm:$0xff]
        %v935 = vld [vmem:[%s303 + $0x1010] sm:$0xff]
        %v936 = vld [vmem:[%s303 + $0x1018] sm:$0xff]
        %v937 = vld [vmem:[%s303 + $0x1020] sm:$0xff]
        %v938 = vld [vmem:[%s303 + $0x1028] sm:$0xff]
        %v939 = vld [vmem:[%s303 + $0x1030] sm:$0xff]
        %v940 = vld [vmem:[%s303 + $0x1038] sm:$0xff]
        %v941 = vld [vmem:[%s303 + $0x1040] sm:$0xff]
        %v942 = vld [vmem:[%s303 + $0x1048] sm:$0xff]
        %v943 = vld [vmem:[%s303 + $0x1050] sm:$0xff]
        %v944 = vld [vmem:[%s303 + $0x1058] sm:$0xff]
        %v945 = vld [vmem:[%s303 + $0x1060] sm:$0xff]
        %v946 = vld [vmem:[%s303 + $0x1068] sm:$0xff]
        %v947 = vld [vmem:[%s303 + $0x1070] sm:$0xff]
        %v948 = vld [vmem:[%s303 + $0x1078] sm:$0xff]
        %v949 = vld [vmem:[%s303 + $0x1080] sm:$0xff]
        %v950 = vld [vmem:[%s303 + $0x1088] sm:$0xff]
        %v951 = vld [vmem:[%s303 + $0x1090] sm:$0xff]
        %v952 = vld [vmem:[%s303 + $0x1098] sm:$0xff]
        %v953 = vld [vmem:[%s303 + $0x10a0] sm:$0xff]
        %v954 = vld [vmem:[%s303 + $0x10a8] sm:$0xff]
        %v955 = vld [vmem:[%s303 + $0x10b0] sm:$0xff]
        %v956 = vld [vmem:[%s303 + $0x10b8] sm:$0xff]
        %v957 = vld [vmem:[%s303 + $0x10c0] sm:$0xff]
        %v958 = vld [vmem:[%s303 + $0x10c8] sm:$0xff]
        %v959 = vld [vmem:[%s303 + $0x10d0] sm:$0xff]
        %v960 = vld [vmem:[%s303 + $0x10d8] sm:$0xff]
        %v961 = vld [vmem:[%s303 + $0x10e0] sm:$0xff]
        %v962 = vld [vmem:[%s303 + $0x10e8] sm:$0xff]
        %v963 = vld [vmem:[%s303 + $0x10f0] sm:$0xff]
        %v964 = vld [vmem:[%s303 + $0x10f8] sm:$0xff]
        %v965 = vld [vmem:[%s303 + $0x1100] sm:$0xff]
        %v966 = vld [vmem:[%s303 + $0x1108] sm:$0xff]
        %v967 = vld [vmem:[%s303 + $0x1110] sm:$0xff]
        %v968 = vld [vmem:[%s303 + $0x1118] sm:$0xff]
        %v969 = vld [vmem:[%s303 + $0x1120] sm:$0xff]
        %v970 = vld [vmem:[%s303 + $0x1128] sm:$0xff]
        %v971 = vld [vmem:[%s303 + $0x1130] sm:$0xff]
        %v972 = vld [vmem:[%s303 + $0x1138] sm:$0xff]
        %v973 = vld [vmem:[%s303 + $0x1140] sm:$0xff]
        %v974 = vld [vmem:[%s303 + $0x1148] sm:$0xff]
        %v975 = vld [vmem:[%s303 + $0x1150] sm:$0xff]
        %v976 = vld [vmem:[%s303 + $0x1158] sm:$0xff]
        %v977 = vld [vmem:[%s303 + $0x1160] sm:$0xff]
        %v978 = vld [vmem:[%s303 + $0x1168] sm:$0xff]
        %v979 = vld [vmem:[%s303 + $0x1170] sm:$0xff]
        %v980 = vld [vmem:[%s303 + $0x1178] sm:$0xff]
        %v981 = vld [vmem:[%s303 + $0x1180] sm:$0xff]
        %v982 = vld [vmem:[%s303 + $0x1188] sm:$0xff]
        %v983 = vld [vmem:[%s303 + $0x1190] sm:$0xff]
        %v984 = vld [vmem:[%s303 + $0x1198] sm:$0xff]
        %v985 = vld [vmem:[%s303 + $0x11a0] sm:$0xff]
        %v986 = vld [vmem:[%s303 + $0x11a8] sm:$0xff]
        %v987 = vld [vmem:[%s303 + $0x11b0] sm:$0xff]
        %v988 = vld [vmem:[%s303 + $0x11b8] sm:$0xff]
        %v989 = vld [vmem:[%s303 + $0x11c0] sm:$0xff]
        %v990 = vld [vmem:[%s303 + $0x11c8] sm:$0xff]
        %v991 = vld [vmem:[%s303 + $0x11d0] sm:$0xff]
        %v992 = vld [vmem:[%s303 + $0x11d8] sm:$0xff]
        %v993 = vld [vmem:[%s303 + $0x11e0] sm:$0xff]
        %v994 = vld [vmem:[%s303 + $0x11e8] sm:$0xff]
        %v995 = vld [vmem:[%s303 + $0x11f0] sm:$0xff]
        %v996 = vld [vmem:[%s303 + $0x11f8] sm:$0xff]
        %v997 = vld [vmem:[%s303 + $0x1200] sm:$0xff]
        %v998 = vld [vmem:[%s303 + $0x1208] sm:$0xff]
        %v999 = vld [vmem:[%s303 + $0x1210] sm:$0xff]
        %v1000 = vld [vmem:[%s303 + $0x1218] sm:$0xff]
        %v1001 = vld [vmem:[%s303 + $0x1220] sm:$0xff]
        %v1002 = vld [vmem:[%s303 + $0x1228] sm:$0xff]
        %v1003 = vld [vmem:[%s303 + $0x1230] sm:$0xff]
        %v1004 = vld [vmem:[%s303 + $0x1238] sm:$0xff]
        %v1005 = vld [vmem:[%s303 + $0x1240] sm:$0xff]
        %v1006 = vld [vmem:[%s303 + $0x1248] sm:$0xff]
        %v1007 = vld [vmem:[%s303 + $0x1250] sm:$0xff]
        %v1008 = vld [vmem:[%s303 + $0x1258] sm:$0xff]
        %v1009 = vld [vmem:[%s303 + $0x1260] sm:$0xff]
        %v1010 = vld [vmem:[%s303 + $0x1268] sm:$0xff]
        %v1011 = vld [vmem:[%s303 + $0x1270] sm:$0xff]
        %v1012 = vld [vmem:[%s303 + $0x1278] sm:$0xff]
        %v1013 = vld [vmem:[%s303 + $0x1280] sm:$0xff]
        %v1014 = vld [vmem:[%s303 + $0x1288] sm:$0xff]
        %v1015 = vld [vmem:[%s303 + $0x1290] sm:$0xff]
        %v1016 = vld [vmem:[%s303 + $0x1298] sm:$0xff]
        %v1017 = vld [vmem:[%s303 + $0x12a0] sm:$0xff]
        %v1018 = vld [vmem:[%s303 + $0x12a8] sm:$0xff]
        %v1019 = vld [vmem:[%s303 + $0x12b0] sm:$0xff]
        %v1020 = vld [vmem:[%s303 + $0x12b8] sm:$0xff]
        %v1021 = vld [vmem:[%s303 + $0x12c0] sm:$0xff]
        %v1022 = vld [vmem:[%s303 + $0x12c8] sm:$0xff]
        %v1023 = vld [vmem:[%s303 + $0x12d0] sm:$0xff]
        %v1024 = vld [vmem:[%s303 + $0x12d8] sm:$0xff]
        %v1025 = vld [vmem:[%s303 + $0x12e0] sm:$0xff]
        %v1026 = vld [vmem:[%s303 + $0x12e8] sm:$0xff]
        %v1027 = vld [vmem:[%s303 + $0x12f0] sm:$0xff]
        %v1028 = vld [vmem:[%s303 + $0x12f8] sm:$0xff]
        %v1029 = vld [vmem:[%s303 + $0x1300] sm:$0xff]
        %v1030 = vld [vmem:[%s303 + $0x1308] sm:$0xff]
        %v1031 = vld [vmem:[%s303 + $0x1310] sm:$0xff]
        %v1032 = vld [vmem:[%s303 + $0x1318] sm:$0xff]
        %v1033 = vld [vmem:[%s303 + $0x1320] sm:$0xff]
        %v1034 = vld [vmem:[%s303 + $0x1328] sm:$0xff]
        %v1035 = vld [vmem:[%s303 + $0x1330] sm:$0xff]
        %v1036 = vld [vmem:[%s303 + $0x1338] sm:$0xff]
        %v1037 = vld [vmem:[%s303 + $0x1340] sm:$0xff]
        %v1038 = vld [vmem:[%s303 + $0x1348] sm:$0xff]
        %v1039 = vld [vmem:[%s303 + $0x1350] sm:$0xff]
        %v1040 = vld [vmem:[%s303 + $0x1358] sm:$0xff]
        %v1041 = vld [vmem:[%s303 + $0x1360] sm:$0xff]
        %v1042 = vld [vmem:[%s303 + $0x1368] sm:$0xff]
        %v1043 = vld [vmem:[%s303 + $0x1370] sm:$0xff]
        %v1044 = vld [vmem:[%s303 + $0x1378] sm:$0xff]
        %v1045 = vld [vmem:[%s303 + $0x1380] sm:$0xff]
        %v1046 = vld [vmem:[%s303 + $0x1388] sm:$0xff]
        %v1047 = vld [vmem:[%s303 + $0x1390] sm:$0xff]
        %v1048 = vld [vmem:[%s303 + $0x1398] sm:$0xff]
        %v1049 = vld [vmem:[%s303 + $0x13a0] sm:$0xff]
        %v1050 = vld [vmem:[%s303 + $0x13a8] sm:$0xff]
        %v1051 = vld [vmem:[%s303 + $0x13b0] sm:$0xff]
        %v1052 = vld [vmem:[%s303 + $0x13b8] sm:$0xff]
        %v1053 = vld [vmem:[%s303 + $0x13c0] sm:$0xff]
        %v1054 = vld [vmem:[%s303 + $0x13c8] sm:$0xff]
        %v1055 = vld [vmem:[%s303 + $0x13d0] sm:$0xff]
        %v1056 = vld [vmem:[%s303 + $0x13d8] sm:$0xff]
        %v1057 = vld [vmem:[%s303 + $0x13e0] sm:$0xff]
        %v1058 = vld [vmem:[%s303 + $0x13e8] sm:$0xff]
        %v1059 = vld [vmem:[%s303 + $0x13f0] sm:$0xff]
        %v1060 = vld [vmem:[%s303 + $0x13f8] sm:$0xff]
        %v1061 = vld [vmem:[%s303 + $0x1400] sm:$0xff]
        %v1062 = vld [vmem:[%s303 + $0x1408] sm:$0xff]
        %v1063 = vld [vmem:[%s303 + $0x1410] sm:$0xff]
        %v1064 = vld [vmem:[%s303 + $0x1418] sm:$0xff]
        %v1065 = vld [vmem:[%s303 + $0x1420] sm:$0xff]
        %v1066 = vld [vmem:[%s303 + $0x1428] sm:$0xff]
        %v1067 = vld [vmem:[%s303 + $0x1430] sm:$0xff]
        %v1068 = vld [vmem:[%s303 + $0x1438] sm:$0xff]
        %v1069 = vld [vmem:[%s303 + $0x1440] sm:$0xff]
        %v1070 = vld [vmem:[%s303 + $0x1448] sm:$0xff]
        %v1071 = vld [vmem:[%s303 + $0x1450] sm:$0xff]
        %v1072 = vld [vmem:[%s303 + $0x1458] sm:$0xff]
        %v1073 = vld [vmem:[%s303 + $0x1460] sm:$0xff]
        %v1074 = vld [vmem:[%s303 + $0x1468] sm:$0xff]
        %v1075 = vld [vmem:[%s303 + $0x1470] sm:$0xff]
        %v1076 = vld [vmem:[%s303 + $0x1478] sm:$0xff]
        %v1077 = vld [vmem:[%s303 + $0x1480] sm:$0xff]
        %v1078 = vld [vmem:[%s303 + $0x1488] sm:$0xff]
        %v1079 = vld [vmem:[%s303 + $0x1490] sm:$0xff]
        %v1080 = vld [vmem:[%s303 + $0x1498] sm:$0xff]
        %v1081 = vld [vmem:[%s303 + $0x14a0] sm:$0xff]
        %v1082 = vld [vmem:[%s303 + $0x14a8] sm:$0xff]
        %v1083 = vld [vmem:[%s303 + $0x14b0] sm:$0xff]
        %v1084 = vld [vmem:[%s303 + $0x14b8] sm:$0xff]
        %v1085 = vld [vmem:[%s303 + $0x14c0] sm:$0xff]
        %v1086 = vld [vmem:[%s303 + $0x14c8] sm:$0xff]
        %v1087 = vld [vmem:[%s303 + $0x14d0] sm:$0xff]
        %v1088 = vld [vmem:[%s303 + $0x14d8] sm:$0xff]
        %v1089 = vld [vmem:[%s303 + $0x14e0] sm:$0xff]
        %v1090 = vld [vmem:[%s303 + $0x14e8] sm:$0xff]
        %v1091 = vld [vmem:[%s303 + $0x14f0] sm:$0xff]
        %v1092 = vld [vmem:[%s303 + $0x14f8] sm:$0xff]
        %v1093 = vld [vmem:[%s303 + $0x1500] sm:$0xff]
        %v1094 = vld [vmem:[%s303 + $0x1508] sm:$0xff]
        %v1095 = vld [vmem:[%s303 + $0x1510] sm:$0xff]
        %v1096 = vld [vmem:[%s303 + $0x1518] sm:$0xff]
        %v1097 = vld [vmem:[%s303 + $0x1520] sm:$0xff]
        %v1098 = vld [vmem:[%s303 + $0x1528] sm:$0xff]
        %v1099 = vld [vmem:[%s303 + $0x1530] sm:$0xff]
        %v1100 = vld [vmem:[%s303 + $0x1538] sm:$0xff]
        %v1101 = vld [vmem:[%s303 + $0x1540] sm:$0xff]
        %v1102 = vld [vmem:[%s303 + $0x1548] sm:$0xff]
        %v1103 = vld [vmem:[%s303 + $0x1550] sm:$0xff]
        %v1104 = vld [vmem:[%s303 + $0x1558] sm:$0xff]
        %v1105 = vld [vmem:[%s303 + $0x1560] sm:$0xff]
        %v1106 = vld [vmem:[%s303 + $0x1568] sm:$0xff]
        %v1107 = vld [vmem:[%s303 + $0x1570] sm:$0xff]
        %v1108 = vld [vmem:[%s303 + $0x1578] sm:$0xff]
        %v1109 = vld [vmem:[%s303 + $0x1580] sm:$0xff]
        %v1110 = vld [vmem:[%s303 + $0x1588] sm:$0xff]
        %v1111 = vld [vmem:[%s303 + $0x1590] sm:$0xff]
        %v1112 = vld [vmem:[%s303 + $0x1598] sm:$0xff]
        %v1113 = vld [vmem:[%s303 + $0x15a0] sm:$0xff]
        %v1114 = vld [vmem:[%s303 + $0x15a8] sm:$0xff]
        %v1115 = vld [vmem:[%s303 + $0x15b0] sm:$0xff]
        %v1116 = vld [vmem:[%s303 + $0x15b8] sm:$0xff]
        %v1117 = vld [vmem:[%s303 + $0x15c0] sm:$0xff]
        %v1118 = vld [vmem:[%s303 + $0x15c8] sm:$0xff]
        %v1119 = vld [vmem:[%s303 + $0x15d0] sm:$0xff]
        %v1120 = vld [vmem:[%s303 + $0x15d8] sm:$0xff]
        %v1121 = vld [vmem:[%s303 + $0x15e0] sm:$0xff]
        %v1122 = vld [vmem:[%s303 + $0x15e8] sm:$0xff]
        %v1123 = vld [vmem:[%s303 + $0x15f0] sm:$0xff]
        %v1124 = vld [vmem:[%s303 + $0x15f8] sm:$0xff]
        %v1125 = vld [vmem:[%s303 + $0x1600] sm:$0xff]
        %v1126 = vld [vmem:[%s303 + $0x1608] sm:$0xff]
        %v1127 = vld [vmem:[%s303 + $0x1610] sm:$0xff]
        %v1128 = vld [vmem:[%s303 + $0x1618] sm:$0xff]
        %v1129 = vld [vmem:[%s303 + $0x1620] sm:$0xff]
        %v1130 = vld [vmem:[%s303 + $0x1628] sm:$0xff]
        %v1131 = vld [vmem:[%s303 + $0x1630] sm:$0xff]
        %v1132 = vld [vmem:[%s303 + $0x1638] sm:$0xff]
        %v1133 = vld [vmem:[%s303 + $0x1640] sm:$0xff]
        %v1134 = vld [vmem:[%s303 + $0x1648] sm:$0xff]
        %v1135 = vld [vmem:[%s303 + $0x1650] sm:$0xff]
        %v1136 = vld [vmem:[%s303 + $0x1658] sm:$0xff]
        %v1137 = vld [vmem:[%s303 + $0x1660] sm:$0xff]
        %v1138 = vld [vmem:[%s303 + $0x1668] sm:$0xff]
        %v1139 = vld [vmem:[%s303 + $0x1670] sm:$0xff]
        %v1140 = vld [vmem:[%s303 + $0x1678] sm:$0xff]
        %v1141 = vld [vmem:[%s303 + $0x1680] sm:$0xff]
        %v1142 = vld [vmem:[%s303 + $0x1688] sm:$0xff]
        %v1143 = vld [vmem:[%s303 + $0x1690] sm:$0xff]
        %v1144 = vld [vmem:[%s303 + $0x1698] sm:$0xff]
        %v1145 = vld [vmem:[%s303 + $0x16a0] sm:$0xff]
        %v1146 = vld [vmem:[%s303 + $0x16a8] sm:$0xff]
        %v1147 = vld [vmem:[%s303 + $0x16b0] sm:$0xff]
        %v1148 = vld [vmem:[%s303 + $0x16b8] sm:$0xff]
        %v1149 = vld [vmem:[%s303 + $0x16c0] sm:$0xff]
        %v1150 = vld [vmem:[%s303 + $0x16c8] sm:$0xff]
        %v1151 = vld [vmem:[%s303 + $0x16d0] sm:$0xff]
        %v1152 = vld [vmem:[%s303 + $0x16d8] sm:$0xff]
        %v1153 = vld [vmem:[%s303 + $0x16e0] sm:$0xff]
        %v1154 = vld [vmem:[%s303 + $0x16e8] sm:$0xff]
        %v1155 = vld [vmem:[%s303 + $0x16f0] sm:$0xff]
        %v1156 = vld [vmem:[%s303 + $0x16f8] sm:$0xff]
        %v1157 = vld [vmem:[%s303 + $0x1700] sm:$0xff]
        %v1158 = vld [vmem:[%s303 + $0x1708] sm:$0xff]
        %v1159 = vld [vmem:[%s303 + $0x1710] sm:$0xff]
        %v1160 = vld [vmem:[%s303 + $0x1718] sm:$0xff]
        %v1161 = vld [vmem:[%s303 + $0x1720] sm:$0xff]
        %v1162 = vld [vmem:[%s303 + $0x1728] sm:$0xff]
        %v1163 = vld [vmem:[%s303 + $0x1730] sm:$0xff]
        %v1164 = vld [vmem:[%s303 + $0x1738] sm:$0xff]
        %v1165 = vld [vmem:[%s303 + $0x1740] sm:$0xff]
        %v1166 = vld [vmem:[%s303 + $0x1748] sm:$0xff]
        %v1167 = vld [vmem:[%s303 + $0x1750] sm:$0xff]
        %v1168 = vld [vmem:[%s303 + $0x1758] sm:$0xff]
        %v1169 = vld [vmem:[%s303 + $0x1760] sm:$0xff]
        %v1170 = vld [vmem:[%s303 + $0x1768] sm:$0xff]
        %v1171 = vld [vmem:[%s303 + $0x1770] sm:$0xff]
        %v1172 = vld [vmem:[%s303 + $0x1778] sm:$0xff]
        %v1173 = vld [vmem:[%s303 + $0x1780] sm:$0xff]
        %v1174 = vld [vmem:[%s303 + $0x1788] sm:$0xff]
        %v1175 = vld [vmem:[%s303 + $0x1790] sm:$0xff]
        %v1176 = vld [vmem:[%s303 + $0x1798] sm:$0xff]
        %v1177 = vld [vmem:[%s303 + $0x17a0] sm:$0xff]
        %v1178 = vld [vmem:[%s303 + $0x17a8] sm:$0xff]
        %v1179 = vld [vmem:[%s303 + $0x17b0] sm:$0xff]
        %v1180 = vld [vmem:[%s303 + $0x17b8] sm:$0xff]
        %v1181 = vld [vmem:[%s303 + $0x17c0] sm:$0xff]
        %v1182 = vld [vmem:[%s303 + $0x17c8] sm:$0xff]
        %v1183 = vld [vmem:[%s303 + $0x17d0] sm:$0xff]
        %v1184 = vld [vmem:[%s303 + $0x17d8] sm:$0xff]
        %v1185 = vld [vmem:[%s303 + $0x17e0] sm:$0xff]
        %v1186 = vld [vmem:[%s303 + $0x17e8] sm:$0xff]
        %v1187 = vld [vmem:[%s303 + $0x17f0] sm:$0xff]
        %v1188 = vld [vmem:[%s303 + $0x17f8] sm:$0xff]
        %v1189 = vld [vmem:[%s303 + $0x1800] sm:$0xff]
        %v1190 = vld [vmem:[%s303 + $0x1808] sm:$0xff]
        %v1191 = vld [vmem:[%s303 + $0x1810] sm:$0xff]
        %v1192 = vld [vmem:[%s303 + $0x1818] sm:$0xff]
        %v1193 = vld [vmem:[%s303 + $0x1820] sm:$0xff]
        %v1194 = vld [vmem:[%s303 + $0x1828] sm:$0xff]
        %v1195 = vld [vmem:[%s303 + $0x1830] sm:$0xff]
        %v1196 = vld [vmem:[%s303 + $0x1838] sm:$0xff]
        %v1197 = vld [vmem:[%s303 + $0x1840] sm:$0xff]
        %v1198 = vld [vmem:[%s303 + $0x1848] sm:$0xff]
        %v1199 = vld [vmem:[%s303 + $0x1850] sm:$0xff]
        %v1200 = vld [vmem:[%s303 + $0x1858] sm:$0xff]
        %v1201 = vld [vmem:[%s303 + $0x1860] sm:$0xff]
        %v1202 = vld [vmem:[%s303 + $0x1868] sm:$0xff]
        %v1203 = vld [vmem:[%s303 + $0x1870] sm:$0xff]
        %v1204 = vld [vmem:[%s303 + $0x1878] sm:$0xff]
        %v1205 = vld [vmem:[%s303 + $0x1880] sm:$0xff]
        %v1206 = vld [vmem:[%s303 + $0x1888] sm:$0xff]
        %v1207 = vld [vmem:[%s303 + $0x1890] sm:$0xff]
        %v1208 = vld [vmem:[%s303 + $0x1898] sm:$0xff]
        %v1209 = vld [vmem:[%s303 + $0x18a0] sm:$0xff]
        %v1210 = vld [vmem:[%s303 + $0x18a8] sm:$0xff]
        %v1211 = vld [vmem:[%s303 + $0x18b0] sm:$0xff]
        %v1212 = vld [vmem:[%s303 + $0x18b8] sm:$0xff]
        %v1213 = vld [vmem:[%s303 + $0x18c0] sm:$0xff]
        %v1214 = vld [vmem:[%s303 + $0x18c8] sm:$0xff]
        %v1215 = vld [vmem:[%s303 + $0x18d0] sm:$0xff]
        %v1216 = vld [vmem:[%s303 + $0x18d8] sm:$0xff]
        %v1217 = vld [vmem:[%s303 + $0x18e0] sm:$0xff]
        %v1218 = vld [vmem:[%s303 + $0x18e8] sm:$0xff]
        %v1219 = vld [vmem:[%s303 + $0x18f0] sm:$0xff]
        %v1220 = vld [vmem:[%s303 + $0x18f8] sm:$0xff]
        %v1221 = vld [vmem:[%s303 + $0x1900] sm:$0xff]
        %v1222 = vld [vmem:[%s303 + $0x1908] sm:$0xff]
        %v1223 = vld [vmem:[%s303 + $0x1910] sm:$0xff]
        %v1224 = vld [vmem:[%s303 + $0x1918] sm:$0xff]
        %v1225 = vld [vmem:[%s303 + $0x1920] sm:$0xff]
        %v1226 = vld [vmem:[%s303 + $0x1928] sm:$0xff]
        %v1227 = vld [vmem:[%s303 + $0x1930] sm:$0xff]
        %v1228 = vld [vmem:[%s303 + $0x1938] sm:$0xff]
        %v1229 = vld [vmem:[%s303 + $0x1940] sm:$0xff]
        %v1230 = vld [vmem:[%s303 + $0x1948] sm:$0xff]
        %v1231 = vld [vmem:[%s303 + $0x1950] sm:$0xff]
        %v1232 = vld [vmem:[%s303 + $0x1958] sm:$0xff]
        %v1233 = vld [vmem:[%s303 + $0x1960] sm:$0xff]
        %v1234 = vld [vmem:[%s303 + $0x1968] sm:$0xff]
        %v1235 = vld [vmem:[%s303 + $0x1970] sm:$0xff]
        %v1236 = vld [vmem:[%s303 + $0x1978] sm:$0xff]
        %v1237 = vld [vmem:[%s303 + $0x1980] sm:$0xff]
        %v1238 = vld [vmem:[%s303 + $0x1988] sm:$0xff]
        %v1239 = vld [vmem:[%s303 + $0x1990] sm:$0xff]
        %v1240 = vld [vmem:[%s303 + $0x1998] sm:$0xff]
        %v1241 = vld [vmem:[%s303 + $0x19a0] sm:$0xff]
        %v1242 = vld [vmem:[%s303 + $0x19a8] sm:$0xff]
        %v1243 = vld [vmem:[%s303 + $0x19b0] sm:$0xff]
        %v1244 = vld [vmem:[%s303 + $0x19b8] sm:$0xff]
        %v1245 = vld [vmem:[%s303 + $0x19c0] sm:$0xff]
        %v1246 = vld [vmem:[%s303 + $0x19c8] sm:$0xff]
        %v1247 = vld [vmem:[%s303 + $0x19d0] sm:$0xff]
        %v1248 = vld [vmem:[%s303 + $0x19d8] sm:$0xff]
        %v1249 = vld [vmem:[%s303 + $0x19e0] sm:$0xff]
        %v1250 = vld [vmem:[%s303 + $0x19e8] sm:$0xff]
        %v1251 = vld [vmem:[%s303 + $0x19f0] sm:$0xff]
        %v1252 = vld [vmem:[%s303 + $0x19f8] sm:$0xff]
        %v1253 = vld [vmem:[%s303 + $0x1a00] sm:$0xff]
        %v1254 = vld [vmem:[%s303 + $0x1a08] sm:$0xff]
        %v1255 = vld [vmem:[%s303 + $0x1a10] sm:$0xff]
        %v1256 = vld [vmem:[%s303 + $0x1a18] sm:$0xff]
        %v1257 = vld [vmem:[%s303 + $0x1a20] sm:$0xff]
        %v1258 = vld [vmem:[%s303 + $0x1a28] sm:$0xff]
        %v1259 = vld [vmem:[%s303 + $0x1a30] sm:$0xff]
        %v1260 = vld [vmem:[%s303 + $0x1a38] sm:$0xff]
        %v1261 = vld [vmem:[%s303 + $0x1a40] sm:$0xff]
        %v1262 = vld [vmem:[%s303 + $0x1a48] sm:$0xff]
        %v1263 = vld [vmem:[%s303 + $0x1a50] sm:$0xff]
        %v1264 = vld [vmem:[%s303 + $0x1a58] sm:$0xff]
        %v1265 = vld [vmem:[%s303 + $0x1a60] sm:$0xff]
        %v1266 = vld [vmem:[%s303 + $0x1a68] sm:$0xff]
        %v1267 = vld [vmem:[%s303 + $0x1a70] sm:$0xff]
        %v1268 = vld [vmem:[%s303 + $0x1a78] sm:$0xff]
        %v1269 = vld [vmem:[%s303 + $0x1a80] sm:$0xff]
        %v1270 = vld [vmem:[%s303 + $0x1a88] sm:$0xff]
        %v1271 = vld [vmem:[%s303 + $0x1a90] sm:$0xff]
        %v1272 = vld [vmem:[%s303 + $0x1a98] sm:$0xff]
        %v1273 = vld [vmem:[%s303 + $0x1aa0] sm:$0xff]
        %v1274 = vld [vmem:[%s303 + $0x1aa8] sm:$0xff]
        %v1275 = vld [vmem:[%s303 + $0x1ab0] sm:$0xff]
        %v1276 = vld [vmem:[%s303 + $0x1ab8] sm:$0xff]
        %v1277 = vld [vmem:[%s303 + $0x1ac0] sm:$0xff]
        %v1278 = vld [vmem:[%s303 + $0x1ac8] sm:$0xff]
        %v1279 = vld [vmem:[%s303 + $0x1ad0] sm:$0xff]
        %v1280 = vld [vmem:[%s303 + $0x1ad8] sm:$0xff]
        %v1281 = vld [vmem:[%s303 + $0x1ae0] sm:$0xff]
        %v1282 = vld [vmem:[%s303 + $0x1ae8] sm:$0xff]
        %v1283 = vld [vmem:[%s303 + $0x1af0] sm:$0xff]
        %v1284 = vld [vmem:[%s303 + $0x1af8] sm:$0xff]
        %v1285 = vld [vmem:[%s303 + $0x1b00] sm:$0xff]
        %v1286 = vld [vmem:[%s303 + $0x1b08] sm:$0xff]
        %v1287 = vld [vmem:[%s303 + $0x1b10] sm:$0xff]
        %v1288 = vld [vmem:[%s303 + $0x1b18] sm:$0xff]
        %v1289 = vld [vmem:[%s303 + $0x1b20] sm:$0xff]
        %v1290 = vld [vmem:[%s303 + $0x1b28] sm:$0xff]
        %v1291 = vld [vmem:[%s303 + $0x1b30] sm:$0xff]
        %v1292 = vld [vmem:[%s303 + $0x1b38] sm:$0xff]
        %v1293 = vld [vmem:[%s303 + $0x1b40] sm:$0xff]
        %v1294 = vld [vmem:[%s303 + $0x1b48] sm:$0xff]
        %v1295 = vld [vmem:[%s303 + $0x1b50] sm:$0xff]
        %v1296 = vld [vmem:[%s303 + $0x1b58] sm:$0xff]
        %v1297 = vld [vmem:[%s303 + $0x1b60] sm:$0xff]
        %v1298 = vld [vmem:[%s303 + $0x1b68] sm:$0xff]
        %v1299 = vld [vmem:[%s303 + $0x1b70] sm:$0xff]
        %v1300 = vld [vmem:[%s303 + $0x1b78] sm:$0xff]
        %v1301 = vld [vmem:[%s303 + $0x1b80] sm:$0xff]
        %v1302 = vld [vmem:[%s303 + $0x1b88] sm:$0xff]
        %v1303 = vld [vmem:[%s303 + $0x1b90] sm:$0xff]
        %v1304 = vld [vmem:[%s303 + $0x1b98] sm:$0xff]
        %v1305 = vld [vmem:[%s303 + $0x1ba0] sm:$0xff]
        %v1306 = vld [vmem:[%s303 + $0x1ba8] sm:$0xff]
        %v1307 = vld [vmem:[%s303 + $0x1bb0] sm:$0xff]
        %v1308 = vld [vmem:[%s303 + $0x1bb8] sm:$0xff]
        %v1309 = vld [vmem:[%s303 + $0x1bc0] sm:$0xff]
        %v1310 = vld [vmem:[%s303 + $0x1bc8] sm:$0xff]
        %v1311 = vld [vmem:[%s303 + $0x1bd0] sm:$0xff]
        %v1312 = vld [vmem:[%s303 + $0x1bd8] sm:$0xff]
        %v1313 = vld [vmem:[%s303 + $0x1be0] sm:$0xff]
        %v1314 = vld [vmem:[%s303 + $0x1be8] sm:$0xff]
        %v1315 = vld [vmem:[%s303 + $0x1bf0] sm:$0xff]
        %v1316 = vld [vmem:[%s303 + $0x1bf8] sm:$0xff]
        %v1317 = vld [vmem:[%s303 + $0x1c00] sm:$0xff]
        %v1318 = vld [vmem:[%s303 + $0x1c08] sm:$0xff]
        %v1319 = vld [vmem:[%s303 + $0x1c10] sm:$0xff]
        %v1320 = vld [vmem:[%s303 + $0x1c18] sm:$0xff]
        %v1321 = vld [vmem:[%s303 + $0x1c20] sm:$0xff]
        %v1322 = vld [vmem:[%s303 + $0x1c28] sm:$0xff]
        %v1323 = vld [vmem:[%s303 + $0x1c30] sm:$0xff]
        %v1324 = vld [vmem:[%s303 + $0x1c38] sm:$0xff]
        %v1325 = vld [vmem:[%s303 + $0x1c40] sm:$0xff]
        %v1326 = vld [vmem:[%s303 + $0x1c48] sm:$0xff]
        %v1327 = vld [vmem:[%s303 + $0x1c50] sm:$0xff]
        %v1328 = vld [vmem:[%s303 + $0x1c58] sm:$0xff]
        %v1329 = vld [vmem:[%s303 + $0x1c60] sm:$0xff]
        %v1330 = vld [vmem:[%s303 + $0x1c68] sm:$0xff]
        %v1331 = vld [vmem:[%s303 + $0x1c70] sm:$0xff]
        %v1332 = vld [vmem:[%s303 + $0x1c78] sm:$0xff]
        %v1333 = vld [vmem:[%s303 + $0x1c80] sm:$0xff]
        %v1334 = vld [vmem:[%s303 + $0x1c88] sm:$0xff]
        %v1335 = vld [vmem:[%s303 + $0x1c90] sm:$0xff]
        %v1336 = vld [vmem:[%s303 + $0x1c98] sm:$0xff]
        %v1337 = vld [vmem:[%s303 + $0x1ca0] sm:$0xff]
        %v1338 = vld [vmem:[%s303 + $0x1ca8] sm:$0xff]
        %v1339 = vld [vmem:[%s303 + $0x1cb0] sm:$0xff]
        %v1340 = vld [vmem:[%s303 + $0x1cb8] sm:$0xff]
        %v1341 = vld [vmem:[%s303 + $0x1cc0] sm:$0xff]
        %v1342 = vld [vmem:[%s303 + $0x1cc8] sm:$0xff]
        %v1343 = vld [vmem:[%s303 + $0x1cd0] sm:$0xff]
        %v1344 = vld [vmem:[%s303 + $0x1cd8] sm:$0xff]
        %v1345 = vld [vmem:[%s303 + $0x1ce0] sm:$0xff]
        %v1346 = vld [vmem:[%s303 + $0x1ce8] sm:$0xff]
        %v1347 = vld [vmem:[%s303 + $0x1cf0] sm:$0xff]
        %v1348 = vld [vmem:[%s303 + $0x1cf8] sm:$0xff]
        %v1349 = vld [vmem:[%s303 + $0x1d00] sm:$0xff]
        %v1350 = vld [vmem:[%s303 + $0x1d08] sm:$0xff]
        %v1351 = vld [vmem:[%s303 + $0x1d10] sm:$0xff]
        %v1352 = vld [vmem:[%s303 + $0x1d18] sm:$0xff]
        %v1353 = vld [vmem:[%s303 + $0x1d20] sm:$0xff]
        %v1354 = vld [vmem:[%s303 + $0x1d28] sm:$0xff]
        %v1355 = vld [vmem:[%s303 + $0x1d30] sm:$0xff]
        %v1356 = vld [vmem:[%s303 + $0x1d38] sm:$0xff]
        %v1357 = vld [vmem:[%s303 + $0x1d40] sm:$0xff]
        %v1358 = vld [vmem:[%s303 + $0x1d48] sm:$0xff]
        %v1359 = vld [vmem:[%s303 + $0x1d50] sm:$0xff]
        %v1360 = vld [vmem:[%s303 + $0x1d58] sm:$0xff]
        %v1361 = vld [vmem:[%s303 + $0x1d60] sm:$0xff]
        %v1362 = vld [vmem:[%s303 + $0x1d68] sm:$0xff]
        %v1363 = vld [vmem:[%s303 + $0x1d70] sm:$0xff]
        %v1364 = vld [vmem:[%s303 + $0x1d78] sm:$0xff]
        %v1365 = vld [vmem:[%s303 + $0x1d80] sm:$0xff]
        %v1366 = vld [vmem:[%s303 + $0x1d88] sm:$0xff]
        %v1367 = vld [vmem:[%s303 + $0x1d90] sm:$0xff]
        %v1368 = vld [vmem:[%s303 + $0x1d98] sm:$0xff]
        %v1369 = vld [vmem:[%s303 + $0x1da0] sm:$0xff]
        %v1370 = vld [vmem:[%s303 + $0x1da8] sm:$0xff]
        %v1371 = vld [vmem:[%s303 + $0x1db0] sm:$0xff]
        %v1372 = vld [vmem:[%s303 + $0x1db8] sm:$0xff]
        %v1373 = vld [vmem:[%s303 + $0x1dc0] sm:$0xff]
        %v1374 = vld [vmem:[%s303 + $0x1dc8] sm:$0xff]
        %v1375 = vld [vmem:[%s303 + $0x1dd0] sm:$0xff]
        %v1376 = vld [vmem:[%s303 + $0x1dd8] sm:$0xff]
        %v1377 = vld [vmem:[%s303 + $0x1de0] sm:$0xff]
        %v1378 = vld [vmem:[%s303 + $0x1de8] sm:$0xff]
        %v1379 = vld [vmem:[%s303 + $0x1df0] sm:$0xff]
        %v1380 = vld [vmem:[%s303 + $0x1df8] sm:$0xff]
        %v1381 = vld [vmem:[%s303 + $0x1e00] sm:$0xff]
        %v1382 = vld [vmem:[%s303 + $0x1e08] sm:$0xff]
        %v1383 = vld [vmem:[%s303 + $0x1e10] sm:$0xff]
        %v1384 = vld [vmem:[%s303 + $0x1e18] sm:$0xff]
        %v1385 = vld [vmem:[%s303 + $0x1e20] sm:$0xff]
        %v1386 = vld [vmem:[%s303 + $0x1e28] sm:$0xff]
        %v1387 = vld [vmem:[%s303 + $0x1e30] sm:$0xff]
        %v1388 = vld [vmem:[%s303 + $0x1e38] sm:$0xff]
        %v1389 = vld [vmem:[%s303 + $0x1e40] sm:$0xff]
        %v1390 = vld [vmem:[%s303 + $0x1e48] sm:$0xff]
        %v1391 = vld [vmem:[%s303 + $0x1e50] sm:$0xff]
        %v1392 = vld [vmem:[%s303 + $0x1e58] sm:$0xff]
        %v1393 = vld [vmem:[%s303 + $0x1e60] sm:$0xff]
        %v1394 = vld [vmem:[%s303 + $0x1e68] sm:$0xff]
        %v1395 = vld [vmem:[%s303 + $0x1e70] sm:$0xff]
        %v1396 = vld [vmem:[%s303 + $0x1e78] sm:$0xff]
        %v1397 = vld [vmem:[%s303 + $0x1e80] sm:$0xff]
        %v1398 = vld [vmem:[%s303 + $0x1e88] sm:$0xff]
        %v1399 = vld [vmem:[%s303 + $0x1e90] sm:$0xff]
        %v1400 = vld [vmem:[%s303 + $0x1e98] sm:$0xff]
        %v1401 = vld [vmem:[%s303 + $0x1ea0] sm:$0xff]
        %v1402 = vld [vmem:[%s303 + $0x1ea8] sm:$0xff]
        %v1403 = vld [vmem:[%s303 + $0x1eb0] sm:$0xff]
        %v1404 = vld [vmem:[%s303 + $0x1eb8] sm:$0xff]
        %v1405 = vld [vmem:[%s303 + $0x1ec0] sm:$0xff]
        %v1406 = vld [vmem:[%s303 + $0x1ec8] sm:$0xff]
        %v1407 = vld [vmem:[%s303 + $0x1ed0] sm:$0xff]
        %v1408 = vld [vmem:[%s303 + $0x1ed8] sm:$0xff]
        %v1409 = vld [vmem:[%s303 + $0x1ee0] sm:$0xff]
        %v1410 = vld [vmem:[%s303 + $0x1ee8] sm:$0xff]
        %v1411 = vld [vmem:[%s303 + $0x1ef0] sm:$0xff]
        %v1412 = vld [vmem:[%s303 + $0x1ef8] sm:$0xff]
        %v1413 = vld [vmem:[%s303 + $0x1f00] sm:$0xff]
        %v1414 = vld [vmem:[%s303 + $0x1f08] sm:$0xff]
        %v1415 = vld [vmem:[%s303 + $0x1f10] sm:$0xff]
        %v1416 = vld [vmem:[%s303 + $0x1f18] sm:$0xff]
        %v1417 = vld [vmem:[%s303 + $0x1f20] sm:$0xff]
        %v1418 = vld [vmem:[%s303 + $0x1f28] sm:$0xff]
        %v1419 = vld [vmem:[%s303 + $0x1f30] sm:$0xff]
        %v1420 = vld [vmem:[%s303 + $0x1f38] sm:$0xff]
        %v1421 = vld [vmem:[%s303 + $0x1f40] sm:$0xff]
        %v1422 = vld [vmem:[%s303 + $0x1f48] sm:$0xff]
        %v1423 = vld [vmem:[%s303 + $0x1f50] sm:$0xff]
        %v1424 = vld [vmem:[%s303 + $0x1f58] sm:$0xff]
        %v1425 = vld [vmem:[%s303 + $0x1f60] sm:$0xff]
        %v1426 = vld [vmem:[%s303 + $0x1f68] sm:$0xff]
        %v1427 = vld [vmem:[%s303 + $0x1f70] sm:$0xff]
        %v1428 = vld [vmem:[%s303 + $0x1f78] sm:$0xff]
        %v1429 = vld [vmem:[%s303 + $0x1f80] sm:$0xff]
        %v1430 = vld [vmem:[%s303 + $0x1f88] sm:$0xff]
        %v1431 = vld [vmem:[%s303 + $0x1f90] sm:$0xff]
        %v1432 = vld [vmem:[%s303 + $0x1f98] sm:$0xff]
        %v1433 = vld [vmem:[%s303 + $0x1fa0] sm:$0xff]
        %v1434 = vld [vmem:[%s303 + $0x1fa8] sm:$0xff]
        %v1435 = vld [vmem:[%s303 + $0x1fb0] sm:$0xff]
        %v1436 = vld [vmem:[%s303 + $0x1fb8] sm:$0xff]
        %v1437 = vld [vmem:[%s303 + $0x1fc0] sm:$0xff]
        %v1438 = vld [vmem:[%s303 + $0x1fc8] sm:$0xff]
        %v1439 = vld [vmem:[%s303 + $0x1fd0] sm:$0xff]
        %v1440 = vld [vmem:[%s303 + $0x1fd8] sm:$0xff]
        %v1441 = vld [vmem:[%s303 + $0x1fe0] sm:$0xff]
        %v1442 = vld [vmem:[%s303 + $0x1fe8] sm:$0xff]
        %v1443 = vld [vmem:[%s303 + $0x1ff0] sm:$0xff]
        %v1444 = vld [vmem:[%s303 + $0x1ff8] sm:$0xff]
        %v1509 = vunpack.c.l.b16 %v357
        %v1510 = vunpack.c.h.b16 %v357
        %v1511 = vunpack.c.l.b16 %v358
        %v1512 = vunpack.c.h.b16 %v358
        %v1513 = vunpack.c.l.b16 %v359
        %v1514 = vunpack.c.h.b16 %v359
        %v1515 = vunpack.c.l.b16 %v360
        %v1516 = vunpack.c.h.b16 %v360
        %v1517 = vunpack.c.l.b16 %v361
        %v1518 = vunpack.c.h.b16 %v361
        %v1519 = vunpack.c.l.b16 %v362
        %v1520 = vunpack.c.h.b16 %v362
        %v1521 = vunpack.c.l.b16 %v363
        %v1522 = vunpack.c.h.b16 %v363
        %v1523 = vunpack.c.l.b16 %v364
        %v1524 = vunpack.c.h.b16 %v364
        %v1525 = vunpack.c.l.b16 %v365
        %v1526 = vunpack.c.h.b16 %v365
        %v1527 = vunpack.c.l.b16 %v366
        %v1528 = vunpack.c.h.b16 %v366
        %v1529 = vunpack.c.l.b16 %v367
        %v1530 = vunpack.c.h.b16 %v367
        %v1531 = vunpack.c.l.b16 %v368
        %v1532 = vunpack.c.h.b16 %v368
        %v1533 = vunpack.c.l.b16 %v369
        %v1534 = vunpack.c.h.b16 %v369
        %v1535 = vunpack.c.l.b16 %v370
        %v1536 = vunpack.c.h.b16 %v370
        %v1537 = vunpack.c.l.b16 %v371
        %v1538 = vunpack.c.h.b16 %v371
        %v1539 = vunpack.c.l.b16 %v372
        %v1540 = vunpack.c.h.b16 %v372
        %v1541 = vunpack.c.l.b16 %v373
        %v1542 = vunpack.c.h.b16 %v373
        %v1543 = vunpack.c.l.b16 %v374
        %v1544 = vunpack.c.h.b16 %v374
        %v1545 = vunpack.c.l.b16 %v375
        %v1546 = vunpack.c.h.b16 %v375
        %v1547 = vunpack.c.l.b16 %v376
        %v1548 = vunpack.c.h.b16 %v376
        %v1549 = vunpack.c.l.b16 %v377
        %v1550 = vunpack.c.h.b16 %v377
        %v1551 = vunpack.c.l.b16 %v378
        %v1552 = vunpack.c.h.b16 %v378
        %v1553 = vunpack.c.l.b16 %v379
        %v1554 = vunpack.c.h.b16 %v379
        %v1555 = vunpack.c.l.b16 %v380
        %v1556 = vunpack.c.h.b16 %v380
        %v1557 = vunpack.c.l.b16 %v381
        %v1558 = vunpack.c.h.b16 %v381
        %v1559 = vunpack.c.l.b16 %v382
        %v1560 = vunpack.c.h.b16 %v382
        %v1561 = vunpack.c.l.b16 %v383
        %v1562 = vunpack.c.h.b16 %v383
        %v1563 = vunpack.c.l.b16 %v384
        %v1564 = vunpack.c.h.b16 %v384
        %v1565 = vunpack.c.l.b16 %v385
        %v1566 = vunpack.c.h.b16 %v385
        %v1567 = vunpack.c.l.b16 %v386
        %v1568 = vunpack.c.h.b16 %v386
        %v1569 = vunpack.c.l.b16 %v387
        %v1570 = vunpack.c.h.b16 %v387
        %v1571 = vunpack.c.l.b16 %v388
        %v1572 = vunpack.c.h.b16 %v388
        %v1573 = vunpack.c.l.b16 %v389
        %v1574 = vunpack.c.h.b16 %v389
        %v1575 = vunpack.c.l.b16 %v390
        %v1576 = vunpack.c.h.b16 %v390
        %v1577 = vunpack.c.l.b16 %v391
        %v1578 = vunpack.c.h.b16 %v391
        %v1579 = vunpack.c.l.b16 %v392
        %v1580 = vunpack.c.h.b16 %v392
        %v1581 = vunpack.c.l.b16 %v393
        %v1582 = vunpack.c.h.b16 %v393
        %v1583 = vunpack.c.l.b16 %v394
        %v1584 = vunpack.c.h.b16 %v394
        %v1585 = vunpack.c.l.b16 %v395
        %v1586 = vunpack.c.h.b16 %v395
        %v1587 = vunpack.c.l.b16 %v396
        %v1588 = vunpack.c.h.b16 %v396
        %v1589 = vunpack.c.l.b16 %v397
        %v1590 = vunpack.c.h.b16 %v397
        %v1591 = vunpack.c.l.b16 %v398
        %v1592 = vunpack.c.h.b16 %v398
        %v1593 = vunpack.c.l.b16 %v399
        %v1594 = vunpack.c.h.b16 %v399
        %v1595 = vunpack.c.l.b16 %v400
        %v1596 = vunpack.c.h.b16 %v400
        %v1597 = vunpack.c.l.b16 %v401
        %v1598 = vunpack.c.h.b16 %v401
        %v1599 = vunpack.c.l.b16 %v402
        %v1600 = vunpack.c.h.b16 %v402
        %v1601 = vunpack.c.l.b16 %v403
        %v1602 = vunpack.c.h.b16 %v403
        %v1603 = vunpack.c.l.b16 %v404
        %v1604 = vunpack.c.h.b16 %v404
        %v1605 = vunpack.c.l.b16 %v405
        %v1606 = vunpack.c.h.b16 %v405
        %v1607 = vunpack.c.l.b16 %v406
        %v1608 = vunpack.c.h.b16 %v406
        %v1609 = vunpack.c.l.b16 %v407
        %v1610 = vunpack.c.h.b16 %v407
        %v1611 = vunpack.c.l.b16 %v408
        %v1612 = vunpack.c.h.b16 %v408
        %v1613 = vunpack.c.l.b16 %v409
        %v1614 = vunpack.c.h.b16 %v409
        %v1615 = vunpack.c.l.b16 %v410
        %v1616 = vunpack.c.h.b16 %v410
        %v1617 = vunpack.c.l.b16 %v411
        %v1618 = vunpack.c.h.b16 %v411
        %v1619 = vunpack.c.l.b16 %v412
        %v1620 = vunpack.c.h.b16 %v412
        %v1621 = vunpack.c.l.b16 %v413
        %v1622 = vunpack.c.h.b16 %v413
        %v1623 = vunpack.c.l.b16 %v414
        %v1624 = vunpack.c.h.b16 %v414
        %v1625 = vunpack.c.l.b16 %v415
        %v1626 = vunpack.c.h.b16 %v415
        %v1627 = vunpack.c.l.b16 %v416
        %v1628 = vunpack.c.h.b16 %v416
        %v1629 = vunpack.c.l.b16 %v417
        %v1630 = vunpack.c.h.b16 %v417
        %v1631 = vunpack.c.l.b16 %v418
        %v1632 = vunpack.c.h.b16 %v418
        %v1633 = vunpack.c.l.b16 %v419
        %v1634 = vunpack.c.h.b16 %v419
        %v1635 = vunpack.c.l.b16 %v420
        %v1636 = vunpack.c.h.b16 %v420
        %v1637 = vpack.c.b16 %v1509, %v1509
        %v1638 = vpack.c.b16 %v1510, %v1510
        %v1639 = vpack.c.b16 %v1511, %v1511
        %v1640 = vpack.c.b16 %v1512, %v1512
        %v1641 = vpack.c.b16 %v1513, %v1513
        %v1642 = vpack.c.b16 %v1514, %v1514
        %v1643 = vpack.c.b16 %v1515, %v1515
        %v1644 = vpack.c.b16 %v1516, %v1516
        %v1645 = vpack.c.b16 %v1517, %v1517
        %v1646 = vpack.c.b16 %v1518, %v1518
        %v1647 = vpack.c.b16 %v1519, %v1519
        %v1648 = vpack.c.b16 %v1520, %v1520
        %v1649 = vpack.c.b16 %v1521, %v1521
        %v1650 = vpack.c.b16 %v1522, %v1522
        %v1651 = vpack.c.b16 %v1523, %v1523
        %v1652 = vpack.c.b16 %v1524, %v1524
        %v1653 = vpack.c.b16 %v1525, %v1525
        %v1654 = vpack.c.b16 %v1526, %v1526
        %v1655 = vpack.c.b16 %v1527, %v1527
        %v1656 = vpack.c.b16 %v1528, %v1528
        %v1657 = vpack.c.b16 %v1529, %v1529
        %v1658 = vpack.c.b16 %v1530, %v1530
        %v1659 = vpack.c.b16 %v1531, %v1531
        %v1660 = vpack.c.b16 %v1532, %v1532
        %v1661 = vpack.c.b16 %v1533, %v1533
        %v1662 = vpack.c.b16 %v1534, %v1534
        %v1663 = vpack.c.b16 %v1535, %v1535
        %v1664 = vpack.c.b16 %v1536, %v1536
        %v1665 = vpack.c.b16 %v1537, %v1537
        %v1666 = vpack.c.b16 %v1538, %v1538
        %v1667 = vpack.c.b16 %v1539, %v1539
        %v1668 = vpack.c.b16 %v1540, %v1540
        %v1669 = vpack.c.b16 %v1541, %v1541
        %v1670 = vpack.c.b16 %v1542, %v1542
        %v1671 = vpack.c.b16 %v1543, %v1543
        %v1672 = vpack.c.b16 %v1544, %v1544
        %v1673 = vpack.c.b16 %v1545, %v1545
        %v1674 = vpack.c.b16 %v1546, %v1546
        %v1675 = vpack.c.b16 %v1547, %v1547
        %v1676 = vpack.c.b16 %v1548, %v1548
        %v1677 = vpack.c.b16 %v1549, %v1549
        %v1678 = vpack.c.b16 %v1550, %v1550
        %v1679 = vpack.c.b16 %v1551, %v1551
        %v1680 = vpack.c.b16 %v1552, %v1552
        %v1681 = vpack.c.b16 %v1553, %v1553
        %v1682 = vpack.c.b16 %v1554, %v1554
        %v1683 = vpack.c.b16 %v1555, %v1555
        %v1684 = vpack.c.b16 %v1556, %v1556
        %v1685 = vpack.c.b16 %v1557, %v1557
        %v1686 = vpack.c.b16 %v1558, %v1558
        %v1687 = vpack.c.b16 %v1559, %v1559
        %v1688 = vpack.c.b16 %v1560, %v1560
        %v1689 = vpack.c.b16 %v1561, %v1561
        %v1690 = vpack.c.b16 %v1562, %v1562
        %v1691 = vpack.c.b16 %v1563, %v1563
        %v1692 = vpack.c.b16 %v1564, %v1564
        %v1693 = vpack.c.b16 %v1565, %v1565
        %v1694 = vpack.c.b16 %v1566, %v1566
        %v1695 = vpack.c.b16 %v1567, %v1567
        %v1696 = vpack.c.b16 %v1568, %v1568
        %v1697 = vpack.c.b16 %v1569, %v1569
        %v1698 = vpack.c.b16 %v1570, %v1570
        %v1699 = vpack.c.b16 %v1571, %v1571
        %v1700 = vpack.c.b16 %v1572, %v1572
        %v1701 = vpack.c.b16 %v1573, %v1573
        %v1702 = vpack.c.b16 %v1574, %v1574
        %v1703 = vpack.c.b16 %v1575, %v1575
        %v1704 = vpack.c.b16 %v1576, %v1576
        %v1705 = vpack.c.b16 %v1577, %v1577
        %v1706 = vpack.c.b16 %v1578, %v1578
        %v1707 = vpack.c.b16 %v1579, %v1579
        %v1708 = vpack.c.b16 %v1580, %v1580
        %v1709 = vpack.c.b16 %v1581, %v1581
        %v1710 = vpack.c.b16 %v1582, %v1582
        %v1711 = vpack.c.b16 %v1583, %v1583
        %v1712 = vpack.c.b16 %v1584, %v1584
        %v1713 = vpack.c.b16 %v1585, %v1585
        %v1714 = vpack.c.b16 %v1586, %v1586
        %v1715 = vpack.c.b16 %v1587, %v1587
        %v1716 = vpack.c.b16 %v1588, %v1588
        %v1717 = vpack.c.b16 %v1589, %v1589
        %v1718 = vpack.c.b16 %v1590, %v1590
        %v1719 = vpack.c.b16 %v1591, %v1591
        %v1720 = vpack.c.b16 %v1592, %v1592
        %v1721 = vpack.c.b16 %v1593, %v1593
        %v1722 = vpack.c.b16 %v1594, %v1594
        %v1723 = vpack.c.b16 %v1595, %v1595
        %v1724 = vpack.c.b16 %v1596, %v1596
        %v1725 = vpack.c.b16 %v1597, %v1597
        %v1726 = vpack.c.b16 %v1598, %v1598
        %v1727 = vpack.c.b16 %v1599, %v1599
        %v1728 = vpack.c.b16 %v1600, %v1600
        %v1729 = vpack.c.b16 %v1601, %v1601
        %v1730 = vpack.c.b16 %v1602, %v1602
        %v1731 = vpack.c.b16 %v1603, %v1603
        %v1732 = vpack.c.b16 %v1604, %v1604
        %v1733 = vpack.c.b16 %v1605, %v1605
        %v1734 = vpack.c.b16 %v1606, %v1606
        %v1735 = vpack.c.b16 %v1607, %v1607
        %v1736 = vpack.c.b16 %v1608, %v1608
        %v1737 = vpack.c.b16 %v1609, %v1609
        %v1738 = vpack.c.b16 %v1610, %v1610
        %v1739 = vpack.c.b16 %v1611, %v1611
        %v1740 = vpack.c.b16 %v1612, %v1612
        %v1741 = vpack.c.b16 %v1613, %v1613
        %v1742 = vpack.c.b16 %v1614, %v1614
        %v1743 = vpack.c.b16 %v1615, %v1615
        %v1744 = vpack.c.b16 %v1616, %v1616
        %v1745 = vpack.c.b16 %v1617, %v1617
        %v1746 = vpack.c.b16 %v1618, %v1618
        %v1747 = vpack.c.b16 %v1619, %v1619
        %v1748 = vpack.c.b16 %v1620, %v1620
        %v1749 = vpack.c.b16 %v1621, %v1621
        %v1750 = vpack.c.b16 %v1622, %v1622
        %v1751 = vpack.c.b16 %v1623, %v1623
        %v1752 = vpack.c.b16 %v1624, %v1624
        %v1753 = vpack.c.b16 %v1625, %v1625
        %v1754 = vpack.c.b16 %v1626, %v1626
        %v1755 = vpack.c.b16 %v1627, %v1627
        %v1756 = vpack.c.b16 %v1628, %v1628
        %v1757 = vpack.c.b16 %v1629, %v1629
        %v1758 = vpack.c.b16 %v1630, %v1630
        %v1759 = vpack.c.b16 %v1631, %v1631
        %v1760 = vpack.c.b16 %v1632, %v1632
        %v1761 = vpack.c.b16 %v1633, %v1633
        %v1762 = vpack.c.b16 %v1634, %v1634
        %v1763 = vpack.c.b16 %v1635, %v1635
        %v1764 = vpack.c.b16 %v1636, %v1636
        %v2917 = vunpack.c.l.b16 %v421
        %v2918 = vunpack.c.h.b16 %v421
        %v2919 = vunpack.c.l.b16 %v422
        %v2920 = vunpack.c.h.b16 %v422
        %v2921 = vunpack.c.l.b16 %v423
        %v2922 = vunpack.c.h.b16 %v423
        %v2923 = vunpack.c.l.b16 %v424
        %v2924 = vunpack.c.h.b16 %v424
        %v2925 = vunpack.c.l.b16 %v425
        %v2926 = vunpack.c.h.b16 %v425
        %v2927 = vunpack.c.l.b16 %v426
        %v2928 = vunpack.c.h.b16 %v426
        %v2929 = vunpack.c.l.b16 %v427
        %v2930 = vunpack.c.h.b16 %v427
        %v2931 = vunpack.c.l.b16 %v428
        %v2932 = vunpack.c.h.b16 %v428
        %v2933 = vunpack.c.l.b16 %v429
        %v2934 = vunpack.c.h.b16 %v429
        %v2935 = vunpack.c.l.b16 %v430
        %v2936 = vunpack.c.h.b16 %v430
        %v2937 = vunpack.c.l.b16 %v431
        %v2938 = vunpack.c.h.b16 %v431
        %v2939 = vunpack.c.l.b16 %v432
        %v2940 = vunpack.c.h.b16 %v432
        %v2941 = vunpack.c.l.b16 %v433
        %v2942 = vunpack.c.h.b16 %v433
        %v2943 = vunpack.c.l.b16 %v434
        %v2944 = vunpack.c.h.b16 %v434
        %v2945 = vunpack.c.l.b16 %v435
        %v2946 = vunpack.c.h.b16 %v435
        %v2947 = vunpack.c.l.b16 %v436
        %v2948 = vunpack.c.h.b16 %v436
        %v2949 = vunpack.c.l.b16 %v437
        %v2950 = vunpack.c.h.b16 %v437
        %v2951 = vunpack.c.l.b16 %v438
        %v2952 = vunpack.c.h.b16 %v438
        %v2953 = vunpack.c.l.b16 %v439
        %v2954 = vunpack.c.h.b16 %v439
        %v2955 = vunpack.c.l.b16 %v440
        %v2956 = vunpack.c.h.b16 %v440
        %v2957 = vunpack.c.l.b16 %v441
        %v2958 = vunpack.c.h.b16 %v441
        %v2959 = vunpack.c.l.b16 %v442
        %v2960 = vunpack.c.h.b16 %v442
        %v2961 = vunpack.c.l.b16 %v443
        %v2962 = vunpack.c.h.b16 %v443
        %v2963 = vunpack.c.l.b16 %v444
        %v2964 = vunpack.c.h.b16 %v444
        %v2965 = vunpack.c.l.b16 %v445
        %v2966 = vunpack.c.h.b16 %v445
        %v2967 = vunpack.c.l.b16 %v446
        %v2968 = vunpack.c.h.b16 %v446
        %v2969 = vunpack.c.l.b16 %v447
        %v2970 = vunpack.c.h.b16 %v447
        %v2971 = vunpack.c.l.b16 %v448
        %v2972 = vunpack.c.h.b16 %v448
        %v2973 = vunpack.c.l.b16 %v449
        %v2974 = vunpack.c.h.b16 %v449
        %v2975 = vunpack.c.l.b16 %v450
        %v2976 = vunpack.c.h.b16 %v450
        %v2977 = vunpack.c.l.b16 %v451
        %v2978 = vunpack.c.h.b16 %v451
        %v2979 = vunpack.c.l.b16 %v452
        %v2980 = vunpack.c.h.b16 %v452
        %v2981 = vunpack.c.l.b16 %v453
        %v2982 = vunpack.c.h.b16 %v453
        %v2983 = vunpack.c.l.b16 %v454
        %v2984 = vunpack.c.h.b16 %v454
        %v2985 = vunpack.c.l.b16 %v455
        %v2986 = vunpack.c.h.b16 %v455
        %v2987 = vunpack.c.l.b16 %v456
        %v2988 = vunpack.c.h.b16 %v456
        %v2989 = vunpack.c.l.b16 %v457
        %v2990 = vunpack.c.h.b16 %v457
        %v2991 = vunpack.c.l.b16 %v458
        %v2992 = vunpack.c.h.b16 %v458
        %v2993 = vunpack.c.l.b16 %v459
        %v2994 = vunpack.c.h.b16 %v459
        %v2995 = vunpack.c.l.b16 %v460
        %v2996 = vunpack.c.h.b16 %v460
        %v2997 = vunpack.c.l.b16 %v461
        %v2998 = vunpack.c.h.b16 %v461
        %v2999 = vunpack.c.l.b16 %v462
        %v3000 = vunpack.c.h.b16 %v462
        %v3001 = vunpack.c.l.b16 %v463
        %v3002 = vunpack.c.h.b16 %v463
        %v3003 = vunpack.c.l.b16 %v464
        %v3004 = vunpack.c.h.b16 %v464
        %v3005 = vunpack.c.l.b16 %v465
        %v3006 = vunpack.c.h.b16 %v465
        %v3007 = vunpack.c.l.b16 %v466
        %v3008 = vunpack.c.h.b16 %v466
        %v3009 = vunpack.c.l.b16 %v467
        %v3010 = vunpack.c.h.b16 %v467
        %v3011 = vunpack.c.l.b16 %v468
        %v3012 = vunpack.c.h.b16 %v468
        %v3013 = vunpack.c.l.b16 %v469
        %v3014 = vunpack.c.h.b16 %v469
        %v3015 = vunpack.c.l.b16 %v470
        %v3016 = vunpack.c.h.b16 %v470
        %v3017 = vunpack.c.l.b16 %v471
        %v3018 = vunpack.c.h.b16 %v471
        %v3019 = vunpack.c.l.b16 %v472
        %v3020 = vunpack.c.h.b16 %v472
        %v3021 = vunpack.c.l.b16 %v473
        %v3022 = vunpack.c.h.b16 %v473
        %v3023 = vunpack.c.l.b16 %v474
        %v3024 = vunpack.c.h.b16 %v474
        %v3025 = vunpack.c.l.b16 %v475
        %v3026 = vunpack.c.h.b16 %v475
        %v3027 = vunpack.c.l.b16 %v476
        %v3028 = vunpack.c.h.b16 %v476
        %v3029 = vunpack.c.l.b16 %v477
        %v3030 = vunpack.c.h.b16 %v477
        %v3031 = vunpack.c.l.b16 %v478
        %v3032 = vunpack.c.h.b16 %v478
        %v3033 = vunpack.c.l.b16 %v479
        %v3034 = vunpack.c.h.b16 %v479
        %v3035 = vunpack.c.l.b16 %v480
        %v3036 = vunpack.c.h.b16 %v480
        %v3037 = vunpack.c.l.b16 %v481
        %v3038 = vunpack.c.h.b16 %v481
        %v3039 = vunpack.c.l.b16 %v482
        %v3040 = vunpack.c.h.b16 %v482
        %v3041 = vunpack.c.l.b16 %v483
        %v3042 = vunpack.c.h.b16 %v483
        %v3043 = vunpack.c.l.b16 %v484
        %v3044 = vunpack.c.h.b16 %v484
        %v3045 = vunpack.c.l.b16 %v485
        %v3046 = vunpack.c.h.b16 %v485
        %v3047 = vunpack.c.l.b16 %v486
        %v3048 = vunpack.c.h.b16 %v486
        %v3049 = vunpack.c.l.b16 %v487
        %v3050 = vunpack.c.h.b16 %v487
        %v3051 = vunpack.c.l.b16 %v488
        %v3052 = vunpack.c.h.b16 %v488
        %v3053 = vunpack.c.l.b16 %v489
        %v3054 = vunpack.c.h.b16 %v489
        %v3055 = vunpack.c.l.b16 %v490
        %v3056 = vunpack.c.h.b16 %v490
        %v3057 = vunpack.c.l.b16 %v491
        %v3058 = vunpack.c.h.b16 %v491
        %v3059 = vunpack.c.l.b16 %v492
        %v3060 = vunpack.c.h.b16 %v492
        %v3061 = vunpack.c.l.b16 %v493
        %v3062 = vunpack.c.h.b16 %v493
        %v3063 = vunpack.c.l.b16 %v494
        %v3064 = vunpack.c.h.b16 %v494
        %v3065 = vunpack.c.l.b16 %v495
        %v3066 = vunpack.c.h.b16 %v495
        %v3067 = vunpack.c.l.b16 %v496
        %v3068 = vunpack.c.h.b16 %v496
        %v3069 = vunpack.c.l.b16 %v497
        %v3070 = vunpack.c.h.b16 %v497
        %v3071 = vunpack.c.l.b16 %v498
        %v3072 = vunpack.c.h.b16 %v498
        %v3073 = vunpack.c.l.b16 %v499
        %v3074 = vunpack.c.h.b16 %v499
        %v3075 = vunpack.c.l.b16 %v500
        %v3076 = vunpack.c.h.b16 %v500
        %v3077 = vunpack.c.l.b16 %v501
        %v3078 = vunpack.c.h.b16 %v501
        %v3079 = vunpack.c.l.b16 %v502
        %v3080 = vunpack.c.h.b16 %v502
        %v3081 = vunpack.c.l.b16 %v503
        %v3082 = vunpack.c.h.b16 %v503
        %v3083 = vunpack.c.l.b16 %v504
        %v3084 = vunpack.c.h.b16 %v504
        %v3085 = vunpack.c.l.b16 %v505
        %v3086 = vunpack.c.h.b16 %v505
        %v3087 = vunpack.c.l.b16 %v506
        %v3088 = vunpack.c.h.b16 %v506
        %v3089 = vunpack.c.l.b16 %v507
        %v3090 = vunpack.c.h.b16 %v507
        %v3091 = vunpack.c.l.b16 %v508
        %v3092 = vunpack.c.h.b16 %v508
        %v3093 = vunpack.c.l.b16 %v509
        %v3094 = vunpack.c.h.b16 %v509
        %v3095 = vunpack.c.l.b16 %v510
        %v3096 = vunpack.c.h.b16 %v510
        %v3097 = vunpack.c.l.b16 %v511
        %v3098 = vunpack.c.h.b16 %v511
        %v3099 = vunpack.c.l.b16 %v512
        %v3100 = vunpack.c.h.b16 %v512
        %v3101 = vunpack.c.l.b16 %v513
        %v3102 = vunpack.c.h.b16 %v513
        %v3103 = vunpack.c.l.b16 %v514
        %v3104 = vunpack.c.h.b16 %v514
        %v3105 = vunpack.c.l.b16 %v515
        %v3106 = vunpack.c.h.b16 %v515
        %v3107 = vunpack.c.l.b16 %v516
        %v3108 = vunpack.c.h.b16 %v516
        %v3109 = vunpack.c.l.b16 %v517
        %v3110 = vunpack.c.h.b16 %v517
        %v3111 = vunpack.c.l.b16 %v518
        %v3112 = vunpack.c.h.b16 %v518
        %v3113 = vunpack.c.l.b16 %v519
        %v3114 = vunpack.c.h.b16 %v519
        %v3115 = vunpack.c.l.b16 %v520
        %v3116 = vunpack.c.h.b16 %v520
        %v3117 = vunpack.c.l.b16 %v521
        %v3118 = vunpack.c.h.b16 %v521
        %v3119 = vunpack.c.l.b16 %v522
        %v3120 = vunpack.c.h.b16 %v522
        %v3121 = vunpack.c.l.b16 %v523
        %v3122 = vunpack.c.h.b16 %v523
        %v3123 = vunpack.c.l.b16 %v524
        %v3124 = vunpack.c.h.b16 %v524
        %v3125 = vunpack.c.l.b16 %v525
        %v3126 = vunpack.c.h.b16 %v525
        %v3127 = vunpack.c.l.b16 %v526
        %v3128 = vunpack.c.h.b16 %v526
        %v3129 = vunpack.c.l.b16 %v527
        %v3130 = vunpack.c.h.b16 %v527
        %v3131 = vunpack.c.l.b16 %v528
        %v3132 = vunpack.c.h.b16 %v528
        %v3133 = vunpack.c.l.b16 %v529
        %v3134 = vunpack.c.h.b16 %v529
        %v3135 = vunpack.c.l.b16 %v530
        %v3136 = vunpack.c.h.b16 %v530
        %v3137 = vunpack.c.l.b16 %v531
        %v3138 = vunpack.c.h.b16 %v531
        %v3139 = vunpack.c.l.b16 %v532
        %v3140 = vunpack.c.h.b16 %v532
        %v3141 = vunpack.c.l.b16 %v533
        %v3142 = vunpack.c.h.b16 %v533
        %v3143 = vunpack.c.l.b16 %v534
        %v3144 = vunpack.c.h.b16 %v534
        %v3145 = vunpack.c.l.b16 %v535
        %v3146 = vunpack.c.h.b16 %v535
        %v3147 = vunpack.c.l.b16 %v536
        %v3148 = vunpack.c.h.b16 %v536
        %v3149 = vunpack.c.l.b16 %v537
        %v3150 = vunpack.c.h.b16 %v537
        %v3151 = vunpack.c.l.b16 %v538
        %v3152 = vunpack.c.h.b16 %v538
        %v3153 = vunpack.c.l.b16 %v539
        %v3154 = vunpack.c.h.b16 %v539
        %v3155 = vunpack.c.l.b16 %v540
        %v3156 = vunpack.c.h.b16 %v540
        %v3157 = vunpack.c.l.b16 %v541
        %v3158 = vunpack.c.h.b16 %v541
        %v3159 = vunpack.c.l.b16 %v542
        %v3160 = vunpack.c.h.b16 %v542
        %v3161 = vunpack.c.l.b16 %v543
        %v3162 = vunpack.c.h.b16 %v543
        %v3163 = vunpack.c.l.b16 %v544
        %v3164 = vunpack.c.h.b16 %v544
        %v3165 = vunpack.c.l.b16 %v545
        %v3166 = vunpack.c.h.b16 %v545
        %v3167 = vunpack.c.l.b16 %v546
        %v3168 = vunpack.c.h.b16 %v546
        %v3169 = vunpack.c.l.b16 %v547
        %v3170 = vunpack.c.h.b16 %v547
        %v3171 = vunpack.c.l.b16 %v548
        %v3172 = vunpack.c.h.b16 %v548
        %v3173 = vunpack.c.l.b16 %v549
        %v3174 = vunpack.c.h.b16 %v549
        %v3175 = vunpack.c.l.b16 %v550
        %v3176 = vunpack.c.h.b16 %v550
        %v3177 = vunpack.c.l.b16 %v551
        %v3178 = vunpack.c.h.b16 %v551
        %v3179 = vunpack.c.l.b16 %v552
        %v3180 = vunpack.c.h.b16 %v552
        %v3181 = vunpack.c.l.b16 %v553
        %v3182 = vunpack.c.h.b16 %v553
        %v3183 = vunpack.c.l.b16 %v554
        %v3184 = vunpack.c.h.b16 %v554
        %v3185 = vunpack.c.l.b16 %v555
        %v3186 = vunpack.c.h.b16 %v555
        %v3187 = vunpack.c.l.b16 %v556
        %v3188 = vunpack.c.h.b16 %v556
        %v3189 = vunpack.c.l.b16 %v557
        %v3190 = vunpack.c.h.b16 %v557
        %v3191 = vunpack.c.l.b16 %v558
        %v3192 = vunpack.c.h.b16 %v558
        %v3193 = vunpack.c.l.b16 %v559
        %v3194 = vunpack.c.h.b16 %v559
        %v3195 = vunpack.c.l.b16 %v560
        %v3196 = vunpack.c.h.b16 %v560
        %v3197 = vunpack.c.l.b16 %v561
        %v3198 = vunpack.c.h.b16 %v561
        %v3199 = vunpack.c.l.b16 %v562
        %v3200 = vunpack.c.h.b16 %v562
        %v3201 = vunpack.c.l.b16 %v563
        %v3202 = vunpack.c.h.b16 %v563
        %v3203 = vunpack.c.l.b16 %v564
        %v3204 = vunpack.c.h.b16 %v564
        %v3205 = vunpack.c.l.b16 %v565
        %v3206 = vunpack.c.h.b16 %v565
        %v3207 = vunpack.c.l.b16 %v566
        %v3208 = vunpack.c.h.b16 %v566
        %v3209 = vunpack.c.l.b16 %v567
        %v3210 = vunpack.c.h.b16 %v567
        %v3211 = vunpack.c.l.b16 %v568
        %v3212 = vunpack.c.h.b16 %v568
        %v3213 = vunpack.c.l.b16 %v569
        %v3214 = vunpack.c.h.b16 %v569
        %v3215 = vunpack.c.l.b16 %v570
        %v3216 = vunpack.c.h.b16 %v570
        %v3217 = vunpack.c.l.b16 %v571
        %v3218 = vunpack.c.h.b16 %v571
        %v3219 = vunpack.c.l.b16 %v572
        %v3220 = vunpack.c.h.b16 %v572
        %v3221 = vunpack.c.l.b16 %v573
        %v3222 = vunpack.c.h.b16 %v573
        %v3223 = vunpack.c.l.b16 %v574
        %v3224 = vunpack.c.h.b16 %v574
        %v3225 = vunpack.c.l.b16 %v575
        %v3226 = vunpack.c.h.b16 %v575
        %v3227 = vunpack.c.l.b16 %v576
        %v3228 = vunpack.c.h.b16 %v576
        %v3229 = vunpack.c.l.b16 %v577
        %v3230 = vunpack.c.h.b16 %v577
        %v3231 = vunpack.c.l.b16 %v578
        %v3232 = vunpack.c.h.b16 %v578
        %v3233 = vunpack.c.l.b16 %v579
        %v3234 = vunpack.c.h.b16 %v579
        %v3235 = vunpack.c.l.b16 %v580
        %v3236 = vunpack.c.h.b16 %v580
        %v3237 = vunpack.c.l.b16 %v581
        %v3238 = vunpack.c.h.b16 %v581
        %v3239 = vunpack.c.l.b16 %v582
        %v3240 = vunpack.c.h.b16 %v582
        %v3241 = vunpack.c.l.b16 %v583
        %v3242 = vunpack.c.h.b16 %v583
        %v3243 = vunpack.c.l.b16 %v584
        %v3244 = vunpack.c.h.b16 %v584
        %v3245 = vunpack.c.l.b16 %v585
        %v3246 = vunpack.c.h.b16 %v585
        %v3247 = vunpack.c.l.b16 %v586
        %v3248 = vunpack.c.h.b16 %v586
        %v3249 = vunpack.c.l.b16 %v587
        %v3250 = vunpack.c.h.b16 %v587
        %v3251 = vunpack.c.l.b16 %v588
        %v3252 = vunpack.c.h.b16 %v588
        %v3253 = vunpack.c.l.b16 %v589
        %v3254 = vunpack.c.h.b16 %v589
        %v3255 = vunpack.c.l.b16 %v590
        %v3256 = vunpack.c.h.b16 %v590
        %v3257 = vunpack.c.l.b16 %v591
        %v3258 = vunpack.c.h.b16 %v591
        %v3259 = vunpack.c.l.b16 %v592
        %v3260 = vunpack.c.h.b16 %v592
        %v3261 = vunpack.c.l.b16 %v593
        %v3262 = vunpack.c.h.b16 %v593
        %v3263 = vunpack.c.l.b16 %v594
        %v3264 = vunpack.c.h.b16 %v594
        %v3265 = vunpack.c.l.b16 %v595
        %v3266 = vunpack.c.h.b16 %v595
        %v3267 = vunpack.c.l.b16 %v596
        %v3268 = vunpack.c.h.b16 %v596
        %v3269 = vunpack.c.l.b16 %v597
        %v3270 = vunpack.c.h.b16 %v597
        %v3271 = vunpack.c.l.b16 %v598
        %v3272 = vunpack.c.h.b16 %v598
        %v3273 = vunpack.c.l.b16 %v599
        %v3274 = vunpack.c.h.b16 %v599
        %v3275 = vunpack.c.l.b16 %v600
        %v3276 = vunpack.c.h.b16 %v600
        %v3277 = vunpack.c.l.b16 %v601
        %v3278 = vunpack.c.h.b16 %v601
        %v3279 = vunpack.c.l.b16 %v602
        %v3280 = vunpack.c.h.b16 %v602
        %v3281 = vunpack.c.l.b16 %v603
        %v3282 = vunpack.c.h.b16 %v603
        %v3283 = vunpack.c.l.b16 %v604
        %v3284 = vunpack.c.h.b16 %v604
        %v3285 = vunpack.c.l.b16 %v605
        %v3286 = vunpack.c.h.b16 %v605
        %v3287 = vunpack.c.l.b16 %v606
        %v3288 = vunpack.c.h.b16 %v606
        %v3289 = vunpack.c.l.b16 %v607
        %v3290 = vunpack.c.h.b16 %v607
        %v3291 = vunpack.c.l.b16 %v608
        %v3292 = vunpack.c.h.b16 %v608
        %v3293 = vunpack.c.l.b16 %v609
        %v3294 = vunpack.c.h.b16 %v609
        %v3295 = vunpack.c.l.b16 %v610
        %v3296 = vunpack.c.h.b16 %v610
        %v3297 = vunpack.c.l.b16 %v611
        %v3298 = vunpack.c.h.b16 %v611
        %v3299 = vunpack.c.l.b16 %v612
        %v3300 = vunpack.c.h.b16 %v612
        %v3301 = vunpack.c.l.b16 %v613
        %v3302 = vunpack.c.h.b16 %v613
        %v3303 = vunpack.c.l.b16 %v614
        %v3304 = vunpack.c.h.b16 %v614
        %v3305 = vunpack.c.l.b16 %v615
        %v3306 = vunpack.c.h.b16 %v615
        %v3307 = vunpack.c.l.b16 %v616
        %v3308 = vunpack.c.h.b16 %v616
        %v3309 = vunpack.c.l.b16 %v617
        %v3310 = vunpack.c.h.b16 %v617
        %v3311 = vunpack.c.l.b16 %v618
        %v3312 = vunpack.c.h.b16 %v618
        %v3313 = vunpack.c.l.b16 %v619
        %v3314 = vunpack.c.h.b16 %v619
        %v3315 = vunpack.c.l.b16 %v620
        %v3316 = vunpack.c.h.b16 %v620
        %v3317 = vunpack.c.l.b16 %v621
        %v3318 = vunpack.c.h.b16 %v621
        %v3319 = vunpack.c.l.b16 %v622
        %v3320 = vunpack.c.h.b16 %v622
        %v3321 = vunpack.c.l.b16 %v623
        %v3322 = vunpack.c.h.b16 %v623
        %v3323 = vunpack.c.l.b16 %v624
        %v3324 = vunpack.c.h.b16 %v624
        %v3325 = vunpack.c.l.b16 %v625
        %v3326 = vunpack.c.h.b16 %v625
        %v3327 = vunpack.c.l.b16 %v626
        %v3328 = vunpack.c.h.b16 %v626
        %v3329 = vunpack.c.l.b16 %v627
        %v3330 = vunpack.c.h.b16 %v627
        %v3331 = vunpack.c.l.b16 %v628
        %v3332 = vunpack.c.h.b16 %v628
        %v3333 = vunpack.c.l.b16 %v629
        %v3334 = vunpack.c.h.b16 %v629
        %v3335 = vunpack.c.l.b16 %v630
        %v3336 = vunpack.c.h.b16 %v630
        %v3337 = vunpack.c.l.b16 %v631
        %v3338 = vunpack.c.h.b16 %v631
        %v3339 = vunpack.c.l.b16 %v632
        %v3340 = vunpack.c.h.b16 %v632
        %v3341 = vunpack.c.l.b16 %v633
        %v3342 = vunpack.c.h.b16 %v633
        %v3343 = vunpack.c.l.b16 %v634
        %v3344 = vunpack.c.h.b16 %v634
        %v3345 = vunpack.c.l.b16 %v635
        %v3346 = vunpack.c.h.b16 %v635
        %v3347 = vunpack.c.l.b16 %v636
        %v3348 = vunpack.c.h.b16 %v636
        %v3349 = vunpack.c.l.b16 %v637
        %v3350 = vunpack.c.h.b16 %v637
        %v3351 = vunpack.c.l.b16 %v638
        %v3352 = vunpack.c.h.b16 %v638
        %v3353 = vunpack.c.l.b16 %v639
        %v3354 = vunpack.c.h.b16 %v639
        %v3355 = vunpack.c.l.b16 %v640
        %v3356 = vunpack.c.h.b16 %v640
        %v3357 = vunpack.c.l.b16 %v641
        %v3358 = vunpack.c.h.b16 %v641
        %v3359 = vunpack.c.l.b16 %v642
        %v3360 = vunpack.c.h.b16 %v642
        %v3361 = vunpack.c.l.b16 %v643
        %v3362 = vunpack.c.h.b16 %v643
        %v3363 = vunpack.c.l.b16 %v644
        %v3364 = vunpack.c.h.b16 %v644
        %v3365 = vunpack.c.l.b16 %v645
        %v3366 = vunpack.c.h.b16 %v645
        %v3367 = vunpack.c.l.b16 %v646
        %v3368 = vunpack.c.h.b16 %v646
        %v3369 = vunpack.c.l.b16 %v647
        %v3370 = vunpack.c.h.b16 %v647
        %v3371 = vunpack.c.l.b16 %v648
        %v3372 = vunpack.c.h.b16 %v648
        %v3373 = vunpack.c.l.b16 %v649
        %v3374 = vunpack.c.h.b16 %v649
        %v3375 = vunpack.c.l.b16 %v650
        %v3376 = vunpack.c.h.b16 %v650
        %v3377 = vunpack.c.l.b16 %v651
        %v3378 = vunpack.c.h.b16 %v651
        %v3379 = vunpack.c.l.b16 %v652
        %v3380 = vunpack.c.h.b16 %v652
        %v3381 = vunpack.c.l.b16 %v653
        %v3382 = vunpack.c.h.b16 %v653
        %v3383 = vunpack.c.l.b16 %v654
        %v3384 = vunpack.c.h.b16 %v654
        %v3385 = vunpack.c.l.b16 %v655
        %v3386 = vunpack.c.h.b16 %v655
        %v3387 = vunpack.c.l.b16 %v656
        %v3388 = vunpack.c.h.b16 %v656
        %v3389 = vunpack.c.l.b16 %v657
        %v3390 = vunpack.c.h.b16 %v657
        %v3391 = vunpack.c.l.b16 %v658
        %v3392 = vunpack.c.h.b16 %v658
        %v3393 = vunpack.c.l.b16 %v659
        %v3394 = vunpack.c.h.b16 %v659
        %v3395 = vunpack.c.l.b16 %v660
        %v3396 = vunpack.c.h.b16 %v660
        %v3397 = vunpack.c.l.b16 %v661
        %v3398 = vunpack.c.h.b16 %v661
        %v3399 = vunpack.c.l.b16 %v662
        %v3400 = vunpack.c.h.b16 %v662
        %v3401 = vunpack.c.l.b16 %v663
        %v3402 = vunpack.c.h.b16 %v663
        %v3403 = vunpack.c.l.b16 %v664
        %v3404 = vunpack.c.h.b16 %v664
        %v3405 = vunpack.c.l.b16 %v665
        %v3406 = vunpack.c.h.b16 %v665
        %v3407 = vunpack.c.l.b16 %v666
        %v3408 = vunpack.c.h.b16 %v666
        %v3409 = vunpack.c.l.b16 %v667
        %v3410 = vunpack.c.h.b16 %v667
        %v3411 = vunpack.c.l.b16 %v668
        %v3412 = vunpack.c.h.b16 %v668
        %v3413 = vunpack.c.l.b16 %v669
        %v3414 = vunpack.c.h.b16 %v669
        %v3415 = vunpack.c.l.b16 %v670
        %v3416 = vunpack.c.h.b16 %v670
        %v3417 = vunpack.c.l.b16 %v671
        %v3418 = vunpack.c.h.b16 %v671
        %v3419 = vunpack.c.l.b16 %v672
        %v3420 = vunpack.c.h.b16 %v672
        %v3421 = vunpack.c.l.b16 %v673
        %v3422 = vunpack.c.h.b16 %v673
        %v3423 = vunpack.c.l.b16 %v674
        %v3424 = vunpack.c.h.b16 %v674
        %v3425 = vunpack.c.l.b16 %v675
        %v3426 = vunpack.c.h.b16 %v675
        %v3427 = vunpack.c.l.b16 %v676
        %v3428 = vunpack.c.h.b16 %v676
        %v3429 = vunpack.c.l.b16 %v677
        %v3430 = vunpack.c.h.b16 %v677
        %v3431 = vunpack.c.l.b16 %v678
        %v3432 = vunpack.c.h.b16 %v678
        %v3433 = vunpack.c.l.b16 %v679
        %v3434 = vunpack.c.h.b16 %v679
        %v3435 = vunpack.c.l.b16 %v680
        %v3436 = vunpack.c.h.b16 %v680
        %v3437 = vunpack.c.l.b16 %v681
        %v3438 = vunpack.c.h.b16 %v681
        %v3439 = vunpack.c.l.b16 %v682
        %v3440 = vunpack.c.h.b16 %v682
        %v3441 = vunpack.c.l.b16 %v683
        %v3442 = vunpack.c.h.b16 %v683
        %v3443 = vunpack.c.l.b16 %v684
        %v3444 = vunpack.c.h.b16 %v684
        %v3445 = vunpack.c.l.b16 %v685
        %v3446 = vunpack.c.h.b16 %v685
        %v3447 = vunpack.c.l.b16 %v686
        %v3448 = vunpack.c.h.b16 %v686
        %v3449 = vunpack.c.l.b16 %v687
        %v3450 = vunpack.c.h.b16 %v687
        %v3451 = vunpack.c.l.b16 %v688
        %v3452 = vunpack.c.h.b16 %v688
        %v3453 = vunpack.c.l.b16 %v689
        %v3454 = vunpack.c.h.b16 %v689
        %v3455 = vunpack.c.l.b16 %v690
        %v3456 = vunpack.c.h.b16 %v690
        %v3457 = vunpack.c.l.b16 %v691
        %v3458 = vunpack.c.h.b16 %v691
        %v3459 = vunpack.c.l.b16 %v692
        %v3460 = vunpack.c.h.b16 %v692
        %v3461 = vunpack.c.l.b16 %v693
        %v3462 = vunpack.c.h.b16 %v693
        %v3463 = vunpack.c.l.b16 %v694
        %v3464 = vunpack.c.h.b16 %v694
        %v3465 = vunpack.c.l.b16 %v695
        %v3466 = vunpack.c.h.b16 %v695
        %v3467 = vunpack.c.l.b16 %v696
        %v3468 = vunpack.c.h.b16 %v696
        %v3469 = vunpack.c.l.b16 %v697
        %v3470 = vunpack.c.h.b16 %v697
        %v3471 = vunpack.c.l.b16 %v698
        %v3472 = vunpack.c.h.b16 %v698
        %v3473 = vunpack.c.l.b16 %v699
        %v3474 = vunpack.c.h.b16 %v699
        %v3475 = vunpack.c.l.b16 %v700
        %v3476 = vunpack.c.h.b16 %v700
        %v3477 = vunpack.c.l.b16 %v701
        %v3478 = vunpack.c.h.b16 %v701
        %v3479 = vunpack.c.l.b16 %v702
        %v3480 = vunpack.c.h.b16 %v702
        %v3481 = vunpack.c.l.b16 %v703
        %v3482 = vunpack.c.h.b16 %v703
        %v3483 = vunpack.c.l.b16 %v704
        %v3484 = vunpack.c.h.b16 %v704
        %v3485 = vunpack.c.l.b16 %v705
        %v3486 = vunpack.c.h.b16 %v705
        %v3487 = vunpack.c.l.b16 %v706
        %v3488 = vunpack.c.h.b16 %v706
        %v3489 = vunpack.c.l.b16 %v707
        %v3490 = vunpack.c.h.b16 %v707
        %v3491 = vunpack.c.l.b16 %v708
        %v3492 = vunpack.c.h.b16 %v708
        %v3493 = vunpack.c.l.b16 %v709
        %v3494 = vunpack.c.h.b16 %v709
        %v3495 = vunpack.c.l.b16 %v710
        %v3496 = vunpack.c.h.b16 %v710
        %v3497 = vunpack.c.l.b16 %v711
        %v3498 = vunpack.c.h.b16 %v711
        %v3499 = vunpack.c.l.b16 %v712
        %v3500 = vunpack.c.h.b16 %v712
        %v3501 = vunpack.c.l.b16 %v713
        %v3502 = vunpack.c.h.b16 %v713
        %v3503 = vunpack.c.l.b16 %v714
        %v3504 = vunpack.c.h.b16 %v714
        %v3505 = vunpack.c.l.b16 %v715
        %v3506 = vunpack.c.h.b16 %v715
        %v3507 = vunpack.c.l.b16 %v716
        %v3508 = vunpack.c.h.b16 %v716
        %v3509 = vunpack.c.l.b16 %v717
        %v3510 = vunpack.c.h.b16 %v717
        %v3511 = vunpack.c.l.b16 %v718
        %v3512 = vunpack.c.h.b16 %v718
        %v3513 = vunpack.c.l.b16 %v719
        %v3514 = vunpack.c.h.b16 %v719
        %v3515 = vunpack.c.l.b16 %v720
        %v3516 = vunpack.c.h.b16 %v720
        %v3517 = vunpack.c.l.b16 %v721
        %v3518 = vunpack.c.h.b16 %v721
        %v3519 = vunpack.c.l.b16 %v722
        %v3520 = vunpack.c.h.b16 %v722
        %v3521 = vunpack.c.l.b16 %v723
        %v3522 = vunpack.c.h.b16 %v723
        %v3523 = vunpack.c.l.b16 %v724
        %v3524 = vunpack.c.h.b16 %v724
        %v3525 = vunpack.c.l.b16 %v725
        %v3526 = vunpack.c.h.b16 %v725
        %v3527 = vunpack.c.l.b16 %v726
        %v3528 = vunpack.c.h.b16 %v726
        %v3529 = vunpack.c.l.b16 %v727
        %v3530 = vunpack.c.h.b16 %v727
        %v3531 = vunpack.c.l.b16 %v728
        %v3532 = vunpack.c.h.b16 %v728
        %v3533 = vunpack.c.l.b16 %v729
        %v3534 = vunpack.c.h.b16 %v729
        %v3535 = vunpack.c.l.b16 %v730
        %v3536 = vunpack.c.h.b16 %v730
        %v3537 = vunpack.c.l.b16 %v731
        %v3538 = vunpack.c.h.b16 %v731
        %v3539 = vunpack.c.l.b16 %v732
        %v3540 = vunpack.c.h.b16 %v732
        %v3541 = vunpack.c.l.b16 %v733
        %v3542 = vunpack.c.h.b16 %v733
        %v3543 = vunpack.c.l.b16 %v734
        %v3544 = vunpack.c.h.b16 %v734
        %v3545 = vunpack.c.l.b16 %v735
        %v3546 = vunpack.c.h.b16 %v735
        %v3547 = vunpack.c.l.b16 %v736
        %v3548 = vunpack.c.h.b16 %v736
        %v3549 = vunpack.c.l.b16 %v737
        %v3550 = vunpack.c.h.b16 %v737
        %v3551 = vunpack.c.l.b16 %v738
        %v3552 = vunpack.c.h.b16 %v738
        %v3553 = vunpack.c.l.b16 %v739
        %v3554 = vunpack.c.h.b16 %v739
        %v3555 = vunpack.c.l.b16 %v740
        %v3556 = vunpack.c.h.b16 %v740
        %v3557 = vunpack.c.l.b16 %v741
        %v3558 = vunpack.c.h.b16 %v741
        %v3559 = vunpack.c.l.b16 %v742
        %v3560 = vunpack.c.h.b16 %v742
        %v3561 = vunpack.c.l.b16 %v743
        %v3562 = vunpack.c.h.b16 %v743
        %v3563 = vunpack.c.l.b16 %v744
        %v3564 = vunpack.c.h.b16 %v744
        %v3565 = vunpack.c.l.b16 %v745
        %v3566 = vunpack.c.h.b16 %v745
        %v3567 = vunpack.c.l.b16 %v746
        %v3568 = vunpack.c.h.b16 %v746
        %v3569 = vunpack.c.l.b16 %v747
        %v3570 = vunpack.c.h.b16 %v747
        %v3571 = vunpack.c.l.b16 %v748
        %v3572 = vunpack.c.h.b16 %v748
        %v3573 = vunpack.c.l.b16 %v749
        %v3574 = vunpack.c.h.b16 %v749
        %v3575 = vunpack.c.l.b16 %v750
        %v3576 = vunpack.c.h.b16 %v750
        %v3577 = vunpack.c.l.b16 %v751
        %v3578 = vunpack.c.h.b16 %v751
        %v3579 = vunpack.c.l.b16 %v752
        %v3580 = vunpack.c.h.b16 %v752
        %v3581 = vunpack.c.l.b16 %v753
        %v3582 = vunpack.c.h.b16 %v753
        %v3583 = vunpack.c.l.b16 %v754
        %v3584 = vunpack.c.h.b16 %v754
        %v3585 = vunpack.c.l.b16 %v755
        %v3586 = vunpack.c.h.b16 %v755
        %v3587 = vunpack.c.l.b16 %v756
        %v3588 = vunpack.c.h.b16 %v756
        %v3589 = vunpack.c.l.b16 %v757
        %v3590 = vunpack.c.h.b16 %v757
        %v3591 = vunpack.c.l.b16 %v758
        %v3592 = vunpack.c.h.b16 %v758
        %v3593 = vunpack.c.l.b16 %v759
        %v3594 = vunpack.c.h.b16 %v759
        %v3595 = vunpack.c.l.b16 %v760
        %v3596 = vunpack.c.h.b16 %v760
        %v3597 = vunpack.c.l.b16 %v761
        %v3598 = vunpack.c.h.b16 %v761
        %v3599 = vunpack.c.l.b16 %v762
        %v3600 = vunpack.c.h.b16 %v762
        %v3601 = vunpack.c.l.b16 %v763
        %v3602 = vunpack.c.h.b16 %v763
        %v3603 = vunpack.c.l.b16 %v764
        %v3604 = vunpack.c.h.b16 %v764
        %v3605 = vunpack.c.l.b16 %v765
        %v3606 = vunpack.c.h.b16 %v765
        %v3607 = vunpack.c.l.b16 %v766
        %v3608 = vunpack.c.h.b16 %v766
        %v3609 = vunpack.c.l.b16 %v767
        %v3610 = vunpack.c.h.b16 %v767
        %v3611 = vunpack.c.l.b16 %v768
        %v3612 = vunpack.c.h.b16 %v768
        %v3613 = vunpack.c.l.b16 %v769
        %v3614 = vunpack.c.h.b16 %v769
        %v3615 = vunpack.c.l.b16 %v770
        %v3616 = vunpack.c.h.b16 %v770
        %v3617 = vunpack.c.l.b16 %v771
        %v3618 = vunpack.c.h.b16 %v771
        %v3619 = vunpack.c.l.b16 %v772
        %v3620 = vunpack.c.h.b16 %v772
        %v3621 = vunpack.c.l.b16 %v773
        %v3622 = vunpack.c.h.b16 %v773
        %v3623 = vunpack.c.l.b16 %v774
        %v3624 = vunpack.c.h.b16 %v774
        %v3625 = vunpack.c.l.b16 %v775
        %v3626 = vunpack.c.h.b16 %v775
        %v3627 = vunpack.c.l.b16 %v776
        %v3628 = vunpack.c.h.b16 %v776
        %v3629 = vunpack.c.l.b16 %v777
        %v3630 = vunpack.c.h.b16 %v777
        %v3631 = vunpack.c.l.b16 %v778
        %v3632 = vunpack.c.h.b16 %v778
        %v3633 = vunpack.c.l.b16 %v779
        %v3634 = vunpack.c.h.b16 %v779
        %v3635 = vunpack.c.l.b16 %v780
        %v3636 = vunpack.c.h.b16 %v780
        %v3637 = vunpack.c.l.b16 %v781
        %v3638 = vunpack.c.h.b16 %v781
        %v3639 = vunpack.c.l.b16 %v782
        %v3640 = vunpack.c.h.b16 %v782
        %v3641 = vunpack.c.l.b16 %v783
        %v3642 = vunpack.c.h.b16 %v783
        %v3643 = vunpack.c.l.b16 %v784
        %v3644 = vunpack.c.h.b16 %v784
        %v3645 = vunpack.c.l.b16 %v785
        %v3646 = vunpack.c.h.b16 %v785
        %v3647 = vunpack.c.l.b16 %v786
        %v3648 = vunpack.c.h.b16 %v786
        %v3649 = vunpack.c.l.b16 %v787
        %v3650 = vunpack.c.h.b16 %v787
        %v3651 = vunpack.c.l.b16 %v788
        %v3652 = vunpack.c.h.b16 %v788
        %v3653 = vunpack.c.l.b16 %v789
        %v3654 = vunpack.c.h.b16 %v789
        %v3655 = vunpack.c.l.b16 %v790
        %v3656 = vunpack.c.h.b16 %v790
        %v3657 = vunpack.c.l.b16 %v791
        %v3658 = vunpack.c.h.b16 %v791
        %v3659 = vunpack.c.l.b16 %v792
        %v3660 = vunpack.c.h.b16 %v792
        %v3661 = vunpack.c.l.b16 %v793
        %v3662 = vunpack.c.h.b16 %v793
        %v3663 = vunpack.c.l.b16 %v794
        %v3664 = vunpack.c.h.b16 %v794
        %v3665 = vunpack.c.l.b16 %v795
        %v3666 = vunpack.c.h.b16 %v795
        %v3667 = vunpack.c.l.b16 %v796
        %v3668 = vunpack.c.h.b16 %v796
        %v3669 = vunpack.c.l.b16 %v797
        %v3670 = vunpack.c.h.b16 %v797
        %v3671 = vunpack.c.l.b16 %v798
        %v3672 = vunpack.c.h.b16 %v798
        %v3673 = vunpack.c.l.b16 %v799
        %v3674 = vunpack.c.h.b16 %v799
        %v3675 = vunpack.c.l.b16 %v800
        %v3676 = vunpack.c.h.b16 %v800
        %v3677 = vunpack.c.l.b16 %v801
        %v3678 = vunpack.c.h.b16 %v801
        %v3679 = vunpack.c.l.b16 %v802
        %v3680 = vunpack.c.h.b16 %v802
        %v3681 = vunpack.c.l.b16 %v803
        %v3682 = vunpack.c.h.b16 %v803
        %v3683 = vunpack.c.l.b16 %v804
        %v3684 = vunpack.c.h.b16 %v804
        %v3685 = vunpack.c.l.b16 %v805
        %v3686 = vunpack.c.h.b16 %v805
        %v3687 = vunpack.c.l.b16 %v806
        %v3688 = vunpack.c.h.b16 %v806
        %v3689 = vunpack.c.l.b16 %v807
        %v3690 = vunpack.c.h.b16 %v807
        %v3691 = vunpack.c.l.b16 %v808
        %v3692 = vunpack.c.h.b16 %v808
        %v3693 = vunpack.c.l.b16 %v809
        %v3694 = vunpack.c.h.b16 %v809
        %v3695 = vunpack.c.l.b16 %v810
        %v3696 = vunpack.c.h.b16 %v810
        %v3697 = vunpack.c.l.b16 %v811
        %v3698 = vunpack.c.h.b16 %v811
        %v3699 = vunpack.c.l.b16 %v812
        %v3700 = vunpack.c.h.b16 %v812
        %v3701 = vunpack.c.l.b16 %v813
        %v3702 = vunpack.c.h.b16 %v813
        %v3703 = vunpack.c.l.b16 %v814
        %v3704 = vunpack.c.h.b16 %v814
        %v3705 = vunpack.c.l.b16 %v815
        %v3706 = vunpack.c.h.b16 %v815
        %v3707 = vunpack.c.l.b16 %v816
        %v3708 = vunpack.c.h.b16 %v816
        %v3709 = vunpack.c.l.b16 %v817
        %v3710 = vunpack.c.h.b16 %v817
        %v3711 = vunpack.c.l.b16 %v818
        %v3712 = vunpack.c.h.b16 %v818
        %v3713 = vunpack.c.l.b16 %v819
        %v3714 = vunpack.c.h.b16 %v819
        %v3715 = vunpack.c.l.b16 %v820
        %v3716 = vunpack.c.h.b16 %v820
        %v3717 = vunpack.c.l.b16 %v821
        %v3718 = vunpack.c.h.b16 %v821
        %v3719 = vunpack.c.l.b16 %v822
        %v3720 = vunpack.c.h.b16 %v822
        %v3721 = vunpack.c.l.b16 %v823
        %v3722 = vunpack.c.h.b16 %v823
        %v3723 = vunpack.c.l.b16 %v824
        %v3724 = vunpack.c.h.b16 %v824
        %v3725 = vunpack.c.l.b16 %v825
        %v3726 = vunpack.c.h.b16 %v825
        %v3727 = vunpack.c.l.b16 %v826
        %v3728 = vunpack.c.h.b16 %v826
        %v3729 = vunpack.c.l.b16 %v827
        %v3730 = vunpack.c.h.b16 %v827
        %v3731 = vunpack.c.l.b16 %v828
        %v3732 = vunpack.c.h.b16 %v828
        %v3733 = vunpack.c.l.b16 %v829
        %v3734 = vunpack.c.h.b16 %v829
        %v3735 = vunpack.c.l.b16 %v830
        %v3736 = vunpack.c.h.b16 %v830
        %v3737 = vunpack.c.l.b16 %v831
        %v3738 = vunpack.c.h.b16 %v831
        %v3739 = vunpack.c.l.b16 %v832
        %v3740 = vunpack.c.h.b16 %v832
        %v3741 = vunpack.c.l.b16 %v833
        %v3742 = vunpack.c.h.b16 %v833
        %v3743 = vunpack.c.l.b16 %v834
        %v3744 = vunpack.c.h.b16 %v834
        %v3745 = vunpack.c.l.b16 %v835
        %v3746 = vunpack.c.h.b16 %v835
        %v3747 = vunpack.c.l.b16 %v836
        %v3748 = vunpack.c.h.b16 %v836
        %v3749 = vunpack.c.l.b16 %v837
        %v3750 = vunpack.c.h.b16 %v837
        %v3751 = vunpack.c.l.b16 %v838
        %v3752 = vunpack.c.h.b16 %v838
        %v3753 = vunpack.c.l.b16 %v839
        %v3754 = vunpack.c.h.b16 %v839
        %v3755 = vunpack.c.l.b16 %v840
        %v3756 = vunpack.c.h.b16 %v840
        %v3757 = vunpack.c.l.b16 %v841
        %v3758 = vunpack.c.h.b16 %v841
        %v3759 = vunpack.c.l.b16 %v842
        %v3760 = vunpack.c.h.b16 %v842
        %v3761 = vunpack.c.l.b16 %v843
        %v3762 = vunpack.c.h.b16 %v843
        %v3763 = vunpack.c.l.b16 %v844
        %v3764 = vunpack.c.h.b16 %v844
        %v3765 = vunpack.c.l.b16 %v845
        %v3766 = vunpack.c.h.b16 %v845
        %v3767 = vunpack.c.l.b16 %v846
        %v3768 = vunpack.c.h.b16 %v846
        %v3769 = vunpack.c.l.b16 %v847
        %v3770 = vunpack.c.h.b16 %v847
        %v3771 = vunpack.c.l.b16 %v848
        %v3772 = vunpack.c.h.b16 %v848
        %v3773 = vunpack.c.l.b16 %v849
        %v3774 = vunpack.c.h.b16 %v849
        %v3775 = vunpack.c.l.b16 %v850
        %v3776 = vunpack.c.h.b16 %v850
        %v3777 = vunpack.c.l.b16 %v851
        %v3778 = vunpack.c.h.b16 %v851
        %v3779 = vunpack.c.l.b16 %v852
        %v3780 = vunpack.c.h.b16 %v852
        %v3781 = vunpack.c.l.b16 %v853
        %v3782 = vunpack.c.h.b16 %v853
        %v3783 = vunpack.c.l.b16 %v854
        %v3784 = vunpack.c.h.b16 %v854
        %v3785 = vunpack.c.l.b16 %v855
        %v3786 = vunpack.c.h.b16 %v855
        %v3787 = vunpack.c.l.b16 %v856
        %v3788 = vunpack.c.h.b16 %v856
        %v3789 = vunpack.c.l.b16 %v857
        %v3790 = vunpack.c.h.b16 %v857
        %v3791 = vunpack.c.l.b16 %v858
        %v3792 = vunpack.c.h.b16 %v858
        %v3793 = vunpack.c.l.b16 %v859
        %v3794 = vunpack.c.h.b16 %v859
        %v3795 = vunpack.c.l.b16 %v860
        %v3796 = vunpack.c.h.b16 %v860
        %v3797 = vunpack.c.l.b16 %v861
        %v3798 = vunpack.c.h.b16 %v861
        %v3799 = vunpack.c.l.b16 %v862
        %v3800 = vunpack.c.h.b16 %v862
        %v3801 = vunpack.c.l.b16 %v863
        %v3802 = vunpack.c.h.b16 %v863
        %v3803 = vunpack.c.l.b16 %v864
        %v3804 = vunpack.c.h.b16 %v864
        %v3805 = vunpack.c.l.b16 %v865
        %v3806 = vunpack.c.h.b16 %v865
        %v3807 = vunpack.c.l.b16 %v866
        %v3808 = vunpack.c.h.b16 %v866
        %v3809 = vunpack.c.l.b16 %v867
        %v3810 = vunpack.c.h.b16 %v867
        %v3811 = vunpack.c.l.b16 %v868
        %v3812 = vunpack.c.h.b16 %v868
        %v3813 = vunpack.c.l.b16 %v869
        %v3814 = vunpack.c.h.b16 %v869
        %v3815 = vunpack.c.l.b16 %v870
        %v3816 = vunpack.c.h.b16 %v870
        %v3817 = vunpack.c.l.b16 %v871
        %v3818 = vunpack.c.h.b16 %v871
        %v3819 = vunpack.c.l.b16 %v872
        %v3820 = vunpack.c.h.b16 %v872
        %v3821 = vunpack.c.l.b16 %v873
        %v3822 = vunpack.c.h.b16 %v873
        %v3823 = vunpack.c.l.b16 %v874
        %v3824 = vunpack.c.h.b16 %v874
        %v3825 = vunpack.c.l.b16 %v875
        %v3826 = vunpack.c.h.b16 %v875
        %v3827 = vunpack.c.l.b16 %v876
        %v3828 = vunpack.c.h.b16 %v876
        %v3829 = vunpack.c.l.b16 %v877
        %v3830 = vunpack.c.h.b16 %v877
        %v3831 = vunpack.c.l.b16 %v878
        %v3832 = vunpack.c.h.b16 %v878
        %v3833 = vunpack.c.l.b16 %v879
        %v3834 = vunpack.c.h.b16 %v879
        %v3835 = vunpack.c.l.b16 %v880
        %v3836 = vunpack.c.h.b16 %v880
        %v3837 = vunpack.c.l.b16 %v881
        %v3838 = vunpack.c.h.b16 %v881
        %v3839 = vunpack.c.l.b16 %v882
        %v3840 = vunpack.c.h.b16 %v882
        %v3841 = vunpack.c.l.b16 %v883
        %v3842 = vunpack.c.h.b16 %v883
        %v3843 = vunpack.c.l.b16 %v884
        %v3844 = vunpack.c.h.b16 %v884
        %v3845 = vunpack.c.l.b16 %v885
        %v3846 = vunpack.c.h.b16 %v885
        %v3847 = vunpack.c.l.b16 %v886
        %v3848 = vunpack.c.h.b16 %v886
        %v3849 = vunpack.c.l.b16 %v887
        %v3850 = vunpack.c.h.b16 %v887
        %v3851 = vunpack.c.l.b16 %v888
        %v3852 = vunpack.c.h.b16 %v888
        %v3853 = vunpack.c.l.b16 %v889
        %v3854 = vunpack.c.h.b16 %v889
        %v3855 = vunpack.c.l.b16 %v890
        %v3856 = vunpack.c.h.b16 %v890
        %v3857 = vunpack.c.l.b16 %v891
        %v3858 = vunpack.c.h.b16 %v891
        %v3859 = vunpack.c.l.b16 %v892
        %v3860 = vunpack.c.h.b16 %v892
        %v3861 = vunpack.c.l.b16 %v893
        %v3862 = vunpack.c.h.b16 %v893
        %v3863 = vunpack.c.l.b16 %v894
        %v3864 = vunpack.c.h.b16 %v894
        %v3865 = vunpack.c.l.b16 %v895
        %v3866 = vunpack.c.h.b16 %v895
        %v3867 = vunpack.c.l.b16 %v896
        %v3868 = vunpack.c.h.b16 %v896
        %v3869 = vunpack.c.l.b16 %v897
        %v3870 = vunpack.c.h.b16 %v897
        %v3871 = vunpack.c.l.b16 %v898
        %v3872 = vunpack.c.h.b16 %v898
        %v3873 = vunpack.c.l.b16 %v899
        %v3874 = vunpack.c.h.b16 %v899
        %v3875 = vunpack.c.l.b16 %v900
        %v3876 = vunpack.c.h.b16 %v900
        %v3877 = vunpack.c.l.b16 %v901
        %v3878 = vunpack.c.h.b16 %v901
        %v3879 = vunpack.c.l.b16 %v902
        %v3880 = vunpack.c.h.b16 %v902
        %v3881 = vunpack.c.l.b16 %v903
        %v3882 = vunpack.c.h.b16 %v903
        %v3883 = vunpack.c.l.b16 %v904
        %v3884 = vunpack.c.h.b16 %v904
        %v3885 = vunpack.c.l.b16 %v905
        %v3886 = vunpack.c.h.b16 %v905
        %v3887 = vunpack.c.l.b16 %v906
        %v3888 = vunpack.c.h.b16 %v906
        %v3889 = vunpack.c.l.b16 %v907
        %v3890 = vunpack.c.h.b16 %v907
        %v3891 = vunpack.c.l.b16 %v908
        %v3892 = vunpack.c.h.b16 %v908
        %v3893 = vunpack.c.l.b16 %v909
        %v3894 = vunpack.c.h.b16 %v909
        %v3895 = vunpack.c.l.b16 %v910
        %v3896 = vunpack.c.h.b16 %v910
        %v3897 = vunpack.c.l.b16 %v911
        %v3898 = vunpack.c.h.b16 %v911
        %v3899 = vunpack.c.l.b16 %v912
        %v3900 = vunpack.c.h.b16 %v912
        %v3901 = vunpack.c.l.b16 %v913
        %v3902 = vunpack.c.h.b16 %v913
        %v3903 = vunpack.c.l.b16 %v914
        %v3904 = vunpack.c.h.b16 %v914
        %v3905 = vunpack.c.l.b16 %v915
        %v3906 = vunpack.c.h.b16 %v915
        %v3907 = vunpack.c.l.b16 %v916
        %v3908 = vunpack.c.h.b16 %v916
        %v3909 = vunpack.c.l.b16 %v917
        %v3910 = vunpack.c.h.b16 %v917
        %v3911 = vunpack.c.l.b16 %v918
        %v3912 = vunpack.c.h.b16 %v918
        %v3913 = vunpack.c.l.b16 %v919
        %v3914 = vunpack.c.h.b16 %v919
        %v3915 = vunpack.c.l.b16 %v920
        %v3916 = vunpack.c.h.b16 %v920
        %v3917 = vunpack.c.l.b16 %v921
        %v3918 = vunpack.c.h.b16 %v921
        %v3919 = vunpack.c.l.b16 %v922
        %v3920 = vunpack.c.h.b16 %v922
        %v3921 = vunpack.c.l.b16 %v923
        %v3922 = vunpack.c.h.b16 %v923
        %v3923 = vunpack.c.l.b16 %v924
        %v3924 = vunpack.c.h.b16 %v924
        %v3925 = vunpack.c.l.b16 %v925
        %v3926 = vunpack.c.h.b16 %v925
        %v3927 = vunpack.c.l.b16 %v926
        %v3928 = vunpack.c.h.b16 %v926
        %v3929 = vunpack.c.l.b16 %v927
        %v3930 = vunpack.c.h.b16 %v927
        %v3931 = vunpack.c.l.b16 %v928
        %v3932 = vunpack.c.h.b16 %v928
        %v3933 = vunpack.c.l.b16 %v929
        %v3934 = vunpack.c.h.b16 %v929
        %v3935 = vunpack.c.l.b16 %v930
        %v3936 = vunpack.c.h.b16 %v930
        %v3937 = vunpack.c.l.b16 %v931
        %v3938 = vunpack.c.h.b16 %v931
        %v3939 = vunpack.c.l.b16 %v932
        %v3940 = vunpack.c.h.b16 %v932
        %v3941 = vunpack.c.l.b16 %v933
        %v3942 = vunpack.c.h.b16 %v933
        %v3943 = vunpack.c.l.b16 %v934
        %v3944 = vunpack.c.h.b16 %v934
        %v3945 = vunpack.c.l.b16 %v935
        %v3946 = vunpack.c.h.b16 %v935
        %v3947 = vunpack.c.l.b16 %v936
        %v3948 = vunpack.c.h.b16 %v936
        %v3949 = vunpack.c.l.b16 %v937
        %v3950 = vunpack.c.h.b16 %v937
        %v3951 = vunpack.c.l.b16 %v938
        %v3952 = vunpack.c.h.b16 %v938
        %v3953 = vunpack.c.l.b16 %v939
        %v3954 = vunpack.c.h.b16 %v939
        %v3955 = vunpack.c.l.b16 %v940
        %v3956 = vunpack.c.h.b16 %v940
        %v3957 = vunpack.c.l.b16 %v941
        %v3958 = vunpack.c.h.b16 %v941
        %v3959 = vunpack.c.l.b16 %v942
        %v3960 = vunpack.c.h.b16 %v942
        %v3961 = vunpack.c.l.b16 %v943
        %v3962 = vunpack.c.h.b16 %v943
        %v3963 = vunpack.c.l.b16 %v944
        %v3964 = vunpack.c.h.b16 %v944
        %v3965 = vunpack.c.l.b16 %v945
        %v3966 = vunpack.c.h.b16 %v945
        %v3967 = vunpack.c.l.b16 %v946
        %v3968 = vunpack.c.h.b16 %v946
        %v3969 = vunpack.c.l.b16 %v947
        %v3970 = vunpack.c.h.b16 %v947
        %v3971 = vunpack.c.l.b16 %v948
        %v3972 = vunpack.c.h.b16 %v948
        %v3973 = vunpack.c.l.b16 %v949
        %v3974 = vunpack.c.h.b16 %v949
        %v3975 = vunpack.c.l.b16 %v950
        %v3976 = vunpack.c.h.b16 %v950
        %v3977 = vunpack.c.l.b16 %v951
        %v3978 = vunpack.c.h.b16 %v951
        %v3979 = vunpack.c.l.b16 %v952
        %v3980 = vunpack.c.h.b16 %v952
        %v3981 = vunpack.c.l.b16 %v953
        %v3982 = vunpack.c.h.b16 %v953
        %v3983 = vunpack.c.l.b16 %v954
        %v3984 = vunpack.c.h.b16 %v954
        %v3985 = vunpack.c.l.b16 %v955
        %v3986 = vunpack.c.h.b16 %v955
        %v3987 = vunpack.c.l.b16 %v956
        %v3988 = vunpack.c.h.b16 %v956
        %v3989 = vunpack.c.l.b16 %v957
        %v3990 = vunpack.c.h.b16 %v957
        %v3991 = vunpack.c.l.b16 %v958
        %v3992 = vunpack.c.h.b16 %v958
        %v3993 = vunpack.c.l.b16 %v959
        %v3994 = vunpack.c.h.b16 %v959
        %v3995 = vunpack.c.l.b16 %v960
        %v3996 = vunpack.c.h.b16 %v960
        %v3997 = vunpack.c.l.b16 %v961
        %v3998 = vunpack.c.h.b16 %v961
        %v3999 = vunpack.c.l.b16 %v962
        %v4000 = vunpack.c.h.b16 %v962
        %v4001 = vunpack.c.l.b16 %v963
        %v4002 = vunpack.c.h.b16 %v963
        %v4003 = vunpack.c.l.b16 %v964
        %v4004 = vunpack.c.h.b16 %v964
        %v4005 = vunpack.c.l.b16 %v965
        %v4006 = vunpack.c.h.b16 %v965
        %v4007 = vunpack.c.l.b16 %v966
        %v4008 = vunpack.c.h.b16 %v966
        %v4009 = vunpack.c.l.b16 %v967
        %v4010 = vunpack.c.h.b16 %v967
        %v4011 = vunpack.c.l.b16 %v968
        %v4012 = vunpack.c.h.b16 %v968
        %v4013 = vunpack.c.l.b16 %v969
        %v4014 = vunpack.c.h.b16 %v969
        %v4015 = vunpack.c.l.b16 %v970
        %v4016 = vunpack.c.h.b16 %v970
        %v4017 = vunpack.c.l.b16 %v971
        %v4018 = vunpack.c.h.b16 %v971
        %v4019 = vunpack.c.l.b16 %v972
        %v4020 = vunpack.c.h.b16 %v972
        %v4021 = vunpack.c.l.b16 %v973
        %v4022 = vunpack.c.h.b16 %v973
        %v4023 = vunpack.c.l.b16 %v974
        %v4024 = vunpack.c.h.b16 %v974
        %v4025 = vunpack.c.l.b16 %v975
        %v4026 = vunpack.c.h.b16 %v975
        %v4027 = vunpack.c.l.b16 %v976
        %v4028 = vunpack.c.h.b16 %v976
        %v4029 = vunpack.c.l.b16 %v977
        %v4030 = vunpack.c.h.b16 %v977
        %v4031 = vunpack.c.l.b16 %v978
        %v4032 = vunpack.c.h.b16 %v978
        %v4033 = vunpack.c.l.b16 %v979
        %v4034 = vunpack.c.h.b16 %v979
        %v4035 = vunpack.c.l.b16 %v980
        %v4036 = vunpack.c.h.b16 %v980
        %v4037 = vunpack.c.l.b16 %v981
        %v4038 = vunpack.c.h.b16 %v981
        %v4039 = vunpack.c.l.b16 %v982
        %v4040 = vunpack.c.h.b16 %v982
        %v4041 = vunpack.c.l.b16 %v983
        %v4042 = vunpack.c.h.b16 %v983
        %v4043 = vunpack.c.l.b16 %v984
        %v4044 = vunpack.c.h.b16 %v984
        %v4045 = vunpack.c.l.b16 %v985
        %v4046 = vunpack.c.h.b16 %v985
        %v4047 = vunpack.c.l.b16 %v986
        %v4048 = vunpack.c.h.b16 %v986
        %v4049 = vunpack.c.l.b16 %v987
        %v4050 = vunpack.c.h.b16 %v987
        %v4051 = vunpack.c.l.b16 %v988
        %v4052 = vunpack.c.h.b16 %v988
        %v4053 = vunpack.c.l.b16 %v989
        %v4054 = vunpack.c.h.b16 %v989
        %v4055 = vunpack.c.l.b16 %v990
        %v4056 = vunpack.c.h.b16 %v990
        %v4057 = vunpack.c.l.b16 %v991
        %v4058 = vunpack.c.h.b16 %v991
        %v4059 = vunpack.c.l.b16 %v992
        %v4060 = vunpack.c.h.b16 %v992
        %v4061 = vunpack.c.l.b16 %v993
        %v4062 = vunpack.c.h.b16 %v993
        %v4063 = vunpack.c.l.b16 %v994
        %v4064 = vunpack.c.h.b16 %v994
        %v4065 = vunpack.c.l.b16 %v995
        %v4066 = vunpack.c.h.b16 %v995
        %v4067 = vunpack.c.l.b16 %v996
        %v4068 = vunpack.c.h.b16 %v996
        %v4069 = vunpack.c.l.b16 %v997
        %v4070 = vunpack.c.h.b16 %v997
        %v4071 = vunpack.c.l.b16 %v998
        %v4072 = vunpack.c.h.b16 %v998
        %v4073 = vunpack.c.l.b16 %v999
        %v4074 = vunpack.c.h.b16 %v999
        %v4075 = vunpack.c.l.b16 %v1000
        %v4076 = vunpack.c.h.b16 %v1000
        %v4077 = vunpack.c.l.b16 %v1001
        %v4078 = vunpack.c.h.b16 %v1001
        %v4079 = vunpack.c.l.b16 %v1002
        %v4080 = vunpack.c.h.b16 %v1002
        %v4081 = vunpack.c.l.b16 %v1003
        %v4082 = vunpack.c.h.b16 %v1003
        %v4083 = vunpack.c.l.b16 %v1004
        %v4084 = vunpack.c.h.b16 %v1004
        %v4085 = vunpack.c.l.b16 %v1005
        %v4086 = vunpack.c.h.b16 %v1005
        %v4087 = vunpack.c.l.b16 %v1006
        %v4088 = vunpack.c.h.b16 %v1006
        %v4089 = vunpack.c.l.b16 %v1007
        %v4090 = vunpack.c.h.b16 %v1007
        %v4091 = vunpack.c.l.b16 %v1008
        %v4092 = vunpack.c.h.b16 %v1008
        %v4093 = vunpack.c.l.b16 %v1009
        %v4094 = vunpack.c.h.b16 %v1009
        %v4095 = vunpack.c.l.b16 %v1010
        %v4096 = vunpack.c.h.b16 %v1010
        %v4097 = vunpack.c.l.b16 %v1011
        %v4098 = vunpack.c.h.b16 %v1011
        %v4099 = vunpack.c.l.b16 %v1012
        %v4100 = vunpack.c.h.b16 %v1012
        %v4101 = vunpack.c.l.b16 %v1013
        %v4102 = vunpack.c.h.b16 %v1013
        %v4103 = vunpack.c.l.b16 %v1014
        %v4104 = vunpack.c.h.b16 %v1014
        %v4105 = vunpack.c.l.b16 %v1015
        %v4106 = vunpack.c.h.b16 %v1015
        %v4107 = vunpack.c.l.b16 %v1016
        %v4108 = vunpack.c.h.b16 %v1016
        %v4109 = vunpack.c.l.b16 %v1017
        %v4110 = vunpack.c.h.b16 %v1017
        %v4111 = vunpack.c.l.b16 %v1018
        %v4112 = vunpack.c.h.b16 %v1018
        %v4113 = vunpack.c.l.b16 %v1019
        %v4114 = vunpack.c.h.b16 %v1019
        %v4115 = vunpack.c.l.b16 %v1020
        %v4116 = vunpack.c.h.b16 %v1020
        %v4117 = vunpack.c.l.b16 %v1021
        %v4118 = vunpack.c.h.b16 %v1021
        %v4119 = vunpack.c.l.b16 %v1022
        %v4120 = vunpack.c.h.b16 %v1022
        %v4121 = vunpack.c.l.b16 %v1023
        %v4122 = vunpack.c.h.b16 %v1023
        %v4123 = vunpack.c.l.b16 %v1024
        %v4124 = vunpack.c.h.b16 %v1024
        %v4125 = vunpack.c.l.b16 %v1025
        %v4126 = vunpack.c.h.b16 %v1025
        %v4127 = vunpack.c.l.b16 %v1026
        %v4128 = vunpack.c.h.b16 %v1026
        %v4129 = vunpack.c.l.b16 %v1027
        %v4130 = vunpack.c.h.b16 %v1027
        %v4131 = vunpack.c.l.b16 %v1028
        %v4132 = vunpack.c.h.b16 %v1028
        %v4133 = vunpack.c.l.b16 %v1029
        %v4134 = vunpack.c.h.b16 %v1029
        %v4135 = vunpack.c.l.b16 %v1030
        %v4136 = vunpack.c.h.b16 %v1030
        %v4137 = vunpack.c.l.b16 %v1031
        %v4138 = vunpack.c.h.b16 %v1031
        %v4139 = vunpack.c.l.b16 %v1032
        %v4140 = vunpack.c.h.b16 %v1032
        %v4141 = vunpack.c.l.b16 %v1033
        %v4142 = vunpack.c.h.b16 %v1033
        %v4143 = vunpack.c.l.b16 %v1034
        %v4144 = vunpack.c.h.b16 %v1034
        %v4145 = vunpack.c.l.b16 %v1035
        %v4146 = vunpack.c.h.b16 %v1035
        %v4147 = vunpack.c.l.b16 %v1036
        %v4148 = vunpack.c.h.b16 %v1036
        %v4149 = vunpack.c.l.b16 %v1037
        %v4150 = vunpack.c.h.b16 %v1037
        %v4151 = vunpack.c.l.b16 %v1038
        %v4152 = vunpack.c.h.b16 %v1038
        %v4153 = vunpack.c.l.b16 %v1039
        %v4154 = vunpack.c.h.b16 %v1039
        %v4155 = vunpack.c.l.b16 %v1040
        %v4156 = vunpack.c.h.b16 %v1040
        %v4157 = vunpack.c.l.b16 %v1041
        %v4158 = vunpack.c.h.b16 %v1041
        %v4159 = vunpack.c.l.b16 %v1042
        %v4160 = vunpack.c.h.b16 %v1042
        %v4161 = vunpack.c.l.b16 %v1043
        %v4162 = vunpack.c.h.b16 %v1043
        %v4163 = vunpack.c.l.b16 %v1044
        %v4164 = vunpack.c.h.b16 %v1044
        %v4165 = vunpack.c.l.b16 %v1045
        %v4166 = vunpack.c.h.b16 %v1045
        %v4167 = vunpack.c.l.b16 %v1046
        %v4168 = vunpack.c.h.b16 %v1046
        %v4169 = vunpack.c.l.b16 %v1047
        %v4170 = vunpack.c.h.b16 %v1047
        %v4171 = vunpack.c.l.b16 %v1048
        %v4172 = vunpack.c.h.b16 %v1048
        %v4173 = vunpack.c.l.b16 %v1049
        %v4174 = vunpack.c.h.b16 %v1049
        %v4175 = vunpack.c.l.b16 %v1050
        %v4176 = vunpack.c.h.b16 %v1050
        %v4177 = vunpack.c.l.b16 %v1051
        %v4178 = vunpack.c.h.b16 %v1051
        %v4179 = vunpack.c.l.b16 %v1052
        %v4180 = vunpack.c.h.b16 %v1052
        %v4181 = vunpack.c.l.b16 %v1053
        %v4182 = vunpack.c.h.b16 %v1053
        %v4183 = vunpack.c.l.b16 %v1054
        %v4184 = vunpack.c.h.b16 %v1054
        %v4185 = vunpack.c.l.b16 %v1055
        %v4186 = vunpack.c.h.b16 %v1055
        %v4187 = vunpack.c.l.b16 %v1056
        %v4188 = vunpack.c.h.b16 %v1056
        %v4189 = vunpack.c.l.b16 %v1057
        %v4190 = vunpack.c.h.b16 %v1057
        %v4191 = vunpack.c.l.b16 %v1058
        %v4192 = vunpack.c.h.b16 %v1058
        %v4193 = vunpack.c.l.b16 %v1059
        %v4194 = vunpack.c.h.b16 %v1059
        %v4195 = vunpack.c.l.b16 %v1060
        %v4196 = vunpack.c.h.b16 %v1060
        %v4197 = vunpack.c.l.b16 %v1061
        %v4198 = vunpack.c.h.b16 %v1061
        %v4199 = vunpack.c.l.b16 %v1062
        %v4200 = vunpack.c.h.b16 %v1062
        %v4201 = vunpack.c.l.b16 %v1063
        %v4202 = vunpack.c.h.b16 %v1063
        %v4203 = vunpack.c.l.b16 %v1064
        %v4204 = vunpack.c.h.b16 %v1064
        %v4205 = vunpack.c.l.b16 %v1065
        %v4206 = vunpack.c.h.b16 %v1065
        %v4207 = vunpack.c.l.b16 %v1066
        %v4208 = vunpack.c.h.b16 %v1066
        %v4209 = vunpack.c.l.b16 %v1067
        %v4210 = vunpack.c.h.b16 %v1067
        %v4211 = vunpack.c.l.b16 %v1068
        %v4212 = vunpack.c.h.b16 %v1068
        %v4213 = vunpack.c.l.b16 %v1069
        %v4214 = vunpack.c.h.b16 %v1069
        %v4215 = vunpack.c.l.b16 %v1070
        %v4216 = vunpack.c.h.b16 %v1070
        %v4217 = vunpack.c.l.b16 %v1071
        %v4218 = vunpack.c.h.b16 %v1071
        %v4219 = vunpack.c.l.b16 %v1072
        %v4220 = vunpack.c.h.b16 %v1072
        %v4221 = vunpack.c.l.b16 %v1073
        %v4222 = vunpack.c.h.b16 %v1073
        %v4223 = vunpack.c.l.b16 %v1074
        %v4224 = vunpack.c.h.b16 %v1074
        %v4225 = vunpack.c.l.b16 %v1075
        %v4226 = vunpack.c.h.b16 %v1075
        %v4227 = vunpack.c.l.b16 %v1076
        %v4228 = vunpack.c.h.b16 %v1076
        %v4229 = vunpack.c.l.b16 %v1077
        %v4230 = vunpack.c.h.b16 %v1077
        %v4231 = vunpack.c.l.b16 %v1078
        %v4232 = vunpack.c.h.b16 %v1078
        %v4233 = vunpack.c.l.b16 %v1079
        %v4234 = vunpack.c.h.b16 %v1079
        %v4235 = vunpack.c.l.b16 %v1080
        %v4236 = vunpack.c.h.b16 %v1080
        %v4237 = vunpack.c.l.b16 %v1081
        %v4238 = vunpack.c.h.b16 %v1081
        %v4239 = vunpack.c.l.b16 %v1082
        %v4240 = vunpack.c.h.b16 %v1082
        %v4241 = vunpack.c.l.b16 %v1083
        %v4242 = vunpack.c.h.b16 %v1083
        %v4243 = vunpack.c.l.b16 %v1084
        %v4244 = vunpack.c.h.b16 %v1084
        %v4245 = vunpack.c.l.b16 %v1085
        %v4246 = vunpack.c.h.b16 %v1085
        %v4247 = vunpack.c.l.b16 %v1086
        %v4248 = vunpack.c.h.b16 %v1086
        %v4249 = vunpack.c.l.b16 %v1087
        %v4250 = vunpack.c.h.b16 %v1087
        %v4251 = vunpack.c.l.b16 %v1088
        %v4252 = vunpack.c.h.b16 %v1088
        %v4253 = vunpack.c.l.b16 %v1089
        %v4254 = vunpack.c.h.b16 %v1089
        %v4255 = vunpack.c.l.b16 %v1090
        %v4256 = vunpack.c.h.b16 %v1090
        %v4257 = vunpack.c.l.b16 %v1091
        %v4258 = vunpack.c.h.b16 %v1091
        %v4259 = vunpack.c.l.b16 %v1092
        %v4260 = vunpack.c.h.b16 %v1092
        %v4261 = vunpack.c.l.b16 %v1093
        %v4262 = vunpack.c.h.b16 %v1093
        %v4263 = vunpack.c.l.b16 %v1094
        %v4264 = vunpack.c.h.b16 %v1094
        %v4265 = vunpack.c.l.b16 %v1095
        %v4266 = vunpack.c.h.b16 %v1095
        %v4267 = vunpack.c.l.b16 %v1096
        %v4268 = vunpack.c.h.b16 %v1096
        %v4269 = vunpack.c.l.b16 %v1097
        %v4270 = vunpack.c.h.b16 %v1097
        %v4271 = vunpack.c.l.b16 %v1098
        %v4272 = vunpack.c.h.b16 %v1098
        %v4273 = vunpack.c.l.b16 %v1099
        %v4274 = vunpack.c.h.b16 %v1099
        %v4275 = vunpack.c.l.b16 %v1100
        %v4276 = vunpack.c.h.b16 %v1100
        %v4277 = vunpack.c.l.b16 %v1101
        %v4278 = vunpack.c.h.b16 %v1101
        %v4279 = vunpack.c.l.b16 %v1102
        %v4280 = vunpack.c.h.b16 %v1102
        %v4281 = vunpack.c.l.b16 %v1103
        %v4282 = vunpack.c.h.b16 %v1103
        %v4283 = vunpack.c.l.b16 %v1104
        %v4284 = vunpack.c.h.b16 %v1104
        %v4285 = vunpack.c.l.b16 %v1105
        %v4286 = vunpack.c.h.b16 %v1105
        %v4287 = vunpack.c.l.b16 %v1106
        %v4288 = vunpack.c.h.b16 %v1106
        %v4289 = vunpack.c.l.b16 %v1107
        %v4290 = vunpack.c.h.b16 %v1107
        %v4291 = vunpack.c.l.b16 %v1108
        %v4292 = vunpack.c.h.b16 %v1108
        %v4293 = vunpack.c.l.b16 %v1109
        %v4294 = vunpack.c.h.b16 %v1109
        %v4295 = vunpack.c.l.b16 %v1110
        %v4296 = vunpack.c.h.b16 %v1110
        %v4297 = vunpack.c.l.b16 %v1111
        %v4298 = vunpack.c.h.b16 %v1111
        %v4299 = vunpack.c.l.b16 %v1112
        %v4300 = vunpack.c.h.b16 %v1112
        %v4301 = vunpack.c.l.b16 %v1113
        %v4302 = vunpack.c.h.b16 %v1113
        %v4303 = vunpack.c.l.b16 %v1114
        %v4304 = vunpack.c.h.b16 %v1114
        %v4305 = vunpack.c.l.b16 %v1115
        %v4306 = vunpack.c.h.b16 %v1115
        %v4307 = vunpack.c.l.b16 %v1116
        %v4308 = vunpack.c.h.b16 %v1116
        %v4309 = vunpack.c.l.b16 %v1117
        %v4310 = vunpack.c.h.b16 %v1117
        %v4311 = vunpack.c.l.b16 %v1118
        %v4312 = vunpack.c.h.b16 %v1118
        %v4313 = vunpack.c.l.b16 %v1119
        %v4314 = vunpack.c.h.b16 %v1119
        %v4315 = vunpack.c.l.b16 %v1120
        %v4316 = vunpack.c.h.b16 %v1120
        %v4317 = vunpack.c.l.b16 %v1121
        %v4318 = vunpack.c.h.b16 %v1121
        %v4319 = vunpack.c.l.b16 %v1122
        %v4320 = vunpack.c.h.b16 %v1122
        %v4321 = vunpack.c.l.b16 %v1123
        %v4322 = vunpack.c.h.b16 %v1123
        %v4323 = vunpack.c.l.b16 %v1124
        %v4324 = vunpack.c.h.b16 %v1124
        %v4325 = vunpack.c.l.b16 %v1125
        %v4326 = vunpack.c.h.b16 %v1125
        %v4327 = vunpack.c.l.b16 %v1126
        %v4328 = vunpack.c.h.b16 %v1126
        %v4329 = vunpack.c.l.b16 %v1127
        %v4330 = vunpack.c.h.b16 %v1127
        %v4331 = vunpack.c.l.b16 %v1128
        %v4332 = vunpack.c.h.b16 %v1128
        %v4333 = vunpack.c.l.b16 %v1129
        %v4334 = vunpack.c.h.b16 %v1129
        %v4335 = vunpack.c.l.b16 %v1130
        %v4336 = vunpack.c.h.b16 %v1130
        %v4337 = vunpack.c.l.b16 %v1131
        %v4338 = vunpack.c.h.b16 %v1131
        %v4339 = vunpack.c.l.b16 %v1132
        %v4340 = vunpack.c.h.b16 %v1132
        %v4341 = vunpack.c.l.b16 %v1133
        %v4342 = vunpack.c.h.b16 %v1133
        %v4343 = vunpack.c.l.b16 %v1134
        %v4344 = vunpack.c.h.b16 %v1134
        %v4345 = vunpack.c.l.b16 %v1135
        %v4346 = vunpack.c.h.b16 %v1135
        %v4347 = vunpack.c.l.b16 %v1136
        %v4348 = vunpack.c.h.b16 %v1136
        %v4349 = vunpack.c.l.b16 %v1137
        %v4350 = vunpack.c.h.b16 %v1137
        %v4351 = vunpack.c.l.b16 %v1138
        %v4352 = vunpack.c.h.b16 %v1138
        %v4353 = vunpack.c.l.b16 %v1139
        %v4354 = vunpack.c.h.b16 %v1139
        %v4355 = vunpack.c.l.b16 %v1140
        %v4356 = vunpack.c.h.b16 %v1140
        %v4357 = vunpack.c.l.b16 %v1141
        %v4358 = vunpack.c.h.b16 %v1141
        %v4359 = vunpack.c.l.b16 %v1142
        %v4360 = vunpack.c.h.b16 %v1142
        %v4361 = vunpack.c.l.b16 %v1143
        %v4362 = vunpack.c.h.b16 %v1143
        %v4363 = vunpack.c.l.b16 %v1144
        %v4364 = vunpack.c.h.b16 %v1144
        %v4365 = vunpack.c.l.b16 %v1145
        %v4366 = vunpack.c.h.b16 %v1145
        %v4367 = vunpack.c.l.b16 %v1146
        %v4368 = vunpack.c.h.b16 %v1146
        %v4369 = vunpack.c.l.b16 %v1147
        %v4370 = vunpack.c.h.b16 %v1147
        %v4371 = vunpack.c.l.b16 %v1148
        %v4372 = vunpack.c.h.b16 %v1148
        %v4373 = vunpack.c.l.b16 %v1149
        %v4374 = vunpack.c.h.b16 %v1149
        %v4375 = vunpack.c.l.b16 %v1150
        %v4376 = vunpack.c.h.b16 %v1150
        %v4377 = vunpack.c.l.b16 %v1151
        %v4378 = vunpack.c.h.b16 %v1151
        %v4379 = vunpack.c.l.b16 %v1152
        %v4380 = vunpack.c.h.b16 %v1152
        %v4381 = vunpack.c.l.b16 %v1153
        %v4382 = vunpack.c.h.b16 %v1153
        %v4383 = vunpack.c.l.b16 %v1154
        %v4384 = vunpack.c.h.b16 %v1154
        %v4385 = vunpack.c.l.b16 %v1155
        %v4386 = vunpack.c.h.b16 %v1155
        %v4387 = vunpack.c.l.b16 %v1156
        %v4388 = vunpack.c.h.b16 %v1156
        %v4389 = vunpack.c.l.b16 %v1157
        %v4390 = vunpack.c.h.b16 %v1157
        %v4391 = vunpack.c.l.b16 %v1158
        %v4392 = vunpack.c.h.b16 %v1158
        %v4393 = vunpack.c.l.b16 %v1159
        %v4394 = vunpack.c.h.b16 %v1159
        %v4395 = vunpack.c.l.b16 %v1160
        %v4396 = vunpack.c.h.b16 %v1160
        %v4397 = vunpack.c.l.b16 %v1161
        %v4398 = vunpack.c.h.b16 %v1161
        %v4399 = vunpack.c.l.b16 %v1162
        %v4400 = vunpack.c.h.b16 %v1162
        %v4401 = vunpack.c.l.b16 %v1163
        %v4402 = vunpack.c.h.b16 %v1163
        %v4403 = vunpack.c.l.b16 %v1164
        %v4404 = vunpack.c.h.b16 %v1164
        %v4405 = vunpack.c.l.b16 %v1165
        %v4406 = vunpack.c.h.b16 %v1165
        %v4407 = vunpack.c.l.b16 %v1166
        %v4408 = vunpack.c.h.b16 %v1166
        %v4409 = vunpack.c.l.b16 %v1167
        %v4410 = vunpack.c.h.b16 %v1167
        %v4411 = vunpack.c.l.b16 %v1168
        %v4412 = vunpack.c.h.b16 %v1168
        %v4413 = vunpack.c.l.b16 %v1169
        %v4414 = vunpack.c.h.b16 %v1169
        %v4415 = vunpack.c.l.b16 %v1170
        %v4416 = vunpack.c.h.b16 %v1170
        %v4417 = vunpack.c.l.b16 %v1171
        %v4418 = vunpack.c.h.b16 %v1171
        %v4419 = vunpack.c.l.b16 %v1172
        %v4420 = vunpack.c.h.b16 %v1172
        %v4421 = vunpack.c.l.b16 %v1173
        %v4422 = vunpack.c.h.b16 %v1173
        %v4423 = vunpack.c.l.b16 %v1174
        %v4424 = vunpack.c.h.b16 %v1174
        %v4425 = vunpack.c.l.b16 %v1175
        %v4426 = vunpack.c.h.b16 %v1175
        %v4427 = vunpack.c.l.b16 %v1176
        %v4428 = vunpack.c.h.b16 %v1176
        %v4429 = vunpack.c.l.b16 %v1177
        %v4430 = vunpack.c.h.b16 %v1177
        %v4431 = vunpack.c.l.b16 %v1178
        %v4432 = vunpack.c.h.b16 %v1178
        %v4433 = vunpack.c.l.b16 %v1179
        %v4434 = vunpack.c.h.b16 %v1179
        %v4435 = vunpack.c.l.b16 %v1180
        %v4436 = vunpack.c.h.b16 %v1180
        %v4437 = vunpack.c.l.b16 %v1181
        %v4438 = vunpack.c.h.b16 %v1181
        %v4439 = vunpack.c.l.b16 %v1182
        %v4440 = vunpack.c.h.b16 %v1182
        %v4441 = vunpack.c.l.b16 %v1183
        %v4442 = vunpack.c.h.b16 %v1183
        %v4443 = vunpack.c.l.b16 %v1184
        %v4444 = vunpack.c.h.b16 %v1184
        %v4445 = vunpack.c.l.b16 %v1185
        %v4446 = vunpack.c.h.b16 %v1185
        %v4447 = vunpack.c.l.b16 %v1186
        %v4448 = vunpack.c.h.b16 %v1186
        %v4449 = vunpack.c.l.b16 %v1187
        %v4450 = vunpack.c.h.b16 %v1187
        %v4451 = vunpack.c.l.b16 %v1188
        %v4452 = vunpack.c.h.b16 %v1188
        %v4453 = vunpack.c.l.b16 %v1189
        %v4454 = vunpack.c.h.b16 %v1189
        %v4455 = vunpack.c.l.b16 %v1190
        %v4456 = vunpack.c.h.b16 %v1190
        %v4457 = vunpack.c.l.b16 %v1191
        %v4458 = vunpack.c.h.b16 %v1191
        %v4459 = vunpack.c.l.b16 %v1192
        %v4460 = vunpack.c.h.b16 %v1192
        %v4461 = vunpack.c.l.b16 %v1193
        %v4462 = vunpack.c.h.b16 %v1193
        %v4463 = vunpack.c.l.b16 %v1194
        %v4464 = vunpack.c.h.b16 %v1194
        %v4465 = vunpack.c.l.b16 %v1195
        %v4466 = vunpack.c.h.b16 %v1195
        %v4467 = vunpack.c.l.b16 %v1196
        %v4468 = vunpack.c.h.b16 %v1196
        %v4469 = vunpack.c.l.b16 %v1197
        %v4470 = vunpack.c.h.b16 %v1197
        %v4471 = vunpack.c.l.b16 %v1198
        %v4472 = vunpack.c.h.b16 %v1198
        %v4473 = vunpack.c.l.b16 %v1199
        %v4474 = vunpack.c.h.b16 %v1199
        %v4475 = vunpack.c.l.b16 %v1200
        %v4476 = vunpack.c.h.b16 %v1200
        %v4477 = vunpack.c.l.b16 %v1201
        %v4478 = vunpack.c.h.b16 %v1201
        %v4479 = vunpack.c.l.b16 %v1202
        %v4480 = vunpack.c.h.b16 %v1202
        %v4481 = vunpack.c.l.b16 %v1203
        %v4482 = vunpack.c.h.b16 %v1203
        %v4483 = vunpack.c.l.b16 %v1204
        %v4484 = vunpack.c.h.b16 %v1204
        %v4485 = vunpack.c.l.b16 %v1205
        %v4486 = vunpack.c.h.b16 %v1205
        %v4487 = vunpack.c.l.b16 %v1206
        %v4488 = vunpack.c.h.b16 %v1206
        %v4489 = vunpack.c.l.b16 %v1207
        %v4490 = vunpack.c.h.b16 %v1207
        %v4491 = vunpack.c.l.b16 %v1208
        %v4492 = vunpack.c.h.b16 %v1208
        %v4493 = vunpack.c.l.b16 %v1209
        %v4494 = vunpack.c.h.b16 %v1209
        %v4495 = vunpack.c.l.b16 %v1210
        %v4496 = vunpack.c.h.b16 %v1210
        %v4497 = vunpack.c.l.b16 %v1211
        %v4498 = vunpack.c.h.b16 %v1211
        %v4499 = vunpack.c.l.b16 %v1212
        %v4500 = vunpack.c.h.b16 %v1212
        %v4501 = vunpack.c.l.b16 %v1213
        %v4502 = vunpack.c.h.b16 %v1213
        %v4503 = vunpack.c.l.b16 %v1214
        %v4504 = vunpack.c.h.b16 %v1214
        %v4505 = vunpack.c.l.b16 %v1215
        %v4506 = vunpack.c.h.b16 %v1215
        %v4507 = vunpack.c.l.b16 %v1216
        %v4508 = vunpack.c.h.b16 %v1216
        %v4509 = vunpack.c.l.b16 %v1217
        %v4510 = vunpack.c.h.b16 %v1217
        %v4511 = vunpack.c.l.b16 %v1218
        %v4512 = vunpack.c.h.b16 %v1218
        %v4513 = vunpack.c.l.b16 %v1219
        %v4514 = vunpack.c.h.b16 %v1219
        %v4515 = vunpack.c.l.b16 %v1220
        %v4516 = vunpack.c.h.b16 %v1220
        %v4517 = vunpack.c.l.b16 %v1221
        %v4518 = vunpack.c.h.b16 %v1221
        %v4519 = vunpack.c.l.b16 %v1222
        %v4520 = vunpack.c.h.b16 %v1222
        %v4521 = vunpack.c.l.b16 %v1223
        %v4522 = vunpack.c.h.b16 %v1223
        %v4523 = vunpack.c.l.b16 %v1224
        %v4524 = vunpack.c.h.b16 %v1224
        %v4525 = vunpack.c.l.b16 %v1225
        %v4526 = vunpack.c.h.b16 %v1225
        %v4527 = vunpack.c.l.b16 %v1226
        %v4528 = vunpack.c.h.b16 %v1226
        %v4529 = vunpack.c.l.b16 %v1227
        %v4530 = vunpack.c.h.b16 %v1227
        %v4531 = vunpack.c.l.b16 %v1228
        %v4532 = vunpack.c.h.b16 %v1228
        %v4533 = vunpack.c.l.b16 %v1229
        %v4534 = vunpack.c.h.b16 %v1229
        %v4535 = vunpack.c.l.b16 %v1230
        %v4536 = vunpack.c.h.b16 %v1230
        %v4537 = vunpack.c.l.b16 %v1231
        %v4538 = vunpack.c.h.b16 %v1231
        %v4539 = vunpack.c.l.b16 %v1232
        %v4540 = vunpack.c.h.b16 %v1232
        %v4541 = vunpack.c.l.b16 %v1233
        %v4542 = vunpack.c.h.b16 %v1233
        %v4543 = vunpack.c.l.b16 %v1234
        %v4544 = vunpack.c.h.b16 %v1234
        %v4545 = vunpack.c.l.b16 %v1235
        %v4546 = vunpack.c.h.b16 %v1235
        %v4547 = vunpack.c.l.b16 %v1236
        %v4548 = vunpack.c.h.b16 %v1236
        %v4549 = vunpack.c.l.b16 %v1237
        %v4550 = vunpack.c.h.b16 %v1237
        %v4551 = vunpack.c.l.b16 %v1238
        %v4552 = vunpack.c.h.b16 %v1238
        %v4553 = vunpack.c.l.b16 %v1239
        %v4554 = vunpack.c.h.b16 %v1239
        %v4555 = vunpack.c.l.b16 %v1240
        %v4556 = vunpack.c.h.b16 %v1240
        %v4557 = vunpack.c.l.b16 %v1241
        %v4558 = vunpack.c.h.b16 %v1241
        %v4559 = vunpack.c.l.b16 %v1242
        %v4560 = vunpack.c.h.b16 %v1242
        %v4561 = vunpack.c.l.b16 %v1243
        %v4562 = vunpack.c.h.b16 %v1243
        %v4563 = vunpack.c.l.b16 %v1244
        %v4564 = vunpack.c.h.b16 %v1244
        %v4565 = vunpack.c.l.b16 %v1245
        %v4566 = vunpack.c.h.b16 %v1245
        %v4567 = vunpack.c.l.b16 %v1246
        %v4568 = vunpack.c.h.b16 %v1246
        %v4569 = vunpack.c.l.b16 %v1247
        %v4570 = vunpack.c.h.b16 %v1247
        %v4571 = vunpack.c.l.b16 %v1248
        %v4572 = vunpack.c.h.b16 %v1248
        %v4573 = vunpack.c.l.b16 %v1249
        %v4574 = vunpack.c.h.b16 %v1249
        %v4575 = vunpack.c.l.b16 %v1250
        %v4576 = vunpack.c.h.b16 %v1250
        %v4577 = vunpack.c.l.b16 %v1251
        %v4578 = vunpack.c.h.b16 %v1251
        %v4579 = vunpack.c.l.b16 %v1252
        %v4580 = vunpack.c.h.b16 %v1252
        %v4581 = vunpack.c.l.b16 %v1253
        %v4582 = vunpack.c.h.b16 %v1253
        %v4583 = vunpack.c.l.b16 %v1254
        %v4584 = vunpack.c.h.b16 %v1254
        %v4585 = vunpack.c.l.b16 %v1255
        %v4586 = vunpack.c.h.b16 %v1255
        %v4587 = vunpack.c.l.b16 %v1256
        %v4588 = vunpack.c.h.b16 %v1256
        %v4589 = vunpack.c.l.b16 %v1257
        %v4590 = vunpack.c.h.b16 %v1257
        %v4591 = vunpack.c.l.b16 %v1258
        %v4592 = vunpack.c.h.b16 %v1258
        %v4593 = vunpack.c.l.b16 %v1259
        %v4594 = vunpack.c.h.b16 %v1259
        %v4595 = vunpack.c.l.b16 %v1260
        %v4596 = vunpack.c.h.b16 %v1260
        %v4597 = vunpack.c.l.b16 %v1261
        %v4598 = vunpack.c.h.b16 %v1261
        %v4599 = vunpack.c.l.b16 %v1262
        %v4600 = vunpack.c.h.b16 %v1262
        %v4601 = vunpack.c.l.b16 %v1263
        %v4602 = vunpack.c.h.b16 %v1263
        %v4603 = vunpack.c.l.b16 %v1264
        %v4604 = vunpack.c.h.b16 %v1264
        %v4605 = vunpack.c.l.b16 %v1265
        %v4606 = vunpack.c.h.b16 %v1265
        %v4607 = vunpack.c.l.b16 %v1266
        %v4608 = vunpack.c.h.b16 %v1266
        %v4609 = vunpack.c.l.b16 %v1267
        %v4610 = vunpack.c.h.b16 %v1267
        %v4611 = vunpack.c.l.b16 %v1268
        %v4612 = vunpack.c.h.b16 %v1268
        %v4613 = vunpack.c.l.b16 %v1269
        %v4614 = vunpack.c.h.b16 %v1269
        %v4615 = vunpack.c.l.b16 %v1270
        %v4616 = vunpack.c.h.b16 %v1270
        %v4617 = vunpack.c.l.b16 %v1271
        %v4618 = vunpack.c.h.b16 %v1271
        %v4619 = vunpack.c.l.b16 %v1272
        %v4620 = vunpack.c.h.b16 %v1272
        %v4621 = vunpack.c.l.b16 %v1273
        %v4622 = vunpack.c.h.b16 %v1273
        %v4623 = vunpack.c.l.b16 %v1274
        %v4624 = vunpack.c.h.b16 %v1274
        %v4625 = vunpack.c.l.b16 %v1275
        %v4626 = vunpack.c.h.b16 %v1275
        %v4627 = vunpack.c.l.b16 %v1276
        %v4628 = vunpack.c.h.b16 %v1276
        %v4629 = vunpack.c.l.b16 %v1277
        %v4630 = vunpack.c.h.b16 %v1277
        %v4631 = vunpack.c.l.b16 %v1278
        %v4632 = vunpack.c.h.b16 %v1278
        %v4633 = vunpack.c.l.b16 %v1279
        %v4634 = vunpack.c.h.b16 %v1279
        %v4635 = vunpack.c.l.b16 %v1280
        %v4636 = vunpack.c.h.b16 %v1280
        %v4637 = vunpack.c.l.b16 %v1281
        %v4638 = vunpack.c.h.b16 %v1281
        %v4639 = vunpack.c.l.b16 %v1282
        %v4640 = vunpack.c.h.b16 %v1282
        %v4641 = vunpack.c.l.b16 %v1283
        %v4642 = vunpack.c.h.b16 %v1283
        %v4643 = vunpack.c.l.b16 %v1284
        %v4644 = vunpack.c.h.b16 %v1284
        %v4645 = vunpack.c.l.b16 %v1285
        %v4646 = vunpack.c.h.b16 %v1285
        %v4647 = vunpack.c.l.b16 %v1286
        %v4648 = vunpack.c.h.b16 %v1286
        %v4649 = vunpack.c.l.b16 %v1287
        %v4650 = vunpack.c.h.b16 %v1287
        %v4651 = vunpack.c.l.b16 %v1288
        %v4652 = vunpack.c.h.b16 %v1288
        %v4653 = vunpack.c.l.b16 %v1289
        %v4654 = vunpack.c.h.b16 %v1289
        %v4655 = vunpack.c.l.b16 %v1290
        %v4656 = vunpack.c.h.b16 %v1290
        %v4657 = vunpack.c.l.b16 %v1291
        %v4658 = vunpack.c.h.b16 %v1291
        %v4659 = vunpack.c.l.b16 %v1292
        %v4660 = vunpack.c.h.b16 %v1292
        %v4661 = vunpack.c.l.b16 %v1293
        %v4662 = vunpack.c.h.b16 %v1293
        %v4663 = vunpack.c.l.b16 %v1294
        %v4664 = vunpack.c.h.b16 %v1294
        %v4665 = vunpack.c.l.b16 %v1295
        %v4666 = vunpack.c.h.b16 %v1295
        %v4667 = vunpack.c.l.b16 %v1296
        %v4668 = vunpack.c.h.b16 %v1296
        %v4669 = vunpack.c.l.b16 %v1297
        %v4670 = vunpack.c.h.b16 %v1297
        %v4671 = vunpack.c.l.b16 %v1298
        %v4672 = vunpack.c.h.b16 %v1298
        %v4673 = vunpack.c.l.b16 %v1299
        %v4674 = vunpack.c.h.b16 %v1299
        %v4675 = vunpack.c.l.b16 %v1300
        %v4676 = vunpack.c.h.b16 %v1300
        %v4677 = vunpack.c.l.b16 %v1301
        %v4678 = vunpack.c.h.b16 %v1301
        %v4679 = vunpack.c.l.b16 %v1302
        %v4680 = vunpack.c.h.b16 %v1302
        %v4681 = vunpack.c.l.b16 %v1303
        %v4682 = vunpack.c.h.b16 %v1303
        %v4683 = vunpack.c.l.b16 %v1304
        %v4684 = vunpack.c.h.b16 %v1304
        %v4685 = vunpack.c.l.b16 %v1305
        %v4686 = vunpack.c.h.b16 %v1305
        %v4687 = vunpack.c.l.b16 %v1306
        %v4688 = vunpack.c.h.b16 %v1306
        %v4689 = vunpack.c.l.b16 %v1307
        %v4690 = vunpack.c.h.b16 %v1307
        %v4691 = vunpack.c.l.b16 %v1308
        %v4692 = vunpack.c.h.b16 %v1308
        %v4693 = vunpack.c.l.b16 %v1309
        %v4694 = vunpack.c.h.b16 %v1309
        %v4695 = vunpack.c.l.b16 %v1310
        %v4696 = vunpack.c.h.b16 %v1310
        %v4697 = vunpack.c.l.b16 %v1311
        %v4698 = vunpack.c.h.b16 %v1311
        %v4699 = vunpack.c.l.b16 %v1312
        %v4700 = vunpack.c.h.b16 %v1312
        %v4701 = vunpack.c.l.b16 %v1313
        %v4702 = vunpack.c.h.b16 %v1313
        %v4703 = vunpack.c.l.b16 %v1314
        %v4704 = vunpack.c.h.b16 %v1314
        %v4705 = vunpack.c.l.b16 %v1315
        %v4706 = vunpack.c.h.b16 %v1315
        %v4707 = vunpack.c.l.b16 %v1316
        %v4708 = vunpack.c.h.b16 %v1316
        %v4709 = vunpack.c.l.b16 %v1317
        %v4710 = vunpack.c.h.b16 %v1317
        %v4711 = vunpack.c.l.b16 %v1318
        %v4712 = vunpack.c.h.b16 %v1318
        %v4713 = vunpack.c.l.b16 %v1319
        %v4714 = vunpack.c.h.b16 %v1319
        %v4715 = vunpack.c.l.b16 %v1320
        %v4716 = vunpack.c.h.b16 %v1320
        %v4717 = vunpack.c.l.b16 %v1321
        %v4718 = vunpack.c.h.b16 %v1321
        %v4719 = vunpack.c.l.b16 %v1322
        %v4720 = vunpack.c.h.b16 %v1322
        %v4721 = vunpack.c.l.b16 %v1323
        %v4722 = vunpack.c.h.b16 %v1323
        %v4723 = vunpack.c.l.b16 %v1324
        %v4724 = vunpack.c.h.b16 %v1324
        %v4725 = vunpack.c.l.b16 %v1325
        %v4726 = vunpack.c.h.b16 %v1325
        %v4727 = vunpack.c.l.b16 %v1326
        %v4728 = vunpack.c.h.b16 %v1326
        %v4729 = vunpack.c.l.b16 %v1327
        %v4730 = vunpack.c.h.b16 %v1327
        %v4731 = vunpack.c.l.b16 %v1328
        %v4732 = vunpack.c.h.b16 %v1328
        %v4733 = vunpack.c.l.b16 %v1329
        %v4734 = vunpack.c.h.b16 %v1329
        %v4735 = vunpack.c.l.b16 %v1330
        %v4736 = vunpack.c.h.b16 %v1330
        %v4737 = vunpack.c.l.b16 %v1331
        %v4738 = vunpack.c.h.b16 %v1331
        %v4739 = vunpack.c.l.b16 %v1332
        %v4740 = vunpack.c.h.b16 %v1332
        %v4741 = vunpack.c.l.b16 %v1333
        %v4742 = vunpack.c.h.b16 %v1333
        %v4743 = vunpack.c.l.b16 %v1334
        %v4744 = vunpack.c.h.b16 %v1334
        %v4745 = vunpack.c.l.b16 %v1335
        %v4746 = vunpack.c.h.b16 %v1335
        %v4747 = vunpack.c.l.b16 %v1336
        %v4748 = vunpack.c.h.b16 %v1336
        %v4749 = vunpack.c.l.b16 %v1337
        %v4750 = vunpack.c.h.b16 %v1337
        %v4751 = vunpack.c.l.b16 %v1338
        %v4752 = vunpack.c.h.b16 %v1338
        %v4753 = vunpack.c.l.b16 %v1339
        %v4754 = vunpack.c.h.b16 %v1339
        %v4755 = vunpack.c.l.b16 %v1340
        %v4756 = vunpack.c.h.b16 %v1340
        %v4757 = vunpack.c.l.b16 %v1341
        %v4758 = vunpack.c.h.b16 %v1341
        %v4759 = vunpack.c.l.b16 %v1342
        %v4760 = vunpack.c.h.b16 %v1342
        %v4761 = vunpack.c.l.b16 %v1343
        %v4762 = vunpack.c.h.b16 %v1343
        %v4763 = vunpack.c.l.b16 %v1344
        %v4764 = vunpack.c.h.b16 %v1344
        %v4765 = vunpack.c.l.b16 %v1345
        %v4766 = vunpack.c.h.b16 %v1345
        %v4767 = vunpack.c.l.b16 %v1346
        %v4768 = vunpack.c.h.b16 %v1346
        %v4769 = vunpack.c.l.b16 %v1347
        %v4770 = vunpack.c.h.b16 %v1347
        %v4771 = vunpack.c.l.b16 %v1348
        %v4772 = vunpack.c.h.b16 %v1348
        %v4773 = vunpack.c.l.b16 %v1349
        %v4774 = vunpack.c.h.b16 %v1349
        %v4775 = vunpack.c.l.b16 %v1350
        %v4776 = vunpack.c.h.b16 %v1350
        %v4777 = vunpack.c.l.b16 %v1351
        %v4778 = vunpack.c.h.b16 %v1351
        %v4779 = vunpack.c.l.b16 %v1352
        %v4780 = vunpack.c.h.b16 %v1352
        %v4781 = vunpack.c.l.b16 %v1353
        %v4782 = vunpack.c.h.b16 %v1353
        %v4783 = vunpack.c.l.b16 %v1354
        %v4784 = vunpack.c.h.b16 %v1354
        %v4785 = vunpack.c.l.b16 %v1355
        %v4786 = vunpack.c.h.b16 %v1355
        %v4787 = vunpack.c.l.b16 %v1356
        %v4788 = vunpack.c.h.b16 %v1356
        %v4789 = vunpack.c.l.b16 %v1357
        %v4790 = vunpack.c.h.b16 %v1357
        %v4791 = vunpack.c.l.b16 %v1358
        %v4792 = vunpack.c.h.b16 %v1358
        %v4793 = vunpack.c.l.b16 %v1359
        %v4794 = vunpack.c.h.b16 %v1359
        %v4795 = vunpack.c.l.b16 %v1360
        %v4796 = vunpack.c.h.b16 %v1360
        %v4797 = vunpack.c.l.b16 %v1361
        %v4798 = vunpack.c.h.b16 %v1361
        %v4799 = vunpack.c.l.b16 %v1362
        %v4800 = vunpack.c.h.b16 %v1362
        %v4801 = vunpack.c.l.b16 %v1363
        %v4802 = vunpack.c.h.b16 %v1363
        %v4803 = vunpack.c.l.b16 %v1364
        %v4804 = vunpack.c.h.b16 %v1364
        %v4805 = vunpack.c.l.b16 %v1365
        %v4806 = vunpack.c.h.b16 %v1365
        %v4807 = vunpack.c.l.b16 %v1366
        %v4808 = vunpack.c.h.b16 %v1366
        %v4809 = vunpack.c.l.b16 %v1367
        %v4810 = vunpack.c.h.b16 %v1367
        %v4811 = vunpack.c.l.b16 %v1368
        %v4812 = vunpack.c.h.b16 %v1368
        %v4813 = vunpack.c.l.b16 %v1369
        %v4814 = vunpack.c.h.b16 %v1369
        %v4815 = vunpack.c.l.b16 %v1370
        %v4816 = vunpack.c.h.b16 %v1370
        %v4817 = vunpack.c.l.b16 %v1371
        %v4818 = vunpack.c.h.b16 %v1371
        %v4819 = vunpack.c.l.b16 %v1372
        %v4820 = vunpack.c.h.b16 %v1372
        %v4821 = vunpack.c.l.b16 %v1373
        %v4822 = vunpack.c.h.b16 %v1373
        %v4823 = vunpack.c.l.b16 %v1374
        %v4824 = vunpack.c.h.b16 %v1374
        %v4825 = vunpack.c.l.b16 %v1375
        %v4826 = vunpack.c.h.b16 %v1375
        %v4827 = vunpack.c.l.b16 %v1376
        %v4828 = vunpack.c.h.b16 %v1376
        %v4829 = vunpack.c.l.b16 %v1377
        %v4830 = vunpack.c.h.b16 %v1377
        %v4831 = vunpack.c.l.b16 %v1378
        %v4832 = vunpack.c.h.b16 %v1378
        %v4833 = vunpack.c.l.b16 %v1379
        %v4834 = vunpack.c.h.b16 %v1379
        %v4835 = vunpack.c.l.b16 %v1380
        %v4836 = vunpack.c.h.b16 %v1380
        %v4837 = vunpack.c.l.b16 %v1381
        %v4838 = vunpack.c.h.b16 %v1381
        %v4839 = vunpack.c.l.b16 %v1382
        %v4840 = vunpack.c.h.b16 %v1382
        %v4841 = vunpack.c.l.b16 %v1383
        %v4842 = vunpack.c.h.b16 %v1383
        %v4843 = vunpack.c.l.b16 %v1384
        %v4844 = vunpack.c.h.b16 %v1384
        %v4845 = vunpack.c.l.b16 %v1385
        %v4846 = vunpack.c.h.b16 %v1385
        %v4847 = vunpack.c.l.b16 %v1386
        %v4848 = vunpack.c.h.b16 %v1386
        %v4849 = vunpack.c.l.b16 %v1387
        %v4850 = vunpack.c.h.b16 %v1387
        %v4851 = vunpack.c.l.b16 %v1388
        %v4852 = vunpack.c.h.b16 %v1388
        %v4853 = vunpack.c.l.b16 %v1389
        %v4854 = vunpack.c.h.b16 %v1389
        %v4855 = vunpack.c.l.b16 %v1390
        %v4856 = vunpack.c.h.b16 %v1390
        %v4857 = vunpack.c.l.b16 %v1391
        %v4858 = vunpack.c.h.b16 %v1391
        %v4859 = vunpack.c.l.b16 %v1392
        %v4860 = vunpack.c.h.b16 %v1392
        %v4861 = vunpack.c.l.b16 %v1393
        %v4862 = vunpack.c.h.b16 %v1393
        %v4863 = vunpack.c.l.b16 %v1394
        %v4864 = vunpack.c.h.b16 %v1394
        %v4865 = vunpack.c.l.b16 %v1395
        %v4866 = vunpack.c.h.b16 %v1395
        %v4867 = vunpack.c.l.b16 %v1396
        %v4868 = vunpack.c.h.b16 %v1396
        %v4869 = vunpack.c.l.b16 %v1397
        %v4870 = vunpack.c.h.b16 %v1397
        %v4871 = vunpack.c.l.b16 %v1398
        %v4872 = vunpack.c.h.b16 %v1398
        %v4873 = vunpack.c.l.b16 %v1399
        %v4874 = vunpack.c.h.b16 %v1399
        %v4875 = vunpack.c.l.b16 %v1400
        %v4876 = vunpack.c.h.b16 %v1400
        %v4877 = vunpack.c.l.b16 %v1401
        %v4878 = vunpack.c.h.b16 %v1401
        %v4879 = vunpack.c.l.b16 %v1402
        %v4880 = vunpack.c.h.b16 %v1402
        %v4881 = vunpack.c.l.b16 %v1403
        %v4882 = vunpack.c.h.b16 %v1403
        %v4883 = vunpack.c.l.b16 %v1404
        %v4884 = vunpack.c.h.b16 %v1404
        %v4885 = vunpack.c.l.b16 %v1405
        %v4886 = vunpack.c.h.b16 %v1405
        %v4887 = vunpack.c.l.b16 %v1406
        %v4888 = vunpack.c.h.b16 %v1406
        %v4889 = vunpack.c.l.b16 %v1407
        %v4890 = vunpack.c.h.b16 %v1407
        %v4891 = vunpack.c.l.b16 %v1408
        %v4892 = vunpack.c.h.b16 %v1408
        %v4893 = vunpack.c.l.b16 %v1409
        %v4894 = vunpack.c.h.b16 %v1409
        %v4895 = vunpack.c.l.b16 %v1410
        %v4896 = vunpack.c.h.b16 %v1410
        %v4897 = vunpack.c.l.b16 %v1411
        %v4898 = vunpack.c.h.b16 %v1411
        %v4899 = vunpack.c.l.b16 %v1412
        %v4900 = vunpack.c.h.b16 %v1412
        %v4901 = vunpack.c.l.b16 %v1413
        %v4902 = vunpack.c.h.b16 %v1413
        %v4903 = vunpack.c.l.b16 %v1414
        %v4904 = vunpack.c.h.b16 %v1414
        %v4905 = vunpack.c.l.b16 %v1415
        %v4906 = vunpack.c.h.b16 %v1415
        %v4907 = vunpack.c.l.b16 %v1416
        %v4908 = vunpack.c.h.b16 %v1416
        %v4909 = vunpack.c.l.b16 %v1417
        %v4910 = vunpack.c.h.b16 %v1417
        %v4911 = vunpack.c.l.b16 %v1418
        %v4912 = vunpack.c.h.b16 %v1418
        %v4913 = vunpack.c.l.b16 %v1419
        %v4914 = vunpack.c.h.b16 %v1419
        %v4915 = vunpack.c.l.b16 %v1420
        %v4916 = vunpack.c.h.b16 %v1420
        %v4917 = vunpack.c.l.b16 %v1421
        %v4918 = vunpack.c.h.b16 %v1421
        %v4919 = vunpack.c.l.b16 %v1422
        %v4920 = vunpack.c.h.b16 %v1422
        %v4921 = vunpack.c.l.b16 %v1423
        %v4922 = vunpack.c.h.b16 %v1423
        %v4923 = vunpack.c.l.b16 %v1424
        %v4924 = vunpack.c.h.b16 %v1424
        %v4925 = vunpack.c.l.b16 %v1425
        %v4926 = vunpack.c.h.b16 %v1425
        %v4927 = vunpack.c.l.b16 %v1426
        %v4928 = vunpack.c.h.b16 %v1426
        %v4929 = vunpack.c.l.b16 %v1427
        %v4930 = vunpack.c.h.b16 %v1427
        %v4931 = vunpack.c.l.b16 %v1428
        %v4932 = vunpack.c.h.b16 %v1428
        %v4933 = vunpack.c.l.b16 %v1429
        %v4934 = vunpack.c.h.b16 %v1429
        %v4935 = vunpack.c.l.b16 %v1430
        %v4936 = vunpack.c.h.b16 %v1430
        %v4937 = vunpack.c.l.b16 %v1431
        %v4938 = vunpack.c.h.b16 %v1431
        %v4939 = vunpack.c.l.b16 %v1432
        %v4940 = vunpack.c.h.b16 %v1432
        %v4941 = vunpack.c.l.b16 %v1433
        %v4942 = vunpack.c.h.b16 %v1433
        %v4943 = vunpack.c.l.b16 %v1434
        %v4944 = vunpack.c.h.b16 %v1434
        %v4945 = vunpack.c.l.b16 %v1435
        %v4946 = vunpack.c.h.b16 %v1435
        %v4947 = vunpack.c.l.b16 %v1436
        %v4948 = vunpack.c.h.b16 %v1436
        %v4949 = vunpack.c.l.b16 %v1437
        %v4950 = vunpack.c.h.b16 %v1437
        %v4951 = vunpack.c.l.b16 %v1438
        %v4952 = vunpack.c.h.b16 %v1438
        %v4953 = vunpack.c.l.b16 %v1439
        %v4954 = vunpack.c.h.b16 %v1439
        %v4955 = vunpack.c.l.b16 %v1440
        %v4956 = vunpack.c.h.b16 %v1440
        %v4957 = vunpack.c.l.b16 %v1441
        %v4958 = vunpack.c.h.b16 %v1441
        %v4959 = vunpack.c.l.b16 %v1442
        %v4960 = vunpack.c.h.b16 %v1442
        %v4961 = vunpack.c.l.b16 %v1443
        %v4962 = vunpack.c.h.b16 %v1443
        %v4963 = vunpack.c.l.b16 %v1444
        %v4964 = vunpack.c.h.b16 %v1444
        %v4965 = vpack.c.b16 %v3045, %v2917
        %v4966 = vpack.c.b16 %v3046, %v2918
        %v4967 = vpack.c.b16 %v3047, %v2919
        %v4968 = vpack.c.b16 %v3048, %v2920
        %v4969 = vpack.c.b16 %v3049, %v2921
        %v4970 = vpack.c.b16 %v3050, %v2922
        %v4971 = vpack.c.b16 %v3051, %v2923
        %v4972 = vpack.c.b16 %v3052, %v2924
        %v4973 = vpack.c.b16 %v3053, %v2925
        %v4974 = vpack.c.b16 %v3054, %v2926
        %v4975 = vpack.c.b16 %v3055, %v2927
        %v4976 = vpack.c.b16 %v3056, %v2928
        %v4977 = vpack.c.b16 %v3057, %v2929
        %v4978 = vpack.c.b16 %v3058, %v2930
        %v4979 = vpack.c.b16 %v3059, %v2931
        %v4980 = vpack.c.b16 %v3060, %v2932
        %v4981 = vpack.c.b16 %v3061, %v2933
        %v4982 = vpack.c.b16 %v3062, %v2934
        %v4983 = vpack.c.b16 %v3063, %v2935
        %v4984 = vpack.c.b16 %v3064, %v2936
        %v4985 = vpack.c.b16 %v3065, %v2937
        %v4986 = vpack.c.b16 %v3066, %v2938
        %v4987 = vpack.c.b16 %v3067, %v2939
        %v4988 = vpack.c.b16 %v3068, %v2940
        %v4989 = vpack.c.b16 %v3069, %v2941
        %v4990 = vpack.c.b16 %v3070, %v2942
        %v4991 = vpack.c.b16 %v3071, %v2943
        %v4992 = vpack.c.b16 %v3072, %v2944
        %v4993 = vpack.c.b16 %v3073, %v2945
        %v4994 = vpack.c.b16 %v3074, %v2946
        %v4995 = vpack.c.b16 %v3075, %v2947
        %v4996 = vpack.c.b16 %v3076, %v2948
        %v4997 = vpack.c.b16 %v3077, %v2949
        %v4998 = vpack.c.b16 %v3078, %v2950
        %v4999 = vpack.c.b16 %v3079, %v2951
        %v5000 = vpack.c.b16 %v3080, %v2952
        %v5001 = vpack.c.b16 %v3081, %v2953
        %v5002 = vpack.c.b16 %v3082, %v2954
        %v5003 = vpack.c.b16 %v3083, %v2955
        %v5004 = vpack.c.b16 %v3084, %v2956
        %v5005 = vpack.c.b16 %v3085, %v2957
        %v5006 = vpack.c.b16 %v3086, %v2958
        %v5007 = vpack.c.b16 %v3087, %v2959
        %v5008 = vpack.c.b16 %v3088, %v2960
        %v5009 = vpack.c.b16 %v3089, %v2961
        %v5010 = vpack.c.b16 %v3090, %v2962
        %v5011 = vpack.c.b16 %v3091, %v2963
        %v5012 = vpack.c.b16 %v3092, %v2964
        %v5013 = vpack.c.b16 %v3093, %v2965
        %v5014 = vpack.c.b16 %v3094, %v2966
        %v5015 = vpack.c.b16 %v3095, %v2967
        %v5016 = vpack.c.b16 %v3096, %v2968
        %v5017 = vpack.c.b16 %v3097, %v2969
        %v5018 = vpack.c.b16 %v3098, %v2970
        %v5019 = vpack.c.b16 %v3099, %v2971
        %v5020 = vpack.c.b16 %v3100, %v2972
        %v5021 = vpack.c.b16 %v3101, %v2973
        %v5022 = vpack.c.b16 %v3102, %v2974
        %v5023 = vpack.c.b16 %v3103, %v2975
        %v5024 = vpack.c.b16 %v3104, %v2976
        %v5025 = vpack.c.b16 %v3105, %v2977
        %v5026 = vpack.c.b16 %v3106, %v2978
        %v5027 = vpack.c.b16 %v3107, %v2979
        %v5028 = vpack.c.b16 %v3108, %v2980
        %v5029 = vpack.c.b16 %v3109, %v2981
        %v5030 = vpack.c.b16 %v3110, %v2982
        %v5031 = vpack.c.b16 %v3111, %v2983
        %v5032 = vpack.c.b16 %v3112, %v2984
        %v5033 = vpack.c.b16 %v3113, %v2985
        %v5034 = vpack.c.b16 %v3114, %v2986
        %v5035 = vpack.c.b16 %v3115, %v2987
        %v5036 = vpack.c.b16 %v3116, %v2988
        %v5037 = vpack.c.b16 %v3117, %v2989
        %v5038 = vpack.c.b16 %v3118, %v2990
        %v5039 = vpack.c.b16 %v3119, %v2991
        %v5040 = vpack.c.b16 %v3120, %v2992
        %v5041 = vpack.c.b16 %v3121, %v2993
        %v5042 = vpack.c.b16 %v3122, %v2994
        %v5043 = vpack.c.b16 %v3123, %v2995
        %v5044 = vpack.c.b16 %v3124, %v2996
        %v5045 = vpack.c.b16 %v3125, %v2997
        %v5046 = vpack.c.b16 %v3126, %v2998
        %v5047 = vpack.c.b16 %v3127, %v2999
        %v5048 = vpack.c.b16 %v3128, %v3000
        %v5049 = vpack.c.b16 %v3129, %v3001
        %v5050 = vpack.c.b16 %v3130, %v3002
        %v5051 = vpack.c.b16 %v3131, %v3003
        %v5052 = vpack.c.b16 %v3132, %v3004
        %v5053 = vpack.c.b16 %v3133, %v3005
        %v5054 = vpack.c.b16 %v3134, %v3006
        %v5055 = vpack.c.b16 %v3135, %v3007
        %v5056 = vpack.c.b16 %v3136, %v3008
        %v5057 = vpack.c.b16 %v3137, %v3009
        %v5058 = vpack.c.b16 %v3138, %v3010
        %v5059 = vpack.c.b16 %v3139, %v3011
        %v5060 = vpack.c.b16 %v3140, %v3012
        %v5061 = vpack.c.b16 %v3141, %v3013
        %v5062 = vpack.c.b16 %v3142, %v3014
        %v5063 = vpack.c.b16 %v3143, %v3015
        %v5064 = vpack.c.b16 %v3144, %v3016
        %v5065 = vpack.c.b16 %v3145, %v3017
        %v5066 = vpack.c.b16 %v3146, %v3018
        %v5067 = vpack.c.b16 %v3147, %v3019
        %v5068 = vpack.c.b16 %v3148, %v3020
        %v5069 = vpack.c.b16 %v3149, %v3021
        %v5070 = vpack.c.b16 %v3150, %v3022
        %v5071 = vpack.c.b16 %v3151, %v3023
        %v5072 = vpack.c.b16 %v3152, %v3024
        %v5073 = vpack.c.b16 %v3153, %v3025
        %v5074 = vpack.c.b16 %v3154, %v3026
        %v5075 = vpack.c.b16 %v3155, %v3027
        %v5076 = vpack.c.b16 %v3156, %v3028
        %v5077 = vpack.c.b16 %v3157, %v3029
        %v5078 = vpack.c.b16 %v3158, %v3030
        %v5079 = vpack.c.b16 %v3159, %v3031
        %v5080 = vpack.c.b16 %v3160, %v3032
        %v5081 = vpack.c.b16 %v3161, %v3033
        %v5082 = vpack.c.b16 %v3162, %v3034
        %v5083 = vpack.c.b16 %v3163, %v3035
        %v5084 = vpack.c.b16 %v3164, %v3036
        %v5085 = vpack.c.b16 %v3165, %v3037
        %v5086 = vpack.c.b16 %v3166, %v3038
        %v5087 = vpack.c.b16 %v3167, %v3039
        %v5088 = vpack.c.b16 %v3168, %v3040
        %v5089 = vpack.c.b16 %v3169, %v3041
        %v5090 = vpack.c.b16 %v3170, %v3042
        %v5091 = vpack.c.b16 %v3171, %v3043
        %v5092 = vpack.c.b16 %v3172, %v3044
        %v5093 = vpack.c.b16 %v3301, %v3173
        %v5094 = vpack.c.b16 %v3302, %v3174
        %v5095 = vpack.c.b16 %v3303, %v3175
        %v5096 = vpack.c.b16 %v3304, %v3176
        %v5097 = vpack.c.b16 %v3305, %v3177
        %v5098 = vpack.c.b16 %v3306, %v3178
        %v5099 = vpack.c.b16 %v3307, %v3179
        %v5100 = vpack.c.b16 %v3308, %v3180
        %v5101 = vpack.c.b16 %v3309, %v3181
        %v5102 = vpack.c.b16 %v3310, %v3182
        %v5103 = vpack.c.b16 %v3311, %v3183
        %v5104 = vpack.c.b16 %v3312, %v3184
        %v5105 = vpack.c.b16 %v3313, %v3185
        %v5106 = vpack.c.b16 %v3314, %v3186
        %v5107 = vpack.c.b16 %v3315, %v3187
        %v5108 = vpack.c.b16 %v3316, %v3188
        %v5109 = vpack.c.b16 %v3317, %v3189
        %v5110 = vpack.c.b16 %v3318, %v3190
        %v5111 = vpack.c.b16 %v3319, %v3191
        %v5112 = vpack.c.b16 %v3320, %v3192
        %v5113 = vpack.c.b16 %v3321, %v3193
        %v5114 = vpack.c.b16 %v3322, %v3194
        %v5115 = vpack.c.b16 %v3323, %v3195
        %v5116 = vpack.c.b16 %v3324, %v3196
        %v5117 = vpack.c.b16 %v3325, %v3197
        %v5118 = vpack.c.b16 %v3326, %v3198
        %v5119 = vpack.c.b16 %v3327, %v3199
        %v5120 = vpack.c.b16 %v3328, %v3200
        %v5121 = vpack.c.b16 %v3329, %v3201
        %v5122 = vpack.c.b16 %v3330, %v3202
        %v5123 = vpack.c.b16 %v3331, %v3203
        %v5124 = vpack.c.b16 %v3332, %v3204
        %v5125 = vpack.c.b16 %v3333, %v3205
        %v5126 = vpack.c.b16 %v3334, %v3206
        %v5127 = vpack.c.b16 %v3335, %v3207
        %v5128 = vpack.c.b16 %v3336, %v3208
        %v5129 = vpack.c.b16 %v3337, %v3209
        %v5130 = vpack.c.b16 %v3338, %v3210
        %v5131 = vpack.c.b16 %v3339, %v3211
        %v5132 = vpack.c.b16 %v3340, %v3212
        %v5133 = vpack.c.b16 %v3341, %v3213
        %v5134 = vpack.c.b16 %v3342, %v3214
        %v5135 = vpack.c.b16 %v3343, %v3215
        %v5136 = vpack.c.b16 %v3344, %v3216
        %v5137 = vpack.c.b16 %v3345, %v3217
        %v5138 = vpack.c.b16 %v3346, %v3218
        %v5139 = vpack.c.b16 %v3347, %v3219
        %v5140 = vpack.c.b16 %v3348, %v3220
        %v5141 = vpack.c.b16 %v3349, %v3221
        %v5142 = vpack.c.b16 %v3350, %v3222
        %v5143 = vpack.c.b16 %v3351, %v3223
        %v5144 = vpack.c.b16 %v3352, %v3224
        %v5145 = vpack.c.b16 %v3353, %v3225
        %v5146 = vpack.c.b16 %v3354, %v3226
        %v5147 = vpack.c.b16 %v3355, %v3227
        %v5148 = vpack.c.b16 %v3356, %v3228
        %v5149 = vpack.c.b16 %v3357, %v3229
        %v5150 = vpack.c.b16 %v3358, %v3230
        %v5151 = vpack.c.b16 %v3359, %v3231
        %v5152 = vpack.c.b16 %v3360, %v3232
        %v5153 = vpack.c.b16 %v3361, %v3233
        %v5154 = vpack.c.b16 %v3362, %v3234
        %v5155 = vpack.c.b16 %v3363, %v3235
        %v5156 = vpack.c.b16 %v3364, %v3236
        %v5157 = vpack.c.b16 %v3365, %v3237
        %v5158 = vpack.c.b16 %v3366, %v3238
        %v5159 = vpack.c.b16 %v3367, %v3239
        %v5160 = vpack.c.b16 %v3368, %v3240
        %v5161 = vpack.c.b16 %v3369, %v3241
        %v5162 = vpack.c.b16 %v3370, %v3242
        %v5163 = vpack.c.b16 %v3371, %v3243
        %v5164 = vpack.c.b16 %v3372, %v3244
        %v5165 = vpack.c.b16 %v3373, %v3245
        %v5166 = vpack.c.b16 %v3374, %v3246
        %v5167 = vpack.c.b16 %v3375, %v3247
        %v5168 = vpack.c.b16 %v3376, %v3248
        %v5169 = vpack.c.b16 %v3377, %v3249
        %v5170 = vpack.c.b16 %v3378, %v3250
        %v5171 = vpack.c.b16 %v3379, %v3251
        %v5172 = vpack.c.b16 %v3380, %v3252
        %v5173 = vpack.c.b16 %v3381, %v3253
        %v5174 = vpack.c.b16 %v3382, %v3254
        %v5175 = vpack.c.b16 %v3383, %v3255
        %v5176 = vpack.c.b16 %v3384, %v3256
        %v5177 = vpack.c.b16 %v3385, %v3257
        %v5178 = vpack.c.b16 %v3386, %v3258
        %v5179 = vpack.c.b16 %v3387, %v3259
        %v5180 = vpack.c.b16 %v3388, %v3260
        %v5181 = vpack.c.b16 %v3389, %v3261
        %v5182 = vpack.c.b16 %v3390, %v3262
        %v5183 = vpack.c.b16 %v3391, %v3263
        %v5184 = vpack.c.b16 %v3392, %v3264
        %v5185 = vpack.c.b16 %v3393, %v3265
        %v5186 = vpack.c.b16 %v3394, %v3266
        %v5187 = vpack.c.b16 %v3395, %v3267
        %v5188 = vpack.c.b16 %v3396, %v3268
        %v5189 = vpack.c.b16 %v3397, %v3269
        %v5190 = vpack.c.b16 %v3398, %v3270
        %v5191 = vpack.c.b16 %v3399, %v3271
        %v5192 = vpack.c.b16 %v3400, %v3272
        %v5193 = vpack.c.b16 %v3401, %v3273
        %v5194 = vpack.c.b16 %v3402, %v3274
        %v5195 = vpack.c.b16 %v3403, %v3275
        %v5196 = vpack.c.b16 %v3404, %v3276
        %v5197 = vpack.c.b16 %v3405, %v3277
        %v5198 = vpack.c.b16 %v3406, %v3278
        %v5199 = vpack.c.b16 %v3407, %v3279
        %v5200 = vpack.c.b16 %v3408, %v3280
        %v5201 = vpack.c.b16 %v3409, %v3281
        %v5202 = vpack.c.b16 %v3410, %v3282
        %v5203 = vpack.c.b16 %v3411, %v3283
        %v5204 = vpack.c.b16 %v3412, %v3284
        %v5205 = vpack.c.b16 %v3413, %v3285
        %v5206 = vpack.c.b16 %v3414, %v3286
        %v5207 = vpack.c.b16 %v3415, %v3287
        %v5208 = vpack.c.b16 %v3416, %v3288
        %v5209 = vpack.c.b16 %v3417, %v3289
        %v5210 = vpack.c.b16 %v3418, %v3290
        %v5211 = vpack.c.b16 %v3419, %v3291
        %v5212 = vpack.c.b16 %v3420, %v3292
        %v5213 = vpack.c.b16 %v3421, %v3293
        %v5214 = vpack.c.b16 %v3422, %v3294
        %v5215 = vpack.c.b16 %v3423, %v3295
        %v5216 = vpack.c.b16 %v3424, %v3296
        %v5217 = vpack.c.b16 %v3425, %v3297
        %v5218 = vpack.c.b16 %v3426, %v3298
        %v5219 = vpack.c.b16 %v3427, %v3299
        %v5220 = vpack.c.b16 %v3428, %v3300
        %v5221 = vpack.c.b16 %v3557, %v3429
        %v5222 = vpack.c.b16 %v3558, %v3430
        %v5223 = vpack.c.b16 %v3559, %v3431
        %v5224 = vpack.c.b16 %v3560, %v3432
        %v5225 = vpack.c.b16 %v3561, %v3433
        %v5226 = vpack.c.b16 %v3562, %v3434
        %v5227 = vpack.c.b16 %v3563, %v3435
        %v5228 = vpack.c.b16 %v3564, %v3436
        %v5229 = vpack.c.b16 %v3565, %v3437
        %v5230 = vpack.c.b16 %v3566, %v3438
        %v5231 = vpack.c.b16 %v3567, %v3439
        %v5232 = vpack.c.b16 %v3568, %v3440
        %v5233 = vpack.c.b16 %v3569, %v3441
        %v5234 = vpack.c.b16 %v3570, %v3442
        %v5235 = vpack.c.b16 %v3571, %v3443
        %v5236 = vpack.c.b16 %v3572, %v3444
        %v5237 = vpack.c.b16 %v3573, %v3445
        %v5238 = vpack.c.b16 %v3574, %v3446
        %v5239 = vpack.c.b16 %v3575, %v3447
        %v5240 = vpack.c.b16 %v3576, %v3448
        %v5241 = vpack.c.b16 %v3577, %v3449
        %v5242 = vpack.c.b16 %v3578, %v3450
        %v5243 = vpack.c.b16 %v3579, %v3451
        %v5244 = vpack.c.b16 %v3580, %v3452
        %v5245 = vpack.c.b16 %v3581, %v3453
        %v5246 = vpack.c.b16 %v3582, %v3454
        %v5247 = vpack.c.b16 %v3583, %v3455
        %v5248 = vpack.c.b16 %v3584, %v3456
        %v5249 = vpack.c.b16 %v3585, %v3457
        %v5250 = vpack.c.b16 %v3586, %v3458
        %v5251 = vpack.c.b16 %v3587, %v3459
        %v5252 = vpack.c.b16 %v3588, %v3460
        %v5253 = vpack.c.b16 %v3589, %v3461
        %v5254 = vpack.c.b16 %v3590, %v3462
        %v5255 = vpack.c.b16 %v3591, %v3463
        %v5256 = vpack.c.b16 %v3592, %v3464
        %v5257 = vpack.c.b16 %v3593, %v3465
        %v5258 = vpack.c.b16 %v3594, %v3466
        %v5259 = vpack.c.b16 %v3595, %v3467
        %v5260 = vpack.c.b16 %v3596, %v3468
        %v5261 = vpack.c.b16 %v3597, %v3469
        %v5262 = vpack.c.b16 %v3598, %v3470
        %v5263 = vpack.c.b16 %v3599, %v3471
        %v5264 = vpack.c.b16 %v3600, %v3472
        %v5265 = vpack.c.b16 %v3601, %v3473
        %v5266 = vpack.c.b16 %v3602, %v3474
        %v5267 = vpack.c.b16 %v3603, %v3475
        %v5268 = vpack.c.b16 %v3604, %v3476
        %v5269 = vpack.c.b16 %v3605, %v3477
        %v5270 = vpack.c.b16 %v3606, %v3478
        %v5271 = vpack.c.b16 %v3607, %v3479
        %v5272 = vpack.c.b16 %v3608, %v3480
        %v5273 = vpack.c.b16 %v3609, %v3481
        %v5274 = vpack.c.b16 %v3610, %v3482
        %v5275 = vpack.c.b16 %v3611, %v3483
        %v5276 = vpack.c.b16 %v3612, %v3484
        %v5277 = vpack.c.b16 %v3613, %v3485
        %v5278 = vpack.c.b16 %v3614, %v3486
        %v5279 = vpack.c.b16 %v3615, %v3487
        %v5280 = vpack.c.b16 %v3616, %v3488
        %v5281 = vpack.c.b16 %v3617, %v3489
        %v5282 = vpack.c.b16 %v3618, %v3490
        %v5283 = vpack.c.b16 %v3619, %v3491
        %v5284 = vpack.c.b16 %v3620, %v3492
        %v5285 = vpack.c.b16 %v3621, %v3493
        %v5286 = vpack.c.b16 %v3622, %v3494
        %v5287 = vpack.c.b16 %v3623, %v3495
        %v5288 = vpack.c.b16 %v3624, %v3496
        %v5289 = vpack.c.b16 %v3625, %v3497
        %v5290 = vpack.c.b16 %v3626, %v3498
        %v5291 = vpack.c.b16 %v3627, %v3499
        %v5292 = vpack.c.b16 %v3628, %v3500
        %v5293 = vpack.c.b16 %v3629, %v3501
        %v5294 = vpack.c.b16 %v3630, %v3502
        %v5295 = vpack.c.b16 %v3631, %v3503
        %v5296 = vpack.c.b16 %v3632, %v3504
        %v5297 = vpack.c.b16 %v3633, %v3505
        %v5298 = vpack.c.b16 %v3634, %v3506
        %v5299 = vpack.c.b16 %v3635, %v3507
        %v5300 = vpack.c.b16 %v3636, %v3508
        %v5301 = vpack.c.b16 %v3637, %v3509
        %v5302 = vpack.c.b16 %v3638, %v3510
        %v5303 = vpack.c.b16 %v3639, %v3511
        %v5304 = vpack.c.b16 %v3640, %v3512
        %v5305 = vpack.c.b16 %v3641, %v3513
        %v5306 = vpack.c.b16 %v3642, %v3514
        %v5307 = vpack.c.b16 %v3643, %v3515
        %v5308 = vpack.c.b16 %v3644, %v3516
        %v5309 = vpack.c.b16 %v3645, %v3517
        %v5310 = vpack.c.b16 %v3646, %v3518
        %v5311 = vpack.c.b16 %v3647, %v3519
        %v5312 = vpack.c.b16 %v3648, %v3520
        %v5313 = vpack.c.b16 %v3649, %v3521
        %v5314 = vpack.c.b16 %v3650, %v3522
        %v5315 = vpack.c.b16 %v3651, %v3523
        %v5316 = vpack.c.b16 %v3652, %v3524
        %v5317 = vpack.c.b16 %v3653, %v3525
        %v5318 = vpack.c.b16 %v3654, %v3526
        %v5319 = vpack.c.b16 %v3655, %v3527
        %v5320 = vpack.c.b16 %v3656, %v3528
        %v5321 = vpack.c.b16 %v3657, %v3529
        %v5322 = vpack.c.b16 %v3658, %v3530
        %v5323 = vpack.c.b16 %v3659, %v3531
        %v5324 = vpack.c.b16 %v3660, %v3532
        %v5325 = vpack.c.b16 %v3661, %v3533
        %v5326 = vpack.c.b16 %v3662, %v3534
        %v5327 = vpack.c.b16 %v3663, %v3535
        %v5328 = vpack.c.b16 %v3664, %v3536
        %v5329 = vpack.c.b16 %v3665, %v3537
        %v5330 = vpack.c.b16 %v3666, %v3538
        %v5331 = vpack.c.b16 %v3667, %v3539
        %v5332 = vpack.c.b16 %v3668, %v3540
        %v5333 = vpack.c.b16 %v3669, %v3541
        %v5334 = vpack.c.b16 %v3670, %v3542
        %v5335 = vpack.c.b16 %v3671, %v3543
        %v5336 = vpack.c.b16 %v3672, %v3544
        %v5337 = vpack.c.b16 %v3673, %v3545
        %v5338 = vpack.c.b16 %v3674, %v3546
        %v5339 = vpack.c.b16 %v3675, %v3547
        %v5340 = vpack.c.b16 %v3676, %v3548
        %v5341 = vpack.c.b16 %v3677, %v3549
        %v5342 = vpack.c.b16 %v3678, %v3550
        %v5343 = vpack.c.b16 %v3679, %v3551
        %v5344 = vpack.c.b16 %v3680, %v3552
        %v5345 = vpack.c.b16 %v3681, %v3553
        %v5346 = vpack.c.b16 %v3682, %v3554
        %v5347 = vpack.c.b16 %v3683, %v3555
        %v5348 = vpack.c.b16 %v3684, %v3556
        %v5349 = vpack.c.b16 %v3813, %v3685
        %v5350 = vpack.c.b16 %v3814, %v3686
        %v5351 = vpack.c.b16 %v3815, %v3687
        %v5352 = vpack.c.b16 %v3816, %v3688
        %v5353 = vpack.c.b16 %v3817, %v3689
        %v5354 = vpack.c.b16 %v3818, %v3690
        %v5355 = vpack.c.b16 %v3819, %v3691
        %v5356 = vpack.c.b16 %v3820, %v3692
        %v5357 = vpack.c.b16 %v3821, %v3693
        %v5358 = vpack.c.b16 %v3822, %v3694
        %v5359 = vpack.c.b16 %v3823, %v3695
        %v5360 = vpack.c.b16 %v3824, %v3696
        %v5361 = vpack.c.b16 %v3825, %v3697
        %v5362 = vpack.c.b16 %v3826, %v3698
        %v5363 = vpack.c.b16 %v3827, %v3699
        %v5364 = vpack.c.b16 %v3828, %v3700
        %v5365 = vpack.c.b16 %v3829, %v3701
        %v5366 = vpack.c.b16 %v3830, %v3702
        %v5367 = vpack.c.b16 %v3831, %v3703
        %v5368 = vpack.c.b16 %v3832, %v3704
        %v5369 = vpack.c.b16 %v3833, %v3705
        %v5370 = vpack.c.b16 %v3834, %v3706
        %v5371 = vpack.c.b16 %v3835, %v3707
        %v5372 = vpack.c.b16 %v3836, %v3708
        %v5373 = vpack.c.b16 %v3837, %v3709
        %v5374 = vpack.c.b16 %v3838, %v3710
        %v5375 = vpack.c.b16 %v3839, %v3711
        %v5376 = vpack.c.b16 %v3840, %v3712
        %v5377 = vpack.c.b16 %v3841, %v3713
        %v5378 = vpack.c.b16 %v3842, %v3714
        %v5379 = vpack.c.b16 %v3843, %v3715
        %v5380 = vpack.c.b16 %v3844, %v3716
        %v5381 = vpack.c.b16 %v3845, %v3717
        %v5382 = vpack.c.b16 %v3846, %v3718
        %v5383 = vpack.c.b16 %v3847, %v3719
        %v5384 = vpack.c.b16 %v3848, %v3720
        %v5385 = vpack.c.b16 %v3849, %v3721
        %v5386 = vpack.c.b16 %v3850, %v3722
        %v5387 = vpack.c.b16 %v3851, %v3723
        %v5388 = vpack.c.b16 %v3852, %v3724
        %v5389 = vpack.c.b16 %v3853, %v3725
        %v5390 = vpack.c.b16 %v3854, %v3726
        %v5391 = vpack.c.b16 %v3855, %v3727
        %v5392 = vpack.c.b16 %v3856, %v3728
        %v5393 = vpack.c.b16 %v3857, %v3729
        %v5394 = vpack.c.b16 %v3858, %v3730
        %v5395 = vpack.c.b16 %v3859, %v3731
        %v5396 = vpack.c.b16 %v3860, %v3732
        %v5397 = vpack.c.b16 %v3861, %v3733
        %v5398 = vpack.c.b16 %v3862, %v3734
        %v5399 = vpack.c.b16 %v3863, %v3735
        %v5400 = vpack.c.b16 %v3864, %v3736
        %v5401 = vpack.c.b16 %v3865, %v3737
        %v5402 = vpack.c.b16 %v3866, %v3738
        %v5403 = vpack.c.b16 %v3867, %v3739
        %v5404 = vpack.c.b16 %v3868, %v3740
        %v5405 = vpack.c.b16 %v3869, %v3741
        %v5406 = vpack.c.b16 %v3870, %v3742
        %v5407 = vpack.c.b16 %v3871, %v3743
        %v5408 = vpack.c.b16 %v3872, %v3744
        %v5409 = vpack.c.b16 %v3873, %v3745
        %v5410 = vpack.c.b16 %v3874, %v3746
        %v5411 = vpack.c.b16 %v3875, %v3747
        %v5412 = vpack.c.b16 %v3876, %v3748
        %v5413 = vpack.c.b16 %v3877, %v3749
        %v5414 = vpack.c.b16 %v3878, %v3750
        %v5415 = vpack.c.b16 %v3879, %v3751
        %v5416 = vpack.c.b16 %v3880, %v3752
        %v5417 = vpack.c.b16 %v3881, %v3753
        %v5418 = vpack.c.b16 %v3882, %v3754
        %v5419 = vpack.c.b16 %v3883, %v3755
        %v5420 = vpack.c.b16 %v3884, %v3756
        %v5421 = vpack.c.b16 %v3885, %v3757
        %v5422 = vpack.c.b16 %v3886, %v3758
        %v5423 = vpack.c.b16 %v3887, %v3759
        %v5424 = vpack.c.b16 %v3888, %v3760
        %v5425 = vpack.c.b16 %v3889, %v3761
        %v5426 = vpack.c.b16 %v3890, %v3762
        %v5427 = vpack.c.b16 %v3891, %v3763
        %v5428 = vpack.c.b16 %v3892, %v3764
        %v5429 = vpack.c.b16 %v3893, %v3765
        %v5430 = vpack.c.b16 %v3894, %v3766
        %v5431 = vpack.c.b16 %v3895, %v3767
        %v5432 = vpack.c.b16 %v3896, %v3768
        %v5433 = vpack.c.b16 %v3897, %v3769
        %v5434 = vpack.c.b16 %v3898, %v3770
        %v5435 = vpack.c.b16 %v3899, %v3771
        %v5436 = vpack.c.b16 %v3900, %v3772
        %v5437 = vpack.c.b16 %v3901, %v3773
        %v5438 = vpack.c.b16 %v3902, %v3774
        %v5439 = vpack.c.b16 %v3903, %v3775
        %v5440 = vpack.c.b16 %v3904, %v3776
        %v5441 = vpack.c.b16 %v3905, %v3777
        %v5442 = vpack.c.b16 %v3906, %v3778
        %v5443 = vpack.c.b16 %v3907, %v3779
        %v5444 = vpack.c.b16 %v3908, %v3780
        %v5445 = vpack.c.b16 %v3909, %v3781
        %v5446 = vpack.c.b16 %v3910, %v3782
        %v5447 = vpack.c.b16 %v3911, %v3783
        %v5448 = vpack.c.b16 %v3912, %v3784
        %v5449 = vpack.c.b16 %v3913, %v3785
        %v5450 = vpack.c.b16 %v3914, %v3786
        %v5451 = vpack.c.b16 %v3915, %v3787
        %v5452 = vpack.c.b16 %v3916, %v3788
        %v5453 = vpack.c.b16 %v3917, %v3789
        %v5454 = vpack.c.b16 %v3918, %v3790
        %v5455 = vpack.c.b16 %v3919, %v3791
        %v5456 = vpack.c.b16 %v3920, %v3792
        %v5457 = vpack.c.b16 %v3921, %v3793
        %v5458 = vpack.c.b16 %v3922, %v3794
        %v5459 = vpack.c.b16 %v3923, %v3795
        %v5460 = vpack.c.b16 %v3924, %v3796
        %v5461 = vpack.c.b16 %v3925, %v3797
        %v5462 = vpack.c.b16 %v3926, %v3798
        %v5463 = vpack.c.b16 %v3927, %v3799
        %v5464 = vpack.c.b16 %v3928, %v3800
        %v5465 = vpack.c.b16 %v3929, %v3801
        %v5466 = vpack.c.b16 %v3930, %v3802
        %v5467 = vpack.c.b16 %v3931, %v3803
        %v5468 = vpack.c.b16 %v3932, %v3804
        %v5469 = vpack.c.b16 %v3933, %v3805
        %v5470 = vpack.c.b16 %v3934, %v3806
        %v5471 = vpack.c.b16 %v3935, %v3807
        %v5472 = vpack.c.b16 %v3936, %v3808
        %v5473 = vpack.c.b16 %v3937, %v3809
        %v5474 = vpack.c.b16 %v3938, %v3810
        %v5475 = vpack.c.b16 %v3939, %v3811
        %v5476 = vpack.c.b16 %v3940, %v3812
        %v5477 = vpack.c.b16 %v4069, %v3941
        %v5478 = vpack.c.b16 %v4070, %v3942
        %v5479 = vpack.c.b16 %v4071, %v3943
        %v5480 = vpack.c.b16 %v4072, %v3944
        %v5481 = vpack.c.b16 %v4073, %v3945
        %v5482 = vpack.c.b16 %v4074, %v3946
        %v5483 = vpack.c.b16 %v4075, %v3947
        %v5484 = vpack.c.b16 %v4076, %v3948
        %v5485 = vpack.c.b16 %v4077, %v3949
        %v5486 = vpack.c.b16 %v4078, %v3950
        %v5487 = vpack.c.b16 %v4079, %v3951
        %v5488 = vpack.c.b16 %v4080, %v3952
        %v5489 = vpack.c.b16 %v4081, %v3953
        %v5490 = vpack.c.b16 %v4082, %v3954
        %v5491 = vpack.c.b16 %v4083, %v3955
        %v5492 = vpack.c.b16 %v4084, %v3956
        %v5493 = vpack.c.b16 %v4085, %v3957
        %v5494 = vpack.c.b16 %v4086, %v3958
        %v5495 = vpack.c.b16 %v4087, %v3959
        %v5496 = vpack.c.b16 %v4088, %v3960
        %v5497 = vpack.c.b16 %v4089, %v3961
        %v5498 = vpack.c.b16 %v4090, %v3962
        %v5499 = vpack.c.b16 %v4091, %v3963
        %v5500 = vpack.c.b16 %v4092, %v3964
        %v5501 = vpack.c.b16 %v4093, %v3965
        %v5502 = vpack.c.b16 %v4094, %v3966
        %v5503 = vpack.c.b16 %v4095, %v3967
        %v5504 = vpack.c.b16 %v4096, %v3968
        %v5505 = vpack.c.b16 %v4097, %v3969
        %v5506 = vpack.c.b16 %v4098, %v3970
        %v5507 = vpack.c.b16 %v4099, %v3971
        %v5508 = vpack.c.b16 %v4100, %v3972
        %v5509 = vpack.c.b16 %v4101, %v3973
        %v5510 = vpack.c.b16 %v4102, %v3974
        %v5511 = vpack.c.b16 %v4103, %v3975
        %v5512 = vpack.c.b16 %v4104, %v3976
        %v5513 = vpack.c.b16 %v4105, %v3977
        %v5514 = vpack.c.b16 %v4106, %v3978
        %v5515 = vpack.c.b16 %v4107, %v3979
        %v5516 = vpack.c.b16 %v4108, %v3980
        %v5517 = vpack.c.b16 %v4109, %v3981
        %v5518 = vpack.c.b16 %v4110, %v3982
        %v5519 = vpack.c.b16 %v4111, %v3983
        %v5520 = vpack.c.b16 %v4112, %v3984
        %v5521 = vpack.c.b16 %v4113, %v3985
        %v5522 = vpack.c.b16 %v4114, %v3986
        %v5523 = vpack.c.b16 %v4115, %v3987
        %v5524 = vpack.c.b16 %v4116, %v3988
        %v5525 = vpack.c.b16 %v4117, %v3989
        %v5526 = vpack.c.b16 %v4118, %v3990
        %v5527 = vpack.c.b16 %v4119, %v3991
        %v5528 = vpack.c.b16 %v4120, %v3992
        %v5529 = vpack.c.b16 %v4121, %v3993
        %v5530 = vpack.c.b16 %v4122, %v3994
        %v5531 = vpack.c.b16 %v4123, %v3995
        %v5532 = vpack.c.b16 %v4124, %v3996
        %v5533 = vpack.c.b16 %v4125, %v3997
        %v5534 = vpack.c.b16 %v4126, %v3998
        %v5535 = vpack.c.b16 %v4127, %v3999
        %v5536 = vpack.c.b16 %v4128, %v4000
        %v5537 = vpack.c.b16 %v4129, %v4001
        %v5538 = vpack.c.b16 %v4130, %v4002
        %v5539 = vpack.c.b16 %v4131, %v4003
        %v5540 = vpack.c.b16 %v4132, %v4004
        %v5541 = vpack.c.b16 %v4133, %v4005
        %v5542 = vpack.c.b16 %v4134, %v4006
        %v5543 = vpack.c.b16 %v4135, %v4007
        %v5544 = vpack.c.b16 %v4136, %v4008
        %v5545 = vpack.c.b16 %v4137, %v4009
        %v5546 = vpack.c.b16 %v4138, %v4010
        %v5547 = vpack.c.b16 %v4139, %v4011
        %v5548 = vpack.c.b16 %v4140, %v4012
        %v5549 = vpack.c.b16 %v4141, %v4013
        %v5550 = vpack.c.b16 %v4142, %v4014
        %v5551 = vpack.c.b16 %v4143, %v4015
        %v5552 = vpack.c.b16 %v4144, %v4016
        %v5553 = vpack.c.b16 %v4145, %v4017
        %v5554 = vpack.c.b16 %v4146, %v4018
        %v5555 = vpack.c.b16 %v4147, %v4019
        %v5556 = vpack.c.b16 %v4148, %v4020
        %v5557 = vpack.c.b16 %v4149, %v4021
        %v5558 = vpack.c.b16 %v4150, %v4022
        %v5559 = vpack.c.b16 %v4151, %v4023
        %v5560 = vpack.c.b16 %v4152, %v4024
        %v5561 = vpack.c.b16 %v4153, %v4025
        %v5562 = vpack.c.b16 %v4154, %v4026
        %v5563 = vpack.c.b16 %v4155, %v4027
        %v5564 = vpack.c.b16 %v4156, %v4028
        %v5565 = vpack.c.b16 %v4157, %v4029
        %v5566 = vpack.c.b16 %v4158, %v4030
        %v5567 = vpack.c.b16 %v4159, %v4031
        %v5568 = vpack.c.b16 %v4160, %v4032
        %v5569 = vpack.c.b16 %v4161, %v4033
        %v5570 = vpack.c.b16 %v4162, %v4034
        %v5571 = vpack.c.b16 %v4163, %v4035
        %v5572 = vpack.c.b16 %v4164, %v4036
        %v5573 = vpack.c.b16 %v4165, %v4037
        %v5574 = vpack.c.b16 %v4166, %v4038
        %v5575 = vpack.c.b16 %v4167, %v4039
        %v5576 = vpack.c.b16 %v4168, %v4040
        %v5577 = vpack.c.b16 %v4169, %v4041
        %v5578 = vpack.c.b16 %v4170, %v4042
        %v5579 = vpack.c.b16 %v4171, %v4043
        %v5580 = vpack.c.b16 %v4172, %v4044
        %v5581 = vpack.c.b16 %v4173, %v4045
        %v5582 = vpack.c.b16 %v4174, %v4046
        %v5583 = vpack.c.b16 %v4175, %v4047
        %v5584 = vpack.c.b16 %v4176, %v4048
        %v5585 = vpack.c.b16 %v4177, %v4049
        %v5586 = vpack.c.b16 %v4178, %v4050
        %v5587 = vpack.c.b16 %v4179, %v4051
        %v5588 = vpack.c.b16 %v4180, %v4052
        %v5589 = vpack.c.b16 %v4181, %v4053
        %v5590 = vpack.c.b16 %v4182, %v4054
        %v5591 = vpack.c.b16 %v4183, %v4055
        %v5592 = vpack.c.b16 %v4184, %v4056
        %v5593 = vpack.c.b16 %v4185, %v4057
        %v5594 = vpack.c.b16 %v4186, %v4058
        %v5595 = vpack.c.b16 %v4187, %v4059
        %v5596 = vpack.c.b16 %v4188, %v4060
        %v5597 = vpack.c.b16 %v4189, %v4061
        %v5598 = vpack.c.b16 %v4190, %v4062
        %v5599 = vpack.c.b16 %v4191, %v4063
        %v5600 = vpack.c.b16 %v4192, %v4064
        %v5601 = vpack.c.b16 %v4193, %v4065
        %v5602 = vpack.c.b16 %v4194, %v4066
        %v5603 = vpack.c.b16 %v4195, %v4067
        %v5604 = vpack.c.b16 %v4196, %v4068
        %v5605 = vpack.c.b16 %v4325, %v4197
        %v5606 = vpack.c.b16 %v4326, %v4198
        %v5607 = vpack.c.b16 %v4327, %v4199
        %v5608 = vpack.c.b16 %v4328, %v4200
        %v5609 = vpack.c.b16 %v4329, %v4201
        %v5610 = vpack.c.b16 %v4330, %v4202
        %v5611 = vpack.c.b16 %v4331, %v4203
        %v5612 = vpack.c.b16 %v4332, %v4204
        %v5613 = vpack.c.b16 %v4333, %v4205
        %v5614 = vpack.c.b16 %v4334, %v4206
        %v5615 = vpack.c.b16 %v4335, %v4207
        %v5616 = vpack.c.b16 %v4336, %v4208
        %v5617 = vpack.c.b16 %v4337, %v4209
        %v5618 = vpack.c.b16 %v4338, %v4210
        %v5619 = vpack.c.b16 %v4339, %v4211
        %v5620 = vpack.c.b16 %v4340, %v4212
        %v5621 = vpack.c.b16 %v4341, %v4213
        %v5622 = vpack.c.b16 %v4342, %v4214
        %v5623 = vpack.c.b16 %v4343, %v4215
        %v5624 = vpack.c.b16 %v4344, %v4216
        %v5625 = vpack.c.b16 %v4345, %v4217
        %v5626 = vpack.c.b16 %v4346, %v4218
        %v5627 = vpack.c.b16 %v4347, %v4219
        %v5628 = vpack.c.b16 %v4348, %v4220
        %v5629 = vpack.c.b16 %v4349, %v4221
        %v5630 = vpack.c.b16 %v4350, %v4222
        %v5631 = vpack.c.b16 %v4351, %v4223
        %v5632 = vpack.c.b16 %v4352, %v4224
        %v5633 = vpack.c.b16 %v4353, %v4225
        %v5634 = vpack.c.b16 %v4354, %v4226
        %v5635 = vpack.c.b16 %v4355, %v4227
        %v5636 = vpack.c.b16 %v4356, %v4228
        %v5637 = vpack.c.b16 %v4357, %v4229
        %v5638 = vpack.c.b16 %v4358, %v4230
        %v5639 = vpack.c.b16 %v4359, %v4231
        %v5640 = vpack.c.b16 %v4360, %v4232
        %v5641 = vpack.c.b16 %v4361, %v4233
        %v5642 = vpack.c.b16 %v4362, %v4234
        %v5643 = vpack.c.b16 %v4363, %v4235
        %v5644 = vpack.c.b16 %v4364, %v4236
        %v5645 = vpack.c.b16 %v4365, %v4237
        %v5646 = vpack.c.b16 %v4366, %v4238
        %v5647 = vpack.c.b16 %v4367, %v4239
        %v5648 = vpack.c.b16 %v4368, %v4240
        %v5649 = vpack.c.b16 %v4369, %v4241
        %v5650 = vpack.c.b16 %v4370, %v4242
        %v5651 = vpack.c.b16 %v4371, %v4243
        %v5652 = vpack.c.b16 %v4372, %v4244
        %v5653 = vpack.c.b16 %v4373, %v4245
        %v5654 = vpack.c.b16 %v4374, %v4246
        %v5655 = vpack.c.b16 %v4375, %v4247
        %v5656 = vpack.c.b16 %v4376, %v4248
        %v5657 = vpack.c.b16 %v4377, %v4249
        %v5658 = vpack.c.b16 %v4378, %v4250
        %v5659 = vpack.c.b16 %v4379, %v4251
        %v5660 = vpack.c.b16 %v4380, %v4252
        %v5661 = vpack.c.b16 %v4381, %v4253
        %v5662 = vpack.c.b16 %v4382, %v4254
        %v5663 = vpack.c.b16 %v4383, %v4255
        %v5664 = vpack.c.b16 %v4384, %v4256
        %v5665 = vpack.c.b16 %v4385, %v4257
        %v5666 = vpack.c.b16 %v4386, %v4258
        %v5667 = vpack.c.b16 %v4387, %v4259
        %v5668 = vpack.c.b16 %v4388, %v4260
        %v5669 = vpack.c.b16 %v4389, %v4261
        %v5670 = vpack.c.b16 %v4390, %v4262
        %v5671 = vpack.c.b16 %v4391, %v4263
        %v5672 = vpack.c.b16 %v4392, %v4264
        %v5673 = vpack.c.b16 %v4393, %v4265
        %v5674 = vpack.c.b16 %v4394, %v4266
        %v5675 = vpack.c.b16 %v4395, %v4267
        %v5676 = vpack.c.b16 %v4396, %v4268
        %v5677 = vpack.c.b16 %v4397, %v4269
        %v5678 = vpack.c.b16 %v4398, %v4270
        %v5679 = vpack.c.b16 %v4399, %v4271
        %v5680 = vpack.c.b16 %v4400, %v4272
        %v5681 = vpack.c.b16 %v4401, %v4273
        %v5682 = vpack.c.b16 %v4402, %v4274
        %v5683 = vpack.c.b16 %v4403, %v4275
        %v5684 = vpack.c.b16 %v4404, %v4276
        %v5685 = vpack.c.b16 %v4405, %v4277
        %v5686 = vpack.c.b16 %v4406, %v4278
        %v5687 = vpack.c.b16 %v4407, %v4279
        %v5688 = vpack.c.b16 %v4408, %v4280
        %v5689 = vpack.c.b16 %v4409, %v4281
        %v5690 = vpack.c.b16 %v4410, %v4282
        %v5691 = vpack.c.b16 %v4411, %v4283
        %v5692 = vpack.c.b16 %v4412, %v4284
        %v5693 = vpack.c.b16 %v4413, %v4285
        %v5694 = vpack.c.b16 %v4414, %v4286
        %v5695 = vpack.c.b16 %v4415, %v4287
        %v5696 = vpack.c.b16 %v4416, %v4288
        %v5697 = vpack.c.b16 %v4417, %v4289
        %v5698 = vpack.c.b16 %v4418, %v4290
        %v5699 = vpack.c.b16 %v4419, %v4291
        %v5700 = vpack.c.b16 %v4420, %v4292
        %v5701 = vpack.c.b16 %v4421, %v4293
        %v5702 = vpack.c.b16 %v4422, %v4294
        %v5703 = vpack.c.b16 %v4423, %v4295
        %v5704 = vpack.c.b16 %v4424, %v4296
        %v5705 = vpack.c.b16 %v4425, %v4297
        %v5706 = vpack.c.b16 %v4426, %v4298
        %v5707 = vpack.c.b16 %v4427, %v4299
        %v5708 = vpack.c.b16 %v4428, %v4300
        %v5709 = vpack.c.b16 %v4429, %v4301
        %v5710 = vpack.c.b16 %v4430, %v4302
        %v5711 = vpack.c.b16 %v4431, %v4303
        %v5712 = vpack.c.b16 %v4432, %v4304
        %v5713 = vpack.c.b16 %v4433, %v4305
        %v5714 = vpack.c.b16 %v4434, %v4306
        %v5715 = vpack.c.b16 %v4435, %v4307
        %v5716 = vpack.c.b16 %v4436, %v4308
        %v5717 = vpack.c.b16 %v4437, %v4309
        %v5718 = vpack.c.b16 %v4438, %v4310
        %v5719 = vpack.c.b16 %v4439, %v4311
        %v5720 = vpack.c.b16 %v4440, %v4312
        %v5721 = vpack.c.b16 %v4441, %v4313
        %v5722 = vpack.c.b16 %v4442, %v4314
        %v5723 = vpack.c.b16 %v4443, %v4315
        %v5724 = vpack.c.b16 %v4444, %v4316
        %v5725 = vpack.c.b16 %v4445, %v4317
        %v5726 = vpack.c.b16 %v4446, %v4318
        %v5727 = vpack.c.b16 %v4447, %v4319
        %v5728 = vpack.c.b16 %v4448, %v4320
        %v5729 = vpack.c.b16 %v4449, %v4321
        %v5730 = vpack.c.b16 %v4450, %v4322
        %v5731 = vpack.c.b16 %v4451, %v4323
        %v5732 = vpack.c.b16 %v4452, %v4324
        %v5733 = vpack.c.b16 %v4581, %v4453
        %v5734 = vpack.c.b16 %v4582, %v4454
        %v5735 = vpack.c.b16 %v4583, %v4455
        %v5736 = vpack.c.b16 %v4584, %v4456
        %v5737 = vpack.c.b16 %v4585, %v4457
        %v5738 = vpack.c.b16 %v4586, %v4458
        %v5739 = vpack.c.b16 %v4587, %v4459
        %v5740 = vpack.c.b16 %v4588, %v4460
        %v5741 = vpack.c.b16 %v4589, %v4461
        %v5742 = vpack.c.b16 %v4590, %v4462
        %v5743 = vpack.c.b16 %v4591, %v4463
        %v5744 = vpack.c.b16 %v4592, %v4464
        %v5745 = vpack.c.b16 %v4593, %v4465
        %v5746 = vpack.c.b16 %v4594, %v4466
        %v5747 = vpack.c.b16 %v4595, %v4467
        %v5748 = vpack.c.b16 %v4596, %v4468
        %v5749 = vpack.c.b16 %v4597, %v4469
        %v5750 = vpack.c.b16 %v4598, %v4470
        %v5751 = vpack.c.b16 %v4599, %v4471
        %v5752 = vpack.c.b16 %v4600, %v4472
        %v5753 = vpack.c.b16 %v4601, %v4473
        %v5754 = vpack.c.b16 %v4602, %v4474
        %v5755 = vpack.c.b16 %v4603, %v4475
        %v5756 = vpack.c.b16 %v4604, %v4476
        %v5757 = vpack.c.b16 %v4605, %v4477
        %v5758 = vpack.c.b16 %v4606, %v4478
        %v5759 = vpack.c.b16 %v4607, %v4479
        %v5760 = vpack.c.b16 %v4608, %v4480
        %v5761 = vpack.c.b16 %v4609, %v4481
        %v5762 = vpack.c.b16 %v4610, %v4482
        %v5763 = vpack.c.b16 %v4611, %v4483
        %v5764 = vpack.c.b16 %v4612, %v4484
        %v5765 = vpack.c.b16 %v4613, %v4485
        %v5766 = vpack.c.b16 %v4614, %v4486
        %v5767 = vpack.c.b16 %v4615, %v4487
        %v5768 = vpack.c.b16 %v4616, %v4488
        %v5769 = vpack.c.b16 %v4617, %v4489
        %v5770 = vpack.c.b16 %v4618, %v4490
        %v5771 = vpack.c.b16 %v4619, %v4491
        %v5772 = vpack.c.b16 %v4620, %v4492
        %v5773 = vpack.c.b16 %v4621, %v4493
        %v5774 = vpack.c.b16 %v4622, %v4494
        %v5775 = vpack.c.b16 %v4623, %v4495
        %v5776 = vpack.c.b16 %v4624, %v4496
        %v5777 = vpack.c.b16 %v4625, %v4497
        %v5778 = vpack.c.b16 %v4626, %v4498
        %v5779 = vpack.c.b16 %v4627, %v4499
        %v5780 = vpack.c.b16 %v4628, %v4500
        %v5781 = vpack.c.b16 %v4629, %v4501
        %v5782 = vpack.c.b16 %v4630, %v4502
        %v5783 = vpack.c.b16 %v4631, %v4503
        %v5784 = vpack.c.b16 %v4632, %v4504
        %v5785 = vpack.c.b16 %v4633, %v4505
        %v5786 = vpack.c.b16 %v4634, %v4506
        %v5787 = vpack.c.b16 %v4635, %v4507
        %v5788 = vpack.c.b16 %v4636, %v4508
        %v5789 = vpack.c.b16 %v4637, %v4509
        %v5790 = vpack.c.b16 %v4638, %v4510
        %v5791 = vpack.c.b16 %v4639, %v4511
        %v5792 = vpack.c.b16 %v4640, %v4512
        %v5793 = vpack.c.b16 %v4641, %v4513
        %v5794 = vpack.c.b16 %v4642, %v4514
        %v5795 = vpack.c.b16 %v4643, %v4515
        %v5796 = vpack.c.b16 %v4644, %v4516
        %v5797 = vpack.c.b16 %v4645, %v4517
        %v5798 = vpack.c.b16 %v4646, %v4518
        %v5799 = vpack.c.b16 %v4647, %v4519
        %v5800 = vpack.c.b16 %v4648, %v4520
        %v5801 = vpack.c.b16 %v4649, %v4521
        %v5802 = vpack.c.b16 %v4650, %v4522
        %v5803 = vpack.c.b16 %v4651, %v4523
        %v5804 = vpack.c.b16 %v4652, %v4524
        %v5805 = vpack.c.b16 %v4653, %v4525
        %v5806 = vpack.c.b16 %v4654, %v4526
        %v5807 = vpack.c.b16 %v4655, %v4527
        %v5808 = vpack.c.b16 %v4656, %v4528
        %v5809 = vpack.c.b16 %v4657, %v4529
        %v5810 = vpack.c.b16 %v4658, %v4530
        %v5811 = vpack.c.b16 %v4659, %v4531
        %v5812 = vpack.c.b16 %v4660, %v4532
        %v5813 = vpack.c.b16 %v4661, %v4533
        %v5814 = vpack.c.b16 %v4662, %v4534
        %v5815 = vpack.c.b16 %v4663, %v4535
        %v5816 = vpack.c.b16 %v4664, %v4536
        %v5817 = vpack.c.b16 %v4665, %v4537
        %v5818 = vpack.c.b16 %v4666, %v4538
        %v5819 = vpack.c.b16 %v4667, %v4539
        %v5820 = vpack.c.b16 %v4668, %v4540
        %v5821 = vpack.c.b16 %v4669, %v4541
        %v5822 = vpack.c.b16 %v4670, %v4542
        %v5823 = vpack.c.b16 %v4671, %v4543
        %v5824 = vpack.c.b16 %v4672, %v4544
        %v5825 = vpack.c.b16 %v4673, %v4545
        %v5826 = vpack.c.b16 %v4674, %v4546
        %v5827 = vpack.c.b16 %v4675, %v4547
        %v5828 = vpack.c.b16 %v4676, %v4548
        %v5829 = vpack.c.b16 %v4677, %v4549
        %v5830 = vpack.c.b16 %v4678, %v4550
        %v5831 = vpack.c.b16 %v4679, %v4551
        %v5832 = vpack.c.b16 %v4680, %v4552
        %v5833 = vpack.c.b16 %v4681, %v4553
        %v5834 = vpack.c.b16 %v4682, %v4554
        %v5835 = vpack.c.b16 %v4683, %v4555
        %v5836 = vpack.c.b16 %v4684, %v4556
        %v5837 = vpack.c.b16 %v4685, %v4557
        %v5838 = vpack.c.b16 %v4686, %v4558
        %v5839 = vpack.c.b16 %v4687, %v4559
        %v5840 = vpack.c.b16 %v4688, %v4560
        %v5841 = vpack.c.b16 %v4689, %v4561
        %v5842 = vpack.c.b16 %v4690, %v4562
        %v5843 = vpack.c.b16 %v4691, %v4563
        %v5844 = vpack.c.b16 %v4692, %v4564
        %v5845 = vpack.c.b16 %v4693, %v4565
        %v5846 = vpack.c.b16 %v4694, %v4566
        %v5847 = vpack.c.b16 %v4695, %v4567
        %v5848 = vpack.c.b16 %v4696, %v4568
        %v5849 = vpack.c.b16 %v4697, %v4569
        %v5850 = vpack.c.b16 %v4698, %v4570
        %v5851 = vpack.c.b16 %v4699, %v4571
        %v5852 = vpack.c.b16 %v4700, %v4572
        %v5853 = vpack.c.b16 %v4701, %v4573
        %v5854 = vpack.c.b16 %v4702, %v4574
        %v5855 = vpack.c.b16 %v4703, %v4575
        %v5856 = vpack.c.b16 %v4704, %v4576
        %v5857 = vpack.c.b16 %v4705, %v4577
        %v5858 = vpack.c.b16 %v4706, %v4578
        %v5859 = vpack.c.b16 %v4707, %v4579
        %v5860 = vpack.c.b16 %v4708, %v4580
        %v5861 = vpack.c.b16 %v4837, %v4709
        %v5862 = vpack.c.b16 %v4838, %v4710
        %v5863 = vpack.c.b16 %v4839, %v4711
        %v5864 = vpack.c.b16 %v4840, %v4712
        %v5865 = vpack.c.b16 %v4841, %v4713
        %v5866 = vpack.c.b16 %v4842, %v4714
        %v5867 = vpack.c.b16 %v4843, %v4715
        %v5868 = vpack.c.b16 %v4844, %v4716
        %v5869 = vpack.c.b16 %v4845, %v4717
        %v5870 = vpack.c.b16 %v4846, %v4718
        %v5871 = vpack.c.b16 %v4847, %v4719
        %v5872 = vpack.c.b16 %v4848, %v4720
        %v5873 = vpack.c.b16 %v4849, %v4721
        %v5874 = vpack.c.b16 %v4850, %v4722
        %v5875 = vpack.c.b16 %v4851, %v4723
        %v5876 = vpack.c.b16 %v4852, %v4724
        %v5877 = vpack.c.b16 %v4853, %v4725
        %v5878 = vpack.c.b16 %v4854, %v4726
        %v5879 = vpack.c.b16 %v4855, %v4727
        %v5880 = vpack.c.b16 %v4856, %v4728
        %v5881 = vpack.c.b16 %v4857, %v4729
        %v5882 = vpack.c.b16 %v4858, %v4730
        %v5883 = vpack.c.b16 %v4859, %v4731
        %v5884 = vpack.c.b16 %v4860, %v4732
        %v5885 = vpack.c.b16 %v4861, %v4733
        %v5886 = vpack.c.b16 %v4862, %v4734
        %v5887 = vpack.c.b16 %v4863, %v4735
        %v5888 = vpack.c.b16 %v4864, %v4736
        %v5889 = vpack.c.b16 %v4865, %v4737
        %v5890 = vpack.c.b16 %v4866, %v4738
        %v5891 = vpack.c.b16 %v4867, %v4739
        %v5892 = vpack.c.b16 %v4868, %v4740
        %v5893 = vpack.c.b16 %v4869, %v4741
        %v5894 = vpack.c.b16 %v4870, %v4742
        %v5895 = vpack.c.b16 %v4871, %v4743
        %v5896 = vpack.c.b16 %v4872, %v4744
        %v5897 = vpack.c.b16 %v4873, %v4745
        %v5898 = vpack.c.b16 %v4874, %v4746
        %v5899 = vpack.c.b16 %v4875, %v4747
        %v5900 = vpack.c.b16 %v4876, %v4748
        %v5901 = vpack.c.b16 %v4877, %v4749
        %v5902 = vpack.c.b16 %v4878, %v4750
        %v5903 = vpack.c.b16 %v4879, %v4751
        %v5904 = vpack.c.b16 %v4880, %v4752
        %v5905 = vpack.c.b16 %v4881, %v4753
        %v5906 = vpack.c.b16 %v4882, %v4754
        %v5907 = vpack.c.b16 %v4883, %v4755
        %v5908 = vpack.c.b16 %v4884, %v4756
        %v5909 = vpack.c.b16 %v4885, %v4757
        %v5910 = vpack.c.b16 %v4886, %v4758
        %v5911 = vpack.c.b16 %v4887, %v4759
        %v5912 = vpack.c.b16 %v4888, %v4760
        %v5913 = vpack.c.b16 %v4889, %v4761
        %v5914 = vpack.c.b16 %v4890, %v4762
        %v5915 = vpack.c.b16 %v4891, %v4763
        %v5916 = vpack.c.b16 %v4892, %v4764
        %v5917 = vpack.c.b16 %v4893, %v4765
        %v5918 = vpack.c.b16 %v4894, %v4766
        %v5919 = vpack.c.b16 %v4895, %v4767
        %v5920 = vpack.c.b16 %v4896, %v4768
        %v5921 = vpack.c.b16 %v4897, %v4769
        %v5922 = vpack.c.b16 %v4898, %v4770
        %v5923 = vpack.c.b16 %v4899, %v4771
        %v5924 = vpack.c.b16 %v4900, %v4772
        %v5925 = vpack.c.b16 %v4901, %v4773
        %v5926 = vpack.c.b16 %v4902, %v4774
        %v5927 = vpack.c.b16 %v4903, %v4775
        %v5928 = vpack.c.b16 %v4904, %v4776
        %v5929 = vpack.c.b16 %v4905, %v4777
        %v5930 = vpack.c.b16 %v4906, %v4778
        %v5931 = vpack.c.b16 %v4907, %v4779
        %v5932 = vpack.c.b16 %v4908, %v4780
        %v5933 = vpack.c.b16 %v4909, %v4781
        %v5934 = vpack.c.b16 %v4910, %v4782
        %v5935 = vpack.c.b16 %v4911, %v4783
        %v5936 = vpack.c.b16 %v4912, %v4784
        %v5937 = vpack.c.b16 %v4913, %v4785
        %v5938 = vpack.c.b16 %v4914, %v4786
        %v5939 = vpack.c.b16 %v4915, %v4787
        %v5940 = vpack.c.b16 %v4916, %v4788
        %v5941 = vpack.c.b16 %v4917, %v4789
        %v5942 = vpack.c.b16 %v4918, %v4790
        %v5943 = vpack.c.b16 %v4919, %v4791
        %v5944 = vpack.c.b16 %v4920, %v4792
        %v5945 = vpack.c.b16 %v4921, %v4793
        %v5946 = vpack.c.b16 %v4922, %v4794
        %v5947 = vpack.c.b16 %v4923, %v4795
        %v5948 = vpack.c.b16 %v4924, %v4796
        %v5949 = vpack.c.b16 %v4925, %v4797
        %v5950 = vpack.c.b16 %v4926, %v4798
        %v5951 = vpack.c.b16 %v4927, %v4799
        %v5952 = vpack.c.b16 %v4928, %v4800
        %v5953 = vpack.c.b16 %v4929, %v4801
        %v5954 = vpack.c.b16 %v4930, %v4802
        %v5955 = vpack.c.b16 %v4931, %v4803
        %v5956 = vpack.c.b16 %v4932, %v4804
        %v5957 = vpack.c.b16 %v4933, %v4805
        %v5958 = vpack.c.b16 %v4934, %v4806
        %v5959 = vpack.c.b16 %v4935, %v4807
        %v5960 = vpack.c.b16 %v4936, %v4808
        %v5961 = vpack.c.b16 %v4937, %v4809
        %v5962 = vpack.c.b16 %v4938, %v4810
        %v5963 = vpack.c.b16 %v4939, %v4811
        %v5964 = vpack.c.b16 %v4940, %v4812
        %v5965 = vpack.c.b16 %v4941, %v4813
        %v5966 = vpack.c.b16 %v4942, %v4814
        %v5967 = vpack.c.b16 %v4943, %v4815
        %v5968 = vpack.c.b16 %v4944, %v4816
        %v5969 = vpack.c.b16 %v4945, %v4817
        %v5970 = vpack.c.b16 %v4946, %v4818
        %v5971 = vpack.c.b16 %v4947, %v4819
        %v5972 = vpack.c.b16 %v4948, %v4820
        %v5973 = vpack.c.b16 %v4949, %v4821
        %v5974 = vpack.c.b16 %v4950, %v4822
        %v5975 = vpack.c.b16 %v4951, %v4823
        %v5976 = vpack.c.b16 %v4952, %v4824
        %v5977 = vpack.c.b16 %v4953, %v4825
        %v5978 = vpack.c.b16 %v4954, %v4826
        %v5979 = vpack.c.b16 %v4955, %v4827
        %v5980 = vpack.c.b16 %v4956, %v4828
        %v5981 = vpack.c.b16 %v4957, %v4829
        %v5982 = vpack.c.b16 %v4958, %v4830
        %v5983 = vpack.c.b16 %v4959, %v4831
        %v5984 = vpack.c.b16 %v4960, %v4832
        %v5985 = vpack.c.b16 %v4961, %v4833
        %v5986 = vpack.c.b16 %v4962, %v4834
        %v5987 = vpack.c.b16 %v4963, %v4835
        %v5988 = vpack.c.b16 %v4964, %v4836
        %7013 = vmatprep.subr.bf16.mxu0 %v5862
        %7014 = vmatpush1.bf16.xpose.msra.mxu0 %v5861
        %7015 = vmatprep.subr.bf16.mxu0 %v5734
        %7016 = vmatpush1.bf16.xpose.msra.mxu0 %v5733
        %7017 = vmatprep.subr.bf16.mxu0 %v5606
        %7018 = vmatpush1.bf16.xpose.msra.mxu0 %v5605
        %7019 = vmatprep.subr.bf16.mxu0 %v5478
        %7020 = vmatpush1.bf16.xpose.msra.mxu0 %v5477
        %7021 = vmatprep.subr.bf16.mxu0 %v5350
        %7022 = vmatpush1.bf16.xpose.msra.mxu0 %v5349
        %7023 = vmatprep.subr.bf16.mxu0 %v5222
        %7024 = vmatpush1.bf16.xpose.msra.mxu0 %v5221
        %7025 = vmatprep.subr.bf16.mxu0 %v5094
        %7026 = vmatpush1.bf16.xpose.msra.mxu0 %v5093
        %7027 = vmatprep.subr.bf16.mxu0 %v4966
        %7028 = vmatpush1.bf16.xpose.msra.mxu0 %v4965
        %7029 = vmatprep.subr.bf16.mxu0 0
        %7030 = vmatpush2.bf16.xpose.msra.mxu0 0
        %7031 = vmatprep.subr.bf16.mxu0 0
        %7032 = vmatpush2.bf16.xpose.msra.mxu0 0
        %7033 = vmatprep.subr.bf16.mxu0 0
        %7034 = vmatpush2.bf16.xpose.msra.mxu0 0
        %7035 = vmatprep.subr.bf16.mxu0 0
        %7036 = vmatpush2.bf16.xpose.msra.mxu0 0
        %7037 = vmatprep.subr.bf16.mxu0 0
        %7038 = vmatpush2.bf16.xpose.msra.mxu0 0
        %7039 = vmatprep.subr.bf16.mxu0 0
        %7040 = vmatpush2.bf16.xpose.msra.mxu0 0
        %7041 = vmatprep.subr.bf16.mxu0 0
        %7042 = vmatpush2.bf16.xpose.msra.mxu0 0
        %7043 = vmatprep.subr.bf16.mxu0 0
        %7044 = vmatpush2.bf16.xpose.msra.mxu0 0
        %7045 = vmatprep.mubr.bf16.mxu0 %v1638
        %7046 = vmatmul.mubr.bf16.gmra.mxu0 %v1637
        %v7047 = vpop.f32.mrf.mxu0
        %v7048 = vadd.f32 0.0, %v7047
        %v7049 = vpop.f32.mrf.mxu0
        %v7050 = vpop.f32.mrf.mxu0
        %v7051 = vpop.f32.mrf.mxu0
        %7052 = vdwg.mxu0
        %7053 = vmatprep.subr.bf16.mxu0 %v5864
        %7054 = vmatpush1.bf16.xpose.msra.mxu0 %v5863
        %7055 = vmatprep.subr.bf16.mxu0 %v5736
        %7056 = vmatpush1.bf16.xpose.msra.mxu0 %v5735
        %7057 = vmatprep.subr.bf16.mxu0 %v5608
        %7058 = vmatpush1.bf16.xpose.msra.mxu0 %v5607
        %7059 = vmatprep.subr.bf16.mxu0 %v5480
        %7060 = vmatpush1.bf16.xpose.msra.mxu0 %v5479
        %7061 = vmatprep.subr.bf16.mxu0 %v5352
        %7062 = vmatpush1.bf16.xpose.msra.mxu0 %v5351
        %7063 = vmatprep.subr.bf16.mxu0 %v5224
        %7064 = vmatpush1.bf16.xpose.msra.mxu0 %v5223
        %7065 = vmatprep.subr.bf16.mxu0 %v5096
        %7066 = vmatpush1.bf16.xpose.msra.mxu0 %v5095
        %7067 = vmatprep.subr.bf16.mxu0 %v4968
        %7068 = vmatpush1.bf16.xpose.msra.mxu0 %v4967
        %7069 = vmatprep.subr.bf16.mxu0 0
        %7070 = vmatpush2.bf16.xpose.msra.mxu0 0
        %7071 = vmatprep.subr.bf16.mxu0 0
        %7072 = vmatpush2.bf16.xpose.msra.mxu0 0
        %7073 = vmatprep.subr.bf16.mxu0 0
        %7074 = vmatpush2.bf16.xpose.msra.mxu0 0
        %7075 = vmatprep.subr.bf16.mxu0 0
        %7076 = vmatpush2.bf16.xpose.msra.mxu0 0
        %7077 = vmatprep.subr.bf16.mxu0 0
        %7078 = vmatpush2.bf16.xpose.msra.mxu0 0
        %7079 = vmatprep.subr.bf16.mxu0 0
        %7080 = vmatpush2.bf16.xpose.msra.mxu0 0
        %7081 = vmatprep.subr.bf16.mxu0 0
        %7082 = vmatpush2.bf16.xpose.msra.mxu0 0
        %7083 = vmatprep.subr.bf16.mxu0 0
        %7084 = vmatpush2.bf16.xpose.msra.mxu0 0
        %7085 = vmatprep.mubr.bf16.mxu0 %v1640
        %7086 = vmatmul.mubr.bf16.gmra.mxu0 %v1639
        %v7087 = vpop.f32.mrf.mxu0
        %v7088 = vadd.f32 %v7048, %v7087
        %v7089 = vpop.f32.mrf.mxu0
        %v7090 = vpop.f32.mrf.mxu0
        %v7091 = vpop.f32.mrf.mxu0
        %7092 = vdwg.mxu0
        %7093 = vmatprep.subr.bf16.mxu0 %v5866
        %7094 = vmatpush1.bf16.xpose.msra.mxu0 %v5865
        %7095 = vmatprep.subr.bf16.mxu0 %v5738
        %7096 = vmatpush1.bf16.xpose.msra.mxu0 %v5737
        %7097 = vmatprep.subr.bf16.mxu0 %v5610
        %7098 = vmatpush1.bf16.xpose.msra.mxu0 %v5609
        %7099 = vmatprep.subr.bf16.mxu0 %v5482
        %7100 = vmatpush1.bf16.xpose.msra.mxu0 %v5481
        %7101 = vmatprep.subr.bf16.mxu0 %v5354
        %7102 = vmatpush1.bf16.xpose.msra.mxu0 %v5353
        %7103 = vmatprep.subr.bf16.mxu0 %v5226
        %7104 = vmatpush1.bf16.xpose.msra.mxu0 %v5225
        %7105 = vmatprep.subr.bf16.mxu0 %v5098
        %7106 = vmatpush1.bf16.xpose.msra.mxu0 %v5097
        %7107 = vmatprep.subr.bf16.mxu0 %v4970
        %7108 = vmatpush1.bf16.xpose.msra.mxu0 %v4969
        %7109 = vmatprep.subr.bf16.mxu0 0
        %7110 = vmatpush2.bf16.xpose.msra.mxu0 0
        %7111 = vmatprep.subr.bf16.mxu0 0
        %7112 = vmatpush2.bf16.xpose.msra.mxu0 0
        %7113 = vmatprep.subr.bf16.mxu0 0
        %7114 = vmatpush2.bf16.xpose.msra.mxu0 0
        %7115 = vmatprep.subr.bf16.mxu0 0
        %7116 = vmatpush2.bf16.xpose.msra.mxu0 0
        %7117 = vmatprep.subr.bf16.mxu0 0
        %7118 = vmatpush2.bf16.xpose.msra.mxu0 0
        %7119 = vmatprep.subr.bf16.mxu0 0
        %7120 = vmatpush2.bf16.xpose.msra.mxu0 0
        %7121 = vmatprep.subr.bf16.mxu0 0
        %7122 = vmatpush2.bf16.xpose.msra.mxu0 0
        %7123 = vmatprep.subr.bf16.mxu0 0
        %7124 = vmatpush2.bf16.xpose.msra.mxu0 0
        %7125 = vmatprep.mubr.bf16.mxu0 %v1642
        %7126 = vmatmul.mubr.bf16.gmra.mxu0 %v1641
        %v7127 = vpop.f32.mrf.mxu0
        %v7128 = vadd.f32 %v7088, %v7127
        %v7129 = vpop.f32.mrf.mxu0
        %v7130 = vpop.f32.mrf.mxu0
        %v7131 = vpop.f32.mrf.mxu0
        %7132 = vdwg.mxu0
        %7133 = vmatprep.subr.bf16.mxu0 %v5868
        %7134 = vmatpush1.bf16.xpose.msra.mxu0 %v5867
        %7135 = vmatprep.subr.bf16.mxu0 %v5740
        %7136 = vmatpush1.bf16.xpose.msra.mxu0 %v5739
        %7137 = vmatprep.subr.bf16.mxu0 %v5612
        %7138 = vmatpush1.bf16.xpose.msra.mxu0 %v5611
        %7139 = vmatprep.subr.bf16.mxu0 %v5484
        %7140 = vmatpush1.bf16.xpose.msra.mxu0 %v5483
        %7141 = vmatprep.subr.bf16.mxu0 %v5356
        %7142 = vmatpush1.bf16.xpose.msra.mxu0 %v5355
        %7143 = vmatprep.subr.bf16.mxu0 %v5228
        %7144 = vmatpush1.bf16.xpose.msra.mxu0 %v5227
        %7145 = vmatprep.subr.bf16.mxu0 %v5100
        %7146 = vmatpush1.bf16.xpose.msra.mxu0 %v5099
        %7147 = vmatprep.subr.bf16.mxu0 %v4972
        %7148 = vmatpush1.bf16.xpose.msra.mxu0 %v4971
        %7149 = vmatprep.subr.bf16.mxu0 0
        %7150 = vmatpush2.bf16.xpose.msra.mxu0 0
        %7151 = vmatprep.subr.bf16.mxu0 0
        %7152 = vmatpush2.bf16.xpose.msra.mxu0 0
        %7153 = vmatprep.subr.bf16.mxu0 0
        %7154 = vmatpush2.bf16.xpose.msra.mxu0 0
        %7155 = vmatprep.subr.bf16.mxu0 0
        %7156 = vmatpush2.bf16.xpose.msra.mxu0 0
        %7157 = vmatprep.subr.bf16.mxu0 0
        %7158 = vmatpush2.bf16.xpose.msra.mxu0 0
        %7159 = vmatprep.subr.bf16.mxu0 0
        %7160 = vmatpush2.bf16.xpose.msra.mxu0 0
        %7161 = vmatprep.subr.bf16.mxu0 0
        %7162 = vmatpush2.bf16.xpose.msra.mxu0 0
        %7163 = vmatprep.subr.bf16.mxu0 0
        %7164 = vmatpush2.bf16.xpose.msra.mxu0 0
        %7165 = vmatprep.mubr.bf16.mxu0 %v1644
        %7166 = vmatmul.mubr.bf16.gmra.mxu0 %v1643
        %v7167 = vpop.f32.mrf.mxu0
        %v7168 = vadd.f32 %v7128, %v7167
        %v7169 = vpop.f32.mrf.mxu0
        %v7170 = vpop.f32.mrf.mxu0
        %v7171 = vpop.f32.mrf.mxu0
        %7172 = vdwg.mxu0
        %7173 = vmatprep.subr.bf16.mxu0 %v5870
        %7174 = vmatpush1.bf16.xpose.msra.mxu0 %v5869
        %7175 = vmatprep.subr.bf16.mxu0 %v5742
        %7176 = vmatpush1.bf16.xpose.msra.mxu0 %v5741
        %7177 = vmatprep.subr.bf16.mxu0 %v5614
        %7178 = vmatpush1.bf16.xpose.msra.mxu0 %v5613
        %7179 = vmatprep.subr.bf16.mxu0 %v5486
        %7180 = vmatpush1.bf16.xpose.msra.mxu0 %v5485
        %7181 = vmatprep.subr.bf16.mxu0 %v5358
        %7182 = vmatpush1.bf16.xpose.msra.mxu0 %v5357
        %7183 = vmatprep.subr.bf16.mxu0 %v5230
        %7184 = vmatpush1.bf16.xpose.msra.mxu0 %v5229
        %7185 = vmatprep.subr.bf16.mxu0 %v5102
        %7186 = vmatpush1.bf16.xpose.msra.mxu0 %v5101
        %7187 = vmatprep.subr.bf16.mxu0 %v4974
        %7188 = vmatpush1.bf16.xpose.msra.mxu0 %v4973
        %7189 = vmatprep.subr.bf16.mxu0 0
        %7190 = vmatpush2.bf16.xpose.msra.mxu0 0
        %7191 = vmatprep.subr.bf16.mxu0 0
        %7192 = vmatpush2.bf16.xpose.msra.mxu0 0
        %7193 = vmatprep.subr.bf16.mxu0 0
        %7194 = vmatpush2.bf16.xpose.msra.mxu0 0
        %7195 = vmatprep.subr.bf16.mxu0 0
        %7196 = vmatpush2.bf16.xpose.msra.mxu0 0
        %7197 = vmatprep.subr.bf16.mxu0 0
        %7198 = vmatpush2.bf16.xpose.msra.mxu0 0
        %7199 = vmatprep.subr.bf16.mxu0 0
        %7200 = vmatpush2.bf16.xpose.msra.mxu0 0
        %7201 = vmatprep.subr.bf16.mxu0 0
        %7202 = vmatpush2.bf16.xpose.msra.mxu0 0
        %7203 = vmatprep.subr.bf16.mxu0 0
        %7204 = vmatpush2.bf16.xpose.msra.mxu0 0
        %7205 = vmatprep.mubr.bf16.mxu0 %v1646
        %7206 = vmatmul.mubr.bf16.gmra.mxu0 %v1645
        %v7207 = vpop.f32.mrf.mxu0
        %v7208 = vadd.f32 %v7168, %v7207
        %v7209 = vpop.f32.mrf.mxu0
        %v7210 = vpop.f32.mrf.mxu0
        %v7211 = vpop.f32.mrf.mxu0
        %7212 = vdwg.mxu0
        %7213 = vmatprep.subr.bf16.mxu0 %v5872
        %7214 = vmatpush1.bf16.xpose.msra.mxu0 %v5871
        %7215 = vmatprep.subr.bf16.mxu0 %v5744
        %7216 = vmatpush1.bf16.xpose.msra.mxu0 %v5743
        %7217 = vmatprep.subr.bf16.mxu0 %v5616
        %7218 = vmatpush1.bf16.xpose.msra.mxu0 %v5615
        %7219 = vmatprep.subr.bf16.mxu0 %v5488
        %7220 = vmatpush1.bf16.xpose.msra.mxu0 %v5487
        %7221 = vmatprep.subr.bf16.mxu0 %v5360
        %7222 = vmatpush1.bf16.xpose.msra.mxu0 %v5359
        %7223 = vmatprep.subr.bf16.mxu0 %v5232
        %7224 = vmatpush1.bf16.xpose.msra.mxu0 %v5231
        %7225 = vmatprep.subr.bf16.mxu0 %v5104
        %7226 = vmatpush1.bf16.xpose.msra.mxu0 %v5103
        %7227 = vmatprep.subr.bf16.mxu0 %v4976
        %7228 = vmatpush1.bf16.xpose.msra.mxu0 %v4975
        %7229 = vmatprep.subr.bf16.mxu0 0
        %7230 = vmatpush2.bf16.xpose.msra.mxu0 0
        %7231 = vmatprep.subr.bf16.mxu0 0
        %7232 = vmatpush2.bf16.xpose.msra.mxu0 0
        %7233 = vmatprep.subr.bf16.mxu0 0
        %7234 = vmatpush2.bf16.xpose.msra.mxu0 0
        %7235 = vmatprep.subr.bf16.mxu0 0
        %7236 = vmatpush2.bf16.xpose.msra.mxu0 0
        %7237 = vmatprep.subr.bf16.mxu0 0
        %7238 = vmatpush2.bf16.xpose.msra.mxu0 0
        %7239 = vmatprep.subr.bf16.mxu0 0
        %7240 = vmatpush2.bf16.xpose.msra.mxu0 0
        %7241 = vmatprep.subr.bf16.mxu0 0
        %7242 = vmatpush2.bf16.xpose.msra.mxu0 0
        %7243 = vmatprep.subr.bf16.mxu0 0
        %7244 = vmatpush2.bf16.xpose.msra.mxu0 0
        %7245 = vmatprep.mubr.bf16.mxu0 %v1648
        %7246 = vmatmul.mubr.bf16.gmra.mxu0 %v1647
        %v7247 = vpop.f32.mrf.mxu0
        %v7248 = vadd.f32 %v7208, %v7247
        %v7249 = vpop.f32.mrf.mxu0
        %v7250 = vpop.f32.mrf.mxu0
        %v7251 = vpop.f32.mrf.mxu0
        %7252 = vdwg.mxu0
        %7253 = vmatprep.subr.bf16.mxu0 %v5874
        %7254 = vmatpush1.bf16.xpose.msra.mxu0 %v5873
        %7255 = vmatprep.subr.bf16.mxu0 %v5746
        %7256 = vmatpush1.bf16.xpose.msra.mxu0 %v5745
        %7257 = vmatprep.subr.bf16.mxu0 %v5618
        %7258 = vmatpush1.bf16.xpose.msra.mxu0 %v5617
        %7259 = vmatprep.subr.bf16.mxu0 %v5490
        %7260 = vmatpush1.bf16.xpose.msra.mxu0 %v5489
        %7261 = vmatprep.subr.bf16.mxu0 %v5362
        %7262 = vmatpush1.bf16.xpose.msra.mxu0 %v5361
        %7263 = vmatprep.subr.bf16.mxu0 %v5234
        %7264 = vmatpush1.bf16.xpose.msra.mxu0 %v5233
        %7265 = vmatprep.subr.bf16.mxu0 %v5106
        %7266 = vmatpush1.bf16.xpose.msra.mxu0 %v5105
        %7267 = vmatprep.subr.bf16.mxu0 %v4978
        %7268 = vmatpush1.bf16.xpose.msra.mxu0 %v4977
        %7269 = vmatprep.subr.bf16.mxu0 0
        %7270 = vmatpush2.bf16.xpose.msra.mxu0 0
        %7271 = vmatprep.subr.bf16.mxu0 0
        %7272 = vmatpush2.bf16.xpose.msra.mxu0 0
        %7273 = vmatprep.subr.bf16.mxu0 0
        %7274 = vmatpush2.bf16.xpose.msra.mxu0 0
        %7275 = vmatprep.subr.bf16.mxu0 0
        %7276 = vmatpush2.bf16.xpose.msra.mxu0 0
        %7277 = vmatprep.subr.bf16.mxu0 0
        %7278 = vmatpush2.bf16.xpose.msra.mxu0 0
        %7279 = vmatprep.subr.bf16.mxu0 0
        %7280 = vmatpush2.bf16.xpose.msra.mxu0 0
        %7281 = vmatprep.subr.bf16.mxu0 0
        %7282 = vmatpush2.bf16.xpose.msra.mxu0 0
        %7283 = vmatprep.subr.bf16.mxu0 0
        %7284 = vmatpush2.bf16.xpose.msra.mxu0 0
        %7285 = vmatprep.mubr.bf16.mxu0 %v1650
        %7286 = vmatmul.mubr.bf16.gmra.mxu0 %v1649
        %v7287 = vpop.f32.mrf.mxu0
        %v7288 = vadd.f32 %v7248, %v7287
        %v7289 = vpop.f32.mrf.mxu0
        %v7290 = vpop.f32.mrf.mxu0
        %v7291 = vpop.f32.mrf.mxu0
        %7292 = vdwg.mxu0
        %7293 = vmatprep.subr.bf16.mxu0 %v5876
        %7294 = vmatpush1.bf16.xpose.msra.mxu0 %v5875
        %7295 = vmatprep.subr.bf16.mxu0 %v5748
        %7296 = vmatpush1.bf16.xpose.msra.mxu0 %v5747
        %7297 = vmatprep.subr.bf16.mxu0 %v5620
        %7298 = vmatpush1.bf16.xpose.msra.mxu0 %v5619
        %7299 = vmatprep.subr.bf16.mxu0 %v5492
        %7300 = vmatpush1.bf16.xpose.msra.mxu0 %v5491
        %7301 = vmatprep.subr.bf16.mxu0 %v5364
        %7302 = vmatpush1.bf16.xpose.msra.mxu0 %v5363
        %7303 = vmatprep.subr.bf16.mxu0 %v5236
        %7304 = vmatpush1.bf16.xpose.msra.mxu0 %v5235
        %7305 = vmatprep.subr.bf16.mxu0 %v5108
        %7306 = vmatpush1.bf16.xpose.msra.mxu0 %v5107
        %7307 = vmatprep.subr.bf16.mxu0 %v4980
        %7308 = vmatpush1.bf16.xpose.msra.mxu0 %v4979
        %7309 = vmatprep.subr.bf16.mxu0 0
        %7310 = vmatpush2.bf16.xpose.msra.mxu0 0
        %7311 = vmatprep.subr.bf16.mxu0 0
        %7312 = vmatpush2.bf16.xpose.msra.mxu0 0
        %7313 = vmatprep.subr.bf16.mxu0 0
        %7314 = vmatpush2.bf16.xpose.msra.mxu0 0
        %7315 = vmatprep.subr.bf16.mxu0 0
        %7316 = vmatpush2.bf16.xpose.msra.mxu0 0
        %7317 = vmatprep.subr.bf16.mxu0 0
        %7318 = vmatpush2.bf16.xpose.msra.mxu0 0
        %7319 = vmatprep.subr.bf16.mxu0 0
        %7320 = vmatpush2.bf16.xpose.msra.mxu0 0
        %7321 = vmatprep.subr.bf16.mxu0 0
        %7322 = vmatpush2.bf16.xpose.msra.mxu0 0
        %7323 = vmatprep.subr.bf16.mxu0 0
        %7324 = vmatpush2.bf16.xpose.msra.mxu0 0
        %7325 = vmatprep.mubr.bf16.mxu0 %v1652
        %7326 = vmatmul.mubr.bf16.gmra.mxu0 %v1651
        %v7327 = vpop.f32.mrf.mxu0
        %v7328 = vadd.f32 %v7288, %v7327
        %v7329 = vpop.f32.mrf.mxu0
        %v7330 = vpop.f32.mrf.mxu0
        %v7331 = vpop.f32.mrf.mxu0
        %7332 = vdwg.mxu0
        %7333 = vmatprep.subr.bf16.mxu0 %v5878
        %7334 = vmatpush1.bf16.xpose.msra.mxu0 %v5877
        %7335 = vmatprep.subr.bf16.mxu0 %v5750
        %7336 = vmatpush1.bf16.xpose.msra.mxu0 %v5749
        %7337 = vmatprep.subr.bf16.mxu0 %v5622
        %7338 = vmatpush1.bf16.xpose.msra.mxu0 %v5621
        %7339 = vmatprep.subr.bf16.mxu0 %v5494
        %7340 = vmatpush1.bf16.xpose.msra.mxu0 %v5493
        %7341 = vmatprep.subr.bf16.mxu0 %v5366
        %7342 = vmatpush1.bf16.xpose.msra.mxu0 %v5365
        %7343 = vmatprep.subr.bf16.mxu0 %v5238
        %7344 = vmatpush1.bf16.xpose.msra.mxu0 %v5237
        %7345 = vmatprep.subr.bf16.mxu0 %v5110
        %7346 = vmatpush1.bf16.xpose.msra.mxu0 %v5109
        %7347 = vmatprep.subr.bf16.mxu0 %v4982
        %7348 = vmatpush1.bf16.xpose.msra.mxu0 %v4981
        %7349 = vmatprep.subr.bf16.mxu0 0
        %7350 = vmatpush2.bf16.xpose.msra.mxu0 0
        %7351 = vmatprep.subr.bf16.mxu0 0
        %7352 = vmatpush2.bf16.xpose.msra.mxu0 0
        %7353 = vmatprep.subr.bf16.mxu0 0
        %7354 = vmatpush2.bf16.xpose.msra.mxu0 0
        %7355 = vmatprep.subr.bf16.mxu0 0
        %7356 = vmatpush2.bf16.xpose.msra.mxu0 0
        %7357 = vmatprep.subr.bf16.mxu0 0
        %7358 = vmatpush2.bf16.xpose.msra.mxu0 0
        %7359 = vmatprep.subr.bf16.mxu0 0
        %7360 = vmatpush2.bf16.xpose.msra.mxu0 0
        %7361 = vmatprep.subr.bf16.mxu0 0
        %7362 = vmatpush2.bf16.xpose.msra.mxu0 0
        %7363 = vmatprep.subr.bf16.mxu0 0
        %7364 = vmatpush2.bf16.xpose.msra.mxu0 0
        %7365 = vmatprep.mubr.bf16.mxu0 %v1654
        %7366 = vmatmul.mubr.bf16.gmra.mxu0 %v1653
        %v7367 = vpop.f32.mrf.mxu0
        %v7368 = vadd.f32 %v7328, %v7367
        %v7369 = vpop.f32.mrf.mxu0
        %v7370 = vpop.f32.mrf.mxu0
        %v7371 = vpop.f32.mrf.mxu0
        %7372 = vdwg.mxu0
        %7373 = vmatprep.subr.bf16.mxu0 %v5880
        %7374 = vmatpush1.bf16.xpose.msra.mxu0 %v5879
        %7375 = vmatprep.subr.bf16.mxu0 %v5752
        %7376 = vmatpush1.bf16.xpose.msra.mxu0 %v5751
        %7377 = vmatprep.subr.bf16.mxu0 %v5624
        %7378 = vmatpush1.bf16.xpose.msra.mxu0 %v5623
        %7379 = vmatprep.subr.bf16.mxu0 %v5496
        %7380 = vmatpush1.bf16.xpose.msra.mxu0 %v5495
        %7381 = vmatprep.subr.bf16.mxu0 %v5368
        %7382 = vmatpush1.bf16.xpose.msra.mxu0 %v5367
        %7383 = vmatprep.subr.bf16.mxu0 %v5240
        %7384 = vmatpush1.bf16.xpose.msra.mxu0 %v5239
        %7385 = vmatprep.subr.bf16.mxu0 %v5112
        %7386 = vmatpush1.bf16.xpose.msra.mxu0 %v5111
        %7387 = vmatprep.subr.bf16.mxu0 %v4984
        %7388 = vmatpush1.bf16.xpose.msra.mxu0 %v4983
        %7389 = vmatprep.subr.bf16.mxu0 0
        %7390 = vmatpush2.bf16.xpose.msra.mxu0 0
        %7391 = vmatprep.subr.bf16.mxu0 0
        %7392 = vmatpush2.bf16.xpose.msra.mxu0 0
        %7393 = vmatprep.subr.bf16.mxu0 0
        %7394 = vmatpush2.bf16.xpose.msra.mxu0 0
        %7395 = vmatprep.subr.bf16.mxu0 0
        %7396 = vmatpush2.bf16.xpose.msra.mxu0 0
        %7397 = vmatprep.subr.bf16.mxu0 0
        %7398 = vmatpush2.bf16.xpose.msra.mxu0 0
        %7399 = vmatprep.subr.bf16.mxu0 0
        %7400 = vmatpush2.bf16.xpose.msra.mxu0 0
        %7401 = vmatprep.subr.bf16.mxu0 0
        %7402 = vmatpush2.bf16.xpose.msra.mxu0 0
        %7403 = vmatprep.subr.bf16.mxu0 0
        %7404 = vmatpush2.bf16.xpose.msra.mxu0 0
        %7405 = vmatprep.mubr.bf16.mxu0 %v1656
        %7406 = vmatmul.mubr.bf16.gmra.mxu0 %v1655
        %v7407 = vpop.f32.mrf.mxu0
        %v7408 = vadd.f32 %v7368, %v7407
        %v7409 = vpop.f32.mrf.mxu0
        %v7410 = vpop.f32.mrf.mxu0
        %v7411 = vpop.f32.mrf.mxu0
        %7412 = vdwg.mxu0
        %7413 = vmatprep.subr.bf16.mxu0 %v5882
        %7414 = vmatpush1.bf16.xpose.msra.mxu0 %v5881
        %7415 = vmatprep.subr.bf16.mxu0 %v5754
        %7416 = vmatpush1.bf16.xpose.msra.mxu0 %v5753
        %7417 = vmatprep.subr.bf16.mxu0 %v5626
        %7418 = vmatpush1.bf16.xpose.msra.mxu0 %v5625
        %7419 = vmatprep.subr.bf16.mxu0 %v5498
        %7420 = vmatpush1.bf16.xpose.msra.mxu0 %v5497
        %7421 = vmatprep.subr.bf16.mxu0 %v5370
        %7422 = vmatpush1.bf16.xpose.msra.mxu0 %v5369
        %7423 = vmatprep.subr.bf16.mxu0 %v5242
        %7424 = vmatpush1.bf16.xpose.msra.mxu0 %v5241
        %7425 = vmatprep.subr.bf16.mxu0 %v5114
        %7426 = vmatpush1.bf16.xpose.msra.mxu0 %v5113
        %7427 = vmatprep.subr.bf16.mxu0 %v4986
        %7428 = vmatpush1.bf16.xpose.msra.mxu0 %v4985
        %7429 = vmatprep.subr.bf16.mxu0 0
        %7430 = vmatpush2.bf16.xpose.msra.mxu0 0
        %7431 = vmatprep.subr.bf16.mxu0 0
        %7432 = vmatpush2.bf16.xpose.msra.mxu0 0
        %7433 = vmatprep.subr.bf16.mxu0 0
        %7434 = vmatpush2.bf16.xpose.msra.mxu0 0
        %7435 = vmatprep.subr.bf16.mxu0 0
        %7436 = vmatpush2.bf16.xpose.msra.mxu0 0
        %7437 = vmatprep.subr.bf16.mxu0 0
        %7438 = vmatpush2.bf16.xpose.msra.mxu0 0
        %7439 = vmatprep.subr.bf16.mxu0 0
        %7440 = vmatpush2.bf16.xpose.msra.mxu0 0
        %7441 = vmatprep.subr.bf16.mxu0 0
        %7442 = vmatpush2.bf16.xpose.msra.mxu0 0
        %7443 = vmatprep.subr.bf16.mxu0 0
        %7444 = vmatpush2.bf16.xpose.msra.mxu0 0
        %7445 = vmatprep.mubr.bf16.mxu0 %v1658
        %7446 = vmatmul.mubr.bf16.gmra.mxu0 %v1657
        %v7447 = vpop.f32.mrf.mxu0
        %v7448 = vadd.f32 %v7408, %v7447
        %v7449 = vpop.f32.mrf.mxu0
        %v7450 = vpop.f32.mrf.mxu0
        %v7451 = vpop.f32.mrf.mxu0
        %7452 = vdwg.mxu0
        %7453 = vmatprep.subr.bf16.mxu0 %v5884
        %7454 = vmatpush1.bf16.xpose.msra.mxu0 %v5883
        %7455 = vmatprep.subr.bf16.mxu0 %v5756
        %7456 = vmatpush1.bf16.xpose.msra.mxu0 %v5755
        %7457 = vmatprep.subr.bf16.mxu0 %v5628
        %7458 = vmatpush1.bf16.xpose.msra.mxu0 %v5627
        %7459 = vmatprep.subr.bf16.mxu0 %v5500
        %7460 = vmatpush1.bf16.xpose.msra.mxu0 %v5499
        %7461 = vmatprep.subr.bf16.mxu0 %v5372
        %7462 = vmatpush1.bf16.xpose.msra.mxu0 %v5371
        %7463 = vmatprep.subr.bf16.mxu0 %v5244
        %7464 = vmatpush1.bf16.xpose.msra.mxu0 %v5243
        %7465 = vmatprep.subr.bf16.mxu0 %v5116
        %7466 = vmatpush1.bf16.xpose.msra.mxu0 %v5115
        %7467 = vmatprep.subr.bf16.mxu0 %v4988
        %7468 = vmatpush1.bf16.xpose.msra.mxu0 %v4987
        %7469 = vmatprep.subr.bf16.mxu0 0
        %7470 = vmatpush2.bf16.xpose.msra.mxu0 0
        %7471 = vmatprep.subr.bf16.mxu0 0
        %7472 = vmatpush2.bf16.xpose.msra.mxu0 0
        %7473 = vmatprep.subr.bf16.mxu0 0
        %7474 = vmatpush2.bf16.xpose.msra.mxu0 0
        %7475 = vmatprep.subr.bf16.mxu0 0
        %7476 = vmatpush2.bf16.xpose.msra.mxu0 0
        %7477 = vmatprep.subr.bf16.mxu0 0
        %7478 = vmatpush2.bf16.xpose.msra.mxu0 0
        %7479 = vmatprep.subr.bf16.mxu0 0
        %7480 = vmatpush2.bf16.xpose.msra.mxu0 0
        %7481 = vmatprep.subr.bf16.mxu0 0
        %7482 = vmatpush2.bf16.xpose.msra.mxu0 0
        %7483 = vmatprep.subr.bf16.mxu0 0
        %7484 = vmatpush2.bf16.xpose.msra.mxu0 0
        %7485 = vmatprep.mubr.bf16.mxu0 %v1660
        %7486 = vmatmul.mubr.bf16.gmra.mxu0 %v1659
        %v7487 = vpop.f32.mrf.mxu0
        %v7488 = vadd.f32 %v7448, %v7487
        %v7489 = vpop.f32.mrf.mxu0
        %v7490 = vpop.f32.mrf.mxu0
        %v7491 = vpop.f32.mrf.mxu0
        %7492 = vdwg.mxu0
        %7493 = vmatprep.subr.bf16.mxu0 %v5886
        %7494 = vmatpush1.bf16.xpose.msra.mxu0 %v5885
        %7495 = vmatprep.subr.bf16.mxu0 %v5758
        %7496 = vmatpush1.bf16.xpose.msra.mxu0 %v5757
        %7497 = vmatprep.subr.bf16.mxu0 %v5630
        %7498 = vmatpush1.bf16.xpose.msra.mxu0 %v5629
        %7499 = vmatprep.subr.bf16.mxu0 %v5502
        %7500 = vmatpush1.bf16.xpose.msra.mxu0 %v5501
        %7501 = vmatprep.subr.bf16.mxu0 %v5374
        %7502 = vmatpush1.bf16.xpose.msra.mxu0 %v5373
        %7503 = vmatprep.subr.bf16.mxu0 %v5246
        %7504 = vmatpush1.bf16.xpose.msra.mxu0 %v5245
        %7505 = vmatprep.subr.bf16.mxu0 %v5118
        %7506 = vmatpush1.bf16.xpose.msra.mxu0 %v5117
        %7507 = vmatprep.subr.bf16.mxu0 %v4990
        %7508 = vmatpush1.bf16.xpose.msra.mxu0 %v4989
        %7509 = vmatprep.subr.bf16.mxu0 0
        %7510 = vmatpush2.bf16.xpose.msra.mxu0 0
        %7511 = vmatprep.subr.bf16.mxu0 0
        %7512 = vmatpush2.bf16.xpose.msra.mxu0 0
        %7513 = vmatprep.subr.bf16.mxu0 0
        %7514 = vmatpush2.bf16.xpose.msra.mxu0 0
        %7515 = vmatprep.subr.bf16.mxu0 0
        %7516 = vmatpush2.bf16.xpose.msra.mxu0 0
        %7517 = vmatprep.subr.bf16.mxu0 0
        %7518 = vmatpush2.bf16.xpose.msra.mxu0 0
        %7519 = vmatprep.subr.bf16.mxu0 0
        %7520 = vmatpush2.bf16.xpose.msra.mxu0 0
        %7521 = vmatprep.subr.bf16.mxu0 0
        %7522 = vmatpush2.bf16.xpose.msra.mxu0 0
        %7523 = vmatprep.subr.bf16.mxu0 0
        %7524 = vmatpush2.bf16.xpose.msra.mxu0 0
        %7525 = vmatprep.mubr.bf16.mxu0 %v1662
        %7526 = vmatmul.mubr.bf16.gmra.mxu0 %v1661
        %v7527 = vpop.f32.mrf.mxu0
        %v7528 = vadd.f32 %v7488, %v7527
        %v7529 = vpop.f32.mrf.mxu0
        %v7530 = vpop.f32.mrf.mxu0
        %v7531 = vpop.f32.mrf.mxu0
        %7532 = vdwg.mxu0
        %7533 = vmatprep.subr.bf16.mxu0 %v5888
        %7534 = vmatpush1.bf16.xpose.msra.mxu0 %v5887
        %7535 = vmatprep.subr.bf16.mxu0 %v5760
        %7536 = vmatpush1.bf16.xpose.msra.mxu0 %v5759
        %7537 = vmatprep.subr.bf16.mxu0 %v5632
        %7538 = vmatpush1.bf16.xpose.msra.mxu0 %v5631
        %7539 = vmatprep.subr.bf16.mxu0 %v5504
        %7540 = vmatpush1.bf16.xpose.msra.mxu0 %v5503
        %7541 = vmatprep.subr.bf16.mxu0 %v5376
        %7542 = vmatpush1.bf16.xpose.msra.mxu0 %v5375
        %7543 = vmatprep.subr.bf16.mxu0 %v5248
        %7544 = vmatpush1.bf16.xpose.msra.mxu0 %v5247
        %7545 = vmatprep.subr.bf16.mxu0 %v5120
        %7546 = vmatpush1.bf16.xpose.msra.mxu0 %v5119
        %7547 = vmatprep.subr.bf16.mxu0 %v4992
        %7548 = vmatpush1.bf16.xpose.msra.mxu0 %v4991
        %7549 = vmatprep.subr.bf16.mxu0 0
        %7550 = vmatpush2.bf16.xpose.msra.mxu0 0
        %7551 = vmatprep.subr.bf16.mxu0 0
        %7552 = vmatpush2.bf16.xpose.msra.mxu0 0
        %7553 = vmatprep.subr.bf16.mxu0 0
        %7554 = vmatpush2.bf16.xpose.msra.mxu0 0
        %7555 = vmatprep.subr.bf16.mxu0 0
        %7556 = vmatpush2.bf16.xpose.msra.mxu0 0
        %7557 = vmatprep.subr.bf16.mxu0 0
        %7558 = vmatpush2.bf16.xpose.msra.mxu0 0
        %7559 = vmatprep.subr.bf16.mxu0 0
        %7560 = vmatpush2.bf16.xpose.msra.mxu0 0
        %7561 = vmatprep.subr.bf16.mxu0 0
        %7562 = vmatpush2.bf16.xpose.msra.mxu0 0
        %7563 = vmatprep.subr.bf16.mxu0 0
        %7564 = vmatpush2.bf16.xpose.msra.mxu0 0
        %7565 = vmatprep.mubr.bf16.mxu0 %v1664
        %7566 = vmatmul.mubr.bf16.gmra.mxu0 %v1663
        %v7567 = vpop.f32.mrf.mxu0
        %v7568 = vadd.f32 %v7528, %v7567
        %v7569 = vpop.f32.mrf.mxu0
        %v7570 = vpop.f32.mrf.mxu0
        %v7571 = vpop.f32.mrf.mxu0
        %7572 = vdwg.mxu0
        %7573 = vmatprep.subr.bf16.mxu0 %v5890
        %7574 = vmatpush1.bf16.xpose.msra.mxu0 %v5889
        %7575 = vmatprep.subr.bf16.mxu0 %v5762
        %7576 = vmatpush1.bf16.xpose.msra.mxu0 %v5761
        %7577 = vmatprep.subr.bf16.mxu0 %v5634
        %7578 = vmatpush1.bf16.xpose.msra.mxu0 %v5633
        %7579 = vmatprep.subr.bf16.mxu0 %v5506
        %7580 = vmatpush1.bf16.xpose.msra.mxu0 %v5505
        %7581 = vmatprep.subr.bf16.mxu0 %v5378
        %7582 = vmatpush1.bf16.xpose.msra.mxu0 %v5377
        %7583 = vmatprep.subr.bf16.mxu0 %v5250
        %7584 = vmatpush1.bf16.xpose.msra.mxu0 %v5249
        %7585 = vmatprep.subr.bf16.mxu0 %v5122
        %7586 = vmatpush1.bf16.xpose.msra.mxu0 %v5121
        %7587 = vmatprep.subr.bf16.mxu0 %v4994
        %7588 = vmatpush1.bf16.xpose.msra.mxu0 %v4993
        %7589 = vmatprep.subr.bf16.mxu0 0
        %7590 = vmatpush2.bf16.xpose.msra.mxu0 0
        %7591 = vmatprep.subr.bf16.mxu0 0
        %7592 = vmatpush2.bf16.xpose.msra.mxu0 0
        %7593 = vmatprep.subr.bf16.mxu0 0
        %7594 = vmatpush2.bf16.xpose.msra.mxu0 0
        %7595 = vmatprep.subr.bf16.mxu0 0
        %7596 = vmatpush2.bf16.xpose.msra.mxu0 0
        %7597 = vmatprep.subr.bf16.mxu0 0
        %7598 = vmatpush2.bf16.xpose.msra.mxu0 0
        %7599 = vmatprep.subr.bf16.mxu0 0
        %7600 = vmatpush2.bf16.xpose.msra.mxu0 0
        %7601 = vmatprep.subr.bf16.mxu0 0
        %7602 = vmatpush2.bf16.xpose.msra.mxu0 0
        %7603 = vmatprep.subr.bf16.mxu0 0
        %7604 = vmatpush2.bf16.xpose.msra.mxu0 0
        %7605 = vmatprep.mubr.bf16.mxu0 %v1666
        %7606 = vmatmul.mubr.bf16.gmra.mxu0 %v1665
        %v7607 = vpop.f32.mrf.mxu0
        %v7608 = vadd.f32 %v7568, %v7607
        %v7609 = vpop.f32.mrf.mxu0
        %v7610 = vpop.f32.mrf.mxu0
        %v7611 = vpop.f32.mrf.mxu0
        %7612 = vdwg.mxu0
        %7613 = vmatprep.subr.bf16.mxu0 %v5892
        %7614 = vmatpush1.bf16.xpose.msra.mxu0 %v5891
        %7615 = vmatprep.subr.bf16.mxu0 %v5764
        %7616 = vmatpush1.bf16.xpose.msra.mxu0 %v5763
        %7617 = vmatprep.subr.bf16.mxu0 %v5636
        %7618 = vmatpush1.bf16.xpose.msra.mxu0 %v5635
        %7619 = vmatprep.subr.bf16.mxu0 %v5508
        %7620 = vmatpush1.bf16.xpose.msra.mxu0 %v5507
        %7621 = vmatprep.subr.bf16.mxu0 %v5380
        %7622 = vmatpush1.bf16.xpose.msra.mxu0 %v5379
        %7623 = vmatprep.subr.bf16.mxu0 %v5252
        %7624 = vmatpush1.bf16.xpose.msra.mxu0 %v5251
        %7625 = vmatprep.subr.bf16.mxu0 %v5124
        %7626 = vmatpush1.bf16.xpose.msra.mxu0 %v5123
        %7627 = vmatprep.subr.bf16.mxu0 %v4996
        %7628 = vmatpush1.bf16.xpose.msra.mxu0 %v4995
        %7629 = vmatprep.subr.bf16.mxu0 0
        %7630 = vmatpush2.bf16.xpose.msra.mxu0 0
        %7631 = vmatprep.subr.bf16.mxu0 0
        %7632 = vmatpush2.bf16.xpose.msra.mxu0 0
        %7633 = vmatprep.subr.bf16.mxu0 0
        %7634 = vmatpush2.bf16.xpose.msra.mxu0 0
        %7635 = vmatprep.subr.bf16.mxu0 0
        %7636 = vmatpush2.bf16.xpose.msra.mxu0 0
        %7637 = vmatprep.subr.bf16.mxu0 0
        %7638 = vmatpush2.bf16.xpose.msra.mxu0 0
        %7639 = vmatprep.subr.bf16.mxu0 0
        %7640 = vmatpush2.bf16.xpose.msra.mxu0 0
        %7641 = vmatprep.subr.bf16.mxu0 0
        %7642 = vmatpush2.bf16.xpose.msra.mxu0 0
        %7643 = vmatprep.subr.bf16.mxu0 0
        %7644 = vmatpush2.bf16.xpose.msra.mxu0 0
        %7645 = vmatprep.mubr.bf16.mxu0 %v1668
        %7646 = vmatmul.mubr.bf16.gmra.mxu0 %v1667
        %v7647 = vpop.f32.mrf.mxu0
        %v7648 = vadd.f32 %v7608, %v7647
        %v7649 = vpop.f32.mrf.mxu0
        %v7650 = vpop.f32.mrf.mxu0
        %v7651 = vpop.f32.mrf.mxu0
        %7652 = vdwg.mxu0
        %7653 = vmatprep.subr.bf16.mxu0 %v5894
        %7654 = vmatpush1.bf16.xpose.msra.mxu0 %v5893
        %7655 = vmatprep.subr.bf16.mxu0 %v5766
        %7656 = vmatpush1.bf16.xpose.msra.mxu0 %v5765
        %7657 = vmatprep.subr.bf16.mxu0 %v5638
        %7658 = vmatpush1.bf16.xpose.msra.mxu0 %v5637
        %7659 = vmatprep.subr.bf16.mxu0 %v5510
        %7660 = vmatpush1.bf16.xpose.msra.mxu0 %v5509
        %7661 = vmatprep.subr.bf16.mxu0 %v5382
        %7662 = vmatpush1.bf16.xpose.msra.mxu0 %v5381
        %7663 = vmatprep.subr.bf16.mxu0 %v5254
        %7664 = vmatpush1.bf16.xpose.msra.mxu0 %v5253
        %7665 = vmatprep.subr.bf16.mxu0 %v5126
        %7666 = vmatpush1.bf16.xpose.msra.mxu0 %v5125
        %7667 = vmatprep.subr.bf16.mxu0 %v4998
        %7668 = vmatpush1.bf16.xpose.msra.mxu0 %v4997
        %7669 = vmatprep.subr.bf16.mxu0 0
        %7670 = vmatpush2.bf16.xpose.msra.mxu0 0
        %7671 = vmatprep.subr.bf16.mxu0 0
        %7672 = vmatpush2.bf16.xpose.msra.mxu0 0
        %7673 = vmatprep.subr.bf16.mxu0 0
        %7674 = vmatpush2.bf16.xpose.msra.mxu0 0
        %7675 = vmatprep.subr.bf16.mxu0 0
        %7676 = vmatpush2.bf16.xpose.msra.mxu0 0
        %7677 = vmatprep.subr.bf16.mxu0 0
        %7678 = vmatpush2.bf16.xpose.msra.mxu0 0
        %7679 = vmatprep.subr.bf16.mxu0 0
        %7680 = vmatpush2.bf16.xpose.msra.mxu0 0
        %7681 = vmatprep.subr.bf16.mxu0 0
        %7682 = vmatpush2.bf16.xpose.msra.mxu0 0
        %7683 = vmatprep.subr.bf16.mxu0 0
        %7684 = vmatpush2.bf16.xpose.msra.mxu0 0
        %7685 = vmatprep.mubr.bf16.mxu0 %v1670
        %7686 = vmatmul.mubr.bf16.gmra.mxu0 %v1669
        %v7687 = vpop.f32.mrf.mxu0
        %v7688 = vadd.f32 %v7648, %v7687
        %v7689 = vpop.f32.mrf.mxu0
        %v7690 = vpop.f32.mrf.mxu0
        %v7691 = vpop.f32.mrf.mxu0
        %7692 = vdwg.mxu0
        %7693 = vmatprep.subr.bf16.mxu0 %v5896
        %7694 = vmatpush1.bf16.xpose.msra.mxu0 %v5895
        %7695 = vmatprep.subr.bf16.mxu0 %v5768
        %7696 = vmatpush1.bf16.xpose.msra.mxu0 %v5767
        %7697 = vmatprep.subr.bf16.mxu0 %v5640
        %7698 = vmatpush1.bf16.xpose.msra.mxu0 %v5639
        %7699 = vmatprep.subr.bf16.mxu0 %v5512
        %7700 = vmatpush1.bf16.xpose.msra.mxu0 %v5511
        %7701 = vmatprep.subr.bf16.mxu0 %v5384
        %7702 = vmatpush1.bf16.xpose.msra.mxu0 %v5383
        %7703 = vmatprep.subr.bf16.mxu0 %v5256
        %7704 = vmatpush1.bf16.xpose.msra.mxu0 %v5255
        %7705 = vmatprep.subr.bf16.mxu0 %v5128
        %7706 = vmatpush1.bf16.xpose.msra.mxu0 %v5127
        %7707 = vmatprep.subr.bf16.mxu0 %v5000
        %7708 = vmatpush1.bf16.xpose.msra.mxu0 %v4999
        %7709 = vmatprep.subr.bf16.mxu0 0
        %7710 = vmatpush2.bf16.xpose.msra.mxu0 0
        %7711 = vmatprep.subr.bf16.mxu0 0
        %7712 = vmatpush2.bf16.xpose.msra.mxu0 0
        %7713 = vmatprep.subr.bf16.mxu0 0
        %7714 = vmatpush2.bf16.xpose.msra.mxu0 0
        %7715 = vmatprep.subr.bf16.mxu0 0
        %7716 = vmatpush2.bf16.xpose.msra.mxu0 0
        %7717 = vmatprep.subr.bf16.mxu0 0
        %7718 = vmatpush2.bf16.xpose.msra.mxu0 0
        %7719 = vmatprep.subr.bf16.mxu0 0
        %7720 = vmatpush2.bf16.xpose.msra.mxu0 0
        %7721 = vmatprep.subr.bf16.mxu0 0
        %7722 = vmatpush2.bf16.xpose.msra.mxu0 0
        %7723 = vmatprep.subr.bf16.mxu0 0
        %7724 = vmatpush2.bf16.xpose.msra.mxu0 0
        %7725 = vmatprep.mubr.bf16.mxu0 %v1672
        %7726 = vmatmul.mubr.bf16.gmra.mxu0 %v1671
        %v7727 = vpop.f32.mrf.mxu0
        %v7728 = vadd.f32 %v7688, %v7727
        %v7729 = vpop.f32.mrf.mxu0
        %v7730 = vpop.f32.mrf.mxu0
        %v7731 = vpop.f32.mrf.mxu0
        %7732 = vdwg.mxu0
        %7733 = vmatprep.subr.bf16.mxu0 %v5898
        %7734 = vmatpush1.bf16.xpose.msra.mxu0 %v5897
        %7735 = vmatprep.subr.bf16.mxu0 %v5770
        %7736 = vmatpush1.bf16.xpose.msra.mxu0 %v5769
        %7737 = vmatprep.subr.bf16.mxu0 %v5642
        %7738 = vmatpush1.bf16.xpose.msra.mxu0 %v5641
        %7739 = vmatprep.subr.bf16.mxu0 %v5514
        %7740 = vmatpush1.bf16.xpose.msra.mxu0 %v5513
        %7741 = vmatprep.subr.bf16.mxu0 %v5386
        %7742 = vmatpush1.bf16.xpose.msra.mxu0 %v5385
        %7743 = vmatprep.subr.bf16.mxu0 %v5258
        %7744 = vmatpush1.bf16.xpose.msra.mxu0 %v5257
        %7745 = vmatprep.subr.bf16.mxu0 %v5130
        %7746 = vmatpush1.bf16.xpose.msra.mxu0 %v5129
        %7747 = vmatprep.subr.bf16.mxu0 %v5002
        %7748 = vmatpush1.bf16.xpose.msra.mxu0 %v5001
        %7749 = vmatprep.subr.bf16.mxu0 0
        %7750 = vmatpush2.bf16.xpose.msra.mxu0 0
        %7751 = vmatprep.subr.bf16.mxu0 0
        %7752 = vmatpush2.bf16.xpose.msra.mxu0 0
        %7753 = vmatprep.subr.bf16.mxu0 0
        %7754 = vmatpush2.bf16.xpose.msra.mxu0 0
        %7755 = vmatprep.subr.bf16.mxu0 0
        %7756 = vmatpush2.bf16.xpose.msra.mxu0 0
        %7757 = vmatprep.subr.bf16.mxu0 0
        %7758 = vmatpush2.bf16.xpose.msra.mxu0 0
        %7759 = vmatprep.subr.bf16.mxu0 0
        %7760 = vmatpush2.bf16.xpose.msra.mxu0 0
        %7761 = vmatprep.subr.bf16.mxu0 0
        %7762 = vmatpush2.bf16.xpose.msra.mxu0 0
        %7763 = vmatprep.subr.bf16.mxu0 0
        %7764 = vmatpush2.bf16.xpose.msra.mxu0 0
        %7765 = vmatprep.mubr.bf16.mxu0 %v1674
        %7766 = vmatmul.mubr.bf16.gmra.mxu0 %v1673
        %v7767 = vpop.f32.mrf.mxu0
        %v7768 = vadd.f32 %v7728, %v7767
        %v7769 = vpop.f32.mrf.mxu0
        %v7770 = vpop.f32.mrf.mxu0
        %v7771 = vpop.f32.mrf.mxu0
        %7772 = vdwg.mxu0
        %7773 = vmatprep.subr.bf16.mxu0 %v5900
        %7774 = vmatpush1.bf16.xpose.msra.mxu0 %v5899
        %7775 = vmatprep.subr.bf16.mxu0 %v5772
        %7776 = vmatpush1.bf16.xpose.msra.mxu0 %v5771
        %7777 = vmatprep.subr.bf16.mxu0 %v5644
        %7778 = vmatpush1.bf16.xpose.msra.mxu0 %v5643
        %7779 = vmatprep.subr.bf16.mxu0 %v5516
        %7780 = vmatpush1.bf16.xpose.msra.mxu0 %v5515
        %7781 = vmatprep.subr.bf16.mxu0 %v5388
        %7782 = vmatpush1.bf16.xpose.msra.mxu0 %v5387
        %7783 = vmatprep.subr.bf16.mxu0 %v5260
        %7784 = vmatpush1.bf16.xpose.msra.mxu0 %v5259
        %7785 = vmatprep.subr.bf16.mxu0 %v5132
        %7786 = vmatpush1.bf16.xpose.msra.mxu0 %v5131
        %7787 = vmatprep.subr.bf16.mxu0 %v5004
        %7788 = vmatpush1.bf16.xpose.msra.mxu0 %v5003
        %7789 = vmatprep.subr.bf16.mxu0 0
        %7790 = vmatpush2.bf16.xpose.msra.mxu0 0
        %7791 = vmatprep.subr.bf16.mxu0 0
        %7792 = vmatpush2.bf16.xpose.msra.mxu0 0
        %7793 = vmatprep.subr.bf16.mxu0 0
        %7794 = vmatpush2.bf16.xpose.msra.mxu0 0
        %7795 = vmatprep.subr.bf16.mxu0 0
        %7796 = vmatpush2.bf16.xpose.msra.mxu0 0
        %7797 = vmatprep.subr.bf16.mxu0 0
        %7798 = vmatpush2.bf16.xpose.msra.mxu0 0
        %7799 = vmatprep.subr.bf16.mxu0 0
        %7800 = vmatpush2.bf16.xpose.msra.mxu0 0
        %7801 = vmatprep.subr.bf16.mxu0 0
        %7802 = vmatpush2.bf16.xpose.msra.mxu0 0
        %7803 = vmatprep.subr.bf16.mxu0 0
        %7804 = vmatpush2.bf16.xpose.msra.mxu0 0
        %7805 = vmatprep.mubr.bf16.mxu0 %v1676
        %7806 = vmatmul.mubr.bf16.gmra.mxu0 %v1675
        %v7807 = vpop.f32.mrf.mxu0
        %v7808 = vadd.f32 %v7768, %v7807
        %v7809 = vpop.f32.mrf.mxu0
        %v7810 = vpop.f32.mrf.mxu0
        %v7811 = vpop.f32.mrf.mxu0
        %7812 = vdwg.mxu0
        %7813 = vmatprep.subr.bf16.mxu0 %v5902
        %7814 = vmatpush1.bf16.xpose.msra.mxu0 %v5901
        %7815 = vmatprep.subr.bf16.mxu0 %v5774
        %7816 = vmatpush1.bf16.xpose.msra.mxu0 %v5773
        %7817 = vmatprep.subr.bf16.mxu0 %v5646
        %7818 = vmatpush1.bf16.xpose.msra.mxu0 %v5645
        %7819 = vmatprep.subr.bf16.mxu0 %v5518
        %7820 = vmatpush1.bf16.xpose.msra.mxu0 %v5517
        %7821 = vmatprep.subr.bf16.mxu0 %v5390
        %7822 = vmatpush1.bf16.xpose.msra.mxu0 %v5389
        %7823 = vmatprep.subr.bf16.mxu0 %v5262
        %7824 = vmatpush1.bf16.xpose.msra.mxu0 %v5261
        %7825 = vmatprep.subr.bf16.mxu0 %v5134
        %7826 = vmatpush1.bf16.xpose.msra.mxu0 %v5133
        %7827 = vmatprep.subr.bf16.mxu0 %v5006
        %7828 = vmatpush1.bf16.xpose.msra.mxu0 %v5005
        %7829 = vmatprep.subr.bf16.mxu0 0
        %7830 = vmatpush2.bf16.xpose.msra.mxu0 0
        %7831 = vmatprep.subr.bf16.mxu0 0
        %7832 = vmatpush2.bf16.xpose.msra.mxu0 0
        %7833 = vmatprep.subr.bf16.mxu0 0
        %7834 = vmatpush2.bf16.xpose.msra.mxu0 0
        %7835 = vmatprep.subr.bf16.mxu0 0
        %7836 = vmatpush2.bf16.xpose.msra.mxu0 0
        %7837 = vmatprep.subr.bf16.mxu0 0
        %7838 = vmatpush2.bf16.xpose.msra.mxu0 0
        %7839 = vmatprep.subr.bf16.mxu0 0
        %7840 = vmatpush2.bf16.xpose.msra.mxu0 0
        %7841 = vmatprep.subr.bf16.mxu0 0
        %7842 = vmatpush2.bf16.xpose.msra.mxu0 0
        %7843 = vmatprep.subr.bf16.mxu0 0
        %7844 = vmatpush2.bf16.xpose.msra.mxu0 0
        %7845 = vmatprep.mubr.bf16.mxu0 %v1678
        %7846 = vmatmul.mubr.bf16.gmra.mxu0 %v1677
        %v7847 = vpop.f32.mrf.mxu0
        %v7848 = vadd.f32 %v7808, %v7847
        %v7849 = vpop.f32.mrf.mxu0
        %v7850 = vpop.f32.mrf.mxu0
        %v7851 = vpop.f32.mrf.mxu0
        %7852 = vdwg.mxu0
        %7853 = vmatprep.subr.bf16.mxu0 %v5904
        %7854 = vmatpush1.bf16.xpose.msra.mxu0 %v5903
        %7855 = vmatprep.subr.bf16.mxu0 %v5776
        %7856 = vmatpush1.bf16.xpose.msra.mxu0 %v5775
        %7857 = vmatprep.subr.bf16.mxu0 %v5648
        %7858 = vmatpush1.bf16.xpose.msra.mxu0 %v5647
        %7859 = vmatprep.subr.bf16.mxu0 %v5520
        %7860 = vmatpush1.bf16.xpose.msra.mxu0 %v5519
        %7861 = vmatprep.subr.bf16.mxu0 %v5392
        %7862 = vmatpush1.bf16.xpose.msra.mxu0 %v5391
        %7863 = vmatprep.subr.bf16.mxu0 %v5264
        %7864 = vmatpush1.bf16.xpose.msra.mxu0 %v5263
        %7865 = vmatprep.subr.bf16.mxu0 %v5136
        %7866 = vmatpush1.bf16.xpose.msra.mxu0 %v5135
        %7867 = vmatprep.subr.bf16.mxu0 %v5008
        %7868 = vmatpush1.bf16.xpose.msra.mxu0 %v5007
        %7869 = vmatprep.subr.bf16.mxu0 0
        %7870 = vmatpush2.bf16.xpose.msra.mxu0 0
        %7871 = vmatprep.subr.bf16.mxu0 0
        %7872 = vmatpush2.bf16.xpose.msra.mxu0 0
        %7873 = vmatprep.subr.bf16.mxu0 0
        %7874 = vmatpush2.bf16.xpose.msra.mxu0 0
        %7875 = vmatprep.subr.bf16.mxu0 0
        %7876 = vmatpush2.bf16.xpose.msra.mxu0 0
        %7877 = vmatprep.subr.bf16.mxu0 0
        %7878 = vmatpush2.bf16.xpose.msra.mxu0 0
        %7879 = vmatprep.subr.bf16.mxu0 0
        %7880 = vmatpush2.bf16.xpose.msra.mxu0 0
        %7881 = vmatprep.subr.bf16.mxu0 0
        %7882 = vmatpush2.bf16.xpose.msra.mxu0 0
        %7883 = vmatprep.subr.bf16.mxu0 0
        %7884 = vmatpush2.bf16.xpose.msra.mxu0 0
        %7885 = vmatprep.mubr.bf16.mxu0 %v1680
        %7886 = vmatmul.mubr.bf16.gmra.mxu0 %v1679
        %v7887 = vpop.f32.mrf.mxu0
        %v7888 = vadd.f32 %v7848, %v7887
        %v7889 = vpop.f32.mrf.mxu0
        %v7890 = vpop.f32.mrf.mxu0
        %v7891 = vpop.f32.mrf.mxu0
        %7892 = vdwg.mxu0
        %7893 = vmatprep.subr.bf16.mxu0 %v5906
        %7894 = vmatpush1.bf16.xpose.msra.mxu0 %v5905
        %7895 = vmatprep.subr.bf16.mxu0 %v5778
        %7896 = vmatpush1.bf16.xpose.msra.mxu0 %v5777
        %7897 = vmatprep.subr.bf16.mxu0 %v5650
        %7898 = vmatpush1.bf16.xpose.msra.mxu0 %v5649
        %7899 = vmatprep.subr.bf16.mxu0 %v5522
        %7900 = vmatpush1.bf16.xpose.msra.mxu0 %v5521
        %7901 = vmatprep.subr.bf16.mxu0 %v5394
        %7902 = vmatpush1.bf16.xpose.msra.mxu0 %v5393
        %7903 = vmatprep.subr.bf16.mxu0 %v5266
        %7904 = vmatpush1.bf16.xpose.msra.mxu0 %v5265
        %7905 = vmatprep.subr.bf16.mxu0 %v5138
        %7906 = vmatpush1.bf16.xpose.msra.mxu0 %v5137
        %7907 = vmatprep.subr.bf16.mxu0 %v5010
        %7908 = vmatpush1.bf16.xpose.msra.mxu0 %v5009
        %7909 = vmatprep.subr.bf16.mxu0 0
        %7910 = vmatpush2.bf16.xpose.msra.mxu0 0
        %7911 = vmatprep.subr.bf16.mxu0 0
        %7912 = vmatpush2.bf16.xpose.msra.mxu0 0
        %7913 = vmatprep.subr.bf16.mxu0 0
        %7914 = vmatpush2.bf16.xpose.msra.mxu0 0
        %7915 = vmatprep.subr.bf16.mxu0 0
        %7916 = vmatpush2.bf16.xpose.msra.mxu0 0
        %7917 = vmatprep.subr.bf16.mxu0 0
        %7918 = vmatpush2.bf16.xpose.msra.mxu0 0
        %7919 = vmatprep.subr.bf16.mxu0 0
        %7920 = vmatpush2.bf16.xpose.msra.mxu0 0
        %7921 = vmatprep.subr.bf16.mxu0 0
        %7922 = vmatpush2.bf16.xpose.msra.mxu0 0
        %7923 = vmatprep.subr.bf16.mxu0 0
        %7924 = vmatpush2.bf16.xpose.msra.mxu0 0
        %7925 = vmatprep.mubr.bf16.mxu0 %v1682
        %7926 = vmatmul.mubr.bf16.gmra.mxu0 %v1681
        %v7927 = vpop.f32.mrf.mxu0
        %v7928 = vadd.f32 %v7888, %v7927
        %v7929 = vpop.f32.mrf.mxu0
        %v7930 = vpop.f32.mrf.mxu0
        %v7931 = vpop.f32.mrf.mxu0
        %7932 = vdwg.mxu0
        %7933 = vmatprep.subr.bf16.mxu0 %v5908
        %7934 = vmatpush1.bf16.xpose.msra.mxu0 %v5907
        %7935 = vmatprep.subr.bf16.mxu0 %v5780
        %7936 = vmatpush1.bf16.xpose.msra.mxu0 %v5779
        %7937 = vmatprep.subr.bf16.mxu0 %v5652
        %7938 = vmatpush1.bf16.xpose.msra.mxu0 %v5651
        %7939 = vmatprep.subr.bf16.mxu0 %v5524
        %7940 = vmatpush1.bf16.xpose.msra.mxu0 %v5523
        %7941 = vmatprep.subr.bf16.mxu0 %v5396
        %7942 = vmatpush1.bf16.xpose.msra.mxu0 %v5395
        %7943 = vmatprep.subr.bf16.mxu0 %v5268
        %7944 = vmatpush1.bf16.xpose.msra.mxu0 %v5267
        %7945 = vmatprep.subr.bf16.mxu0 %v5140
        %7946 = vmatpush1.bf16.xpose.msra.mxu0 %v5139
        %7947 = vmatprep.subr.bf16.mxu0 %v5012
        %7948 = vmatpush1.bf16.xpose.msra.mxu0 %v5011
        %7949 = vmatprep.subr.bf16.mxu0 0
        %7950 = vmatpush2.bf16.xpose.msra.mxu0 0
        %7951 = vmatprep.subr.bf16.mxu0 0
        %7952 = vmatpush2.bf16.xpose.msra.mxu0 0
        %7953 = vmatprep.subr.bf16.mxu0 0
        %7954 = vmatpush2.bf16.xpose.msra.mxu0 0
        %7955 = vmatprep.subr.bf16.mxu0 0
        %7956 = vmatpush2.bf16.xpose.msra.mxu0 0
        %7957 = vmatprep.subr.bf16.mxu0 0
        %7958 = vmatpush2.bf16.xpose.msra.mxu0 0
        %7959 = vmatprep.subr.bf16.mxu0 0
        %7960 = vmatpush2.bf16.xpose.msra.mxu0 0
        %7961 = vmatprep.subr.bf16.mxu0 0
        %7962 = vmatpush2.bf16.xpose.msra.mxu0 0
        %7963 = vmatprep.subr.bf16.mxu0 0
        %7964 = vmatpush2.bf16.xpose.msra.mxu0 0
        %7965 = vmatprep.mubr.bf16.mxu0 %v1684
        %7966 = vmatmul.mubr.bf16.gmra.mxu0 %v1683
        %v7967 = vpop.f32.mrf.mxu0
        %v7968 = vadd.f32 %v7928, %v7967
        %v7969 = vpop.f32.mrf.mxu0
        %v7970 = vpop.f32.mrf.mxu0
        %v7971 = vpop.f32.mrf.mxu0
        %7972 = vdwg.mxu0
        %7973 = vmatprep.subr.bf16.mxu0 %v5910
        %7974 = vmatpush1.bf16.xpose.msra.mxu0 %v5909
        %7975 = vmatprep.subr.bf16.mxu0 %v5782
        %7976 = vmatpush1.bf16.xpose.msra.mxu0 %v5781
        %7977 = vmatprep.subr.bf16.mxu0 %v5654
        %7978 = vmatpush1.bf16.xpose.msra.mxu0 %v5653
        %7979 = vmatprep.subr.bf16.mxu0 %v5526
        %7980 = vmatpush1.bf16.xpose.msra.mxu0 %v5525
        %7981 = vmatprep.subr.bf16.mxu0 %v5398
        %7982 = vmatpush1.bf16.xpose.msra.mxu0 %v5397
        %7983 = vmatprep.subr.bf16.mxu0 %v5270
        %7984 = vmatpush1.bf16.xpose.msra.mxu0 %v5269
        %7985 = vmatprep.subr.bf16.mxu0 %v5142
        %7986 = vmatpush1.bf16.xpose.msra.mxu0 %v5141
        %7987 = vmatprep.subr.bf16.mxu0 %v5014
        %7988 = vmatpush1.bf16.xpose.msra.mxu0 %v5013
        %7989 = vmatprep.subr.bf16.mxu0 0
        %7990 = vmatpush2.bf16.xpose.msra.mxu0 0
        %7991 = vmatprep.subr.bf16.mxu0 0
        %7992 = vmatpush2.bf16.xpose.msra.mxu0 0
        %7993 = vmatprep.subr.bf16.mxu0 0
        %7994 = vmatpush2.bf16.xpose.msra.mxu0 0
        %7995 = vmatprep.subr.bf16.mxu0 0
        %7996 = vmatpush2.bf16.xpose.msra.mxu0 0
        %7997 = vmatprep.subr.bf16.mxu0 0
        %7998 = vmatpush2.bf16.xpose.msra.mxu0 0
        %7999 = vmatprep.subr.bf16.mxu0 0
        %8000 = vmatpush2.bf16.xpose.msra.mxu0 0
        %8001 = vmatprep.subr.bf16.mxu0 0
        %8002 = vmatpush2.bf16.xpose.msra.mxu0 0
        %8003 = vmatprep.subr.bf16.mxu0 0
        %8004 = vmatpush2.bf16.xpose.msra.mxu0 0
        %8005 = vmatprep.mubr.bf16.mxu0 %v1686
        %8006 = vmatmul.mubr.bf16.gmra.mxu0 %v1685
        %v8007 = vpop.f32.mrf.mxu0
        %v8008 = vadd.f32 %v7968, %v8007
        %v8009 = vpop.f32.mrf.mxu0
        %v8010 = vpop.f32.mrf.mxu0
        %v8011 = vpop.f32.mrf.mxu0
        %8012 = vdwg.mxu0
        %8013 = vmatprep.subr.bf16.mxu0 %v5912
        %8014 = vmatpush1.bf16.xpose.msra.mxu0 %v5911
        %8015 = vmatprep.subr.bf16.mxu0 %v5784
        %8016 = vmatpush1.bf16.xpose.msra.mxu0 %v5783
        %8017 = vmatprep.subr.bf16.mxu0 %v5656
        %8018 = vmatpush1.bf16.xpose.msra.mxu0 %v5655
        %8019 = vmatprep.subr.bf16.mxu0 %v5528
        %8020 = vmatpush1.bf16.xpose.msra.mxu0 %v5527
        %8021 = vmatprep.subr.bf16.mxu0 %v5400
        %8022 = vmatpush1.bf16.xpose.msra.mxu0 %v5399
        %8023 = vmatprep.subr.bf16.mxu0 %v5272
        %8024 = vmatpush1.bf16.xpose.msra.mxu0 %v5271
        %8025 = vmatprep.subr.bf16.mxu0 %v5144
        %8026 = vmatpush1.bf16.xpose.msra.mxu0 %v5143
        %8027 = vmatprep.subr.bf16.mxu0 %v5016
        %8028 = vmatpush1.bf16.xpose.msra.mxu0 %v5015
        %8029 = vmatprep.subr.bf16.mxu0 0
        %8030 = vmatpush2.bf16.xpose.msra.mxu0 0
        %8031 = vmatprep.subr.bf16.mxu0 0
        %8032 = vmatpush2.bf16.xpose.msra.mxu0 0
        %8033 = vmatprep.subr.bf16.mxu0 0
        %8034 = vmatpush2.bf16.xpose.msra.mxu0 0
        %8035 = vmatprep.subr.bf16.mxu0 0
        %8036 = vmatpush2.bf16.xpose.msra.mxu0 0
        %8037 = vmatprep.subr.bf16.mxu0 0
        %8038 = vmatpush2.bf16.xpose.msra.mxu0 0
        %8039 = vmatprep.subr.bf16.mxu0 0
        %8040 = vmatpush2.bf16.xpose.msra.mxu0 0
        %8041 = vmatprep.subr.bf16.mxu0 0
        %8042 = vmatpush2.bf16.xpose.msra.mxu0 0
        %8043 = vmatprep.subr.bf16.mxu0 0
        %8044 = vmatpush2.bf16.xpose.msra.mxu0 0
        %8045 = vmatprep.mubr.bf16.mxu0 %v1688
        %8046 = vmatmul.mubr.bf16.gmra.mxu0 %v1687
        %v8047 = vpop.f32.mrf.mxu0
        %v8048 = vadd.f32 %v8008, %v8047
        %v8049 = vpop.f32.mrf.mxu0
        %v8050 = vpop.f32.mrf.mxu0
        %v8051 = vpop.f32.mrf.mxu0
        %8052 = vdwg.mxu0
        %8053 = vmatprep.subr.bf16.mxu0 %v5914
        %8054 = vmatpush1.bf16.xpose.msra.mxu0 %v5913
        %8055 = vmatprep.subr.bf16.mxu0 %v5786
        %8056 = vmatpush1.bf16.xpose.msra.mxu0 %v5785
        %8057 = vmatprep.subr.bf16.mxu0 %v5658
        %8058 = vmatpush1.bf16.xpose.msra.mxu0 %v5657
        %8059 = vmatprep.subr.bf16.mxu0 %v5530
        %8060 = vmatpush1.bf16.xpose.msra.mxu0 %v5529
        %8061 = vmatprep.subr.bf16.mxu0 %v5402
        %8062 = vmatpush1.bf16.xpose.msra.mxu0 %v5401
        %8063 = vmatprep.subr.bf16.mxu0 %v5274
        %8064 = vmatpush1.bf16.xpose.msra.mxu0 %v5273
        %8065 = vmatprep.subr.bf16.mxu0 %v5146
        %8066 = vmatpush1.bf16.xpose.msra.mxu0 %v5145
        %8067 = vmatprep.subr.bf16.mxu0 %v5018
        %8068 = vmatpush1.bf16.xpose.msra.mxu0 %v5017
        %8069 = vmatprep.subr.bf16.mxu0 0
        %8070 = vmatpush2.bf16.xpose.msra.mxu0 0
        %8071 = vmatprep.subr.bf16.mxu0 0
        %8072 = vmatpush2.bf16.xpose.msra.mxu0 0
        %8073 = vmatprep.subr.bf16.mxu0 0
        %8074 = vmatpush2.bf16.xpose.msra.mxu0 0
        %8075 = vmatprep.subr.bf16.mxu0 0
        %8076 = vmatpush2.bf16.xpose.msra.mxu0 0
        %8077 = vmatprep.subr.bf16.mxu0 0
        %8078 = vmatpush2.bf16.xpose.msra.mxu0 0
        %8079 = vmatprep.subr.bf16.mxu0 0
        %8080 = vmatpush2.bf16.xpose.msra.mxu0 0
        %8081 = vmatprep.subr.bf16.mxu0 0
        %8082 = vmatpush2.bf16.xpose.msra.mxu0 0
        %8083 = vmatprep.subr.bf16.mxu0 0
        %8084 = vmatpush2.bf16.xpose.msra.mxu0 0
        %8085 = vmatprep.mubr.bf16.mxu0 %v1690
        %8086 = vmatmul.mubr.bf16.gmra.mxu0 %v1689
        %v8087 = vpop.f32.mrf.mxu0
        %v8088 = vadd.f32 %v8048, %v8087
        %v8089 = vpop.f32.mrf.mxu0
        %v8090 = vpop.f32.mrf.mxu0
        %v8091 = vpop.f32.mrf.mxu0
        %8092 = vdwg.mxu0
        %8093 = vmatprep.subr.bf16.mxu0 %v5916
        %8094 = vmatpush1.bf16.xpose.msra.mxu0 %v5915
        %8095 = vmatprep.subr.bf16.mxu0 %v5788
        %8096 = vmatpush1.bf16.xpose.msra.mxu0 %v5787
        %8097 = vmatprep.subr.bf16.mxu0 %v5660
        %8098 = vmatpush1.bf16.xpose.msra.mxu0 %v5659
        %8099 = vmatprep.subr.bf16.mxu0 %v5532
        %8100 = vmatpush1.bf16.xpose.msra.mxu0 %v5531
        %8101 = vmatprep.subr.bf16.mxu0 %v5404
        %8102 = vmatpush1.bf16.xpose.msra.mxu0 %v5403
        %8103 = vmatprep.subr.bf16.mxu0 %v5276
        %8104 = vmatpush1.bf16.xpose.msra.mxu0 %v5275
        %8105 = vmatprep.subr.bf16.mxu0 %v5148
        %8106 = vmatpush1.bf16.xpose.msra.mxu0 %v5147
        %8107 = vmatprep.subr.bf16.mxu0 %v5020
        %8108 = vmatpush1.bf16.xpose.msra.mxu0 %v5019
        %8109 = vmatprep.subr.bf16.mxu0 0
        %8110 = vmatpush2.bf16.xpose.msra.mxu0 0
        %8111 = vmatprep.subr.bf16.mxu0 0
        %8112 = vmatpush2.bf16.xpose.msra.mxu0 0
        %8113 = vmatprep.subr.bf16.mxu0 0
        %8114 = vmatpush2.bf16.xpose.msra.mxu0 0
        %8115 = vmatprep.subr.bf16.mxu0 0
        %8116 = vmatpush2.bf16.xpose.msra.mxu0 0
        %8117 = vmatprep.subr.bf16.mxu0 0
        %8118 = vmatpush2.bf16.xpose.msra.mxu0 0
        %8119 = vmatprep.subr.bf16.mxu0 0
        %8120 = vmatpush2.bf16.xpose.msra.mxu0 0
        %8121 = vmatprep.subr.bf16.mxu0 0
        %8122 = vmatpush2.bf16.xpose.msra.mxu0 0
        %8123 = vmatprep.subr.bf16.mxu0 0
        %8124 = vmatpush2.bf16.xpose.msra.mxu0 0
        %8125 = vmatprep.mubr.bf16.mxu0 %v1692
        %8126 = vmatmul.mubr.bf16.gmra.mxu0 %v1691
        %v8127 = vpop.f32.mrf.mxu0
        %v8128 = vadd.f32 %v8088, %v8127
        %v8129 = vpop.f32.mrf.mxu0
        %v8130 = vpop.f32.mrf.mxu0
        %v8131 = vpop.f32.mrf.mxu0
        %8132 = vdwg.mxu0
        %8133 = vmatprep.subr.bf16.mxu0 %v5918
        %8134 = vmatpush1.bf16.xpose.msra.mxu0 %v5917
        %8135 = vmatprep.subr.bf16.mxu0 %v5790
        %8136 = vmatpush1.bf16.xpose.msra.mxu0 %v5789
        %8137 = vmatprep.subr.bf16.mxu0 %v5662
        %8138 = vmatpush1.bf16.xpose.msra.mxu0 %v5661
        %8139 = vmatprep.subr.bf16.mxu0 %v5534
        %8140 = vmatpush1.bf16.xpose.msra.mxu0 %v5533
        %8141 = vmatprep.subr.bf16.mxu0 %v5406
        %8142 = vmatpush1.bf16.xpose.msra.mxu0 %v5405
        %8143 = vmatprep.subr.bf16.mxu0 %v5278
        %8144 = vmatpush1.bf16.xpose.msra.mxu0 %v5277
        %8145 = vmatprep.subr.bf16.mxu0 %v5150
        %8146 = vmatpush1.bf16.xpose.msra.mxu0 %v5149
        %8147 = vmatprep.subr.bf16.mxu0 %v5022
        %8148 = vmatpush1.bf16.xpose.msra.mxu0 %v5021
        %8149 = vmatprep.subr.bf16.mxu0 0
        %8150 = vmatpush2.bf16.xpose.msra.mxu0 0
        %8151 = vmatprep.subr.bf16.mxu0 0
        %8152 = vmatpush2.bf16.xpose.msra.mxu0 0
        %8153 = vmatprep.subr.bf16.mxu0 0
        %8154 = vmatpush2.bf16.xpose.msra.mxu0 0
        %8155 = vmatprep.subr.bf16.mxu0 0
        %8156 = vmatpush2.bf16.xpose.msra.mxu0 0
        %8157 = vmatprep.subr.bf16.mxu0 0
        %8158 = vmatpush2.bf16.xpose.msra.mxu0 0
        %8159 = vmatprep.subr.bf16.mxu0 0
        %8160 = vmatpush2.bf16.xpose.msra.mxu0 0
        %8161 = vmatprep.subr.bf16.mxu0 0
        %8162 = vmatpush2.bf16.xpose.msra.mxu0 0
        %8163 = vmatprep.subr.bf16.mxu0 0
        %8164 = vmatpush2.bf16.xpose.msra.mxu0 0
        %8165 = vmatprep.mubr.bf16.mxu0 %v1694
        %8166 = vmatmul.mubr.bf16.gmra.mxu0 %v1693
        %v8167 = vpop.f32.mrf.mxu0
        %v8168 = vadd.f32 %v8128, %v8167
        %v8169 = vpop.f32.mrf.mxu0
        %v8170 = vpop.f32.mrf.mxu0
        %v8171 = vpop.f32.mrf.mxu0
        %8172 = vdwg.mxu0
        %8173 = vmatprep.subr.bf16.mxu0 %v5920
        %8174 = vmatpush1.bf16.xpose.msra.mxu0 %v5919
        %8175 = vmatprep.subr.bf16.mxu0 %v5792
        %8176 = vmatpush1.bf16.xpose.msra.mxu0 %v5791
        %8177 = vmatprep.subr.bf16.mxu0 %v5664
        %8178 = vmatpush1.bf16.xpose.msra.mxu0 %v5663
        %8179 = vmatprep.subr.bf16.mxu0 %v5536
        %8180 = vmatpush1.bf16.xpose.msra.mxu0 %v5535
        %8181 = vmatprep.subr.bf16.mxu0 %v5408
        %8182 = vmatpush1.bf16.xpose.msra.mxu0 %v5407
        %8183 = vmatprep.subr.bf16.mxu0 %v5280
        %8184 = vmatpush1.bf16.xpose.msra.mxu0 %v5279
        %8185 = vmatprep.subr.bf16.mxu0 %v5152
        %8186 = vmatpush1.bf16.xpose.msra.mxu0 %v5151
        %8187 = vmatprep.subr.bf16.mxu0 %v5024
        %8188 = vmatpush1.bf16.xpose.msra.mxu0 %v5023
        %8189 = vmatprep.subr.bf16.mxu0 0
        %8190 = vmatpush2.bf16.xpose.msra.mxu0 0
        %8191 = vmatprep.subr.bf16.mxu0 0
        %8192 = vmatpush2.bf16.xpose.msra.mxu0 0
        %8193 = vmatprep.subr.bf16.mxu0 0
        %8194 = vmatpush2.bf16.xpose.msra.mxu0 0
        %8195 = vmatprep.subr.bf16.mxu0 0
        %8196 = vmatpush2.bf16.xpose.msra.mxu0 0
        %8197 = vmatprep.subr.bf16.mxu0 0
        %8198 = vmatpush2.bf16.xpose.msra.mxu0 0
        %8199 = vmatprep.subr.bf16.mxu0 0
        %8200 = vmatpush2.bf16.xpose.msra.mxu0 0
        %8201 = vmatprep.subr.bf16.mxu0 0
        %8202 = vmatpush2.bf16.xpose.msra.mxu0 0
        %8203 = vmatprep.subr.bf16.mxu0 0
        %8204 = vmatpush2.bf16.xpose.msra.mxu0 0
        %8205 = vmatprep.mubr.bf16.mxu0 %v1696
        %8206 = vmatmul.mubr.bf16.gmra.mxu0 %v1695
        %v8207 = vpop.f32.mrf.mxu0
        %v8208 = vadd.f32 %v8168, %v8207
        %v8209 = vpop.f32.mrf.mxu0
        %v8210 = vpop.f32.mrf.mxu0
        %v8211 = vpop.f32.mrf.mxu0
        %8212 = vdwg.mxu0
        %8213 = vmatprep.subr.bf16.mxu0 %v5922
        %8214 = vmatpush1.bf16.xpose.msra.mxu0 %v5921
        %8215 = vmatprep.subr.bf16.mxu0 %v5794
        %8216 = vmatpush1.bf16.xpose.msra.mxu0 %v5793
        %8217 = vmatprep.subr.bf16.mxu0 %v5666
        %8218 = vmatpush1.bf16.xpose.msra.mxu0 %v5665
        %8219 = vmatprep.subr.bf16.mxu0 %v5538
        %8220 = vmatpush1.bf16.xpose.msra.mxu0 %v5537
        %8221 = vmatprep.subr.bf16.mxu0 %v5410
        %8222 = vmatpush1.bf16.xpose.msra.mxu0 %v5409
        %8223 = vmatprep.subr.bf16.mxu0 %v5282
        %8224 = vmatpush1.bf16.xpose.msra.mxu0 %v5281
        %8225 = vmatprep.subr.bf16.mxu0 %v5154
        %8226 = vmatpush1.bf16.xpose.msra.mxu0 %v5153
        %8227 = vmatprep.subr.bf16.mxu0 %v5026
        %8228 = vmatpush1.bf16.xpose.msra.mxu0 %v5025
        %8229 = vmatprep.subr.bf16.mxu0 0
        %8230 = vmatpush2.bf16.xpose.msra.mxu0 0
        %8231 = vmatprep.subr.bf16.mxu0 0
        %8232 = vmatpush2.bf16.xpose.msra.mxu0 0
        %8233 = vmatprep.subr.bf16.mxu0 0
        %8234 = vmatpush2.bf16.xpose.msra.mxu0 0
        %8235 = vmatprep.subr.bf16.mxu0 0
        %8236 = vmatpush2.bf16.xpose.msra.mxu0 0
        %8237 = vmatprep.subr.bf16.mxu0 0
        %8238 = vmatpush2.bf16.xpose.msra.mxu0 0
        %8239 = vmatprep.subr.bf16.mxu0 0
        %8240 = vmatpush2.bf16.xpose.msra.mxu0 0
        %8241 = vmatprep.subr.bf16.mxu0 0
        %8242 = vmatpush2.bf16.xpose.msra.mxu0 0
        %8243 = vmatprep.subr.bf16.mxu0 0
        %8244 = vmatpush2.bf16.xpose.msra.mxu0 0
        %8245 = vmatprep.mubr.bf16.mxu0 %v1698
        %8246 = vmatmul.mubr.bf16.gmra.mxu0 %v1697
        %v8247 = vpop.f32.mrf.mxu0
        %v8248 = vadd.f32 %v8208, %v8247
        %v8249 = vpop.f32.mrf.mxu0
        %v8250 = vpop.f32.mrf.mxu0
        %v8251 = vpop.f32.mrf.mxu0
        %8252 = vdwg.mxu0
        %8253 = vmatprep.subr.bf16.mxu0 %v5924
        %8254 = vmatpush1.bf16.xpose.msra.mxu0 %v5923
        %8255 = vmatprep.subr.bf16.mxu0 %v5796
        %8256 = vmatpush1.bf16.xpose.msra.mxu0 %v5795
        %8257 = vmatprep.subr.bf16.mxu0 %v5668
        %8258 = vmatpush1.bf16.xpose.msra.mxu0 %v5667
        %8259 = vmatprep.subr.bf16.mxu0 %v5540
        %8260 = vmatpush1.bf16.xpose.msra.mxu0 %v5539
        %8261 = vmatprep.subr.bf16.mxu0 %v5412
        %8262 = vmatpush1.bf16.xpose.msra.mxu0 %v5411
        %8263 = vmatprep.subr.bf16.mxu0 %v5284
        %8264 = vmatpush1.bf16.xpose.msra.mxu0 %v5283
        %8265 = vmatprep.subr.bf16.mxu0 %v5156
        %8266 = vmatpush1.bf16.xpose.msra.mxu0 %v5155
        %8267 = vmatprep.subr.bf16.mxu0 %v5028
        %8268 = vmatpush1.bf16.xpose.msra.mxu0 %v5027
        %8269 = vmatprep.subr.bf16.mxu0 0
        %8270 = vmatpush2.bf16.xpose.msra.mxu0 0
        %8271 = vmatprep.subr.bf16.mxu0 0
        %8272 = vmatpush2.bf16.xpose.msra.mxu0 0
        %8273 = vmatprep.subr.bf16.mxu0 0
        %8274 = vmatpush2.bf16.xpose.msra.mxu0 0
        %8275 = vmatprep.subr.bf16.mxu0 0
        %8276 = vmatpush2.bf16.xpose.msra.mxu0 0
        %8277 = vmatprep.subr.bf16.mxu0 0
        %8278 = vmatpush2.bf16.xpose.msra.mxu0 0
        %8279 = vmatprep.subr.bf16.mxu0 0
        %8280 = vmatpush2.bf16.xpose.msra.mxu0 0
        %8281 = vmatprep.subr.bf16.mxu0 0
        %8282 = vmatpush2.bf16.xpose.msra.mxu0 0
        %8283 = vmatprep.subr.bf16.mxu0 0
        %8284 = vmatpush2.bf16.xpose.msra.mxu0 0
        %8285 = vmatprep.mubr.bf16.mxu0 %v1700
        %8286 = vmatmul.mubr.bf16.gmra.mxu0 %v1699
        %v8287 = vpop.f32.mrf.mxu0
        %v8288 = vadd.f32 %v8248, %v8287
        %v8289 = vpop.f32.mrf.mxu0
        %v8290 = vpop.f32.mrf.mxu0
        %v8291 = vpop.f32.mrf.mxu0
        %8292 = vdwg.mxu0
        %8293 = vmatprep.subr.bf16.mxu0 %v5926
        %8294 = vmatpush1.bf16.xpose.msra.mxu0 %v5925
        %8295 = vmatprep.subr.bf16.mxu0 %v5798
        %8296 = vmatpush1.bf16.xpose.msra.mxu0 %v5797
        %8297 = vmatprep.subr.bf16.mxu0 %v5670
        %8298 = vmatpush1.bf16.xpose.msra.mxu0 %v5669
        %8299 = vmatprep.subr.bf16.mxu0 %v5542
        %8300 = vmatpush1.bf16.xpose.msra.mxu0 %v5541
        %8301 = vmatprep.subr.bf16.mxu0 %v5414
        %8302 = vmatpush1.bf16.xpose.msra.mxu0 %v5413
        %8303 = vmatprep.subr.bf16.mxu0 %v5286
        %8304 = vmatpush1.bf16.xpose.msra.mxu0 %v5285
        %8305 = vmatprep.subr.bf16.mxu0 %v5158
        %8306 = vmatpush1.bf16.xpose.msra.mxu0 %v5157
        %8307 = vmatprep.subr.bf16.mxu0 %v5030
        %8308 = vmatpush1.bf16.xpose.msra.mxu0 %v5029
        %8309 = vmatprep.subr.bf16.mxu0 0
        %8310 = vmatpush2.bf16.xpose.msra.mxu0 0
        %8311 = vmatprep.subr.bf16.mxu0 0
        %8312 = vmatpush2.bf16.xpose.msra.mxu0 0
        %8313 = vmatprep.subr.bf16.mxu0 0
        %8314 = vmatpush2.bf16.xpose.msra.mxu0 0
        %8315 = vmatprep.subr.bf16.mxu0 0
        %8316 = vmatpush2.bf16.xpose.msra.mxu0 0
        %8317 = vmatprep.subr.bf16.mxu0 0
        %8318 = vmatpush2.bf16.xpose.msra.mxu0 0
        %8319 = vmatprep.subr.bf16.mxu0 0
        %8320 = vmatpush2.bf16.xpose.msra.mxu0 0
        %8321 = vmatprep.subr.bf16.mxu0 0
        %8322 = vmatpush2.bf16.xpose.msra.mxu0 0
        %8323 = vmatprep.subr.bf16.mxu0 0
        %8324 = vmatpush2.bf16.xpose.msra.mxu0 0
        %8325 = vmatprep.mubr.bf16.mxu0 %v1702
        %8326 = vmatmul.mubr.bf16.gmra.mxu0 %v1701
        %v8327 = vpop.f32.mrf.mxu0
        %v8328 = vadd.f32 %v8288, %v8327
        %v8329 = vpop.f32.mrf.mxu0
        %v8330 = vpop.f32.mrf.mxu0
        %v8331 = vpop.f32.mrf.mxu0
        %8332 = vdwg.mxu0
        %8333 = vmatprep.subr.bf16.mxu0 %v5928
        %8334 = vmatpush1.bf16.xpose.msra.mxu0 %v5927
        %8335 = vmatprep.subr.bf16.mxu0 %v5800
        %8336 = vmatpush1.bf16.xpose.msra.mxu0 %v5799
        %8337 = vmatprep.subr.bf16.mxu0 %v5672
        %8338 = vmatpush1.bf16.xpose.msra.mxu0 %v5671
        %8339 = vmatprep.subr.bf16.mxu0 %v5544
        %8340 = vmatpush1.bf16.xpose.msra.mxu0 %v5543
        %8341 = vmatprep.subr.bf16.mxu0 %v5416
        %8342 = vmatpush1.bf16.xpose.msra.mxu0 %v5415
        %8343 = vmatprep.subr.bf16.mxu0 %v5288
        %8344 = vmatpush1.bf16.xpose.msra.mxu0 %v5287
        %8345 = vmatprep.subr.bf16.mxu0 %v5160
        %8346 = vmatpush1.bf16.xpose.msra.mxu0 %v5159
        %8347 = vmatprep.subr.bf16.mxu0 %v5032
        %8348 = vmatpush1.bf16.xpose.msra.mxu0 %v5031
        %8349 = vmatprep.subr.bf16.mxu0 0
        %8350 = vmatpush2.bf16.xpose.msra.mxu0 0
        %8351 = vmatprep.subr.bf16.mxu0 0
        %8352 = vmatpush2.bf16.xpose.msra.mxu0 0
        %8353 = vmatprep.subr.bf16.mxu0 0
        %8354 = vmatpush2.bf16.xpose.msra.mxu0 0
        %8355 = vmatprep.subr.bf16.mxu0 0
        %8356 = vmatpush2.bf16.xpose.msra.mxu0 0
        %8357 = vmatprep.subr.bf16.mxu0 0
        %8358 = vmatpush2.bf16.xpose.msra.mxu0 0
        %8359 = vmatprep.subr.bf16.mxu0 0
        %8360 = vmatpush2.bf16.xpose.msra.mxu0 0
        %8361 = vmatprep.subr.bf16.mxu0 0
        %8362 = vmatpush2.bf16.xpose.msra.mxu0 0
        %8363 = vmatprep.subr.bf16.mxu0 0
        %8364 = vmatpush2.bf16.xpose.msra.mxu0 0
        %8365 = vmatprep.mubr.bf16.mxu0 %v1704
        %8366 = vmatmul.mubr.bf16.gmra.mxu0 %v1703
        %v8367 = vpop.f32.mrf.mxu0
        %v8368 = vadd.f32 %v8328, %v8367
        %v8369 = vpop.f32.mrf.mxu0
        %v8370 = vpop.f32.mrf.mxu0
        %v8371 = vpop.f32.mrf.mxu0
        %8372 = vdwg.mxu0
        %8373 = vmatprep.subr.bf16.mxu0 %v5930
        %8374 = vmatpush1.bf16.xpose.msra.mxu0 %v5929
        %8375 = vmatprep.subr.bf16.mxu0 %v5802
        %8376 = vmatpush1.bf16.xpose.msra.mxu0 %v5801
        %8377 = vmatprep.subr.bf16.mxu0 %v5674
        %8378 = vmatpush1.bf16.xpose.msra.mxu0 %v5673
        %8379 = vmatprep.subr.bf16.mxu0 %v5546
        %8380 = vmatpush1.bf16.xpose.msra.mxu0 %v5545
        %8381 = vmatprep.subr.bf16.mxu0 %v5418
        %8382 = vmatpush1.bf16.xpose.msra.mxu0 %v5417
        %8383 = vmatprep.subr.bf16.mxu0 %v5290
        %8384 = vmatpush1.bf16.xpose.msra.mxu0 %v5289
        %8385 = vmatprep.subr.bf16.mxu0 %v5162
        %8386 = vmatpush1.bf16.xpose.msra.mxu0 %v5161
        %8387 = vmatprep.subr.bf16.mxu0 %v5034
        %8388 = vmatpush1.bf16.xpose.msra.mxu0 %v5033
        %8389 = vmatprep.subr.bf16.mxu0 0
        %8390 = vmatpush2.bf16.xpose.msra.mxu0 0
        %8391 = vmatprep.subr.bf16.mxu0 0
        %8392 = vmatpush2.bf16.xpose.msra.mxu0 0
        %8393 = vmatprep.subr.bf16.mxu0 0
        %8394 = vmatpush2.bf16.xpose.msra.mxu0 0
        %8395 = vmatprep.subr.bf16.mxu0 0
        %8396 = vmatpush2.bf16.xpose.msra.mxu0 0
        %8397 = vmatprep.subr.bf16.mxu0 0
        %8398 = vmatpush2.bf16.xpose.msra.mxu0 0
        %8399 = vmatprep.subr.bf16.mxu0 0
        %8400 = vmatpush2.bf16.xpose.msra.mxu0 0
        %8401 = vmatprep.subr.bf16.mxu0 0
        %8402 = vmatpush2.bf16.xpose.msra.mxu0 0
        %8403 = vmatprep.subr.bf16.mxu0 0
        %8404 = vmatpush2.bf16.xpose.msra.mxu0 0
        %8405 = vmatprep.mubr.bf16.mxu0 %v1706
        %8406 = vmatmul.mubr.bf16.gmra.mxu0 %v1705
        %v8407 = vpop.f32.mrf.mxu0
        %v8408 = vadd.f32 %v8368, %v8407
        %v8409 = vpop.f32.mrf.mxu0
        %v8410 = vpop.f32.mrf.mxu0
        %v8411 = vpop.f32.mrf.mxu0
        %8412 = vdwg.mxu0
        %8413 = vmatprep.subr.bf16.mxu0 %v5932
        %8414 = vmatpush1.bf16.xpose.msra.mxu0 %v5931
        %8415 = vmatprep.subr.bf16.mxu0 %v5804
        %8416 = vmatpush1.bf16.xpose.msra.mxu0 %v5803
        %8417 = vmatprep.subr.bf16.mxu0 %v5676
        %8418 = vmatpush1.bf16.xpose.msra.mxu0 %v5675
        %8419 = vmatprep.subr.bf16.mxu0 %v5548
        %8420 = vmatpush1.bf16.xpose.msra.mxu0 %v5547
        %8421 = vmatprep.subr.bf16.mxu0 %v5420
        %8422 = vmatpush1.bf16.xpose.msra.mxu0 %v5419
        %8423 = vmatprep.subr.bf16.mxu0 %v5292
        %8424 = vmatpush1.bf16.xpose.msra.mxu0 %v5291
        %8425 = vmatprep.subr.bf16.mxu0 %v5164
        %8426 = vmatpush1.bf16.xpose.msra.mxu0 %v5163
        %8427 = vmatprep.subr.bf16.mxu0 %v5036
        %8428 = vmatpush1.bf16.xpose.msra.mxu0 %v5035
        %8429 = vmatprep.subr.bf16.mxu0 0
        %8430 = vmatpush2.bf16.xpose.msra.mxu0 0
        %8431 = vmatprep.subr.bf16.mxu0 0
        %8432 = vmatpush2.bf16.xpose.msra.mxu0 0
        %8433 = vmatprep.subr.bf16.mxu0 0
        %8434 = vmatpush2.bf16.xpose.msra.mxu0 0
        %8435 = vmatprep.subr.bf16.mxu0 0
        %8436 = vmatpush2.bf16.xpose.msra.mxu0 0
        %8437 = vmatprep.subr.bf16.mxu0 0
        %8438 = vmatpush2.bf16.xpose.msra.mxu0 0
        %8439 = vmatprep.subr.bf16.mxu0 0
        %8440 = vmatpush2.bf16.xpose.msra.mxu0 0
        %8441 = vmatprep.subr.bf16.mxu0 0
        %8442 = vmatpush2.bf16.xpose.msra.mxu0 0
        %8443 = vmatprep.subr.bf16.mxu0 0
        %8444 = vmatpush2.bf16.xpose.msra.mxu0 0
        %8445 = vmatprep.mubr.bf16.mxu0 %v1708
        %8446 = vmatmul.mubr.bf16.gmra.mxu0 %v1707
        %v8447 = vpop.f32.mrf.mxu0
        %v8448 = vadd.f32 %v8408, %v8447
        %v8449 = vpop.f32.mrf.mxu0
        %v8450 = vpop.f32.mrf.mxu0
        %v8451 = vpop.f32.mrf.mxu0
        %8452 = vdwg.mxu0
        %8453 = vmatprep.subr.bf16.mxu0 %v5934
        %8454 = vmatpush1.bf16.xpose.msra.mxu0 %v5933
        %8455 = vmatprep.subr.bf16.mxu0 %v5806
        %8456 = vmatpush1.bf16.xpose.msra.mxu0 %v5805
        %8457 = vmatprep.subr.bf16.mxu0 %v5678
        %8458 = vmatpush1.bf16.xpose.msra.mxu0 %v5677
        %8459 = vmatprep.subr.bf16.mxu0 %v5550
        %8460 = vmatpush1.bf16.xpose.msra.mxu0 %v5549
        %8461 = vmatprep.subr.bf16.mxu0 %v5422
        %8462 = vmatpush1.bf16.xpose.msra.mxu0 %v5421
        %8463 = vmatprep.subr.bf16.mxu0 %v5294
        %8464 = vmatpush1.bf16.xpose.msra.mxu0 %v5293
        %8465 = vmatprep.subr.bf16.mxu0 %v5166
        %8466 = vmatpush1.bf16.xpose.msra.mxu0 %v5165
        %8467 = vmatprep.subr.bf16.mxu0 %v5038
        %8468 = vmatpush1.bf16.xpose.msra.mxu0 %v5037
        %8469 = vmatprep.subr.bf16.mxu0 0
        %8470 = vmatpush2.bf16.xpose.msra.mxu0 0
        %8471 = vmatprep.subr.bf16.mxu0 0
        %8472 = vmatpush2.bf16.xpose.msra.mxu0 0
        %8473 = vmatprep.subr.bf16.mxu0 0
        %8474 = vmatpush2.bf16.xpose.msra.mxu0 0
        %8475 = vmatprep.subr.bf16.mxu0 0
        %8476 = vmatpush2.bf16.xpose.msra.mxu0 0
        %8477 = vmatprep.subr.bf16.mxu0 0
        %8478 = vmatpush2.bf16.xpose.msra.mxu0 0
        %8479 = vmatprep.subr.bf16.mxu0 0
        %8480 = vmatpush2.bf16.xpose.msra.mxu0 0
        %8481 = vmatprep.subr.bf16.mxu0 0
        %8482 = vmatpush2.bf16.xpose.msra.mxu0 0
        %8483 = vmatprep.subr.bf16.mxu0 0
        %8484 = vmatpush2.bf16.xpose.msra.mxu0 0
        %8485 = vmatprep.mubr.bf16.mxu0 %v1710
        %8486 = vmatmul.mubr.bf16.gmra.mxu0 %v1709
        %v8487 = vpop.f32.mrf.mxu0
        %v8488 = vadd.f32 %v8448, %v8487
        %v8489 = vpop.f32.mrf.mxu0
        %v8490 = vpop.f32.mrf.mxu0
        %v8491 = vpop.f32.mrf.mxu0
        %8492 = vdwg.mxu0
        %8493 = vmatprep.subr.bf16.mxu0 %v5936
        %8494 = vmatpush1.bf16.xpose.msra.mxu0 %v5935
        %8495 = vmatprep.subr.bf16.mxu0 %v5808
        %8496 = vmatpush1.bf16.xpose.msra.mxu0 %v5807
        %8497 = vmatprep.subr.bf16.mxu0 %v5680
        %8498 = vmatpush1.bf16.xpose.msra.mxu0 %v5679
        %8499 = vmatprep.subr.bf16.mxu0 %v5552
        %8500 = vmatpush1.bf16.xpose.msra.mxu0 %v5551
        %8501 = vmatprep.subr.bf16.mxu0 %v5424
        %8502 = vmatpush1.bf16.xpose.msra.mxu0 %v5423
        %8503 = vmatprep.subr.bf16.mxu0 %v5296
        %8504 = vmatpush1.bf16.xpose.msra.mxu0 %v5295
        %8505 = vmatprep.subr.bf16.mxu0 %v5168
        %8506 = vmatpush1.bf16.xpose.msra.mxu0 %v5167
        %8507 = vmatprep.subr.bf16.mxu0 %v5040
        %8508 = vmatpush1.bf16.xpose.msra.mxu0 %v5039
        %8509 = vmatprep.subr.bf16.mxu0 0
        %8510 = vmatpush2.bf16.xpose.msra.mxu0 0
        %8511 = vmatprep.subr.bf16.mxu0 0
        %8512 = vmatpush2.bf16.xpose.msra.mxu0 0
        %8513 = vmatprep.subr.bf16.mxu0 0
        %8514 = vmatpush2.bf16.xpose.msra.mxu0 0
        %8515 = vmatprep.subr.bf16.mxu0 0
        %8516 = vmatpush2.bf16.xpose.msra.mxu0 0
        %8517 = vmatprep.subr.bf16.mxu0 0
        %8518 = vmatpush2.bf16.xpose.msra.mxu0 0
        %8519 = vmatprep.subr.bf16.mxu0 0
        %8520 = vmatpush2.bf16.xpose.msra.mxu0 0
        %8521 = vmatprep.subr.bf16.mxu0 0
        %8522 = vmatpush2.bf16.xpose.msra.mxu0 0
        %8523 = vmatprep.subr.bf16.mxu0 0
        %8524 = vmatpush2.bf16.xpose.msra.mxu0 0
        %8525 = vmatprep.mubr.bf16.mxu0 %v1712
        %8526 = vmatmul.mubr.bf16.gmra.mxu0 %v1711
        %v8527 = vpop.f32.mrf.mxu0
        %v8528 = vadd.f32 %v8488, %v8527
        %v8529 = vpop.f32.mrf.mxu0
        %v8530 = vpop.f32.mrf.mxu0
        %v8531 = vpop.f32.mrf.mxu0
        %8532 = vdwg.mxu0
        %8533 = vmatprep.subr.bf16.mxu0 %v5938
        %8534 = vmatpush1.bf16.xpose.msra.mxu0 %v5937
        %8535 = vmatprep.subr.bf16.mxu0 %v5810
        %8536 = vmatpush1.bf16.xpose.msra.mxu0 %v5809
        %8537 = vmatprep.subr.bf16.mxu0 %v5682
        %8538 = vmatpush1.bf16.xpose.msra.mxu0 %v5681
        %8539 = vmatprep.subr.bf16.mxu0 %v5554
        %8540 = vmatpush1.bf16.xpose.msra.mxu0 %v5553
        %8541 = vmatprep.subr.bf16.mxu0 %v5426
        %8542 = vmatpush1.bf16.xpose.msra.mxu0 %v5425
        %8543 = vmatprep.subr.bf16.mxu0 %v5298
        %8544 = vmatpush1.bf16.xpose.msra.mxu0 %v5297
        %8545 = vmatprep.subr.bf16.mxu0 %v5170
        %8546 = vmatpush1.bf16.xpose.msra.mxu0 %v5169
        %8547 = vmatprep.subr.bf16.mxu0 %v5042
        %8548 = vmatpush1.bf16.xpose.msra.mxu0 %v5041
        %8549 = vmatprep.subr.bf16.mxu0 0
        %8550 = vmatpush2.bf16.xpose.msra.mxu0 0
        %8551 = vmatprep.subr.bf16.mxu0 0
        %8552 = vmatpush2.bf16.xpose.msra.mxu0 0
        %8553 = vmatprep.subr.bf16.mxu0 0
        %8554 = vmatpush2.bf16.xpose.msra.mxu0 0
        %8555 = vmatprep.subr.bf16.mxu0 0
        %8556 = vmatpush2.bf16.xpose.msra.mxu0 0
        %8557 = vmatprep.subr.bf16.mxu0 0
        %8558 = vmatpush2.bf16.xpose.msra.mxu0 0
        %8559 = vmatprep.subr.bf16.mxu0 0
        %8560 = vmatpush2.bf16.xpose.msra.mxu0 0
        %8561 = vmatprep.subr.bf16.mxu0 0
        %8562 = vmatpush2.bf16.xpose.msra.mxu0 0
        %8563 = vmatprep.subr.bf16.mxu0 0
        %8564 = vmatpush2.bf16.xpose.msra.mxu0 0
        %8565 = vmatprep.mubr.bf16.mxu0 %v1714
        %8566 = vmatmul.mubr.bf16.gmra.mxu0 %v1713
        %v8567 = vpop.f32.mrf.mxu0
        %v8568 = vadd.f32 %v8528, %v8567
        %v8569 = vpop.f32.mrf.mxu0
        %v8570 = vpop.f32.mrf.mxu0
        %v8571 = vpop.f32.mrf.mxu0
        %8572 = vdwg.mxu0
        %8573 = vmatprep.subr.bf16.mxu0 %v5940
        %8574 = vmatpush1.bf16.xpose.msra.mxu0 %v5939
        %8575 = vmatprep.subr.bf16.mxu0 %v5812
        %8576 = vmatpush1.bf16.xpose.msra.mxu0 %v5811
        %8577 = vmatprep.subr.bf16.mxu0 %v5684
        %8578 = vmatpush1.bf16.xpose.msra.mxu0 %v5683
        %8579 = vmatprep.subr.bf16.mxu0 %v5556
        %8580 = vmatpush1.bf16.xpose.msra.mxu0 %v5555
        %8581 = vmatprep.subr.bf16.mxu0 %v5428
        %8582 = vmatpush1.bf16.xpose.msra.mxu0 %v5427
        %8583 = vmatprep.subr.bf16.mxu0 %v5300
        %8584 = vmatpush1.bf16.xpose.msra.mxu0 %v5299
        %8585 = vmatprep.subr.bf16.mxu0 %v5172
        %8586 = vmatpush1.bf16.xpose.msra.mxu0 %v5171
        %8587 = vmatprep.subr.bf16.mxu0 %v5044
        %8588 = vmatpush1.bf16.xpose.msra.mxu0 %v5043
        %8589 = vmatprep.subr.bf16.mxu0 0
        %8590 = vmatpush2.bf16.xpose.msra.mxu0 0
        %8591 = vmatprep.subr.bf16.mxu0 0
        %8592 = vmatpush2.bf16.xpose.msra.mxu0 0
        %8593 = vmatprep.subr.bf16.mxu0 0
        %8594 = vmatpush2.bf16.xpose.msra.mxu0 0
        %8595 = vmatprep.subr.bf16.mxu0 0
        %8596 = vmatpush2.bf16.xpose.msra.mxu0 0
        %8597 = vmatprep.subr.bf16.mxu0 0
        %8598 = vmatpush2.bf16.xpose.msra.mxu0 0
        %8599 = vmatprep.subr.bf16.mxu0 0
        %8600 = vmatpush2.bf16.xpose.msra.mxu0 0
        %8601 = vmatprep.subr.bf16.mxu0 0
        %8602 = vmatpush2.bf16.xpose.msra.mxu0 0
        %8603 = vmatprep.subr.bf16.mxu0 0
        %8604 = vmatpush2.bf16.xpose.msra.mxu0 0
        %8605 = vmatprep.mubr.bf16.mxu0 %v1716
        %8606 = vmatmul.mubr.bf16.gmra.mxu0 %v1715
        %v8607 = vpop.f32.mrf.mxu0
        %v8608 = vadd.f32 %v8568, %v8607
        %v8609 = vpop.f32.mrf.mxu0
        %v8610 = vpop.f32.mrf.mxu0
        %v8611 = vpop.f32.mrf.mxu0
        %8612 = vdwg.mxu0
        %8613 = vmatprep.subr.bf16.mxu0 %v5942
        %8614 = vmatpush1.bf16.xpose.msra.mxu0 %v5941
        %8615 = vmatprep.subr.bf16.mxu0 %v5814
        %8616 = vmatpush1.bf16.xpose.msra.mxu0 %v5813
        %8617 = vmatprep.subr.bf16.mxu0 %v5686
        %8618 = vmatpush1.bf16.xpose.msra.mxu0 %v5685
        %8619 = vmatprep.subr.bf16.mxu0 %v5558
        %8620 = vmatpush1.bf16.xpose.msra.mxu0 %v5557
        %8621 = vmatprep.subr.bf16.mxu0 %v5430
        %8622 = vmatpush1.bf16.xpose.msra.mxu0 %v5429
        %8623 = vmatprep.subr.bf16.mxu0 %v5302
        %8624 = vmatpush1.bf16.xpose.msra.mxu0 %v5301
        %8625 = vmatprep.subr.bf16.mxu0 %v5174
        %8626 = vmatpush1.bf16.xpose.msra.mxu0 %v5173
        %8627 = vmatprep.subr.bf16.mxu0 %v5046
        %8628 = vmatpush1.bf16.xpose.msra.mxu0 %v5045
        %8629 = vmatprep.subr.bf16.mxu0 0
        %8630 = vmatpush2.bf16.xpose.msra.mxu0 0
        %8631 = vmatprep.subr.bf16.mxu0 0
        %8632 = vmatpush2.bf16.xpose.msra.mxu0 0
        %8633 = vmatprep.subr.bf16.mxu0 0
        %8634 = vmatpush2.bf16.xpose.msra.mxu0 0
        %8635 = vmatprep.subr.bf16.mxu0 0
        %8636 = vmatpush2.bf16.xpose.msra.mxu0 0
        %8637 = vmatprep.subr.bf16.mxu0 0
        %8638 = vmatpush2.bf16.xpose.msra.mxu0 0
        %8639 = vmatprep.subr.bf16.mxu0 0
        %8640 = vmatpush2.bf16.xpose.msra.mxu0 0
        %8641 = vmatprep.subr.bf16.mxu0 0
        %8642 = vmatpush2.bf16.xpose.msra.mxu0 0
        %8643 = vmatprep.subr.bf16.mxu0 0
        %8644 = vmatpush2.bf16.xpose.msra.mxu0 0
        %8645 = vmatprep.mubr.bf16.mxu0 %v1718
        %8646 = vmatmul.mubr.bf16.gmra.mxu0 %v1717
        %v8647 = vpop.f32.mrf.mxu0
        %v8648 = vadd.f32 %v8608, %v8647
        %v8649 = vpop.f32.mrf.mxu0
        %v8650 = vpop.f32.mrf.mxu0
        %v8651 = vpop.f32.mrf.mxu0
        %8652 = vdwg.mxu0
        %8653 = vmatprep.subr.bf16.mxu0 %v5944
        %8654 = vmatpush1.bf16.xpose.msra.mxu0 %v5943
        %8655 = vmatprep.subr.bf16.mxu0 %v5816
        %8656 = vmatpush1.bf16.xpose.msra.mxu0 %v5815
        %8657 = vmatprep.subr.bf16.mxu0 %v5688
        %8658 = vmatpush1.bf16.xpose.msra.mxu0 %v5687
        %8659 = vmatprep.subr.bf16.mxu0 %v5560
        %8660 = vmatpush1.bf16.xpose.msra.mxu0 %v5559
        %8661 = vmatprep.subr.bf16.mxu0 %v5432
        %8662 = vmatpush1.bf16.xpose.msra.mxu0 %v5431
        %8663 = vmatprep.subr.bf16.mxu0 %v5304
        %8664 = vmatpush1.bf16.xpose.msra.mxu0 %v5303
        %8665 = vmatprep.subr.bf16.mxu0 %v5176
        %8666 = vmatpush1.bf16.xpose.msra.mxu0 %v5175
        %8667 = vmatprep.subr.bf16.mxu0 %v5048
        %8668 = vmatpush1.bf16.xpose.msra.mxu0 %v5047
        %8669 = vmatprep.subr.bf16.mxu0 0
        %8670 = vmatpush2.bf16.xpose.msra.mxu0 0
        %8671 = vmatprep.subr.bf16.mxu0 0
        %8672 = vmatpush2.bf16.xpose.msra.mxu0 0
        %8673 = vmatprep.subr.bf16.mxu0 0
        %8674 = vmatpush2.bf16.xpose.msra.mxu0 0
        %8675 = vmatprep.subr.bf16.mxu0 0
        %8676 = vmatpush2.bf16.xpose.msra.mxu0 0
        %8677 = vmatprep.subr.bf16.mxu0 0
        %8678 = vmatpush2.bf16.xpose.msra.mxu0 0
        %8679 = vmatprep.subr.bf16.mxu0 0
        %8680 = vmatpush2.bf16.xpose.msra.mxu0 0
        %8681 = vmatprep.subr.bf16.mxu0 0
        %8682 = vmatpush2.bf16.xpose.msra.mxu0 0
        %8683 = vmatprep.subr.bf16.mxu0 0
        %8684 = vmatpush2.bf16.xpose.msra.mxu0 0
        %8685 = vmatprep.mubr.bf16.mxu0 %v1720
        %8686 = vmatmul.mubr.bf16.gmra.mxu0 %v1719
        %v8687 = vpop.f32.mrf.mxu0
        %v8688 = vadd.f32 %v8648, %v8687
        %v8689 = vpop.f32.mrf.mxu0
        %v8690 = vpop.f32.mrf.mxu0
        %v8691 = vpop.f32.mrf.mxu0
        %8692 = vdwg.mxu0
        %8693 = vmatprep.subr.bf16.mxu0 %v5946
        %8694 = vmatpush1.bf16.xpose.msra.mxu0 %v5945
        %8695 = vmatprep.subr.bf16.mxu0 %v5818
        %8696 = vmatpush1.bf16.xpose.msra.mxu0 %v5817
        %8697 = vmatprep.subr.bf16.mxu0 %v5690
        %8698 = vmatpush1.bf16.xpose.msra.mxu0 %v5689
        %8699 = vmatprep.subr.bf16.mxu0 %v5562
        %8700 = vmatpush1.bf16.xpose.msra.mxu0 %v5561
        %8701 = vmatprep.subr.bf16.mxu0 %v5434
        %8702 = vmatpush1.bf16.xpose.msra.mxu0 %v5433
        %8703 = vmatprep.subr.bf16.mxu0 %v5306
        %8704 = vmatpush1.bf16.xpose.msra.mxu0 %v5305
        %8705 = vmatprep.subr.bf16.mxu0 %v5178
        %8706 = vmatpush1.bf16.xpose.msra.mxu0 %v5177
        %8707 = vmatprep.subr.bf16.mxu0 %v5050
        %8708 = vmatpush1.bf16.xpose.msra.mxu0 %v5049
        %8709 = vmatprep.subr.bf16.mxu0 0
        %8710 = vmatpush2.bf16.xpose.msra.mxu0 0
        %8711 = vmatprep.subr.bf16.mxu0 0
        %8712 = vmatpush2.bf16.xpose.msra.mxu0 0
        %8713 = vmatprep.subr.bf16.mxu0 0
        %8714 = vmatpush2.bf16.xpose.msra.mxu0 0
        %8715 = vmatprep.subr.bf16.mxu0 0
        %8716 = vmatpush2.bf16.xpose.msra.mxu0 0
        %8717 = vmatprep.subr.bf16.mxu0 0
        %8718 = vmatpush2.bf16.xpose.msra.mxu0 0
        %8719 = vmatprep.subr.bf16.mxu0 0
        %8720 = vmatpush2.bf16.xpose.msra.mxu0 0
        %8721 = vmatprep.subr.bf16.mxu0 0
        %8722 = vmatpush2.bf16.xpose.msra.mxu0 0
        %8723 = vmatprep.subr.bf16.mxu0 0
        %8724 = vmatpush2.bf16.xpose.msra.mxu0 0
        %8725 = vmatprep.mubr.bf16.mxu0 %v1722
        %8726 = vmatmul.mubr.bf16.gmra.mxu0 %v1721
        %v8727 = vpop.f32.mrf.mxu0
        %v8728 = vadd.f32 %v8688, %v8727
        %v8729 = vpop.f32.mrf.mxu0
        %v8730 = vpop.f32.mrf.mxu0
        %v8731 = vpop.f32.mrf.mxu0
        %8732 = vdwg.mxu0
        %8733 = vmatprep.subr.bf16.mxu0 %v5948
        %8734 = vmatpush1.bf16.xpose.msra.mxu0 %v5947
        %8735 = vmatprep.subr.bf16.mxu0 %v5820
        %8736 = vmatpush1.bf16.xpose.msra.mxu0 %v5819
        %8737 = vmatprep.subr.bf16.mxu0 %v5692
        %8738 = vmatpush1.bf16.xpose.msra.mxu0 %v5691
        %8739 = vmatprep.subr.bf16.mxu0 %v5564
        %8740 = vmatpush1.bf16.xpose.msra.mxu0 %v5563
        %8741 = vmatprep.subr.bf16.mxu0 %v5436
        %8742 = vmatpush1.bf16.xpose.msra.mxu0 %v5435
        %8743 = vmatprep.subr.bf16.mxu0 %v5308
        %8744 = vmatpush1.bf16.xpose.msra.mxu0 %v5307
        %8745 = vmatprep.subr.bf16.mxu0 %v5180
        %8746 = vmatpush1.bf16.xpose.msra.mxu0 %v5179
        %8747 = vmatprep.subr.bf16.mxu0 %v5052
        %8748 = vmatpush1.bf16.xpose.msra.mxu0 %v5051
        %8749 = vmatprep.subr.bf16.mxu0 0
        %8750 = vmatpush2.bf16.xpose.msra.mxu0 0
        %8751 = vmatprep.subr.bf16.mxu0 0
        %8752 = vmatpush2.bf16.xpose.msra.mxu0 0
        %8753 = vmatprep.subr.bf16.mxu0 0
        %8754 = vmatpush2.bf16.xpose.msra.mxu0 0
        %8755 = vmatprep.subr.bf16.mxu0 0
        %8756 = vmatpush2.bf16.xpose.msra.mxu0 0
        %8757 = vmatprep.subr.bf16.mxu0 0
        %8758 = vmatpush2.bf16.xpose.msra.mxu0 0
        %8759 = vmatprep.subr.bf16.mxu0 0
        %8760 = vmatpush2.bf16.xpose.msra.mxu0 0
        %8761 = vmatprep.subr.bf16.mxu0 0
        %8762 = vmatpush2.bf16.xpose.msra.mxu0 0
        %8763 = vmatprep.subr.bf16.mxu0 0
        %8764 = vmatpush2.bf16.xpose.msra.mxu0 0
        %8765 = vmatprep.mubr.bf16.mxu0 %v1724
        %8766 = vmatmul.mubr.bf16.gmra.mxu0 %v1723
        %v8767 = vpop.f32.mrf.mxu0
        %v8768 = vadd.f32 %v8728, %v8767
        %v8769 = vpop.f32.mrf.mxu0
        %v8770 = vpop.f32.mrf.mxu0
        %v8771 = vpop.f32.mrf.mxu0
        %8772 = vdwg.mxu0
        %8773 = vmatprep.subr.bf16.mxu0 %v5950
        %8774 = vmatpush1.bf16.xpose.msra.mxu0 %v5949
        %8775 = vmatprep.subr.bf16.mxu0 %v5822
        %8776 = vmatpush1.bf16.xpose.msra.mxu0 %v5821
        %8777 = vmatprep.subr.bf16.mxu0 %v5694
        %8778 = vmatpush1.bf16.xpose.msra.mxu0 %v5693
        %8779 = vmatprep.subr.bf16.mxu0 %v5566
        %8780 = vmatpush1.bf16.xpose.msra.mxu0 %v5565
        %8781 = vmatprep.subr.bf16.mxu0 %v5438
        %8782 = vmatpush1.bf16.xpose.msra.mxu0 %v5437
        %8783 = vmatprep.subr.bf16.mxu0 %v5310
        %8784 = vmatpush1.bf16.xpose.msra.mxu0 %v5309
        %8785 = vmatprep.subr.bf16.mxu0 %v5182
        %8786 = vmatpush1.bf16.xpose.msra.mxu0 %v5181
        %8787 = vmatprep.subr.bf16.mxu0 %v5054
        %8788 = vmatpush1.bf16.xpose.msra.mxu0 %v5053
        %8789 = vmatprep.subr.bf16.mxu0 0
        %8790 = vmatpush2.bf16.xpose.msra.mxu0 0
        %8791 = vmatprep.subr.bf16.mxu0 0
        %8792 = vmatpush2.bf16.xpose.msra.mxu0 0
        %8793 = vmatprep.subr.bf16.mxu0 0
        %8794 = vmatpush2.bf16.xpose.msra.mxu0 0
        %8795 = vmatprep.subr.bf16.mxu0 0
        %8796 = vmatpush2.bf16.xpose.msra.mxu0 0
        %8797 = vmatprep.subr.bf16.mxu0 0
        %8798 = vmatpush2.bf16.xpose.msra.mxu0 0
        %8799 = vmatprep.subr.bf16.mxu0 0
        %8800 = vmatpush2.bf16.xpose.msra.mxu0 0
        %8801 = vmatprep.subr.bf16.mxu0 0
        %8802 = vmatpush2.bf16.xpose.msra.mxu0 0
        %8803 = vmatprep.subr.bf16.mxu0 0
        %8804 = vmatpush2.bf16.xpose.msra.mxu0 0
        %8805 = vmatprep.mubr.bf16.mxu0 %v1726
        %8806 = vmatmul.mubr.bf16.gmra.mxu0 %v1725
        %v8807 = vpop.f32.mrf.mxu0
        %v8808 = vadd.f32 %v8768, %v8807
        %v8809 = vpop.f32.mrf.mxu0
        %v8810 = vpop.f32.mrf.mxu0
        %v8811 = vpop.f32.mrf.mxu0
        %8812 = vdwg.mxu0
        %8813 = vmatprep.subr.bf16.mxu0 %v5952
        %8814 = vmatpush1.bf16.xpose.msra.mxu0 %v5951
        %8815 = vmatprep.subr.bf16.mxu0 %v5824
        %8816 = vmatpush1.bf16.xpose.msra.mxu0 %v5823
        %8817 = vmatprep.subr.bf16.mxu0 %v5696
        %8818 = vmatpush1.bf16.xpose.msra.mxu0 %v5695
        %8819 = vmatprep.subr.bf16.mxu0 %v5568
        %8820 = vmatpush1.bf16.xpose.msra.mxu0 %v5567
        %8821 = vmatprep.subr.bf16.mxu0 %v5440
        %8822 = vmatpush1.bf16.xpose.msra.mxu0 %v5439
        %8823 = vmatprep.subr.bf16.mxu0 %v5312
        %8824 = vmatpush1.bf16.xpose.msra.mxu0 %v5311
        %8825 = vmatprep.subr.bf16.mxu0 %v5184
        %8826 = vmatpush1.bf16.xpose.msra.mxu0 %v5183
        %8827 = vmatprep.subr.bf16.mxu0 %v5056
        %8828 = vmatpush1.bf16.xpose.msra.mxu0 %v5055
        %8829 = vmatprep.subr.bf16.mxu0 0
        %8830 = vmatpush2.bf16.xpose.msra.mxu0 0
        %8831 = vmatprep.subr.bf16.mxu0 0
        %8832 = vmatpush2.bf16.xpose.msra.mxu0 0
        %8833 = vmatprep.subr.bf16.mxu0 0
        %8834 = vmatpush2.bf16.xpose.msra.mxu0 0
        %8835 = vmatprep.subr.bf16.mxu0 0
        %8836 = vmatpush2.bf16.xpose.msra.mxu0 0
        %8837 = vmatprep.subr.bf16.mxu0 0
        %8838 = vmatpush2.bf16.xpose.msra.mxu0 0
        %8839 = vmatprep.subr.bf16.mxu0 0
        %8840 = vmatpush2.bf16.xpose.msra.mxu0 0
        %8841 = vmatprep.subr.bf16.mxu0 0
        %8842 = vmatpush2.bf16.xpose.msra.mxu0 0
        %8843 = vmatprep.subr.bf16.mxu0 0
        %8844 = vmatpush2.bf16.xpose.msra.mxu0 0
        %8845 = vmatprep.mubr.bf16.mxu0 %v1728
        %8846 = vmatmul.mubr.bf16.gmra.mxu0 %v1727
        %v8847 = vpop.f32.mrf.mxu0
        %v8848 = vadd.f32 %v8808, %v8847
        %v8849 = vpop.f32.mrf.mxu0
        %v8850 = vpop.f32.mrf.mxu0
        %v8851 = vpop.f32.mrf.mxu0
        %8852 = vdwg.mxu0
        %8853 = vmatprep.subr.bf16.mxu0 %v5954
        %8854 = vmatpush1.bf16.xpose.msra.mxu0 %v5953
        %8855 = vmatprep.subr.bf16.mxu0 %v5826
        %8856 = vmatpush1.bf16.xpose.msra.mxu0 %v5825
        %8857 = vmatprep.subr.bf16.mxu0 %v5698
        %8858 = vmatpush1.bf16.xpose.msra.mxu0 %v5697
        %8859 = vmatprep.subr.bf16.mxu0 %v5570
        %8860 = vmatpush1.bf16.xpose.msra.mxu0 %v5569
        %8861 = vmatprep.subr.bf16.mxu0 %v5442
        %8862 = vmatpush1.bf16.xpose.msra.mxu0 %v5441
        %8863 = vmatprep.subr.bf16.mxu0 %v5314
        %8864 = vmatpush1.bf16.xpose.msra.mxu0 %v5313
        %8865 = vmatprep.subr.bf16.mxu0 %v5186
        %8866 = vmatpush1.bf16.xpose.msra.mxu0 %v5185
        %8867 = vmatprep.subr.bf16.mxu0 %v5058
        %8868 = vmatpush1.bf16.xpose.msra.mxu0 %v5057
        %8869 = vmatprep.subr.bf16.mxu0 0
        %8870 = vmatpush2.bf16.xpose.msra.mxu0 0
        %8871 = vmatprep.subr.bf16.mxu0 0
        %8872 = vmatpush2.bf16.xpose.msra.mxu0 0
        %8873 = vmatprep.subr.bf16.mxu0 0
        %8874 = vmatpush2.bf16.xpose.msra.mxu0 0
        %8875 = vmatprep.subr.bf16.mxu0 0
        %8876 = vmatpush2.bf16.xpose.msra.mxu0 0
        %8877 = vmatprep.subr.bf16.mxu0 0
        %8878 = vmatpush2.bf16.xpose.msra.mxu0 0
        %8879 = vmatprep.subr.bf16.mxu0 0
        %8880 = vmatpush2.bf16.xpose.msra.mxu0 0
        %8881 = vmatprep.subr.bf16.mxu0 0
        %8882 = vmatpush2.bf16.xpose.msra.mxu0 0
        %8883 = vmatprep.subr.bf16.mxu0 0
        %8884 = vmatpush2.bf16.xpose.msra.mxu0 0
        %8885 = vmatprep.mubr.bf16.mxu0 %v1730
        %8886 = vmatmul.mubr.bf16.gmra.mxu0 %v1729
        %v8887 = vpop.f32.mrf.mxu0
        %v8888 = vadd.f32 %v8848, %v8887
        %v8889 = vpop.f32.mrf.mxu0
        %v8890 = vpop.f32.mrf.mxu0
        %v8891 = vpop.f32.mrf.mxu0
        %8892 = vdwg.mxu0
        %8893 = vmatprep.subr.bf16.mxu0 %v5956
        %8894 = vmatpush1.bf16.xpose.msra.mxu0 %v5955
        %8895 = vmatprep.subr.bf16.mxu0 %v5828
        %8896 = vmatpush1.bf16.xpose.msra.mxu0 %v5827
        %8897 = vmatprep.subr.bf16.mxu0 %v5700
        %8898 = vmatpush1.bf16.xpose.msra.mxu0 %v5699
        %8899 = vmatprep.subr.bf16.mxu0 %v5572
        %8900 = vmatpush1.bf16.xpose.msra.mxu0 %v5571
        %8901 = vmatprep.subr.bf16.mxu0 %v5444
        %8902 = vmatpush1.bf16.xpose.msra.mxu0 %v5443
        %8903 = vmatprep.subr.bf16.mxu0 %v5316
        %8904 = vmatpush1.bf16.xpose.msra.mxu0 %v5315
        %8905 = vmatprep.subr.bf16.mxu0 %v5188
        %8906 = vmatpush1.bf16.xpose.msra.mxu0 %v5187
        %8907 = vmatprep.subr.bf16.mxu0 %v5060
        %8908 = vmatpush1.bf16.xpose.msra.mxu0 %v5059
        %8909 = vmatprep.subr.bf16.mxu0 0
        %8910 = vmatpush2.bf16.xpose.msra.mxu0 0
        %8911 = vmatprep.subr.bf16.mxu0 0
        %8912 = vmatpush2.bf16.xpose.msra.mxu0 0
        %8913 = vmatprep.subr.bf16.mxu0 0
        %8914 = vmatpush2.bf16.xpose.msra.mxu0 0
        %8915 = vmatprep.subr.bf16.mxu0 0
        %8916 = vmatpush2.bf16.xpose.msra.mxu0 0
        %8917 = vmatprep.subr.bf16.mxu0 0
        %8918 = vmatpush2.bf16.xpose.msra.mxu0 0
        %8919 = vmatprep.subr.bf16.mxu0 0
        %8920 = vmatpush2.bf16.xpose.msra.mxu0 0
        %8921 = vmatprep.subr.bf16.mxu0 0
        %8922 = vmatpush2.bf16.xpose.msra.mxu0 0
        %8923 = vmatprep.subr.bf16.mxu0 0
        %8924 = vmatpush2.bf16.xpose.msra.mxu0 0
        %8925 = vmatprep.mubr.bf16.mxu0 %v1732
        %8926 = vmatmul.mubr.bf16.gmra.mxu0 %v1731
        %v8927 = vpop.f32.mrf.mxu0
        %v8928 = vadd.f32 %v8888, %v8927
        %v8929 = vpop.f32.mrf.mxu0
        %v8930 = vpop.f32.mrf.mxu0
        %v8931 = vpop.f32.mrf.mxu0
        %8932 = vdwg.mxu0
        %8933 = vmatprep.subr.bf16.mxu0 %v5958
        %8934 = vmatpush1.bf16.xpose.msra.mxu0 %v5957
        %8935 = vmatprep.subr.bf16.mxu0 %v5830
        %8936 = vmatpush1.bf16.xpose.msra.mxu0 %v5829
        %8937 = vmatprep.subr.bf16.mxu0 %v5702
        %8938 = vmatpush1.bf16.xpose.msra.mxu0 %v5701
        %8939 = vmatprep.subr.bf16.mxu0 %v5574
        %8940 = vmatpush1.bf16.xpose.msra.mxu0 %v5573
        %8941 = vmatprep.subr.bf16.mxu0 %v5446
        %8942 = vmatpush1.bf16.xpose.msra.mxu0 %v5445
        %8943 = vmatprep.subr.bf16.mxu0 %v5318
        %8944 = vmatpush1.bf16.xpose.msra.mxu0 %v5317
        %8945 = vmatprep.subr.bf16.mxu0 %v5190
        %8946 = vmatpush1.bf16.xpose.msra.mxu0 %v5189
        %8947 = vmatprep.subr.bf16.mxu0 %v5062
        %8948 = vmatpush1.bf16.xpose.msra.mxu0 %v5061
        %8949 = vmatprep.subr.bf16.mxu0 0
        %8950 = vmatpush2.bf16.xpose.msra.mxu0 0
        %8951 = vmatprep.subr.bf16.mxu0 0
        %8952 = vmatpush2.bf16.xpose.msra.mxu0 0
        %8953 = vmatprep.subr.bf16.mxu0 0
        %8954 = vmatpush2.bf16.xpose.msra.mxu0 0
        %8955 = vmatprep.subr.bf16.mxu0 0
        %8956 = vmatpush2.bf16.xpose.msra.mxu0 0
        %8957 = vmatprep.subr.bf16.mxu0 0
        %8958 = vmatpush2.bf16.xpose.msra.mxu0 0
        %8959 = vmatprep.subr.bf16.mxu0 0
        %8960 = vmatpush2.bf16.xpose.msra.mxu0 0
        %8961 = vmatprep.subr.bf16.mxu0 0
        %8962 = vmatpush2.bf16.xpose.msra.mxu0 0
        %8963 = vmatprep.subr.bf16.mxu0 0
        %8964 = vmatpush2.bf16.xpose.msra.mxu0 0
        %8965 = vmatprep.mubr.bf16.mxu0 %v1734
        %8966 = vmatmul.mubr.bf16.gmra.mxu0 %v1733
        %v8967 = vpop.f32.mrf.mxu0
        %v8968 = vadd.f32 %v8928, %v8967
        %v8969 = vpop.f32.mrf.mxu0
        %v8970 = vpop.f32.mrf.mxu0
        %v8971 = vpop.f32.mrf.mxu0
        %8972 = vdwg.mxu0
        %8973 = vmatprep.subr.bf16.mxu0 %v5960
        %8974 = vmatpush1.bf16.xpose.msra.mxu0 %v5959
        %8975 = vmatprep.subr.bf16.mxu0 %v5832
        %8976 = vmatpush1.bf16.xpose.msra.mxu0 %v5831
        %8977 = vmatprep.subr.bf16.mxu0 %v5704
        %8978 = vmatpush1.bf16.xpose.msra.mxu0 %v5703
        %8979 = vmatprep.subr.bf16.mxu0 %v5576
        %8980 = vmatpush1.bf16.xpose.msra.mxu0 %v5575
        %8981 = vmatprep.subr.bf16.mxu0 %v5448
        %8982 = vmatpush1.bf16.xpose.msra.mxu0 %v5447
        %8983 = vmatprep.subr.bf16.mxu0 %v5320
        %8984 = vmatpush1.bf16.xpose.msra.mxu0 %v5319
        %8985 = vmatprep.subr.bf16.mxu0 %v5192
        %8986 = vmatpush1.bf16.xpose.msra.mxu0 %v5191
        %8987 = vmatprep.subr.bf16.mxu0 %v5064
        %8988 = vmatpush1.bf16.xpose.msra.mxu0 %v5063
        %8989 = vmatprep.subr.bf16.mxu0 0
        %8990 = vmatpush2.bf16.xpose.msra.mxu0 0
        %8991 = vmatprep.subr.bf16.mxu0 0
        %8992 = vmatpush2.bf16.xpose.msra.mxu0 0
        %8993 = vmatprep.subr.bf16.mxu0 0
        %8994 = vmatpush2.bf16.xpose.msra.mxu0 0
        %8995 = vmatprep.subr.bf16.mxu0 0
        %8996 = vmatpush2.bf16.xpose.msra.mxu0 0
        %8997 = vmatprep.subr.bf16.mxu0 0
        %8998 = vmatpush2.bf16.xpose.msra.mxu0 0
        %8999 = vmatprep.subr.bf16.mxu0 0
        %9000 = vmatpush2.bf16.xpose.msra.mxu0 0
        %9001 = vmatprep.subr.bf16.mxu0 0
        %9002 = vmatpush2.bf16.xpose.msra.mxu0 0
        %9003 = vmatprep.subr.bf16.mxu0 0
        %9004 = vmatpush2.bf16.xpose.msra.mxu0 0
        %9005 = vmatprep.mubr.bf16.mxu0 %v1736
        %9006 = vmatmul.mubr.bf16.gmra.mxu0 %v1735
        %v9007 = vpop.f32.mrf.mxu0
        %v9008 = vadd.f32 %v8968, %v9007
        %v9009 = vpop.f32.mrf.mxu0
        %v9010 = vpop.f32.mrf.mxu0
        %v9011 = vpop.f32.mrf.mxu0
        %9012 = vdwg.mxu0
        %9013 = vmatprep.subr.bf16.mxu0 %v5962
        %9014 = vmatpush1.bf16.xpose.msra.mxu0 %v5961
        %9015 = vmatprep.subr.bf16.mxu0 %v5834
        %9016 = vmatpush1.bf16.xpose.msra.mxu0 %v5833
        %9017 = vmatprep.subr.bf16.mxu0 %v5706
        %9018 = vmatpush1.bf16.xpose.msra.mxu0 %v5705
        %9019 = vmatprep.subr.bf16.mxu0 %v5578
        %9020 = vmatpush1.bf16.xpose.msra.mxu0 %v5577
        %9021 = vmatprep.subr.bf16.mxu0 %v5450
        %9022 = vmatpush1.bf16.xpose.msra.mxu0 %v5449
        %9023 = vmatprep.subr.bf16.mxu0 %v5322
        %9024 = vmatpush1.bf16.xpose.msra.mxu0 %v5321
        %9025 = vmatprep.subr.bf16.mxu0 %v5194
        %9026 = vmatpush1.bf16.xpose.msra.mxu0 %v5193
        %9027 = vmatprep.subr.bf16.mxu0 %v5066
        %9028 = vmatpush1.bf16.xpose.msra.mxu0 %v5065
        %9029 = vmatprep.subr.bf16.mxu0 0
        %9030 = vmatpush2.bf16.xpose.msra.mxu0 0
        %9031 = vmatprep.subr.bf16.mxu0 0
        %9032 = vmatpush2.bf16.xpose.msra.mxu0 0
        %9033 = vmatprep.subr.bf16.mxu0 0
        %9034 = vmatpush2.bf16.xpose.msra.mxu0 0
        %9035 = vmatprep.subr.bf16.mxu0 0
        %9036 = vmatpush2.bf16.xpose.msra.mxu0 0
        %9037 = vmatprep.subr.bf16.mxu0 0
        %9038 = vmatpush2.bf16.xpose.msra.mxu0 0
        %9039 = vmatprep.subr.bf16.mxu0 0
        %9040 = vmatpush2.bf16.xpose.msra.mxu0 0
        %9041 = vmatprep.subr.bf16.mxu0 0
        %9042 = vmatpush2.bf16.xpose.msra.mxu0 0
        %9043 = vmatprep.subr.bf16.mxu0 0
        %9044 = vmatpush2.bf16.xpose.msra.mxu0 0
        %9045 = vmatprep.mubr.bf16.mxu0 %v1738
        %9046 = vmatmul.mubr.bf16.gmra.mxu0 %v1737
        %v9047 = vpop.f32.mrf.mxu0
        %v9048 = vadd.f32 %v9008, %v9047
        %v9049 = vpop.f32.mrf.mxu0
        %v9050 = vpop.f32.mrf.mxu0
        %v9051 = vpop.f32.mrf.mxu0
        %9052 = vdwg.mxu0
        %9053 = vmatprep.subr.bf16.mxu0 %v5964
        %9054 = vmatpush1.bf16.xpose.msra.mxu0 %v5963
        %9055 = vmatprep.subr.bf16.mxu0 %v5836
        %9056 = vmatpush1.bf16.xpose.msra.mxu0 %v5835
        %9057 = vmatprep.subr.bf16.mxu0 %v5708
        %9058 = vmatpush1.bf16.xpose.msra.mxu0 %v5707
        %9059 = vmatprep.subr.bf16.mxu0 %v5580
        %9060 = vmatpush1.bf16.xpose.msra.mxu0 %v5579
        %9061 = vmatprep.subr.bf16.mxu0 %v5452
        %9062 = vmatpush1.bf16.xpose.msra.mxu0 %v5451
        %9063 = vmatprep.subr.bf16.mxu0 %v5324
        %9064 = vmatpush1.bf16.xpose.msra.mxu0 %v5323
        %9065 = vmatprep.subr.bf16.mxu0 %v5196
        %9066 = vmatpush1.bf16.xpose.msra.mxu0 %v5195
        %9067 = vmatprep.subr.bf16.mxu0 %v5068
        %9068 = vmatpush1.bf16.xpose.msra.mxu0 %v5067
        %9069 = vmatprep.subr.bf16.mxu0 0
        %9070 = vmatpush2.bf16.xpose.msra.mxu0 0
        %9071 = vmatprep.subr.bf16.mxu0 0
        %9072 = vmatpush2.bf16.xpose.msra.mxu0 0
        %9073 = vmatprep.subr.bf16.mxu0 0
        %9074 = vmatpush2.bf16.xpose.msra.mxu0 0
        %9075 = vmatprep.subr.bf16.mxu0 0
        %9076 = vmatpush2.bf16.xpose.msra.mxu0 0
        %9077 = vmatprep.subr.bf16.mxu0 0
        %9078 = vmatpush2.bf16.xpose.msra.mxu0 0
        %9079 = vmatprep.subr.bf16.mxu0 0
        %9080 = vmatpush2.bf16.xpose.msra.mxu0 0
        %9081 = vmatprep.subr.bf16.mxu0 0
        %9082 = vmatpush2.bf16.xpose.msra.mxu0 0
        %9083 = vmatprep.subr.bf16.mxu0 0
        %9084 = vmatpush2.bf16.xpose.msra.mxu0 0
        %9085 = vmatprep.mubr.bf16.mxu0 %v1740
        %9086 = vmatmul.mubr.bf16.gmra.mxu0 %v1739
        %v9087 = vpop.f32.mrf.mxu0
        %v9088 = vadd.f32 %v9048, %v9087
        %v9089 = vpop.f32.mrf.mxu0
        %v9090 = vpop.f32.mrf.mxu0
        %v9091 = vpop.f32.mrf.mxu0
        %9092 = vdwg.mxu0
        %9093 = vmatprep.subr.bf16.mxu0 %v5966
        %9094 = vmatpush1.bf16.xpose.msra.mxu0 %v5965
        %9095 = vmatprep.subr.bf16.mxu0 %v5838
        %9096 = vmatpush1.bf16.xpose.msra.mxu0 %v5837
        %9097 = vmatprep.subr.bf16.mxu0 %v5710
        %9098 = vmatpush1.bf16.xpose.msra.mxu0 %v5709
        %9099 = vmatprep.subr.bf16.mxu0 %v5582
        %9100 = vmatpush1.bf16.xpose.msra.mxu0 %v5581
        %9101 = vmatprep.subr.bf16.mxu0 %v5454
        %9102 = vmatpush1.bf16.xpose.msra.mxu0 %v5453
        %9103 = vmatprep.subr.bf16.mxu0 %v5326
        %9104 = vmatpush1.bf16.xpose.msra.mxu0 %v5325
        %9105 = vmatprep.subr.bf16.mxu0 %v5198
        %9106 = vmatpush1.bf16.xpose.msra.mxu0 %v5197
        %9107 = vmatprep.subr.bf16.mxu0 %v5070
        %9108 = vmatpush1.bf16.xpose.msra.mxu0 %v5069
        %9109 = vmatprep.subr.bf16.mxu0 0
        %9110 = vmatpush2.bf16.xpose.msra.mxu0 0
        %9111 = vmatprep.subr.bf16.mxu0 0
        %9112 = vmatpush2.bf16.xpose.msra.mxu0 0
        %9113 = vmatprep.subr.bf16.mxu0 0
        %9114 = vmatpush2.bf16.xpose.msra.mxu0 0
        %9115 = vmatprep.subr.bf16.mxu0 0
        %9116 = vmatpush2.bf16.xpose.msra.mxu0 0
        %9117 = vmatprep.subr.bf16.mxu0 0
        %9118 = vmatpush2.bf16.xpose.msra.mxu0 0
        %9119 = vmatprep.subr.bf16.mxu0 0
        %9120 = vmatpush2.bf16.xpose.msra.mxu0 0
        %9121 = vmatprep.subr.bf16.mxu0 0
        %9122 = vmatpush2.bf16.xpose.msra.mxu0 0
        %9123 = vmatprep.subr.bf16.mxu0 0
        %9124 = vmatpush2.bf16.xpose.msra.mxu0 0
        %9125 = vmatprep.mubr.bf16.mxu0 %v1742
        %9126 = vmatmul.mubr.bf16.gmra.mxu0 %v1741
        %v9127 = vpop.f32.mrf.mxu0
        %v9128 = vadd.f32 %v9088, %v9127
        %v9129 = vpop.f32.mrf.mxu0
        %v9130 = vpop.f32.mrf.mxu0
        %v9131 = vpop.f32.mrf.mxu0
        %9132 = vdwg.mxu0
        %9133 = vmatprep.subr.bf16.mxu0 %v5968
        %9134 = vmatpush1.bf16.xpose.msra.mxu0 %v5967
        %9135 = vmatprep.subr.bf16.mxu0 %v5840
        %9136 = vmatpush1.bf16.xpose.msra.mxu0 %v5839
        %9137 = vmatprep.subr.bf16.mxu0 %v5712
        %9138 = vmatpush1.bf16.xpose.msra.mxu0 %v5711
        %9139 = vmatprep.subr.bf16.mxu0 %v5584
        %9140 = vmatpush1.bf16.xpose.msra.mxu0 %v5583
        %9141 = vmatprep.subr.bf16.mxu0 %v5456
        %9142 = vmatpush1.bf16.xpose.msra.mxu0 %v5455
        %9143 = vmatprep.subr.bf16.mxu0 %v5328
        %9144 = vmatpush1.bf16.xpose.msra.mxu0 %v5327
        %9145 = vmatprep.subr.bf16.mxu0 %v5200
        %9146 = vmatpush1.bf16.xpose.msra.mxu0 %v5199
        %9147 = vmatprep.subr.bf16.mxu0 %v5072
        %9148 = vmatpush1.bf16.xpose.msra.mxu0 %v5071
        %9149 = vmatprep.subr.bf16.mxu0 0
        %9150 = vmatpush2.bf16.xpose.msra.mxu0 0
        %9151 = vmatprep.subr.bf16.mxu0 0
        %9152 = vmatpush2.bf16.xpose.msra.mxu0 0
        %9153 = vmatprep.subr.bf16.mxu0 0
        %9154 = vmatpush2.bf16.xpose.msra.mxu0 0
        %9155 = vmatprep.subr.bf16.mxu0 0
        %9156 = vmatpush2.bf16.xpose.msra.mxu0 0
        %9157 = vmatprep.subr.bf16.mxu0 0
        %9158 = vmatpush2.bf16.xpose.msra.mxu0 0
        %9159 = vmatprep.subr.bf16.mxu0 0
        %9160 = vmatpush2.bf16.xpose.msra.mxu0 0
        %9161 = vmatprep.subr.bf16.mxu0 0
        %9162 = vmatpush2.bf16.xpose.msra.mxu0 0
        %9163 = vmatprep.subr.bf16.mxu0 0
        %9164 = vmatpush2.bf16.xpose.msra.mxu0 0
        %9165 = vmatprep.mubr.bf16.mxu0 %v1744
        %9166 = vmatmul.mubr.bf16.gmra.mxu0 %v1743
        %v9167 = vpop.f32.mrf.mxu0
        %v9168 = vadd.f32 %v9128, %v9167
        %v9169 = vpop.f32.mrf.mxu0
        %v9170 = vpop.f32.mrf.mxu0
        %v9171 = vpop.f32.mrf.mxu0
        %9172 = vdwg.mxu0
        %9173 = vmatprep.subr.bf16.mxu0 %v5970
        %9174 = vmatpush1.bf16.xpose.msra.mxu0 %v5969
        %9175 = vmatprep.subr.bf16.mxu0 %v5842
        %9176 = vmatpush1.bf16.xpose.msra.mxu0 %v5841
        %9177 = vmatprep.subr.bf16.mxu0 %v5714
        %9178 = vmatpush1.bf16.xpose.msra.mxu0 %v5713
        %9179 = vmatprep.subr.bf16.mxu0 %v5586
        %9180 = vmatpush1.bf16.xpose.msra.mxu0 %v5585
        %9181 = vmatprep.subr.bf16.mxu0 %v5458
        %9182 = vmatpush1.bf16.xpose.msra.mxu0 %v5457
        %9183 = vmatprep.subr.bf16.mxu0 %v5330
        %9184 = vmatpush1.bf16.xpose.msra.mxu0 %v5329
        %9185 = vmatprep.subr.bf16.mxu0 %v5202
        %9186 = vmatpush1.bf16.xpose.msra.mxu0 %v5201
        %9187 = vmatprep.subr.bf16.mxu0 %v5074
        %9188 = vmatpush1.bf16.xpose.msra.mxu0 %v5073
        %9189 = vmatprep.subr.bf16.mxu0 0
        %9190 = vmatpush2.bf16.xpose.msra.mxu0 0
        %9191 = vmatprep.subr.bf16.mxu0 0
        %9192 = vmatpush2.bf16.xpose.msra.mxu0 0
        %9193 = vmatprep.subr.bf16.mxu0 0
        %9194 = vmatpush2.bf16.xpose.msra.mxu0 0
        %9195 = vmatprep.subr.bf16.mxu0 0
        %9196 = vmatpush2.bf16.xpose.msra.mxu0 0
        %9197 = vmatprep.subr.bf16.mxu0 0
        %9198 = vmatpush2.bf16.xpose.msra.mxu0 0
        %9199 = vmatprep.subr.bf16.mxu0 0
        %9200 = vmatpush2.bf16.xpose.msra.mxu0 0
        %9201 = vmatprep.subr.bf16.mxu0 0
        %9202 = vmatpush2.bf16.xpose.msra.mxu0 0
        %9203 = vmatprep.subr.bf16.mxu0 0
        %9204 = vmatpush2.bf16.xpose.msra.mxu0 0
        %9205 = vmatprep.mubr.bf16.mxu0 %v1746
        %9206 = vmatmul.mubr.bf16.gmra.mxu0 %v1745
        %v9207 = vpop.f32.mrf.mxu0
        %v9208 = vadd.f32 %v9168, %v9207
        %v9209 = vpop.f32.mrf.mxu0
        %v9210 = vpop.f32.mrf.mxu0
        %v9211 = vpop.f32.mrf.mxu0
        %9212 = vdwg.mxu0
        %9213 = vmatprep.subr.bf16.mxu0 %v5972
        %9214 = vmatpush1.bf16.xpose.msra.mxu0 %v5971
        %9215 = vmatprep.subr.bf16.mxu0 %v5844
        %9216 = vmatpush1.bf16.xpose.msra.mxu0 %v5843
        %9217 = vmatprep.subr.bf16.mxu0 %v5716
        %9218 = vmatpush1.bf16.xpose.msra.mxu0 %v5715
        %9219 = vmatprep.subr.bf16.mxu0 %v5588
        %9220 = vmatpush1.bf16.xpose.msra.mxu0 %v5587
        %9221 = vmatprep.subr.bf16.mxu0 %v5460
        %9222 = vmatpush1.bf16.xpose.msra.mxu0 %v5459
        %9223 = vmatprep.subr.bf16.mxu0 %v5332
        %9224 = vmatpush1.bf16.xpose.msra.mxu0 %v5331
        %9225 = vmatprep.subr.bf16.mxu0 %v5204
        %9226 = vmatpush1.bf16.xpose.msra.mxu0 %v5203
        %9227 = vmatprep.subr.bf16.mxu0 %v5076
        %9228 = vmatpush1.bf16.xpose.msra.mxu0 %v5075
        %9229 = vmatprep.subr.bf16.mxu0 0
        %9230 = vmatpush2.bf16.xpose.msra.mxu0 0
        %9231 = vmatprep.subr.bf16.mxu0 0
        %9232 = vmatpush2.bf16.xpose.msra.mxu0 0
        %9233 = vmatprep.subr.bf16.mxu0 0
        %9234 = vmatpush2.bf16.xpose.msra.mxu0 0
        %9235 = vmatprep.subr.bf16.mxu0 0
        %9236 = vmatpush2.bf16.xpose.msra.mxu0 0
        %9237 = vmatprep.subr.bf16.mxu0 0
        %9238 = vmatpush2.bf16.xpose.msra.mxu0 0
        %9239 = vmatprep.subr.bf16.mxu0 0
        %9240 = vmatpush2.bf16.xpose.msra.mxu0 0
        %9241 = vmatprep.subr.bf16.mxu0 0
        %9242 = vmatpush2.bf16.xpose.msra.mxu0 0
        %9243 = vmatprep.subr.bf16.mxu0 0
        %9244 = vmatpush2.bf16.xpose.msra.mxu0 0
        %9245 = vmatprep.mubr.bf16.mxu0 %v1748
        %9246 = vmatmul.mubr.bf16.gmra.mxu0 %v1747
        %v9247 = vpop.f32.mrf.mxu0
        %v9248 = vadd.f32 %v9208, %v9247
        %v9249 = vpop.f32.mrf.mxu0
        %v9250 = vpop.f32.mrf.mxu0
        %v9251 = vpop.f32.mrf.mxu0
        %9252 = vdwg.mxu0
        %9253 = vmatprep.subr.bf16.mxu0 %v5974
        %9254 = vmatpush1.bf16.xpose.msra.mxu0 %v5973
        %9255 = vmatprep.subr.bf16.mxu0 %v5846
        %9256 = vmatpush1.bf16.xpose.msra.mxu0 %v5845
        %9257 = vmatprep.subr.bf16.mxu0 %v5718
        %9258 = vmatpush1.bf16.xpose.msra.mxu0 %v5717
        %9259 = vmatprep.subr.bf16.mxu0 %v5590
        %9260 = vmatpush1.bf16.xpose.msra.mxu0 %v5589
        %9261 = vmatprep.subr.bf16.mxu0 %v5462
        %9262 = vmatpush1.bf16.xpose.msra.mxu0 %v5461
        %9263 = vmatprep.subr.bf16.mxu0 %v5334
        %9264 = vmatpush1.bf16.xpose.msra.mxu0 %v5333
        %9265 = vmatprep.subr.bf16.mxu0 %v5206
        %9266 = vmatpush1.bf16.xpose.msra.mxu0 %v5205
        %9267 = vmatprep.subr.bf16.mxu0 %v5078
        %9268 = vmatpush1.bf16.xpose.msra.mxu0 %v5077
        %9269 = vmatprep.subr.bf16.mxu0 0
        %9270 = vmatpush2.bf16.xpose.msra.mxu0 0
        %9271 = vmatprep.subr.bf16.mxu0 0
        %9272 = vmatpush2.bf16.xpose.msra.mxu0 0
        %9273 = vmatprep.subr.bf16.mxu0 0
        %9274 = vmatpush2.bf16.xpose.msra.mxu0 0
        %9275 = vmatprep.subr.bf16.mxu0 0
        %9276 = vmatpush2.bf16.xpose.msra.mxu0 0
        %9277 = vmatprep.subr.bf16.mxu0 0
        %9278 = vmatpush2.bf16.xpose.msra.mxu0 0
        %9279 = vmatprep.subr.bf16.mxu0 0
        %9280 = vmatpush2.bf16.xpose.msra.mxu0 0
        %9281 = vmatprep.subr.bf16.mxu0 0
        %9282 = vmatpush2.bf16.xpose.msra.mxu0 0
        %9283 = vmatprep.subr.bf16.mxu0 0
        %9284 = vmatpush2.bf16.xpose.msra.mxu0 0
        %9285 = vmatprep.mubr.bf16.mxu0 %v1750
        %9286 = vmatmul.mubr.bf16.gmra.mxu0 %v1749
        %v9287 = vpop.f32.mrf.mxu0
        %v9288 = vadd.f32 %v9248, %v9287
        %v9289 = vpop.f32.mrf.mxu0
        %v9290 = vpop.f32.mrf.mxu0
        %v9291 = vpop.f32.mrf.mxu0
        %9292 = vdwg.mxu0
        %9293 = vmatprep.subr.bf16.mxu0 %v5976
        %9294 = vmatpush1.bf16.xpose.msra.mxu0 %v5975
        %9295 = vmatprep.subr.bf16.mxu0 %v5848
        %9296 = vmatpush1.bf16.xpose.msra.mxu0 %v5847
        %9297 = vmatprep.subr.bf16.mxu0 %v5720
        %9298 = vmatpush1.bf16.xpose.msra.mxu0 %v5719
        %9299 = vmatprep.subr.bf16.mxu0 %v5592
        %9300 = vmatpush1.bf16.xpose.msra.mxu0 %v5591
        %9301 = vmatprep.subr.bf16.mxu0 %v5464
        %9302 = vmatpush1.bf16.xpose.msra.mxu0 %v5463
        %9303 = vmatprep.subr.bf16.mxu0 %v5336
        %9304 = vmatpush1.bf16.xpose.msra.mxu0 %v5335
        %9305 = vmatprep.subr.bf16.mxu0 %v5208
        %9306 = vmatpush1.bf16.xpose.msra.mxu0 %v5207
        %9307 = vmatprep.subr.bf16.mxu0 %v5080
        %9308 = vmatpush1.bf16.xpose.msra.mxu0 %v5079
        %9309 = vmatprep.subr.bf16.mxu0 0
        %9310 = vmatpush2.bf16.xpose.msra.mxu0 0
        %9311 = vmatprep.subr.bf16.mxu0 0
        %9312 = vmatpush2.bf16.xpose.msra.mxu0 0
        %9313 = vmatprep.subr.bf16.mxu0 0
        %9314 = vmatpush2.bf16.xpose.msra.mxu0 0
        %9315 = vmatprep.subr.bf16.mxu0 0
        %9316 = vmatpush2.bf16.xpose.msra.mxu0 0
        %9317 = vmatprep.subr.bf16.mxu0 0
        %9318 = vmatpush2.bf16.xpose.msra.mxu0 0
        %9319 = vmatprep.subr.bf16.mxu0 0
        %9320 = vmatpush2.bf16.xpose.msra.mxu0 0
        %9321 = vmatprep.subr.bf16.mxu0 0
        %9322 = vmatpush2.bf16.xpose.msra.mxu0 0
        %9323 = vmatprep.subr.bf16.mxu0 0
        %9324 = vmatpush2.bf16.xpose.msra.mxu0 0
        %9325 = vmatprep.mubr.bf16.mxu0 %v1752
        %9326 = vmatmul.mubr.bf16.gmra.mxu0 %v1751
        %v9327 = vpop.f32.mrf.mxu0
        %v9328 = vadd.f32 %v9288, %v9327
        %v9329 = vpop.f32.mrf.mxu0
        %v9330 = vpop.f32.mrf.mxu0
        %v9331 = vpop.f32.mrf.mxu0
        %9332 = vdwg.mxu0
        %9333 = vmatprep.subr.bf16.mxu0 %v5978
        %9334 = vmatpush1.bf16.xpose.msra.mxu0 %v5977
        %9335 = vmatprep.subr.bf16.mxu0 %v5850
        %9336 = vmatpush1.bf16.xpose.msra.mxu0 %v5849
        %9337 = vmatprep.subr.bf16.mxu0 %v5722
        %9338 = vmatpush1.bf16.xpose.msra.mxu0 %v5721
        %9339 = vmatprep.subr.bf16.mxu0 %v5594
        %9340 = vmatpush1.bf16.xpose.msra.mxu0 %v5593
        %9341 = vmatprep.subr.bf16.mxu0 %v5466
        %9342 = vmatpush1.bf16.xpose.msra.mxu0 %v5465
        %9343 = vmatprep.subr.bf16.mxu0 %v5338
        %9344 = vmatpush1.bf16.xpose.msra.mxu0 %v5337
        %9345 = vmatprep.subr.bf16.mxu0 %v5210
        %9346 = vmatpush1.bf16.xpose.msra.mxu0 %v5209
        %9347 = vmatprep.subr.bf16.mxu0 %v5082
        %9348 = vmatpush1.bf16.xpose.msra.mxu0 %v5081
        %9349 = vmatprep.subr.bf16.mxu0 0
        %9350 = vmatpush2.bf16.xpose.msra.mxu0 0
        %9351 = vmatprep.subr.bf16.mxu0 0
        %9352 = vmatpush2.bf16.xpose.msra.mxu0 0
        %9353 = vmatprep.subr.bf16.mxu0 0
        %9354 = vmatpush2.bf16.xpose.msra.mxu0 0
        %9355 = vmatprep.subr.bf16.mxu0 0
        %9356 = vmatpush2.bf16.xpose.msra.mxu0 0
        %9357 = vmatprep.subr.bf16.mxu0 0
        %9358 = vmatpush2.bf16.xpose.msra.mxu0 0
        %9359 = vmatprep.subr.bf16.mxu0 0
        %9360 = vmatpush2.bf16.xpose.msra.mxu0 0
        %9361 = vmatprep.subr.bf16.mxu0 0
        %9362 = vmatpush2.bf16.xpose.msra.mxu0 0
        %9363 = vmatprep.subr.bf16.mxu0 0
        %9364 = vmatpush2.bf16.xpose.msra.mxu0 0
        %9365 = vmatprep.mubr.bf16.mxu0 %v1754
        %9366 = vmatmul.mubr.bf16.gmra.mxu0 %v1753
        %v9367 = vpop.f32.mrf.mxu0
        %v9368 = vadd.f32 %v9328, %v9367
        %v9369 = vpop.f32.mrf.mxu0
        %v9370 = vpop.f32.mrf.mxu0
        %v9371 = vpop.f32.mrf.mxu0
        %9372 = vdwg.mxu0
        %9373 = vmatprep.subr.bf16.mxu0 %v5980
        %9374 = vmatpush1.bf16.xpose.msra.mxu0 %v5979
        %9375 = vmatprep.subr.bf16.mxu0 %v5852
        %9376 = vmatpush1.bf16.xpose.msra.mxu0 %v5851
        %9377 = vmatprep.subr.bf16.mxu0 %v5724
        %9378 = vmatpush1.bf16.xpose.msra.mxu0 %v5723
        %9379 = vmatprep.subr.bf16.mxu0 %v5596
        %9380 = vmatpush1.bf16.xpose.msra.mxu0 %v5595
        %9381 = vmatprep.subr.bf16.mxu0 %v5468
        %9382 = vmatpush1.bf16.xpose.msra.mxu0 %v5467
        %9383 = vmatprep.subr.bf16.mxu0 %v5340
        %9384 = vmatpush1.bf16.xpose.msra.mxu0 %v5339
        %9385 = vmatprep.subr.bf16.mxu0 %v5212
        %9386 = vmatpush1.bf16.xpose.msra.mxu0 %v5211
        %9387 = vmatprep.subr.bf16.mxu0 %v5084
        %9388 = vmatpush1.bf16.xpose.msra.mxu0 %v5083
        %9389 = vmatprep.subr.bf16.mxu0 0
        %9390 = vmatpush2.bf16.xpose.msra.mxu0 0
        %9391 = vmatprep.subr.bf16.mxu0 0
        %9392 = vmatpush2.bf16.xpose.msra.mxu0 0
        %9393 = vmatprep.subr.bf16.mxu0 0
        %9394 = vmatpush2.bf16.xpose.msra.mxu0 0
        %9395 = vmatprep.subr.bf16.mxu0 0
        %9396 = vmatpush2.bf16.xpose.msra.mxu0 0
        %9397 = vmatprep.subr.bf16.mxu0 0
        %9398 = vmatpush2.bf16.xpose.msra.mxu0 0
        %9399 = vmatprep.subr.bf16.mxu0 0
        %9400 = vmatpush2.bf16.xpose.msra.mxu0 0
        %9401 = vmatprep.subr.bf16.mxu0 0
        %9402 = vmatpush2.bf16.xpose.msra.mxu0 0
        %9403 = vmatprep.subr.bf16.mxu0 0
        %9404 = vmatpush2.bf16.xpose.msra.mxu0 0
        %9405 = vmatprep.mubr.bf16.mxu0 %v1756
        %9406 = vmatmul.mubr.bf16.gmra.mxu0 %v1755
        %v9407 = vpop.f32.mrf.mxu0
        %v9408 = vadd.f32 %v9368, %v9407
        %v9409 = vpop.f32.mrf.mxu0
        %v9410 = vpop.f32.mrf.mxu0
        %v9411 = vpop.f32.mrf.mxu0
        %9412 = vdwg.mxu0
        %9413 = vmatprep.subr.bf16.mxu0 %v5982
        %9414 = vmatpush1.bf16.xpose.msra.mxu0 %v5981
        %9415 = vmatprep.subr.bf16.mxu0 %v5854
        %9416 = vmatpush1.bf16.xpose.msra.mxu0 %v5853
        %9417 = vmatprep.subr.bf16.mxu0 %v5726
        %9418 = vmatpush1.bf16.xpose.msra.mxu0 %v5725
        %9419 = vmatprep.subr.bf16.mxu0 %v5598
        %9420 = vmatpush1.bf16.xpose.msra.mxu0 %v5597
        %9421 = vmatprep.subr.bf16.mxu0 %v5470
        %9422 = vmatpush1.bf16.xpose.msra.mxu0 %v5469
        %9423 = vmatprep.subr.bf16.mxu0 %v5342
        %9424 = vmatpush1.bf16.xpose.msra.mxu0 %v5341
        %9425 = vmatprep.subr.bf16.mxu0 %v5214
        %9426 = vmatpush1.bf16.xpose.msra.mxu0 %v5213
        %9427 = vmatprep.subr.bf16.mxu0 %v5086
        %9428 = vmatpush1.bf16.xpose.msra.mxu0 %v5085
        %9429 = vmatprep.subr.bf16.mxu0 0
        %9430 = vmatpush2.bf16.xpose.msra.mxu0 0
        %9431 = vmatprep.subr.bf16.mxu0 0
        %9432 = vmatpush2.bf16.xpose.msra.mxu0 0
        %9433 = vmatprep.subr.bf16.mxu0 0
        %9434 = vmatpush2.bf16.xpose.msra.mxu0 0
        %9435 = vmatprep.subr.bf16.mxu0 0
        %9436 = vmatpush2.bf16.xpose.msra.mxu0 0
        %9437 = vmatprep.subr.bf16.mxu0 0
        %9438 = vmatpush2.bf16.xpose.msra.mxu0 0
        %9439 = vmatprep.subr.bf16.mxu0 0
        %9440 = vmatpush2.bf16.xpose.msra.mxu0 0
        %9441 = vmatprep.subr.bf16.mxu0 0
        %9442 = vmatpush2.bf16.xpose.msra.mxu0 0
        %9443 = vmatprep.subr.bf16.mxu0 0
        %9444 = vmatpush2.bf16.xpose.msra.mxu0 0
        %9445 = vmatprep.mubr.bf16.mxu0 %v1758
        %9446 = vmatmul.mubr.bf16.gmra.mxu0 %v1757
        %v9447 = vpop.f32.mrf.mxu0
        %v9448 = vadd.f32 %v9408, %v9447
        %v9449 = vpop.f32.mrf.mxu0
        %v9450 = vpop.f32.mrf.mxu0
        %v9451 = vpop.f32.mrf.mxu0
        %9452 = vdwg.mxu0
        %9453 = vmatprep.subr.bf16.mxu0 %v5984
        %9454 = vmatpush1.bf16.xpose.msra.mxu0 %v5983
        %9455 = vmatprep.subr.bf16.mxu0 %v5856
        %9456 = vmatpush1.bf16.xpose.msra.mxu0 %v5855
        %9457 = vmatprep.subr.bf16.mxu0 %v5728
        %9458 = vmatpush1.bf16.xpose.msra.mxu0 %v5727
        %9459 = vmatprep.subr.bf16.mxu0 %v5600
        %9460 = vmatpush1.bf16.xpose.msra.mxu0 %v5599
        %9461 = vmatprep.subr.bf16.mxu0 %v5472
        %9462 = vmatpush1.bf16.xpose.msra.mxu0 %v5471
        %9463 = vmatprep.subr.bf16.mxu0 %v5344
        %9464 = vmatpush1.bf16.xpose.msra.mxu0 %v5343
        %9465 = vmatprep.subr.bf16.mxu0 %v5216
        %9466 = vmatpush1.bf16.xpose.msra.mxu0 %v5215
        %9467 = vmatprep.subr.bf16.mxu0 %v5088
        %9468 = vmatpush1.bf16.xpose.msra.mxu0 %v5087
        %9469 = vmatprep.subr.bf16.mxu0 0
        %9470 = vmatpush2.bf16.xpose.msra.mxu0 0
        %9471 = vmatprep.subr.bf16.mxu0 0
        %9472 = vmatpush2.bf16.xpose.msra.mxu0 0
        %9473 = vmatprep.subr.bf16.mxu0 0
        %9474 = vmatpush2.bf16.xpose.msra.mxu0 0
        %9475 = vmatprep.subr.bf16.mxu0 0
        %9476 = vmatpush2.bf16.xpose.msra.mxu0 0
        %9477 = vmatprep.subr.bf16.mxu0 0
        %9478 = vmatpush2.bf16.xpose.msra.mxu0 0
        %9479 = vmatprep.subr.bf16.mxu0 0
        %9480 = vmatpush2.bf16.xpose.msra.mxu0 0
        %9481 = vmatprep.subr.bf16.mxu0 0
        %9482 = vmatpush2.bf16.xpose.msra.mxu0 0
        %9483 = vmatprep.subr.bf16.mxu0 0
        %9484 = vmatpush2.bf16.xpose.msra.mxu0 0
        %9485 = vmatprep.mubr.bf16.mxu0 %v1760
        %9486 = vmatmul.mubr.bf16.gmra.mxu0 %v1759
        %v9487 = vpop.f32.mrf.mxu0
        %v9488 = vadd.f32 %v9448, %v9487
        %v9489 = vpop.f32.mrf.mxu0
        %v9490 = vpop.f32.mrf.mxu0
        %v9491 = vpop.f32.mrf.mxu0
        %9492 = vdwg.mxu0
        %9493 = vmatprep.subr.bf16.mxu0 %v5986
        %9494 = vmatpush1.bf16.xpose.msra.mxu0 %v5985
        %9495 = vmatprep.subr.bf16.mxu0 %v5858
        %9496 = vmatpush1.bf16.xpose.msra.mxu0 %v5857
        %9497 = vmatprep.subr.bf16.mxu0 %v5730
        %9498 = vmatpush1.bf16.xpose.msra.mxu0 %v5729
        %9499 = vmatprep.subr.bf16.mxu0 %v5602
        %9500 = vmatpush1.bf16.xpose.msra.mxu0 %v5601
        %9501 = vmatprep.subr.bf16.mxu0 %v5474
        %9502 = vmatpush1.bf16.xpose.msra.mxu0 %v5473
        %9503 = vmatprep.subr.bf16.mxu0 %v5346
        %9504 = vmatpush1.bf16.xpose.msra.mxu0 %v5345
        %9505 = vmatprep.subr.bf16.mxu0 %v5218
        %9506 = vmatpush1.bf16.xpose.msra.mxu0 %v5217
        %9507 = vmatprep.subr.bf16.mxu0 %v5090
        %9508 = vmatpush1.bf16.xpose.msra.mxu0 %v5089
        %9509 = vmatprep.subr.bf16.mxu0 0
        %9510 = vmatpush2.bf16.xpose.msra.mxu0 0
        %9511 = vmatprep.subr.bf16.mxu0 0
        %9512 = vmatpush2.bf16.xpose.msra.mxu0 0
        %9513 = vmatprep.subr.bf16.mxu0 0
        %9514 = vmatpush2.bf16.xpose.msra.mxu0 0
        %9515 = vmatprep.subr.bf16.mxu0 0
        %9516 = vmatpush2.bf16.xpose.msra.mxu0 0
        %9517 = vmatprep.subr.bf16.mxu0 0
        %9518 = vmatpush2.bf16.xpose.msra.mxu0 0
        %9519 = vmatprep.subr.bf16.mxu0 0
        %9520 = vmatpush2.bf16.xpose.msra.mxu0 0
        %9521 = vmatprep.subr.bf16.mxu0 0
        %9522 = vmatpush2.bf16.xpose.msra.mxu0 0
        %9523 = vmatprep.subr.bf16.mxu0 0
        %9524 = vmatpush2.bf16.xpose.msra.mxu0 0
        %9525 = vmatprep.mubr.bf16.mxu0 %v1762
        %9526 = vmatmul.mubr.bf16.gmra.mxu0 %v1761
        %v9527 = vpop.f32.mrf.mxu0
        %v9528 = vadd.f32 %v9488, %v9527
        %v9529 = vpop.f32.mrf.mxu0
        %v9530 = vpop.f32.mrf.mxu0
        %v9531 = vpop.f32.mrf.mxu0
        %9532 = vdwg.mxu0
        %9533 = vmatprep.subr.bf16.mxu0 %v5988
        %9534 = vmatpush1.bf16.xpose.msra.mxu0 %v5987
        %9535 = vmatprep.subr.bf16.mxu0 %v5860
        %9536 = vmatpush1.bf16.xpose.msra.mxu0 %v5859
        %9537 = vmatprep.subr.bf16.mxu0 %v5732
        %9538 = vmatpush1.bf16.xpose.msra.mxu0 %v5731
        %9539 = vmatprep.subr.bf16.mxu0 %v5604
        %9540 = vmatpush1.bf16.xpose.msra.mxu0 %v5603
        %9541 = vmatprep.subr.bf16.mxu0 %v5476
        %9542 = vmatpush1.bf16.xpose.msra.mxu0 %v5475
        %9543 = vmatprep.subr.bf16.mxu0 %v5348
        %9544 = vmatpush1.bf16.xpose.msra.mxu0 %v5347
        %9545 = vmatprep.subr.bf16.mxu0 %v5220
        %9546 = vmatpush1.bf16.xpose.msra.mxu0 %v5219
        %9547 = vmatprep.subr.bf16.mxu0 %v5092
        %9548 = vmatpush1.bf16.xpose.msra.mxu0 %v5091
        %9549 = vmatprep.subr.bf16.mxu0 0
        %9550 = vmatpush2.bf16.xpose.msra.mxu0 0
        %9551 = vmatprep.subr.bf16.mxu0 0
        %9552 = vmatpush2.bf16.xpose.msra.mxu0 0
        %9553 = vmatprep.subr.bf16.mxu0 0
        %9554 = vmatpush2.bf16.xpose.msra.mxu0 0
        %9555 = vmatprep.subr.bf16.mxu0 0
        %9556 = vmatpush2.bf16.xpose.msra.mxu0 0
        %9557 = vmatprep.subr.bf16.mxu0 0
        %9558 = vmatpush2.bf16.xpose.msra.mxu0 0
        %9559 = vmatprep.subr.bf16.mxu0 0
        %9560 = vmatpush2.bf16.xpose.msra.mxu0 0
        %9561 = vmatprep.subr.bf16.mxu0 0
        %9562 = vmatpush2.bf16.xpose.msra.mxu0 0
        %9563 = vmatprep.subr.bf16.mxu0 0
        %9564 = vmatpush2.bf16.xpose.msra.mxu0 0
        %9565 = vmatprep.mubr.bf16.mxu0 %v1764
        %9566 = vmatmul.mubr.bf16.gmra.mxu0 %v1763
        %v9567 = vpop.f32.mrf.mxu0
        %v9568 = vadd.f32 %v9528, %v9567
        %v9569 = vpop.f32.mrf.mxu0
        %v9570 = vpop.f32.mrf.mxu0
        %v9571 = vpop.f32.mrf.mxu0
        %9572 = vdwg.mxu0
        %v9573 = vadd.f32 %v356, %v9568
        %9574 = vst [vmem:[#allocation2] sm:$0xff] %v9573
        %p9575 = scmp.eq.s32.totalorder %s26, 1
        // Predicated region
        $region73: #{tpu_custom_call.1} parent=43 // pred_check
          %p9576 = pneg %p9575
        $region74: #{tpu_custom_call.1} parent=43 // pred_check_branch
          %9578 = sbr.rel (%p9576) target = $region76
        $region75: #{tpu_custom_call.1} parent=43 // pred_region
          %v9579 = vld [vmem:[#allocation2] sm:$0xff]
          %v9580 = vrot.slane %v9579, 4
          %v9581 = vadd.f32 %v9579, %v9580
          %v9582 = vrot.slane %v9581, 2
          %v9583 = vadd.f32 %v9581, %v9582
          %v9584 = vrot.slane %v9583, 1
          %v9585 = vadd.f32 %v9583, %v9584
          %v9586 = vrcp.pop 8.0
          %v9587 = vmul.f32 %v9585, %v9586
          %v9588 = vsub.f32 %v9579, %v9587
          %v9589 = vmul.f32 %v9588, %v9588
          %v9590 = vrot.slane %v9589, 4
          %v9591 = vadd.f32 %v9589, %v9590
          %v9592 = vrot.slane %v9591, 2
          %v9593 = vadd.f32 %v9591, %v9592
          %v9594 = vrot.slane %v9593, 1
          %v9595 = vadd.f32 %v9593, %v9594
          %v9596 = vmul.f32 %v9595, %v9586
          %v9597 = vld [vmem:[#allocation8] sm:$0x1]
          %v9598 = vadd.f32 %v9596, 1e-05
          %v9599 = vrsqrt.pop %v9598
          %v9600 = vmul.f32 %v9597, %v9599
          %v9601 = vld [vmem:[#allocation9] sm:$0x1]
          %v9602 = vmul.f32 %v9587, %v9600
          %v9603 = vsub.f32 %v9601, %v9602
          %v9605 = vlaneseq
          %v9606 = vshrl.u32 %v9605, 7
          %v9607 = vsub.s32 0, %v9606
          %v9608 = vrot.slane %v9600, %v9607
          %v9610 = vmul.f32 %v9579, %v9608
          %v9612 = vlaneseq
          %v9613 = vshrl.u32 %v9612, 7
          %v9614 = vsub.s32 0, %v9613
          %v9615 = vrot.slane %v9603, %v9614
          %v9617 = vadd.f32 %v9610, %v9615
          %vm9618 = vcmp.ge.f32.partialorder %v9617, 0.0
          %v9619 = vmul.f32 %v9617, 0.2
          %v9620 = vsel %vm9618, %v9617, %v9619
          %v9621 = vld [vmem:[#allocation11] sm:$0xff]
          %v9622 = vld [vmem:[#allocation11 + $0x8] sm:$0xff]
          %v9623 = vld [vmem:[#allocation11 + $0x10] sm:$0xff]
          %v9624 = vld [vmem:[#allocation11 + $0x18] sm:$0xff]
          %v9625 = vld [vmem:[#allocation11 + $0x20] sm:$0xff]
          %v9626 = vld [vmem:[#allocation11 + $0x28] sm:$0xff]
          %v9627 = vld [vmem:[#allocation11 + $0x30] sm:$0xff]
          %v9628 = vld [vmem:[#allocation11 + $0x38] sm:$0xff]
          %v9629 = vld [vmem:[#allocation11 + $0x40] sm:$0xff]
          %v9630 = vld [vmem:[#allocation11 + $0x48] sm:$0xff]
          %v9631 = vld [vmem:[#allocation11 + $0x50] sm:$0xff]
          %v9632 = vld [vmem:[#allocation11 + $0x58] sm:$0xff]
          %v9633 = vld [vmem:[#allocation11 + $0x60] sm:$0xff]
          %v9634 = vld [vmem:[#allocation11 + $0x68] sm:$0xff]
          %v9635 = vld [vmem:[#allocation11 + $0x70] sm:$0xff]
          %v9636 = vld [vmem:[#allocation11 + $0x78] sm:$0xff]
          %v9637 = vld [vmem:[#allocation12] sm:$0x1]
          %v9639 = vlaneseq
          %v9640 = vshrl.u32 %v9639, 7
          %v9641 = vsub.s32 0, %v9640
          %v9642 = vrot.slane %v9637, %v9641
          %9644 = vmatprep.subr.mxu0 0.0
          %9645 = vmatpush1.msra.mxu0 %v9636
          %9646 = vmatprep.subr.mxu0 0.0
          %9647 = vmatpush1.msra.mxu0 %v9635
          %9648 = vmatprep.subr.mxu0 0.0
          %9649 = vmatpush1.msra.mxu0 %v9634
          %9650 = vmatprep.subr.mxu0 0.0
          %9651 = vmatpush1.msra.mxu0 %v9633
          %9652 = vmatprep.subr.mxu0 0.0
          %9653 = vmatpush1.msra.mxu0 %v9632
          %9654 = vmatprep.subr.mxu0 0.0
          %9655 = vmatpush1.msra.mxu0 %v9631
          %9656 = vmatprep.subr.mxu0 0.0
          %9657 = vmatpush1.msra.mxu0 %v9630
          %9658 = vmatprep.subr.mxu0 0.0
          %9659 = vmatpush1.msra.mxu0 %v9629
          %9660 = vmatprep.subr.mxu0 0.0
          %9661 = vmatpush1.msra.mxu0 %v9628
          %9662 = vmatprep.subr.mxu0 0.0
          %9663 = vmatpush1.msra.mxu0 %v9627
          %9664 = vmatprep.subr.mxu0 0.0
          %9665 = vmatpush1.msra.mxu0 %v9626
          %9666 = vmatprep.subr.mxu0 0.0
          %9667 = vmatpush1.msra.mxu0 %v9625
          %9668 = vmatprep.subr.mxu0 0.0
          %9669 = vmatpush1.msra.mxu0 %v9624
          %9670 = vmatprep.subr.mxu0 0.0
          %9671 = vmatpush1.msra.mxu0 %v9623
          %9672 = vmatprep.subr.mxu0 0.0
          %9673 = vmatpush1.msra.mxu0 %v9622
          %9674 = vmatprep.subr.mxu0 0.0
          %9675 = vmatpush1.msra.mxu0 %v9621
          %9676 = vmatprep.subr.mxu0 0.0
          %9677 = vmatpush2.msra.mxu0 0.0
          %9678 = vmatprep.subr.mxu0 0.0
          %9679 = vmatpush2.msra.mxu0 0.0
          %9680 = vmatprep.subr.mxu0 0.0
          %9681 = vmatpush2.msra.mxu0 0.0
          %9682 = vmatprep.subr.mxu0 0.0
          %9683 = vmatpush2.msra.mxu0 0.0
          %9684 = vmatprep.subr.mxu0 0.0
          %9685 = vmatpush2.msra.mxu0 0.0
          %9686 = vmatprep.subr.mxu0 0.0
          %9687 = vmatpush2.msra.mxu0 0.0
          %9688 = vmatprep.subr.mxu0 0.0
          %9689 = vmatpush2.msra.mxu0 0.0
          %9690 = vmatprep.subr.mxu0 0.0
          %9691 = vmatpush2.msra.mxu0 0.0
          %9692 = vmatprep.subr.mxu0 0.0
          %9693 = vmatpush2.msra.mxu0 0.0
          %9694 = vmatprep.subr.mxu0 0.0
          %9695 = vmatpush2.msra.mxu0 0.0
          %9696 = vmatprep.subr.mxu0 0.0
          %9697 = vmatpush2.msra.mxu0 0.0
          %9698 = vmatprep.subr.mxu0 0.0
          %9699 = vmatpush2.msra.mxu0 0.0
          %9700 = vmatprep.subr.mxu0 0.0
          %9701 = vmatpush2.msra.mxu0 0.0
          %9702 = vmatprep.subr.mxu0 0.0
          %9703 = vmatpush2.msra.mxu0 0.0
          %9704 = vmatprep.subr.mxu0 0.0
          %9705 = vmatpush2.msra.mxu0 0.0
          %9706 = vmatprep.subr.mxu0 0.0
          %9707 = vmatpush2.msra.mxu0 0.0
          %9708 = vmatprep.mubr.f32.mxu0 0.0
          %9709 = vmatmul.mubr.f32.gmra.mxu0 %v9620
          %v9710 = vpop.f32.mrf.mxu0
          %v9711 = vadd.f32 %v9642, %v9710
          %v9712 = vpop.f32.mrf.mxu0
          %9713 = vdwg.mxu0
          %9714 = vst [vmem:[#allocation14] sm:$0xff] %v9711
        $region76: #{tpu_custom_call.1} parent=43 // pred_fallthru
          _
        // Predicated region
        $region77: #{tpu_custom_call.1} parent=43 // pred_check
          %p9715 = pneg %p175
        $region78: #{tpu_custom_call.1} parent=43 // pred_check_branch
          %9717 = sbr.rel (%p9715) target = $region80
        $region79: #{tpu_custom_call.1} parent=43 // pred_region
          %s9719 = ssub.s32 128, 128
          %9720 = vsyncadd [#allocation5], %s9719
          %s9722 = sshll.u32 [#allocation14], 4
          %s9723 = int_to_ptr.vmem [resolvable:$true] %s9722
          %9725 = dma.vmem_to_hbm [thread:$0]  %s9723, 128, %s6, [#allocation5]
        $region80: #{tpu_custom_call.1} parent=43 // pred_fallthru
          _
        // Predicated region
        $region81: #{tpu_custom_call.1} parent=43 // pred_check
          %p9726 = pneg %p175
        $region82: #{tpu_custom_call.1} parent=43 // pred_check_branch
          %9728 = sbr.rel (%p9726) target = $region84
        $region83: #{tpu_custom_call.1} parent=43 // pred_region
          %9729 = dma.done [#allocation5], 128
        $region84: #{tpu_custom_call.1} parent=43 // pred_fallthru
          _
      $region44: #{tpu_custom_call.1} parent=5 // pred_fallthru
        _
      %p9730 = scmp.le.s32.totalorder 2, %s21
      // Predicated region
      $region85: #{tpu_custom_call.1} parent=5 // pred_check
        %p9731 = pneg %p9730
      $region86: #{tpu_custom_call.1} parent=5 // pred_check_branch
        %9733 = sbr.rel (%p9731) target = $region88
      $region87: #{tpu_custom_call.1} parent=5 // pred_region
        %s9734 = ssub.s32 %s21, 2
      $region88: #{tpu_custom_call.1} parent=5 // pred_fallthru
        _
    $region6: #{tpu_custom_call.1} parent=1 // loop_footer
      %s25 = sadd.s32 1, %s21
    $region7: #{tpu_custom_call.1} parent=1 // loop_footer_branch
      %20 = sbr.rel target = $region3
    $region8: #{tpu_custom_call.1} parent=1 // loop_exit
      _
    %9735 = vsyncpa [#allocation4], 1
    %s9736 = scalar_lea.sflag [#allocation4], 1
    %9737 = vsyncpa %s9736, 1
    %9738 = vsyncpa [#allocation7], 1
    %s9739 = scalar_lea.sflag [#allocation7], 1
    %9740 = vsyncpa %s9739, 1
    %9741 = vsyncpa [#allocation10], 1
    %9742 = vsyncpa [#allocation13], 1
    %9743 = vsyncpa [#allocation5], 1
    %s9744 = scalar_lea.sflag [#allocation5], 1
    %9745 = vsyncpa %s9744, 1

</llo_original>
